<compile_context>
chip_gen: v6e
topology: v6e:2x2x1
jax: 0.10.0
libtpu: 0.0.40
codegen_flags: <defaults>
</compile_context>

<pallas_src>
import functools

import jax
import jax.numpy as jnp
from jax import lax
from jax.experimental import pallas as pl
from jax.experimental.pallas import tpu as pltpu

GRID_SIZE = 5
SPLINE_ORDER = 3
NUM_BASES = GRID_SIZE + SPLINE_ORDER            # 8 cubic B-spline basis functions
NUM_CHUNKS = 1 + NUM_BASES                      # SiLU base + 8 spline bases
_H = 2.0 / GRID_SIZE                            # uniform knot spacing
_T0 = -1.0 - SPLINE_ORDER * _H                  # leftmost knot
# Full uniform knot vector (used only by the pure-JAX Cox-de Boor reference).
KNOTS = tuple(-1.0 + (j - SPLINE_ORDER) * _H for j in range(GRID_SIZE + 2 * SPLINE_ORDER + 1))
LANE = 128

CONV1_OUT, CONV2_OUT, NUM_CLASSES = 6, 16, 10
KSIZE = 5

_COMPILER_PARAMS = pltpu.CompilerParams(
    dimension_semantics=("parallel",),
    vmem_limit_bytes=32 * 1024 * 1024,
)


def _round_up(x, m):
    return -(-x // m) * m


# ---------------------------------------------------------------------------
# In-kernel math
# ---------------------------------------------------------------------------
def _silu_and_bases(x):
    """Return [SiLU(x), B0(x), ..., B7(x)] (f32), closed-form uniform cubic B-splines.

    Uses shared knot-cell masks (m == v) and a short select chain per basis:
    11 compares + 4 selects/basis instead of a 4-deep compare+select chain per basis.
    Matches Cox-de Boor with the half-open [t_j, t_{j+1}) convention.
    """
    silu = x * (1.0 / (1.0 + jnp.exp(-x)))
    s = (x - _T0) * (1.0 / _H)
    m = jnp.floor(s)
    u = s - m
    u2 = u * u
    u3 = u2 * u
    w = 1.0 - u
    poly = (
        u3 * (1.0 / 6.0),                                       # active basis j == m
        (-3.0 * u3 + 3.0 * u2 + 3.0 * u + 1.0) * (1.0 / 6.0),   # j == m - 1
        (3.0 * u3 - 6.0 * u2 + 4.0) * (1.0 / 6.0),              # j == m - 2
        w * w * w * (1.0 / 6.0),                                # j == m - 3
    )
    masks = [m == float(v) for v in range(NUM_BASES + SPLINE_ORDER)]   # shared cell masks
    zero = jnp.zeros_like(x)
    parts = [silu]
    for j in range(NUM_BASES):
        bj = zero
        for off in range(SPLINE_ORDER, -1, -1):
            bj = jnp.where(masks[j + off], poly[off], bj)
        parts.append(bj)
    return parts


# ---------------------------------------------------------------------------
# Pallas kernels
# ---------------------------------------------------------------------------
def expand_kernel(x_ref, o_ref):
    """Per-pixel KAN feature expansion: o[s] = [SiLU | B_{s-1}](x), one plane per chunk."""
    x = x_ref[0].astype(jnp.float32)
    parts = _silu_and_bases(x)
    for s in range(NUM_CHUNKS):
        o_ref[s, 0] = parts[s].astype(o_ref.dtype)


def conv_pool_kernel(p_ref, w_ref, o_ref, *, npix, c_out):
    """One image: dense-K MXU matmul + fused 2x2 max-pool + ReLU.

    Patch rows are pre-ordered (quadrant, pooled_row, pooled_col), so the pool is a
    max over four contiguous, 8-row-aligned blocks of the matmul result.
    """
    acc = jnp.dot(p_ref[...], w_ref[...], preferred_element_type=jnp.float32)
    m = jnp.maximum(jnp.maximum(acc[0:npix], acc[npix:2 * npix]),
                    jnp.maximum(acc[2 * npix:3 * npix], acc[3 * npix:4 * npix]))
    m = jnp.maximum(m, 0.0)
    o_ref[0] = m[:, :c_out].astype(o_ref.dtype)


def classifier_kernel(x_ref, w1_ref, w2_ref, w3_ref, o_ref):
    """Fused KANLinear(256,120)->ReLU->KANLinear(120,84)->ReLU->KANLinear(84,10)."""
    def kan_layer(y, w_ref, relu):
        slab = jnp.concatenate(
            [p.astype(jnp.bfloat16) for p in _silu_and_bases(y)], axis=-1)
        out = jnp.dot(slab, w_ref[...], preferred_element_type=jnp.float32)
        return jnp.maximum(out, 0.0) if relu else out

    y = x_ref[...].astype(jnp.float32)
    y = kan_layer(y, w1_ref, True)
    y = kan_layer(y, w2_ref, True)
    y = kan_layer(y, w3_ref, False)
    o_ref[...] = y


# ---------------------------------------------------------------------------
# Wrappers
# ---------------------------------------------------------------------------
def expand_bases(x3):
    """x3: (B, H, W*C) float -> (NUM_CHUNKS, B, H, W*C) bf16 per-pixel features."""
    b, h, wc = x3.shape
    return pl.pallas_call(
        expand_kernel,
        out_shape=jax.ShapeDtypeStruct((NUM_CHUNKS, b, h, wc), jnp.bfloat16),
        grid=(b,),
        in_specs=[pl.BlockSpec((1, h, wc), lambda i: (i, 0, 0))],
        out_specs=pl.BlockSpec((NUM_CHUNKS, 1, h, wc), lambda i: (0, i, 0, 0)),
        compiler_params=_COMPILER_PARAMS,
    )(x3)


def _im2col_expanded(e, ksize):
    """Dense-K im2col over per-pixel features.

    e: (NUM_CHUNKS, B, H, W, C) bf16.  Returns (B*ho*wo, K_pad) bf16 with feature
    order k = s*(C*k*k) + c*(k*k) + di*k + dj (matching pack_conv_weight) and rows
    ordered (b, quadrant, pooled_row, pooled_col) so the conv kernel can fuse the
    2x2 max-pool as a max over four contiguous row blocks.
    """
    # TODO(synk): move this patch gather into the conv kernel (pl.ds row windows over
    # an HBM-resident feature map) to avoid materializing the expanded patch matrix in
    # HBM at large batch sizes.
    s9, b, h, w, c = e.shape
    ho, wo = h - ksize + 1, w - ksize + 1
    hp, wp = ho // 2, wo // 2
    shards = [e[:, :, di:di + ho, dj:dj + wo, :]
              for di in range(ksize) for dj in range(ksize)]
    p = jnp.stack(shards, axis=0)                    # (k*k, 9, B, ho, wo, C)
    p = jnp.transpose(p, (2, 3, 4, 1, 5, 0))         # (B, ho, wo, 9, C, k*k)
    k_real = s9 * c * ksize * ksize
    p = p.reshape(b, hp, 2, wp, 2, k_real)
    p = jnp.transpose(p, (0, 2, 4, 1, 3, 5))         # (B, 2, 2, hp, wp, K)
    p = p.reshape(b * ho * wo, k_real)
    k_pad = _round_up(k_real, LANE)
    if k_pad != k_real:
        p = jnp.pad(p, ((0, 0), (0, k_pad - k_real)))
    return p


def kan_conv_pool_relu(patches, w, batch, ho, wo, c_out):
    """patches: (B*ho*wo, K_pad) bf16, w: (K_pad, 128) bf16 -> (B, (ho//2)*(wo//2), c_out) bf16."""
    rows = ho * wo
    hp, wp = ho // 2, wo // 2
    k_pad = patches.shape[1]
    return pl.pallas_call(
        functools.partial(conv_pool_kernel, npix=hp * wp, c_out=c_out),
        out_shape=jax.ShapeDtypeStruct((batch, hp * wp, c_out), jnp.bfloat16),
        grid=(batch,),
        in_specs=[
            pl.BlockSpec((rows, k_pad), lambda i: (i, 0)),
            # Weight block index is constant across the grid (single-buffering it via
            # pipeline_mode would save one small VMEM copy; left at the default here).
            pl.BlockSpec(w.shape, lambda i: (0, 0)),
        ],
        out_specs=pl.BlockSpec((1, hp * wp, c_out), lambda i: (i, 0, 0)),
        compiler_params=_COMPILER_PARAMS,
    )(patches, w)


def classifier(x, w1, w2, w3, num_classes):
    """Fused fc1->ReLU->fc2->ReLU->fc3.  x: (B, 256) bf16 -> (B, num_classes) f32."""
    n, f = x.shape
    g = max(2, -(-n // 128))                         # >=2 parallel steps (v7x megacore)
    tn = _round_up(-(-n // g), 8)
    n_pad = g * tn
    if n_pad != n:
        x = jnp.pad(x, ((0, n_pad - n), (0, 0)))
    out = pl.pallas_call(
        classifier_kernel,
        out_shape=jax.ShapeDtypeStruct((n_pad, w3.shape[1]), jnp.float32),
        grid=(g,),
        in_specs=[
            pl.BlockSpec((tn, f), lambda i: (i, 0)),
            pl.BlockSpec(w1.shape, lambda i: (0, 0)),
            pl.BlockSpec(w2.shape, lambda i: (0, 0)),
            pl.BlockSpec(w3.shape, lambda i: (0, 0)),
        ],
        out_specs=pl.BlockSpec((tn, w3.shape[1]), lambda i: (i, 0)),
        compiler_params=_COMPILER_PARAMS,
    )(x, w1, w2, w3)
    return out[:n, :num_classes]


# ---------------------------------------------------------------------------
# Parameters (deterministic synthetic init, packed for the kernels)
# ---------------------------------------------------------------------------
def _raw_kan_params(key, in_f, out_f):
    k1, k2, k3 = jax.random.split(key, 3)
    base_w = jax.random.normal(k1, (out_f, in_f), jnp.float32) / jnp.sqrt(in_f)
    spline_w = jax.random.normal(k2, (out_f, in_f, NUM_BASES), jnp.float32) * (0.1 / jnp.sqrt(in_f))
    spline_scaler = 1.0 + 0.1 * jax.random.normal(k3, (out_f, in_f), jnp.float32)
    return {"base": base_w, "spline": spline_w * spline_scaler[..., None]}


def _coeff_matrix(raw):
    """(in_f, NUM_CHUNKS, out_f): chunk 0 = SiLU base weight, chunks 1..8 = scaled splines."""
    base = raw["base"]                               # (O, F)
    spline = raw["spline"]                           # (O, F, 8)
    return jnp.concatenate([base.T[:, None, :], jnp.transpose(spline, (1, 2, 0))], axis=1)


def pack_conv_weight(raw):
    """Dense-K conv weight: row s*F + f, zero-padded to (round_up(9F,128), 128), bf16."""
    coeff = _coeff_matrix(raw)                       # (F, 9, O)
    f, _, o = coeff.shape
    w = jnp.transpose(coeff, (1, 0, 2)).reshape(NUM_CHUNKS * f, o)
    k_pad, o_pad = _round_up(NUM_CHUNKS * f, LANE), _round_up(o, LANE)
    return jnp.pad(w, ((0, k_pad - NUM_CHUNKS * f), (0, o_pad - o))).astype(jnp.bfloat16)


def pack_linear_weight(raw, row_perm=None):
    """Chunk-major linear weight: rows [base | B0 | ... | B7], each chunk zero-padded to 128.

    Zero rows at padded input positions keep padded activation lanes (whose basis
    values are nonzero) from contributing — required invariant.
    """
    coeff = _coeff_matrix(raw)                       # (F, 9, O)
    if row_perm is not None:
        coeff = coeff[jnp.asarray(row_perm)]
    f, _, o = coeff.shape
    f_pad, o_pad = _round_up(f, LANE), _round_up(o, LANE)
    w = jnp.zeros((NUM_CHUNKS * f_pad, o_pad), jnp.float32)
    for s in range(NUM_CHUNKS):
        w = w.at[s * f_pad:s * f_pad + f, :o].set(coeff[:, s, :])
    return w.astype(jnp.bfloat16)


def _fc1_row_perm():
    """Fold torch's NCHW x.view(-1, 256) into fc1's rows (our flat order is (h*4+w)*16+c)."""
    perm = []
    for j in range(CONV2_OUT * 4 * 4):
        spatial, c = divmod(j, CONV2_OUT)            # ours: (h*4+w)*C + c
        perm.append(c * (4 * 4) + spatial)           # torch: c*(4*4) + h*4 + w
    return perm


def init_params(key):
    ks = jax.random.split(key, 5)
    raw = {
        "conv1": _raw_kan_params(ks[0], 1 * KSIZE * KSIZE, CONV1_OUT),
        "conv2": _raw_kan_params(ks[1], CONV1_OUT * KSIZE * KSIZE, CONV2_OUT),
        "fc1": _raw_kan_params(ks[2], CONV2_OUT * 4 * 4, 120),
        "fc2": _raw_kan_params(ks[3], 120, 84),
        "fc3": _raw_kan_params(ks[4], 84, NUM_CLASSES),
    }
    return {
        "raw": raw,                                  # used only by the pure-JAX reference
        "conv1": pack_conv_weight(raw["conv1"]),
        "conv2": pack_conv_weight(raw["conv2"]),
        "fc1": pack_linear_weight(raw["fc1"], row_perm=_fc1_row_perm()),
        "fc2": pack_linear_weight(raw["fc2"]),
        "fc3": pack_linear_weight(raw["fc3"]),
    }


# ---------------------------------------------------------------------------
# Forward pass (matches SimpleConvKAN.forward)
# ---------------------------------------------------------------------------
def simple_conv_kan_forward(params, x):
    """x: (B, 1, 28, 28) f32 NCHW -> (B, 10) f32."""
    b = x.shape[0]
    # conv1 -> pool -> relu
    e1 = expand_bases(x[:, 0])                                            # (9, B, 28, 28) bf16
    p1 = _im2col_expanded(e1[..., None], KSIZE)                           # (B*576, 256) bf16
    a1 = kan_conv_pool_relu(p1, params["conv1"], b, 24, 24, CONV1_OUT)    # (B, 144, 6) bf16
    # conv2 -> pool -> relu
    e2 = expand_bases(a1.reshape(b, 12, 12 * CONV1_OUT))                  # (9, B, 12, 72) bf16
    e2 = e2.reshape(NUM_CHUNKS, b, 12, 12, CONV1_OUT)
    p2 = _im2col_expanded(e2, KSIZE)                                      # (B*64, 1408) bf16
    a2 = kan_conv_pool_relu(p2, params["conv2"], b, 8, 8, CONV2_OUT)      # (B, 16, 16) bf16
    # classifier (NCHW flatten folded into fc1's packed weight rows)
    feats = a2.reshape(b, CONV2_OUT * 4 * 4)                              # (B, 256) bf16, (h,w,c) order
    return classifier(feats, params["fc1"], params["fc2"], params["fc3"], NUM_CLASSES)


# ---------------------------------------------------------------------------
# Pure-JAX reference (Cox-de Boor basis, torch-order unfold, raw coefficients)
# ---------------------------------------------------------------------------
def _ref_features(x):
    """SiLU + Cox-de Boor cubic B-spline bases, bf16-rounded like the kernel path."""
    silu = x * (1.0 / (1.0 + jnp.exp(-x)))
    m = len(KNOTS) - 1
    bases = [jnp.where((x >= KNOTS[j]) & (x < KNOTS[j + 1]), 1.0, 0.0) for j in range(m)]
    for k in range(1, SPLINE_ORDER + 1):
        bases = [
            (x - KNOTS[j]) / (KNOTS[j + k] - KNOTS[j]) * bases[j]
            + (KNOTS[j + k + 1] - x) / (KNOTS[j + k + 1] - KNOTS[j + 1]) * bases[j + 1]
            for j in range(m - k)
        ]
    feats = [silu] + bases
    return [f.astype(jnp.bfloat16).astype(jnp.float32) for f in feats]


def _ref_kan_linear(x, raw):
    feats = _ref_features(x)
    base = raw["base"].astype(jnp.bfloat16).astype(jnp.float32)
    spline = raw["spline"].astype(jnp.bfloat16).astype(jnp.float32)
    y = jnp.dot(feats[0], base.T, precision=lax.Precision.HIGHEST)
    for s in range(NUM_BASES):
        y = y + jnp.dot(feats[1 + s], spline[:, :, s].T, precision=lax.Precision.HIGHEST)
    return y


def _ref_conv_pool_relu(x_nchw, raw, k):
    b, c, h, w = x_nchw.shape
    ho, wo = h - k + 1, w - k + 1
    cols = []
    for ci in range(c):
        for di in range(k):
            for dj in range(k):
                cols.append(x_nchw[:, ci, di:di + ho, dj:dj + wo])
    p = jnp.stack(cols, axis=-1).reshape(b * ho * wo, c * k * k)          # torch unfold order
    y = _ref_kan_linear(p, raw).reshape(b, ho, wo, -1)
    y = jnp.max(y.reshape(b, ho // 2, 2, wo // 2, 2, y.shape[-1]), axis=(2, 4))
    y = jnp.maximum(y, 0.0)
    return y.astype(jnp.bfloat16).astype(jnp.float32)                     # NHWC, stage rounding


def ref_forward(params, x):
    raw = params["raw"]
    b = x.shape[0]
    a1 = _ref_conv_pool_relu(x, raw["conv1"], KSIZE)                                  # (B,12,12,6)
    a2 = _ref_conv_pool_relu(jnp.transpose(a1, (0, 3, 1, 2)), raw["conv2"], KSIZE)    # (B,4,4,16)
    f = jnp.transpose(a2, (0, 3, 1, 2)).reshape(b, CONV2_OUT * 4 * 4)                 # NCHW flatten
    h1 = jnp.maximum(_ref_kan_linear(f, raw["fc1"]), 0.0)
    h2 = jnp.maximum(_ref_kan_linear(h1, raw["fc2"]), 0.0)
    return _ref_kan_linear(h2, raw["fc3"])


if __name__ == "__main__":
    key = jax.random.PRNGKey(0)
    k_x, k_p = jax.random.split(key)
    # MNIST-shaped input is required by the 16*4*4 flatten; batch kept small.
    x = jax.random.normal(k_x, (2, 1, 28, 28), dtype=jnp.float32)
    params = init_params(k_p)

    fwd = jax.jit(simple_conv_kan_forward)
    out = fwd(params, x)
    jax.block_until_ready(out)
    assert out.shape == (2, NUM_CLASSES)
    assert bool(jnp.all(jnp.isfinite(out)))

    ref = jax.jit(ref_forward)(params, x)
    jax.block_until_ready(ref)
    assert bool(jnp.allclose(out, ref, rtol=2e-2, atol=2e-2))
    print("KERNEL_OK")
</pallas_src>

<mosaic_0001>
module attributes {stable_mosaic.version = 11 : i64} {
  func.func @expand_kernel(%arg0: i32, %arg1: memref<1x28x28xf32, #tpu.memory_space<vmem>>, %arg2: memref<9x1x28x28xbf16, #tpu.memory_space<vmem>>) attributes {dimension_semantics = [#tpu.dimension_semantics<parallel>], iteration_bounds = array<i64: 2>, scalar_prefetch = 0 : i64, scratch_operands = 0 : i64, tpu.core_type = #tpu.core_type<tc>, window_params = [{transform_indices = @transform_0, window_bounds = array<i64: 1, 28, 28>}, {transform_indices = @transform_1, window_bounds = array<i64: 9, 1, 28, 28>}]} {
    %c0 = arith.constant 0 : index
    %c0_0 = arith.constant 0 : index
    %c0_1 = arith.constant 0 : index
    %0 = vector.load %arg1[%c0, %c0_0, %c0_1] : memref<1x28x28xf32, #tpu.memory_space<vmem>>, vector<1x28x28xf32>
    %1 = vector.shape_cast %0 : vector<1x28x28xf32> to vector<28x28xf32>
    %cst = arith.constant 0.000000e+00 : f32
    %2 = vector.broadcast %cst : f32 to vector<28x28xf32>
    %3 = arith.subf %2, %1 : vector<28x28xf32>
    %4 = math.exp %3 : vector<28x28xf32>
    %cst_2 = arith.constant 1.000000e+00 : f32
    %5 = vector.broadcast %cst_2 : f32 to vector<28x28xf32>
    %6 = arith.addf %5, %4 : vector<28x28xf32>
    %cst_3 = arith.constant 1.000000e+00 : f32
    %7 = vector.broadcast %cst_3 : f32 to vector<28x28xf32>
    %8 = arith.divf %7, %6 : vector<28x28xf32>
    %9 = arith.mulf %1, %8 : vector<28x28xf32>
    %cst_4 = arith.constant -2.200000e+00 : f32
    %10 = vector.broadcast %cst_4 : f32 to vector<28x28xf32>
    %11 = arith.subf %1, %10 : vector<28x28xf32>
    %cst_5 = arith.constant 2.500000e+00 : f32
    %12 = vector.broadcast %cst_5 : f32 to vector<28x28xf32>
    %13 = arith.mulf %11, %12 : vector<28x28xf32>
    %14 = math.floor %13 : vector<28x28xf32>
    %15 = arith.subf %13, %14 : vector<28x28xf32>
    %16 = arith.mulf %15, %15 : vector<28x28xf32>
    %17 = arith.mulf %16, %15 : vector<28x28xf32>
    %cst_6 = arith.constant 1.000000e+00 : f32
    %18 = vector.broadcast %cst_6 : f32 to vector<28x28xf32>
    %19 = arith.subf %18, %15 : vector<28x28xf32>
    %cst_7 = arith.constant 0.166666672 : f32
    %20 = vector.broadcast %cst_7 : f32 to vector<28x28xf32>
    %21 = arith.mulf %17, %20 : vector<28x28xf32>
    %cst_8 = arith.constant -3.000000e+00 : f32
    %22 = vector.broadcast %cst_8 : f32 to vector<28x28xf32>
    %23 = arith.mulf %22, %17 : vector<28x28xf32>
    %cst_9 = arith.constant 3.000000e+00 : f32
    %24 = vector.broadcast %cst_9 : f32 to vector<28x28xf32>
    %25 = arith.mulf %24, %16 : vector<28x28xf32>
    %26 = arith.addf %23, %25 : vector<28x28xf32>
    %cst_10 = arith.constant 3.000000e+00 : f32
    %27 = vector.broadcast %cst_10 : f32 to vector<28x28xf32>
    %28 = arith.mulf %27, %15 : vector<28x28xf32>
    %29 = arith.addf %26, %28 : vector<28x28xf32>
    %cst_11 = arith.constant 1.000000e+00 : f32
    %30 = vector.broadcast %cst_11 : f32 to vector<28x28xf32>
    %31 = arith.addf %29, %30 : vector<28x28xf32>
    %cst_12 = arith.constant 0.166666672 : f32
    %32 = vector.broadcast %cst_12 : f32 to vector<28x28xf32>
    %33 = arith.mulf %31, %32 : vector<28x28xf32>
    %cst_13 = arith.constant 3.000000e+00 : f32
    %34 = vector.broadcast %cst_13 : f32 to vector<28x28xf32>
    %35 = arith.mulf %34, %17 : vector<28x28xf32>
    %cst_14 = arith.constant 6.000000e+00 : f32
    %36 = vector.broadcast %cst_14 : f32 to vector<28x28xf32>
    %37 = arith.mulf %36, %16 : vector<28x28xf32>
    %38 = arith.subf %35, %37 : vector<28x28xf32>
    %cst_15 = arith.constant 4.000000e+00 : f32
    %39 = vector.broadcast %cst_15 : f32 to vector<28x28xf32>
    %40 = arith.addf %38, %39 : vector<28x28xf32>
    %cst_16 = arith.constant 0.166666672 : f32
    %41 = vector.broadcast %cst_16 : f32 to vector<28x28xf32>
    %42 = arith.mulf %40, %41 : vector<28x28xf32>
    %43 = arith.mulf %19, %19 : vector<28x28xf32>
    %44 = arith.mulf %43, %19 : vector<28x28xf32>
    %cst_17 = arith.constant 0.166666672 : f32
    %45 = vector.broadcast %cst_17 : f32 to vector<28x28xf32>
    %46 = arith.mulf %44, %45 : vector<28x28xf32>
    %cst_18 = arith.constant 0.000000e+00 : f32
    %47 = vector.broadcast %cst_18 : f32 to vector<28x28xf32>
    %48 = arith.cmpf oeq, %14, %47 : vector<28x28xf32>
    %cst_19 = arith.constant 1.000000e+00 : f32
    %49 = vector.broadcast %cst_19 : f32 to vector<28x28xf32>
    %50 = arith.cmpf oeq, %14, %49 : vector<28x28xf32>
    %cst_20 = arith.constant 2.000000e+00 : f32
    %51 = vector.broadcast %cst_20 : f32 to vector<28x28xf32>
    %52 = arith.cmpf oeq, %14, %51 : vector<28x28xf32>
    %cst_21 = arith.constant 3.000000e+00 : f32
    %53 = vector.broadcast %cst_21 : f32 to vector<28x28xf32>
    %54 = arith.cmpf oeq, %14, %53 : vector<28x28xf32>
    %cst_22 = arith.constant 4.000000e+00 : f32
    %55 = vector.broadcast %cst_22 : f32 to vector<28x28xf32>
    %56 = arith.cmpf oeq, %14, %55 : vector<28x28xf32>
    %cst_23 = arith.constant 5.000000e+00 : f32
    %57 = vector.broadcast %cst_23 : f32 to vector<28x28xf32>
    %58 = arith.cmpf oeq, %14, %57 : vector<28x28xf32>
    %cst_24 = arith.constant 6.000000e+00 : f32
    %59 = vector.broadcast %cst_24 : f32 to vector<28x28xf32>
    %60 = arith.cmpf oeq, %14, %59 : vector<28x28xf32>
    %cst_25 = arith.constant 7.000000e+00 : f32
    %61 = vector.broadcast %cst_25 : f32 to vector<28x28xf32>
    %62 = arith.cmpf oeq, %14, %61 : vector<28x28xf32>
    %cst_26 = arith.constant 8.000000e+00 : f32
    %63 = vector.broadcast %cst_26 : f32 to vector<28x28xf32>
    %64 = arith.cmpf oeq, %14, %63 : vector<28x28xf32>
    %cst_27 = arith.constant 9.000000e+00 : f32
    %65 = vector.broadcast %cst_27 : f32 to vector<28x28xf32>
    %66 = arith.cmpf oeq, %14, %65 : vector<28x28xf32>
    %cst_28 = arith.constant 1.000000e+01 : f32
    %67 = vector.broadcast %cst_28 : f32 to vector<28x28xf32>
    %68 = arith.cmpf oeq, %14, %67 : vector<28x28xf32>
    %cst_29 = arith.constant 0.000000e+00 : f32
    %69 = vector.broadcast %cst_29 : f32 to vector<28x28xf32>
    %70 = arith.select %54, %46, %69 : vector<28x28xi1>, vector<28x28xf32>
    %71 = arith.select %52, %42, %70 : vector<28x28xi1>, vector<28x28xf32>
    %72 = arith.select %50, %33, %71 : vector<28x28xi1>, vector<28x28xf32>
    %73 = arith.select %48, %21, %72 : vector<28x28xi1>, vector<28x28xf32>
    %74 = arith.select %56, %46, %69 : vector<28x28xi1>, vector<28x28xf32>
    %75 = arith.select %54, %42, %74 : vector<28x28xi1>, vector<28x28xf32>
    %76 = arith.select %52, %33, %75 : vector<28x28xi1>, vector<28x28xf32>
    %77 = arith.select %50, %21, %76 : vector<28x28xi1>, vector<28x28xf32>
    %78 = arith.select %58, %46, %69 : vector<28x28xi1>, vector<28x28xf32>
    %79 = arith.select %56, %42, %78 : vector<28x28xi1>, vector<28x28xf32>
    %80 = arith.select %54, %33, %79 : vector<28x28xi1>, vector<28x28xf32>
    %81 = arith.select %52, %21, %80 : vector<28x28xi1>, vector<28x28xf32>
    %82 = arith.select %60, %46, %69 : vector<28x28xi1>, vector<28x28xf32>
    %83 = arith.select %58, %42, %82 : vector<28x28xi1>, vector<28x28xf32>
    %84 = arith.select %56, %33, %83 : vector<28x28xi1>, vector<28x28xf32>
    %85 = arith.select %54, %21, %84 : vector<28x28xi1>, vector<28x28xf32>
    %86 = arith.select %62, %46, %69 : vector<28x28xi1>, vector<28x28xf32>
    %87 = arith.select %60, %42, %86 : vector<28x28xi1>, vector<28x28xf32>
    %88 = arith.select %58, %33, %87 : vector<28x28xi1>, vector<28x28xf32>
    %89 = arith.select %56, %21, %88 : vector<28x28xi1>, vector<28x28xf32>
    %90 = arith.select %64, %46, %69 : vector<28x28xi1>, vector<28x28xf32>
    %91 = arith.select %62, %42, %90 : vector<28x28xi1>, vector<28x28xf32>
    %92 = arith.select %60, %33, %91 : vector<28x28xi1>, vector<28x28xf32>
    %93 = arith.select %58, %21, %92 : vector<28x28xi1>, vector<28x28xf32>
    %94 = arith.select %66, %46, %69 : vector<28x28xi1>, vector<28x28xf32>
    %95 = arith.select %64, %42, %94 : vector<28x28xi1>, vector<28x28xf32>
    %96 = arith.select %62, %33, %95 : vector<28x28xi1>, vector<28x28xf32>
    %97 = arith.select %60, %21, %96 : vector<28x28xi1>, vector<28x28xf32>
    %98 = arith.select %68, %46, %69 : vector<28x28xi1>, vector<28x28xf32>
    %99 = arith.select %66, %42, %98 : vector<28x28xi1>, vector<28x28xf32>
    %100 = arith.select %64, %33, %99 : vector<28x28xi1>, vector<28x28xf32>
    %101 = arith.select %62, %21, %100 : vector<28x28xi1>, vector<28x28xf32>
    %102 = arith.truncf %9 : vector<28x28xf32> to vector<28x28xbf16>
    %c0_30 = arith.constant 0 : index
    %c0_31 = arith.constant 0 : index
    %c0_32 = arith.constant 0 : index
    %c0_33 = arith.constant 0 : index
    %103 = vector.load %arg2[%c0_30, %c0_31, %c0_32, %c0_33] : memref<9x1x28x28xbf16, #tpu.memory_space<vmem>>, vector<1x1x28x28xbf16>
    %104 = vector.shape_cast %103 : vector<1x1x28x28xbf16> to vector<28x28xbf16>
    %105 = vector.shape_cast %102 : vector<28x28xbf16> to vector<1x1x28x28xbf16>
    tpu.vector_store %arg2[%c0_30, %c0_31, %c0_32, %c0_33], %105 {strides = array<i32>} : memref<9x1x28x28xbf16, #tpu.memory_space<vmem>>, vector<1x1x28x28xbf16>,
    %106 = arith.truncf %73 : vector<28x28xf32> to vector<28x28xbf16>
    %c1 = arith.constant 1 : index
    %c0_34 = arith.constant 0 : index
    %c0_35 = arith.constant 0 : index
    %c0_36 = arith.constant 0 : index
    %107 = vector.load %arg2[%c1, %c0_34, %c0_35, %c0_36] : memref<9x1x28x28xbf16, #tpu.memory_space<vmem>>, vector<1x1x28x28xbf16>
    %108 = vector.shape_cast %107 : vector<1x1x28x28xbf16> to vector<28x28xbf16>
    %109 = vector.shape_cast %106 : vector<28x28xbf16> to vector<1x1x28x28xbf16>
    tpu.vector_store %arg2[%c1, %c0_34, %c0_35, %c0_36], %109 {strides = array<i32>} : memref<9x1x28x28xbf16, #tpu.memory_space<vmem>>, vector<1x1x28x28xbf16>,
    %110 = arith.truncf %77 : vector<28x28xf32> to vector<28x28xbf16>
    %c2 = arith.constant 2 : index
    %c0_37 = arith.constant 0 : index
    %c0_38 = arith.constant 0 : index
    %c0_39 = arith.constant 0 : index
    %111 = vector.load %arg2[%c2, %c0_37, %c0_38, %c0_39] : memref<9x1x28x28xbf16, #tpu.memory_space<vmem>>, vector<1x1x28x28xbf16>
    %112 = vector.shape_cast %111 : vector<1x1x28x28xbf16> to vector<28x28xbf16>
    %113 = vector.shape_cast %110 : vector<28x28xbf16> to vector<1x1x28x28xbf16>
    tpu.vector_store %arg2[%c2, %c0_37, %c0_38, %c0_39], %113 {strides = array<i32>} : memref<9x1x28x28xbf16, #tpu.memory_space<vmem>>, vector<1x1x28x28xbf16>,
    %114 = arith.truncf %81 : vector<28x28xf32> to vector<28x28xbf16>
    %c3 = arith.constant 3 : index
    %c0_40 = arith.constant 0 : index
    %c0_41 = arith.constant 0 : index
    %c0_42 = arith.constant 0 : index
    %115 = vector.load %arg2[%c3, %c0_40, %c0_41, %c0_42] : memref<9x1x28x28xbf16, #tpu.memory_space<vmem>>, vector<1x1x28x28xbf16>
    %116 = vector.shape_cast %115 : vector<1x1x28x28xbf16> to vector<28x28xbf16>
    %117 = vector.shape_cast %114 : vector<28x28xbf16> to vector<1x1x28x28xbf16>
    tpu.vector_store %arg2[%c3, %c0_40, %c0_41, %c0_42], %117 {strides = array<i32>} : memref<9x1x28x28xbf16, #tpu.memory_space<vmem>>, vector<1x1x28x28xbf16>,
    %118 = arith.truncf %85 : vector<28x28xf32> to vector<28x28xbf16>
    %c4 = arith.constant 4 : index
    %c0_43 = arith.constant 0 : index
    %c0_44 = arith.constant 0 : index
    %c0_45 = arith.constant 0 : index
    %119 = vector.load %arg2[%c4, %c0_43, %c0_44, %c0_45] : memref<9x1x28x28xbf16, #tpu.memory_space<vmem>>, vector<1x1x28x28xbf16>
    %120 = vector.shape_cast %119 : vector<1x1x28x28xbf16> to vector<28x28xbf16>
    %121 = vector.shape_cast %118 : vector<28x28xbf16> to vector<1x1x28x28xbf16>
    tpu.vector_store %arg2[%c4, %c0_43, %c0_44, %c0_45], %121 {strides = array<i32>} : memref<9x1x28x28xbf16, #tpu.memory_space<vmem>>, vector<1x1x28x28xbf16>,
    %122 = arith.truncf %89 : vector<28x28xf32> to vector<28x28xbf16>
    %c5 = arith.constant 5 : index
    %c0_46 = arith.constant 0 : index
    %c0_47 = arith.constant 0 : index
    %c0_48 = arith.constant 0 : index
    %123 = vector.load %arg2[%c5, %c0_46, %c0_47, %c0_48] : memref<9x1x28x28xbf16, #tpu.memory_space<vmem>>, vector<1x1x28x28xbf16>
    %124 = vector.shape_cast %123 : vector<1x1x28x28xbf16> to vector<28x28xbf16>
    %125 = vector.shape_cast %122 : vector<28x28xbf16> to vector<1x1x28x28xbf16>
    tpu.vector_store %arg2[%c5, %c0_46, %c0_47, %c0_48], %125 {strides = array<i32>} : memref<9x1x28x28xbf16, #tpu.memory_space<vmem>>, vector<1x1x28x28xbf16>,
    %126 = arith.truncf %93 : vector<28x28xf32> to vector<28x28xbf16>
    %c6 = arith.constant 6 : index
    %c0_49 = arith.constant 0 : index
    %c0_50 = arith.constant 0 : index
    %c0_51 = arith.constant 0 : index
    %127 = vector.load %arg2[%c6, %c0_49, %c0_50, %c0_51] : memref<9x1x28x28xbf16, #tpu.memory_space<vmem>>, vector<1x1x28x28xbf16>
    %128 = vector.shape_cast %127 : vector<1x1x28x28xbf16> to vector<28x28xbf16>
    %129 = vector.shape_cast %126 : vector<28x28xbf16> to vector<1x1x28x28xbf16>
    tpu.vector_store %arg2[%c6, %c0_49, %c0_50, %c0_51], %129 {strides = array<i32>} : memref<9x1x28x28xbf16, #tpu.memory_space<vmem>>, vector<1x1x28x28xbf16>,
    %130 = arith.truncf %97 : vector<28x28xf32> to vector<28x28xbf16>
    %c7 = arith.constant 7 : index
    %c0_52 = arith.constant 0 : index
    %c0_53 = arith.constant 0 : index
    %c0_54 = arith.constant 0 : index
    %131 = vector.load %arg2[%c7, %c0_52, %c0_53, %c0_54] : memref<9x1x28x28xbf16, #tpu.memory_space<vmem>>, vector<1x1x28x28xbf16>
    %132 = vector.shape_cast %131 : vector<1x1x28x28xbf16> to vector<28x28xbf16>
    %133 = vector.shape_cast %130 : vector<28x28xbf16> to vector<1x1x28x28xbf16>
    tpu.vector_store %arg2[%c7, %c0_52, %c0_53, %c0_54], %133 {strides = array<i32>} : memref<9x1x28x28xbf16, #tpu.memory_space<vmem>>, vector<1x1x28x28xbf16>,
    %134 = arith.truncf %101 : vector<28x28xf32> to vector<28x28xbf16>
    %c8 = arith.constant 8 : index
    %c0_55 = arith.constant 0 : index
    %c0_56 = arith.constant 0 : index
    %c0_57 = arith.constant 0 : index
    %135 = vector.load %arg2[%c8, %c0_55, %c0_56, %c0_57] : memref<9x1x28x28xbf16, #tpu.memory_space<vmem>>, vector<1x1x28x28xbf16>
    %136 = vector.shape_cast %135 : vector<1x1x28x28xbf16> to vector<28x28xbf16>
    %137 = vector.shape_cast %134 : vector<28x28xbf16> to vector<1x1x28x28xbf16>
    tpu.vector_store %arg2[%c8, %c0_55, %c0_56, %c0_57], %137 {strides = array<i32>} : memref<9x1x28x28xbf16, #tpu.memory_space<vmem>>, vector<1x1x28x28xbf16>,
    return
  }
  func.func @transform_0(%arg0: i32) -> (i32, i32, i32) {
    %c0_i32 = arith.constant 0 : i32
    %c0_i32_0 = arith.constant 0 : i32
    %c0_i32_1 = arith.constant 0 : i32
    return %arg0, %c0_i32, %c0_i32_0 : i32, i32, i32
  }
  func.func @transform_1(%arg0: i32) -> (i32, i32, i32, i32) {
    %c0_i32 = arith.constant 0 : i32
    %c0_i32_0 = arith.constant 0 : i32
    %c0_i32_1 = arith.constant 0 : i32
    %c0_i32_2 = arith.constant 0 : i32
    return %c0_i32, %arg0, %c0_i32_0, %c0_i32_1 : i32, i32, i32, i32
  }
}

module attributes {stable_mosaic.version = 11 : i64} {
  func.func @conv_pool_kernel(%arg0: i32, %arg1: memref<576x256xbf16, #tpu.memory_space<vmem>>, %arg2: memref<256x128xbf16, #tpu.memory_space<vmem>>, %arg3: memref<1x144x6xbf16, #tpu.memory_space<vmem>>) attributes {dimension_semantics = [#tpu.dimension_semantics<parallel>], iteration_bounds = array<i64: 2>, scalar_prefetch = 0 : i64, scratch_operands = 0 : i64, tpu.core_type = #tpu.core_type<tc>, window_params = [{transform_indices = @transform_0, window_bounds = array<i64: 576, 256>}, {pipeline_mode = #tpu.pipeline_mode<synchronous>, transform_indices = @transform_1, window_bounds = array<i64: 256, 128>}, {transform_indices = @transform_2, window_bounds = array<i64: 1, 144, 6>}]} {
    %c0 = arith.constant 0 : index
    %c0_0 = arith.constant 0 : index
    %0 = vector.load %arg1[%c0, %c0_0] : memref<576x256xbf16, #tpu.memory_space<vmem>>, vector<576x256xbf16>
    %c0_1 = arith.constant 0 : index
    %c0_2 = arith.constant 0 : index
    %1 = vector.load %arg2[%c0_1, %c0_2] : memref<256x128xbf16, #tpu.memory_space<vmem>>, vector<256x128xbf16>
    %cst = arith.constant dense<0.000000e+00> : vector<576x128xf32>
    %2 = tpu.matmul %0, %1, %cst {dimension_numbers = #tpu.dot_dimension_numbers<[1], [0], [0], [1], [0, 0, 1, 1], [], []>} : vector<576x256xbf16>, vector<256x128xbf16>, vector<576x128xf32> -> vector<576x128xf32>
    %3 = vector.extract_strided_slice %2 {offsets = [0, 0], sizes = [144, 128], strides = [1, 1]} : vector<576x128xf32> to vector<144x128xf32>
    %4 = vector.extract_strided_slice %2 {offsets = [144, 0], sizes = [144, 128], strides = [1, 1]} : vector<576x128xf32> to vector<144x128xf32>
    %5 = arith.maximumf %3, %4 : vector<144x128xf32>
    %6 = vector.extract_strided_slice %2 {offsets = [288, 0], sizes = [144, 128], strides = [1, 1]} : vector<576x128xf32> to vector<144x128xf32>
    %7 = vector.extract_strided_slice %2 {offsets = [432, 0], sizes = [144, 128], strides = [1, 1]} : vector<576x128xf32> to vector<144x128xf32>
    %8 = arith.maximumf %6, %7 : vector<144x128xf32>
    %9 = arith.maximumf %5, %8 : vector<144x128xf32>
    %cst_3 = arith.constant 0.000000e+00 : f32
    %10 = vector.broadcast %cst_3 : f32 to vector<144x128xf32>
    %11 = arith.maximumf %9, %10 : vector<144x128xf32>
    %12 = vector.extract_strided_slice %11 {offsets = [0, 0], sizes = [144, 6], strides = [1, 1]} : vector<144x128xf32> to vector<144x6xf32>
    %13 = arith.truncf %12 : vector<144x6xf32> to vector<144x6xbf16>
    %c0_4 = arith.constant 0 : index
    %c0_5 = arith.constant 0 : index
    %c0_6 = arith.constant 0 : index
    %14 = vector.load %arg3[%c0_4, %c0_5, %c0_6] : memref<1x144x6xbf16, #tpu.memory_space<vmem>>, vector<1x144x6xbf16>
    %15 = vector.shape_cast %14 : vector<1x144x6xbf16> to vector<144x6xbf16>
    %16 = vector.shape_cast %13 : vector<144x6xbf16> to vector<1x144x6xbf16>
    tpu.vector_store %arg3[%c0_4, %c0_5, %c0_6], %16 {strides = array<i32>} : memref<1x144x6xbf16, #tpu.memory_space<vmem>>, vector<1x144x6xbf16>,
    return
  }
  func.func @transform_0(%arg0: i32) -> (i32, i32) {
    %c0_i32 = arith.constant 0 : i32
    %c0_i32_0 = arith.constant 0 : i32
    return %arg0, %c0_i32 : i32, i32
  }
  func.func @transform_1(%arg0: i32) -> (i32, i32) {
    %c0_i32 = arith.constant 0 : i32
    %c0_i32_0 = arith.constant 0 : i32
    %c0_i32_1 = arith.constant 0 : i32
    return %c0_i32, %c0_i32_0 : i32, i32
  }
  func.func @transform_2(%arg0: i32) -> (i32, i32, i32) {
    %c0_i32 = arith.constant 0 : i32
    %c0_i32_0 = arith.constant 0 : i32
    %c0_i32_1 = arith.constant 0 : i32
    return %arg0, %c0_i32, %c0_i32_0 : i32, i32, i32
  }
}

module attributes {stable_mosaic.version = 11 : i64} {
  func.func @expand_kernel(%arg0: i32, %arg1: memref<1x12x72xbf16, #tpu.memory_space<vmem>>, %arg2: memref<9x1x12x72xbf16, #tpu.memory_space<vmem>>) attributes {dimension_semantics = [#tpu.dimension_semantics<parallel>], iteration_bounds = array<i64: 2>, scalar_prefetch = 0 : i64, scratch_operands = 0 : i64, tpu.core_type = #tpu.core_type<tc>, window_params = [{transform_indices = @transform_0, window_bounds = array<i64: 1, 12, 72>}, {transform_indices = @transform_1, window_bounds = array<i64: 9, 1, 12, 72>}]} {
    %c0 = arith.constant 0 : index
    %c0_0 = arith.constant 0 : index
    %c0_1 = arith.constant 0 : index
    %0 = vector.load %arg1[%c0, %c0_0, %c0_1] : memref<1x12x72xbf16, #tpu.memory_space<vmem>>, vector<1x12x72xbf16>
    %1 = vector.shape_cast %0 : vector<1x12x72xbf16> to vector<12x72xbf16>
    %2 = arith.extf %1 : vector<12x72xbf16> to vector<12x72xf32>
    %cst = arith.constant 0.000000e+00 : f32
    %3 = vector.broadcast %cst : f32 to vector<12x72xf32>
    %4 = arith.subf %3, %2 : vector<12x72xf32>
    %5 = math.exp %4 : vector<12x72xf32>
    %cst_2 = arith.constant 1.000000e+00 : f32
    %6 = vector.broadcast %cst_2 : f32 to vector<12x72xf32>
    %7 = arith.addf %6, %5 : vector<12x72xf32>
    %cst_3 = arith.constant 1.000000e+00 : f32
    %8 = vector.broadcast %cst_3 : f32 to vector<12x72xf32>
    %9 = arith.divf %8, %7 : vector<12x72xf32>
    %10 = arith.mulf %2, %9 : vector<12x72xf32>
    %cst_4 = arith.constant -2.200000e+00 : f32
    %11 = vector.broadcast %cst_4 : f32 to vector<12x72xf32>
    %12 = arith.subf %2, %11 : vector<12x72xf32>
    %cst_5 = arith.constant 2.500000e+00 : f32
    %13 = vector.broadcast %cst_5 : f32 to vector<12x72xf32>
    %14 = arith.mulf %12, %13 : vector<12x72xf32>
    %15 = math.floor %14 : vector<12x72xf32>
    %16 = arith.subf %14, %15 : vector<12x72xf32>
    %17 = arith.mulf %16, %16 : vector<12x72xf32>
    %18 = arith.mulf %17, %16 : vector<12x72xf32>
    %cst_6 = arith.constant 1.000000e+00 : f32
    %19 = vector.broadcast %cst_6 : f32 to vector<12x72xf32>
    %20 = arith.subf %19, %16 : vector<12x72xf32>
    %cst_7 = arith.constant 0.166666672 : f32
    %21 = vector.broadcast %cst_7 : f32 to vector<12x72xf32>
    %22 = arith.mulf %18, %21 : vector<12x72xf32>
    %cst_8 = arith.constant -3.000000e+00 : f32
    %23 = vector.broadcast %cst_8 : f32 to vector<12x72xf32>
    %24 = arith.mulf %23, %18 : vector<12x72xf32>
    %cst_9 = arith.constant 3.000000e+00 : f32
    %25 = vector.broadcast %cst_9 : f32 to vector<12x72xf32>
    %26 = arith.mulf %25, %17 : vector<12x72xf32>
    %27 = arith.addf %24, %26 : vector<12x72xf32>
    %cst_10 = arith.constant 3.000000e+00 : f32
    %28 = vector.broadcast %cst_10 : f32 to vector<12x72xf32>
    %29 = arith.mulf %28, %16 : vector<12x72xf32>
    %30 = arith.addf %27, %29 : vector<12x72xf32>
    %cst_11 = arith.constant 1.000000e+00 : f32
    %31 = vector.broadcast %cst_11 : f32 to vector<12x72xf32>
    %32 = arith.addf %30, %31 : vector<12x72xf32>
    %cst_12 = arith.constant 0.166666672 : f32
    %33 = vector.broadcast %cst_12 : f32 to vector<12x72xf32>
    %34 = arith.mulf %32, %33 : vector<12x72xf32>
    %cst_13 = arith.constant 3.000000e+00 : f32
    %35 = vector.broadcast %cst_13 : f32 to vector<12x72xf32>
    %36 = arith.mulf %35, %18 : vector<12x72xf32>
    %cst_14 = arith.constant 6.000000e+00 : f32
    %37 = vector.broadcast %cst_14 : f32 to vector<12x72xf32>
    %38 = arith.mulf %37, %17 : vector<12x72xf32>
    %39 = arith.subf %36, %38 : vector<12x72xf32>
    %cst_15 = arith.constant 4.000000e+00 : f32
    %40 = vector.broadcast %cst_15 : f32 to vector<12x72xf32>
    %41 = arith.addf %39, %40 : vector<12x72xf32>
    %cst_16 = arith.constant 0.166666672 : f32
    %42 = vector.broadcast %cst_16 : f32 to vector<12x72xf32>
    %43 = arith.mulf %41, %42 : vector<12x72xf32>
    %44 = arith.mulf %20, %20 : vector<12x72xf32>
    %45 = arith.mulf %44, %20 : vector<12x72xf32>
    %cst_17 = arith.constant 0.166666672 : f32
    %46 = vector.broadcast %cst_17 : f32 to vector<12x72xf32>
    %47 = arith.mulf %45, %46 : vector<12x72xf32>
    %cst_18 = arith.constant 0.000000e+00 : f32
    %48 = vector.broadcast %cst_18 : f32 to vector<12x72xf32>
    %49 = arith.cmpf oeq, %15, %48 : vector<12x72xf32>
    %cst_19 = arith.constant 1.000000e+00 : f32
    %50 = vector.broadcast %cst_19 : f32 to vector<12x72xf32>
    %51 = arith.cmpf oeq, %15, %50 : vector<12x72xf32>
    %cst_20 = arith.constant 2.000000e+00 : f32
    %52 = vector.broadcast %cst_20 : f32 to vector<12x72xf32>
    %53 = arith.cmpf oeq, %15, %52 : vector<12x72xf32>
    %cst_21 = arith.constant 3.000000e+00 : f32
    %54 = vector.broadcast %cst_21 : f32 to vector<12x72xf32>
    %55 = arith.cmpf oeq, %15, %54 : vector<12x72xf32>
    %cst_22 = arith.constant 4.000000e+00 : f32
    %56 = vector.broadcast %cst_22 : f32 to vector<12x72xf32>
    %57 = arith.cmpf oeq, %15, %56 : vector<12x72xf32>
    %cst_23 = arith.constant 5.000000e+00 : f32
    %58 = vector.broadcast %cst_23 : f32 to vector<12x72xf32>
    %59 = arith.cmpf oeq, %15, %58 : vector<12x72xf32>
    %cst_24 = arith.constant 6.000000e+00 : f32
    %60 = vector.broadcast %cst_24 : f32 to vector<12x72xf32>
    %61 = arith.cmpf oeq, %15, %60 : vector<12x72xf32>
    %cst_25 = arith.constant 7.000000e+00 : f32
    %62 = vector.broadcast %cst_25 : f32 to vector<12x72xf32>
    %63 = arith.cmpf oeq, %15, %62 : vector<12x72xf32>
    %cst_26 = arith.constant 8.000000e+00 : f32
    %64 = vector.broadcast %cst_26 : f32 to vector<12x72xf32>
    %65 = arith.cmpf oeq, %15, %64 : vector<12x72xf32>
    %cst_27 = arith.constant 9.000000e+00 : f32
    %66 = vector.broadcast %cst_27 : f32 to vector<12x72xf32>
    %67 = arith.cmpf oeq, %15, %66 : vector<12x72xf32>
    %cst_28 = arith.constant 1.000000e+01 : f32
    %68 = vector.broadcast %cst_28 : f32 to vector<12x72xf32>
    %69 = arith.cmpf oeq, %15, %68 : vector<12x72xf32>
    %cst_29 = arith.constant 0.000000e+00 : f32
    %70 = vector.broadcast %cst_29 : f32 to vector<12x72xf32>
    %71 = arith.select %55, %47, %70 : vector<12x72xi1>, vector<12x72xf32>
    %72 = arith.select %53, %43, %71 : vector<12x72xi1>, vector<12x72xf32>
    %73 = arith.select %51, %34, %72 : vector<12x72xi1>, vector<12x72xf32>
    %74 = arith.select %49, %22, %73 : vector<12x72xi1>, vector<12x72xf32>
    %75 = arith.select %57, %47, %70 : vector<12x72xi1>, vector<12x72xf32>
    %76 = arith.select %55, %43, %75 : vector<12x72xi1>, vector<12x72xf32>
    %77 = arith.select %53, %34, %76 : vector<12x72xi1>, vector<12x72xf32>
    %78 = arith.select %51, %22, %77 : vector<12x72xi1>, vector<12x72xf32>
    %79 = arith.select %59, %47, %70 : vector<12x72xi1>, vector<12x72xf32>
    %80 = arith.select %57, %43, %79 : vector<12x72xi1>, vector<12x72xf32>
    %81 = arith.select %55, %34, %80 : vector<12x72xi1>, vector<12x72xf32>
    %82 = arith.select %53, %22, %81 : vector<12x72xi1>, vector<12x72xf32>
    %83 = arith.select %61, %47, %70 : vector<12x72xi1>, vector<12x72xf32>
    %84 = arith.select %59, %43, %83 : vector<12x72xi1>, vector<12x72xf32>
    %85 = arith.select %57, %34, %84 : vector<12x72xi1>, vector<12x72xf32>
    %86 = arith.select %55, %22, %85 : vector<12x72xi1>, vector<12x72xf32>
    %87 = arith.select %63, %47, %70 : vector<12x72xi1>, vector<12x72xf32>
    %88 = arith.select %61, %43, %87 : vector<12x72xi1>, vector<12x72xf32>
    %89 = arith.select %59, %34, %88 : vector<12x72xi1>, vector<12x72xf32>
    %90 = arith.select %57, %22, %89 : vector<12x72xi1>, vector<12x72xf32>
    %91 = arith.select %65, %47, %70 : vector<12x72xi1>, vector<12x72xf32>
    %92 = arith.select %63, %43, %91 : vector<12x72xi1>, vector<12x72xf32>
    %93 = arith.select %61, %34, %92 : vector<12x72xi1>, vector<12x72xf32>
    %94 = arith.select %59, %22, %93 : vector<12x72xi1>, vector<12x72xf32>
    %95 = arith.select %67, %47, %70 : vector<12x72xi1>, vector<12x72xf32>
    %96 = arith.select %65, %43, %95 : vector<12x72xi1>, vector<12x72xf32>
    %97 = arith.select %63, %34, %96 : vector<12x72xi1>, vector<12x72xf32>
    %98 = arith.select %61, %22, %97 : vector<12x72xi1>, vector<12x72xf32>
    %99 = arith.select %69, %47, %70 : vector<12x72xi1>, vector<12x72xf32>
    %100 = arith.select %67, %43, %99 : vector<12x72xi1>, vector<12x72xf32>
    %101 = arith.select %65, %34, %100 : vector<12x72xi1>, vector<12x72xf32>
    %102 = arith.select %63, %22, %101 : vector<12x72xi1>, vector<12x72xf32>
    %103 = arith.truncf %10 : vector<12x72xf32> to vector<12x72xbf16>
    %c0_30 = arith.constant 0 : index
    %c0_31 = arith.constant 0 : index
    %c0_32 = arith.constant 0 : index
    %c0_33 = arith.constant 0 : index
    %104 = vector.load %arg2[%c0_30, %c0_31, %c0_32, %c0_33] : memref<9x1x12x72xbf16, #tpu.memory_space<vmem>>, vector<1x1x12x72xbf16>
    %105 = vector.shape_cast %104 : vector<1x1x12x72xbf16> to vector<12x72xbf16>
    %106 = vector.shape_cast %103 : vector<12x72xbf16> to vector<1x1x12x72xbf16>
    tpu.vector_store %arg2[%c0_30, %c0_31, %c0_32, %c0_33], %106 {strides = array<i32>} : memref<9x1x12x72xbf16, #tpu.memory_space<vmem>>, vector<1x1x12x72xbf16>,
    %107 = arith.truncf %74 : vector<12x72xf32> to vector<12x72xbf16>
    %c1 = arith.constant 1 : index
    %c0_34 = arith.constant 0 : index
    %c0_35 = arith.constant 0 : index
    %c0_36 = arith.constant 0 : index
    %108 = vector.load %arg2[%c1, %c0_34, %c0_35, %c0_36] : memref<9x1x12x72xbf16, #tpu.memory_space<vmem>>, vector<1x1x12x72xbf16>
    %109 = vector.shape_cast %108 : vector<1x1x12x72xbf16> to vector<12x72xbf16>
    %110 = vector.shape_cast %107 : vector<12x72xbf16> to vector<1x1x12x72xbf16>
    tpu.vector_store %arg2[%c1, %c0_34, %c0_35, %c0_36], %110 {strides = array<i32>} : memref<9x1x12x72xbf16, #tpu.memory_space<vmem>>, vector<1x1x12x72xbf16>,
    %111 = arith.truncf %78 : vector<12x72xf32> to vector<12x72xbf16>
    %c2 = arith.constant 2 : index
    %c0_37 = arith.constant 0 : index
    %c0_38 = arith.constant 0 : index
    %c0_39 = arith.constant 0 : index
    %112 = vector.load %arg2[%c2, %c0_37, %c0_38, %c0_39] : memref<9x1x12x72xbf16, #tpu.memory_space<vmem>>, vector<1x1x12x72xbf16>
    %113 = vector.shape_cast %112 : vector<1x1x12x72xbf16> to vector<12x72xbf16>
    %114 = vector.shape_cast %111 : vector<12x72xbf16> to vector<1x1x12x72xbf16>
    tpu.vector_store %arg2[%c2, %c0_37, %c0_38, %c0_39], %114 {strides = array<i32>} : memref<9x1x12x72xbf16, #tpu.memory_space<vmem>>, vector<1x1x12x72xbf16>,
    %115 = arith.truncf %82 : vector<12x72xf32> to vector<12x72xbf16>
    %c3 = arith.constant 3 : index
    %c0_40 = arith.constant 0 : index
    %c0_41 = arith.constant 0 : index
    %c0_42 = arith.constant 0 : index
    %116 = vector.load %arg2[%c3, %c0_40, %c0_41, %c0_42] : memref<9x1x12x72xbf16, #tpu.memory_space<vmem>>, vector<1x1x12x72xbf16>
    %117 = vector.shape_cast %116 : vector<1x1x12x72xbf16> to vector<12x72xbf16>
    %118 = vector.shape_cast %115 : vector<12x72xbf16> to vector<1x1x12x72xbf16>
    tpu.vector_store %arg2[%c3, %c0_40, %c0_41, %c0_42], %118 {strides = array<i32>} : memref<9x1x12x72xbf16, #tpu.memory_space<vmem>>, vector<1x1x12x72xbf16>,
    %119 = arith.truncf %86 : vector<12x72xf32> to vector<12x72xbf16>
    %c4 = arith.constant 4 : index
    %c0_43 = arith.constant 0 : index
    %c0_44 = arith.constant 0 : index
    %c0_45 = arith.constant 0 : index
    %120 = vector.load %arg2[%c4, %c0_43, %c0_44, %c0_45] : memref<9x1x12x72xbf16, #tpu.memory_space<vmem>>, vector<1x1x12x72xbf16>
    %121 = vector.shape_cast %120 : vector<1x1x12x72xbf16> to vector<12x72xbf16>
    %122 = vector.shape_cast %119 : vector<12x72xbf16> to vector<1x1x12x72xbf16>
    tpu.vector_store %arg2[%c4, %c0_43, %c0_44, %c0_45], %122 {strides = array<i32>} : memref<9x1x12x72xbf16, #tpu.memory_space<vmem>>, vector<1x1x12x72xbf16>,
    %123 = arith.truncf %90 : vector<12x72xf32> to vector<12x72xbf16>
    %c5 = arith.constant 5 : index
    %c0_46 = arith.constant 0 : index
    %c0_47 = arith.constant 0 : index
    %c0_48 = arith.constant 0 : index
    %124 = vector.load %arg2[%c5, %c0_46, %c0_47, %c0_48] : memref<9x1x12x72xbf16, #tpu.memory_space<vmem>>, vector<1x1x12x72xbf16>
    %125 = vector.shape_cast %124 : vector<1x1x12x72xbf16> to vector<12x72xbf16>
    %126 = vector.shape_cast %123 : vector<12x72xbf16> to vector<1x1x12x72xbf16>
    tpu.vector_store %arg2[%c5, %c0_46, %c0_47, %c0_48], %126 {strides = array<i32>} : memref<9x1x12x72xbf16, #tpu.memory_space<vmem>>, vector<1x1x12x72xbf16>,
    %127 = arith.truncf %94 : vector<12x72xf32> to vector<12x72xbf16>
    %c6 = arith.constant 6 : index
    %c0_49 = arith.constant 0 : index
    %c0_50 = arith.constant 0 : index
    %c0_51 = arith.constant 0 : index
    %128 = vector.load %arg2[%c6, %c0_49, %c0_50, %c0_51] : memref<9x1x12x72xbf16, #tpu.memory_space<vmem>>, vector<1x1x12x72xbf16>
    %129 = vector.shape_cast %128 : vector<1x1x12x72xbf16> to vector<12x72xbf16>
    %130 = vector.shape_cast %127 : vector<12x72xbf16> to vector<1x1x12x72xbf16>
    tpu.vector_store %arg2[%c6, %c0_49, %c0_50, %c0_51], %130 {strides = array<i32>} : memref<9x1x12x72xbf16, #tpu.memory_space<vmem>>, vector<1x1x12x72xbf16>,
    %131 = arith.truncf %98 : vector<12x72xf32> to vector<12x72xbf16>
    %c7 = arith.constant 7 : index
    %c0_52 = arith.constant 0 : index
    %c0_53 = arith.constant 0 : index
    %c0_54 = arith.constant 0 : index
    %132 = vector.load %arg2[%c7, %c0_52, %c0_53, %c0_54] : memref<9x1x12x72xbf16, #tpu.memory_space<vmem>>, vector<1x1x12x72xbf16>
    %133 = vector.shape_cast %132 : vector<1x1x12x72xbf16> to vector<12x72xbf16>
    %134 = vector.shape_cast %131 : vector<12x72xbf16> to vector<1x1x12x72xbf16>
    tpu.vector_store %arg2[%c7, %c0_52, %c0_53, %c0_54], %134 {strides = array<i32>} : memref<9x1x12x72xbf16, #tpu.memory_space<vmem>>, vector<1x1x12x72xbf16>,
    %135 = arith.truncf %102 : vector<12x72xf32> to vector<12x72xbf16>
    %c8 = arith.constant 8 : index
    %c0_55 = arith.constant 0 : index
    %c0_56 = arith.constant 0 : index
    %c0_57 = arith.constant 0 : index
    %136 = vector.load %arg2[%c8, %c0_55, %c0_56, %c0_57] : memref<9x1x12x72xbf16, #tpu.memory_space<vmem>>, vector<1x1x12x72xbf16>
    %137 = vector.shape_cast %136 : vector<1x1x12x72xbf16> to vector<12x72xbf16>
    %138 = vector.shape_cast %135 : vector<12x72xbf16> to vector<1x1x12x72xbf16>
    tpu.vector_store %arg2[%c8, %c0_55, %c0_56, %c0_57], %138 {strides = array<i32>} : memref<9x1x12x72xbf16, #tpu.memory_space<vmem>>, vector<1x1x12x72xbf16>,
    return
  }
  func.func @transform_0(%arg0: i32) -> (i32, i32, i32) {
    %c0_i32 = arith.constant 0 : i32
    %c0_i32_0 = arith.constant 0 : i32
    %c0_i32_1 = arith.constant 0 : i32
    return %arg0, %c0_i32, %c0_i32_0 : i32, i32, i32
  }
  func.func @transform_1(%arg0: i32) -> (i32, i32, i32, i32) {
    %c0_i32 = arith.constant 0 : i32
    %c0_i32_0 = arith.constant 0 : i32
    %c0_i32_1 = arith.constant 0 : i32
    %c0_i32_2 = arith.constant 0 : i32
    return %c0_i32, %arg0, %c0_i32_0, %c0_i32_1 : i32, i32, i32, i32
  }
}

module attributes {stable_mosaic.version = 11 : i64} {
  func.func @conv_pool_kernel(%arg0: i32, %arg1: memref<64x1408xbf16, #tpu.memory_space<vmem>>, %arg2: memref<1408x128xbf16, #tpu.memory_space<vmem>>, %arg3: memref<1x16x16xbf16, #tpu.memory_space<vmem>>) attributes {dimension_semantics = [#tpu.dimension_semantics<parallel>], iteration_bounds = array<i64: 2>, scalar_prefetch = 0 : i64, scratch_operands = 0 : i64, tpu.core_type = #tpu.core_type<tc>, window_params = [{transform_indices = @transform_0, window_bounds = array<i64: 64, 1408>}, {pipeline_mode = #tpu.pipeline_mode<synchronous>, transform_indices = @transform_1, window_bounds = array<i64: 1408, 128>}, {transform_indices = @transform_2, window_bounds = array<i64: 1, 16, 16>}]} {
    %c0 = arith.constant 0 : index
    %c0_0 = arith.constant 0 : index
    %0 = vector.load %arg1[%c0, %c0_0] : memref<64x1408xbf16, #tpu.memory_space<vmem>>, vector<64x1408xbf16>
    %c0_1 = arith.constant 0 : index
    %c0_2 = arith.constant 0 : index
    %1 = vector.load %arg2[%c0_1, %c0_2] : memref<1408x128xbf16, #tpu.memory_space<vmem>>, vector<1408x128xbf16>
    %cst = arith.constant dense<0.000000e+00> : vector<64x128xf32>
    %2 = tpu.matmul %0, %1, %cst {dimension_numbers = #tpu.dot_dimension_numbers<[1], [0], [0], [1], [0, 0, 1, 1], [], []>} : vector<64x1408xbf16>, vector<1408x128xbf16>, vector<64x128xf32> -> vector<64x128xf32>
    %3 = vector.extract_strided_slice %2 {offsets = [0, 0], sizes = [16, 128], strides = [1, 1]} : vector<64x128xf32> to vector<16x128xf32>
    %4 = vector.extract_strided_slice %2 {offsets = [16, 0], sizes = [16, 128], strides = [1, 1]} : vector<64x128xf32> to vector<16x128xf32>
    %5 = arith.maximumf %3, %4 : vector<16x128xf32>
    %6 = vector.extract_strided_slice %2 {offsets = [32, 0], sizes = [16, 128], strides = [1, 1]} : vector<64x128xf32> to vector<16x128xf32>
    %7 = vector.extract_strided_slice %2 {offsets = [48, 0], sizes = [16, 128], strides = [1, 1]} : vector<64x128xf32> to vector<16x128xf32>
    %8 = arith.maximumf %6, %7 : vector<16x128xf32>
    %9 = arith.maximumf %5, %8 : vector<16x128xf32>
    %cst_3 = arith.constant 0.000000e+00 : f32
    %10 = vector.broadcast %cst_3 : f32 to vector<16x128xf32>
    %11 = arith.maximumf %9, %10 : vector<16x128xf32>
    %12 = vector.extract_strided_slice %11 {offsets = [0, 0], sizes = [16, 16], strides = [1, 1]} : vector<16x128xf32> to vector<16x16xf32>
    %13 = arith.truncf %12 : vector<16x16xf32> to vector<16x16xbf16>
    %c0_4 = arith.constant 0 : index
    %c0_5 = arith.constant 0 : index
    %c0_6 = arith.constant 0 : index
    %14 = vector.load %arg3[%c0_4, %c0_5, %c0_6] : memref<1x16x16xbf16, #tpu.memory_space<vmem>>, vector<1x16x16xbf16>
    %15 = vector.shape_cast %14 : vector<1x16x16xbf16> to vector<16x16xbf16>
    %16 = vector.shape_cast %13 : vector<16x16xbf16> to vector<1x16x16xbf16>
    tpu.vector_store %arg3[%c0_4, %c0_5, %c0_6], %16 {strides = array<i32>} : memref<1x16x16xbf16, #tpu.memory_space<vmem>>, vector<1x16x16xbf16>,
    return
  }
  func.func @transform_0(%arg0: i32) -> (i32, i32) {
    %c0_i32 = arith.constant 0 : i32
    %c0_i32_0 = arith.constant 0 : i32
    return %arg0, %c0_i32 : i32, i32
  }
  func.func @transform_1(%arg0: i32) -> (i32, i32) {
    %c0_i32 = arith.constant 0 : i32
    %c0_i32_0 = arith.constant 0 : i32
    %c0_i32_1 = arith.constant 0 : i32
    return %c0_i32, %c0_i32_0 : i32, i32
  }
  func.func @transform_2(%arg0: i32) -> (i32, i32, i32) {
    %c0_i32 = arith.constant 0 : i32
    %c0_i32_0 = arith.constant 0 : i32
    %c0_i32_1 = arith.constant 0 : i32
    return %arg0, %c0_i32, %c0_i32_0 : i32, i32, i32
  }
}

module attributes {stable_mosaic.version = 11 : i64} {
  func.func @classifier_kernel(%arg0: i32, %arg1: memref<8x256xbf16, #tpu.memory_space<vmem>>, %arg2: memref<2304x128xbf16, #tpu.memory_space<vmem>>, %arg3: memref<1152x128xbf16, #tpu.memory_space<vmem>>, %arg4: memref<1152x128xbf16, #tpu.memory_space<vmem>>, %arg5: memref<8x128xf32, #tpu.memory_space<vmem>>) attributes {dimension_semantics = [#tpu.dimension_semantics<parallel>], iteration_bounds = array<i64: 2>, scalar_prefetch = 0 : i64, scratch_operands = 0 : i64, tpu.core_type = #tpu.core_type<tc>, window_params = [{transform_indices = @transform_0, window_bounds = array<i64: 8, 256>}, {pipeline_mode = #tpu.pipeline_mode<synchronous>, transform_indices = @transform_1, window_bounds = array<i64: 2304, 128>}, {pipeline_mode = #tpu.pipeline_mode<synchronous>, transform_indices = @transform_2, window_bounds = array<i64: 1152, 128>}, {pipeline_mode = #tpu.pipeline_mode<synchronous>, transform_indices = @transform_3, window_bounds = array<i64: 1152, 128>}, {transform_indices = @transform_4, window_bounds = array<i64: 8, 128>}]} {
    %c0 = arith.constant 0 : index
    %c0_0 = arith.constant 0 : index
    %0 = vector.load %arg1[%c0, %c0_0] : memref<8x256xbf16, #tpu.memory_space<vmem>>, vector<8x256xbf16>
    %1 = arith.extf %0 : vector<8x256xbf16> to vector<8x256xf32>
    %cst = arith.constant 0.000000e+00 : f32
    %2 = vector.broadcast %cst : f32 to vector<8x256xf32>
    %3 = arith.subf %2, %1 : vector<8x256xf32>
    %4 = math.exp %3 : vector<8x256xf32>
    %cst_1 = arith.constant 1.000000e+00 : f32
    %5 = vector.broadcast %cst_1 : f32 to vector<8x256xf32>
    %6 = arith.addf %5, %4 : vector<8x256xf32>
    %cst_2 = arith.constant 1.000000e+00 : f32
    %7 = vector.broadcast %cst_2 : f32 to vector<8x256xf32>
    %8 = arith.divf %7, %6 : vector<8x256xf32>
    %9 = arith.mulf %1, %8 : vector<8x256xf32>
    %cst_3 = arith.constant -2.200000e+00 : f32
    %10 = vector.broadcast %cst_3 : f32 to vector<8x256xf32>
    %11 = arith.subf %1, %10 : vector<8x256xf32>
    %cst_4 = arith.constant 2.500000e+00 : f32
    %12 = vector.broadcast %cst_4 : f32 to vector<8x256xf32>
    %13 = arith.mulf %11, %12 : vector<8x256xf32>
    %14 = math.floor %13 : vector<8x256xf32>
    %15 = arith.subf %13, %14 : vector<8x256xf32>
    %16 = arith.mulf %15, %15 : vector<8x256xf32>
    %17 = arith.mulf %16, %15 : vector<8x256xf32>
    %cst_5 = arith.constant 1.000000e+00 : f32
    %18 = vector.broadcast %cst_5 : f32 to vector<8x256xf32>
    %19 = arith.subf %18, %15 : vector<8x256xf32>
    %cst_6 = arith.constant 0.166666672 : f32
    %20 = vector.broadcast %cst_6 : f32 to vector<8x256xf32>
    %21 = arith.mulf %17, %20 : vector<8x256xf32>
    %cst_7 = arith.constant -3.000000e+00 : f32
    %22 = vector.broadcast %cst_7 : f32 to vector<8x256xf32>
    %23 = arith.mulf %22, %17 : vector<8x256xf32>
    %cst_8 = arith.constant 3.000000e+00 : f32
    %24 = vector.broadcast %cst_8 : f32 to vector<8x256xf32>
    %25 = arith.mulf %24, %16 : vector<8x256xf32>
    %26 = arith.addf %23, %25 : vector<8x256xf32>
    %cst_9 = arith.constant 3.000000e+00 : f32
    %27 = vector.broadcast %cst_9 : f32 to vector<8x256xf32>
    %28 = arith.mulf %27, %15 : vector<8x256xf32>
    %29 = arith.addf %26, %28 : vector<8x256xf32>
    %cst_10 = arith.constant 1.000000e+00 : f32
    %30 = vector.broadcast %cst_10 : f32 to vector<8x256xf32>
    %31 = arith.addf %29, %30 : vector<8x256xf32>
    %cst_11 = arith.constant 0.166666672 : f32
    %32 = vector.broadcast %cst_11 : f32 to vector<8x256xf32>
    %33 = arith.mulf %31, %32 : vector<8x256xf32>
    %cst_12 = arith.constant 3.000000e+00 : f32
    %34 = vector.broadcast %cst_12 : f32 to vector<8x256xf32>
    %35 = arith.mulf %34, %17 : vector<8x256xf32>
    %cst_13 = arith.constant 6.000000e+00 : f32
    %36 = vector.broadcast %cst_13 : f32 to vector<8x256xf32>
    %37 = arith.mulf %36, %16 : vector<8x256xf32>
    %38 = arith.subf %35, %37 : vector<8x256xf32>
    %cst_14 = arith.constant 4.000000e+00 : f32
    %39 = vector.broadcast %cst_14 : f32 to vector<8x256xf32>
    %40 = arith.addf %38, %39 : vector<8x256xf32>
    %cst_15 = arith.constant 0.166666672 : f32
    %41 = vector.broadcast %cst_15 : f32 to vector<8x256xf32>
    %42 = arith.mulf %40, %41 : vector<8x256xf32>
    %43 = arith.mulf %19, %19 : vector<8x256xf32>
    %44 = arith.mulf %43, %19 : vector<8x256xf32>
    %cst_16 = arith.constant 0.166666672 : f32
    %45 = vector.broadcast %cst_16 : f32 to vector<8x256xf32>
    %46 = arith.mulf %44, %45 : vector<8x256xf32>
    %cst_17 = arith.constant 0.000000e+00 : f32
    %47 = vector.broadcast %cst_17 : f32 to vector<8x256xf32>
    %48 = arith.cmpf oeq, %14, %47 : vector<8x256xf32>
    %cst_18 = arith.constant 1.000000e+00 : f32
    %49 = vector.broadcast %cst_18 : f32 to vector<8x256xf32>
    %50 = arith.cmpf oeq, %14, %49 : vector<8x256xf32>
    %cst_19 = arith.constant 2.000000e+00 : f32
    %51 = vector.broadcast %cst_19 : f32 to vector<8x256xf32>
    %52 = arith.cmpf oeq, %14, %51 : vector<8x256xf32>
    %cst_20 = arith.constant 3.000000e+00 : f32
    %53 = vector.broadcast %cst_20 : f32 to vector<8x256xf32>
    %54 = arith.cmpf oeq, %14, %53 : vector<8x256xf32>
    %cst_21 = arith.constant 4.000000e+00 : f32
    %55 = vector.broadcast %cst_21 : f32 to vector<8x256xf32>
    %56 = arith.cmpf oeq, %14, %55 : vector<8x256xf32>
    %cst_22 = arith.constant 5.000000e+00 : f32
    %57 = vector.broadcast %cst_22 : f32 to vector<8x256xf32>
    %58 = arith.cmpf oeq, %14, %57 : vector<8x256xf32>
    %cst_23 = arith.constant 6.000000e+00 : f32
    %59 = vector.broadcast %cst_23 : f32 to vector<8x256xf32>
    %60 = arith.cmpf oeq, %14, %59 : vector<8x256xf32>
    %cst_24 = arith.constant 7.000000e+00 : f32
    %61 = vector.broadcast %cst_24 : f32 to vector<8x256xf32>
    %62 = arith.cmpf oeq, %14, %61 : vector<8x256xf32>
    %cst_25 = arith.constant 8.000000e+00 : f32
    %63 = vector.broadcast %cst_25 : f32 to vector<8x256xf32>
    %64 = arith.cmpf oeq, %14, %63 : vector<8x256xf32>
    %cst_26 = arith.constant 9.000000e+00 : f32
    %65 = vector.broadcast %cst_26 : f32 to vector<8x256xf32>
    %66 = arith.cmpf oeq, %14, %65 : vector<8x256xf32>
    %cst_27 = arith.constant 1.000000e+01 : f32
    %67 = vector.broadcast %cst_27 : f32 to vector<8x256xf32>
    %68 = arith.cmpf oeq, %14, %67 : vector<8x256xf32>
    %cst_28 = arith.constant 0.000000e+00 : f32
    %69 = vector.broadcast %cst_28 : f32 to vector<8x256xf32>
    %70 = arith.select %54, %46, %69 : vector<8x256xi1>, vector<8x256xf32>
    %71 = arith.select %52, %42, %70 : vector<8x256xi1>, vector<8x256xf32>
    %72 = arith.select %50, %33, %71 : vector<8x256xi1>, vector<8x256xf32>
    %73 = arith.select %48, %21, %72 : vector<8x256xi1>, vector<8x256xf32>
    %74 = arith.select %56, %46, %69 : vector<8x256xi1>, vector<8x256xf32>
    %75 = arith.select %54, %42, %74 : vector<8x256xi1>, vector<8x256xf32>
    %76 = arith.select %52, %33, %75 : vector<8x256xi1>, vector<8x256xf32>
    %77 = arith.select %50, %21, %76 : vector<8x256xi1>, vector<8x256xf32>
    %78 = arith.select %58, %46, %69 : vector<8x256xi1>, vector<8x256xf32>
    %79 = arith.select %56, %42, %78 : vector<8x256xi1>, vector<8x256xf32>
    %80 = arith.select %54, %33, %79 : vector<8x256xi1>, vector<8x256xf32>
    %81 = arith.select %52, %21, %80 : vector<8x256xi1>, vector<8x256xf32>
    %82 = arith.select %60, %46, %69 : vector<8x256xi1>, vector<8x256xf32>
    %83 = arith.select %58, %42, %82 : vector<8x256xi1>, vector<8x256xf32>
    %84 = arith.select %56, %33, %83 : vector<8x256xi1>, vector<8x256xf32>
    %85 = arith.select %54, %21, %84 : vector<8x256xi1>, vector<8x256xf32>
    %86 = arith.select %62, %46, %69 : vector<8x256xi1>, vector<8x256xf32>
    %87 = arith.select %60, %42, %86 : vector<8x256xi1>, vector<8x256xf32>
    %88 = arith.select %58, %33, %87 : vector<8x256xi1>, vector<8x256xf32>
    %89 = arith.select %56, %21, %88 : vector<8x256xi1>, vector<8x256xf32>
    %90 = arith.select %64, %46, %69 : vector<8x256xi1>, vector<8x256xf32>
    %91 = arith.select %62, %42, %90 : vector<8x256xi1>, vector<8x256xf32>
    %92 = arith.select %60, %33, %91 : vector<8x256xi1>, vector<8x256xf32>
    %93 = arith.select %58, %21, %92 : vector<8x256xi1>, vector<8x256xf32>
    %94 = arith.select %66, %46, %69 : vector<8x256xi1>, vector<8x256xf32>
    %95 = arith.select %64, %42, %94 : vector<8x256xi1>, vector<8x256xf32>
    %96 = arith.select %62, %33, %95 : vector<8x256xi1>, vector<8x256xf32>
    %97 = arith.select %60, %21, %96 : vector<8x256xi1>, vector<8x256xf32>
    %98 = arith.select %68, %46, %69 : vector<8x256xi1>, vector<8x256xf32>
    %99 = arith.select %66, %42, %98 : vector<8x256xi1>, vector<8x256xf32>
    %100 = arith.select %64, %33, %99 : vector<8x256xi1>, vector<8x256xf32>
    %101 = arith.select %62, %21, %100 : vector<8x256xi1>, vector<8x256xf32>
    %102 = arith.truncf %9 : vector<8x256xf32> to vector<8x256xbf16>
    %103 = arith.truncf %73 : vector<8x256xf32> to vector<8x256xbf16>
    %104 = arith.truncf %77 : vector<8x256xf32> to vector<8x256xbf16>
    %105 = arith.truncf %81 : vector<8x256xf32> to vector<8x256xbf16>
    %106 = arith.truncf %85 : vector<8x256xf32> to vector<8x256xbf16>
    %107 = arith.truncf %89 : vector<8x256xf32> to vector<8x256xbf16>
    %108 = arith.truncf %93 : vector<8x256xf32> to vector<8x256xbf16>
    %109 = arith.truncf %97 : vector<8x256xf32> to vector<8x256xbf16>
    %110 = arith.truncf %101 : vector<8x256xf32> to vector<8x256xbf16>
    %111 = tpu.concatenate %102, %103, %104, %105, %106, %107, %108, %109, %110 in 1 : vector<8x256xbf16>, vector<8x256xbf16>, vector<8x256xbf16>, vector<8x256xbf16>, vector<8x256xbf16>, vector<8x256xbf16>, vector<8x256xbf16>, vector<8x256xbf16>, vector<8x256xbf16> -> vector<8x2304xbf16>
    %c0_29 = arith.constant 0 : index
    %c0_30 = arith.constant 0 : index
    %112 = vector.load %arg2[%c0_29, %c0_30] : memref<2304x128xbf16, #tpu.memory_space<vmem>>, vector<2304x128xbf16>
    %cst_31 = arith.constant dense<0.000000e+00> : vector<8x128xf32>
    %113 = tpu.matmul %111, %112, %cst_31 {dimension_numbers = #tpu.dot_dimension_numbers<[1], [0], [0], [1], [0, 0, 1, 1], [], []>} : vector<8x2304xbf16>, vector<2304x128xbf16>, vector<8x128xf32> -> vector<8x128xf32>
    %cst_32 = arith.constant 0.000000e+00 : f32
    %114 = vector.broadcast %cst_32 : f32 to vector<8x128xf32>
    %115 = arith.maximumf %113, %114 : vector<8x128xf32>
    %cst_33 = arith.constant 0.000000e+00 : f32
    %116 = vector.broadcast %cst_33 : f32 to vector<8x128xf32>
    %117 = arith.subf %116, %115 : vector<8x128xf32>
    %118 = math.exp %117 : vector<8x128xf32>
    %cst_34 = arith.constant 1.000000e+00 : f32
    %119 = vector.broadcast %cst_34 : f32 to vector<8x128xf32>
    %120 = arith.addf %119, %118 : vector<8x128xf32>
    %cst_35 = arith.constant 1.000000e+00 : f32
    %121 = vector.broadcast %cst_35 : f32 to vector<8x128xf32>
    %122 = arith.divf %121, %120 : vector<8x128xf32>
    %123 = arith.mulf %115, %122 : vector<8x128xf32>
    %cst_36 = arith.constant -2.200000e+00 : f32
    %124 = vector.broadcast %cst_36 : f32 to vector<8x128xf32>
    %125 = arith.subf %115, %124 : vector<8x128xf32>
    %cst_37 = arith.constant 2.500000e+00 : f32
    %126 = vector.broadcast %cst_37 : f32 to vector<8x128xf32>
    %127 = arith.mulf %125, %126 : vector<8x128xf32>
    %128 = math.floor %127 : vector<8x128xf32>
    %129 = arith.subf %127, %128 : vector<8x128xf32>
    %130 = arith.mulf %129, %129 : vector<8x128xf32>
    %131 = arith.mulf %130, %129 : vector<8x128xf32>
    %cst_38 = arith.constant 1.000000e+00 : f32
    %132 = vector.broadcast %cst_38 : f32 to vector<8x128xf32>
    %133 = arith.subf %132, %129 : vector<8x128xf32>
    %cst_39 = arith.constant 0.166666672 : f32
    %134 = vector.broadcast %cst_39 : f32 to vector<8x128xf32>
    %135 = arith.mulf %131, %134 : vector<8x128xf32>
    %cst_40 = arith.constant -3.000000e+00 : f32
    %136 = vector.broadcast %cst_40 : f32 to vector<8x128xf32>
    %137 = arith.mulf %136, %131 : vector<8x128xf32>
    %cst_41 = arith.constant 3.000000e+00 : f32
    %138 = vector.broadcast %cst_41 : f32 to vector<8x128xf32>
    %139 = arith.mulf %138, %130 : vector<8x128xf32>
    %140 = arith.addf %137, %139 : vector<8x128xf32>
    %cst_42 = arith.constant 3.000000e+00 : f32
    %141 = vector.broadcast %cst_42 : f32 to vector<8x128xf32>
    %142 = arith.mulf %141, %129 : vector<8x128xf32>
    %143 = arith.addf %140, %142 : vector<8x128xf32>
    %cst_43 = arith.constant 1.000000e+00 : f32
    %144 = vector.broadcast %cst_43 : f32 to vector<8x128xf32>
    %145 = arith.addf %143, %144 : vector<8x128xf32>
    %cst_44 = arith.constant 0.166666672 : f32
    %146 = vector.broadcast %cst_44 : f32 to vector<8x128xf32>
    %147 = arith.mulf %145, %146 : vector<8x128xf32>
    %cst_45 = arith.constant 3.000000e+00 : f32
    %148 = vector.broadcast %cst_45 : f32 to vector<8x128xf32>
    %149 = arith.mulf %148, %131 : vector<8x128xf32>
    %cst_46 = arith.constant 6.000000e+00 : f32
    %150 = vector.broadcast %cst_46 : f32 to vector<8x128xf32>
    %151 = arith.mulf %150, %130 : vector<8x128xf32>
    %152 = arith.subf %149, %151 : vector<8x128xf32>
    %cst_47 = arith.constant 4.000000e+00 : f32
    %153 = vector.broadcast %cst_47 : f32 to vector<8x128xf32>
    %154 = arith.addf %152, %153 : vector<8x128xf32>
    %cst_48 = arith.constant 0.166666672 : f32
    %155 = vector.broadcast %cst_48 : f32 to vector<8x128xf32>
    %156 = arith.mulf %154, %155 : vector<8x128xf32>
    %157 = arith.mulf %133, %133 : vector<8x128xf32>
    %158 = arith.mulf %157, %133 : vector<8x128xf32>
    %cst_49 = arith.constant 0.166666672 : f32
    %159 = vector.broadcast %cst_49 : f32 to vector<8x128xf32>
    %160 = arith.mulf %158, %159 : vector<8x128xf32>
    %cst_50 = arith.constant 0.000000e+00 : f32
    %161 = vector.broadcast %cst_50 : f32 to vector<8x128xf32>
    %162 = arith.cmpf oeq, %128, %161 : vector<8x128xf32>
    %cst_51 = arith.constant 1.000000e+00 : f32
    %163 = vector.broadcast %cst_51 : f32 to vector<8x128xf32>
    %164 = arith.cmpf oeq, %128, %163 : vector<8x128xf32>
    %cst_52 = arith.constant 2.000000e+00 : f32
    %165 = vector.broadcast %cst_52 : f32 to vector<8x128xf32>
    %166 = arith.cmpf oeq, %128, %165 : vector<8x128xf32>
    %cst_53 = arith.constant 3.000000e+00 : f32
    %167 = vector.broadcast %cst_53 : f32 to vector<8x128xf32>
    %168 = arith.cmpf oeq, %128, %167 : vector<8x128xf32>
    %cst_54 = arith.constant 4.000000e+00 : f32
    %169 = vector.broadcast %cst_54 : f32 to vector<8x128xf32>
    %170 = arith.cmpf oeq, %128, %169 : vector<8x128xf32>
    %cst_55 = arith.constant 5.000000e+00 : f32
    %171 = vector.broadcast %cst_55 : f32 to vector<8x128xf32>
    %172 = arith.cmpf oeq, %128, %171 : vector<8x128xf32>
    %cst_56 = arith.constant 6.000000e+00 : f32
    %173 = vector.broadcast %cst_56 : f32 to vector<8x128xf32>
    %174 = arith.cmpf oeq, %128, %173 : vector<8x128xf32>
    %cst_57 = arith.constant 7.000000e+00 : f32
    %175 = vector.broadcast %cst_57 : f32 to vector<8x128xf32>
    %176 = arith.cmpf oeq, %128, %175 : vector<8x128xf32>
    %cst_58 = arith.constant 8.000000e+00 : f32
    %177 = vector.broadcast %cst_58 : f32 to vector<8x128xf32>
    %178 = arith.cmpf oeq, %128, %177 : vector<8x128xf32>
    %cst_59 = arith.constant 9.000000e+00 : f32
    %179 = vector.broadcast %cst_59 : f32 to vector<8x128xf32>
    %180 = arith.cmpf oeq, %128, %179 : vector<8x128xf32>
    %cst_60 = arith.constant 1.000000e+01 : f32
    %181 = vector.broadcast %cst_60 : f32 to vector<8x128xf32>
    %182 = arith.cmpf oeq, %128, %181 : vector<8x128xf32>
    %cst_61 = arith.constant 0.000000e+00 : f32
    %183 = vector.broadcast %cst_61 : f32 to vector<8x128xf32>
    %184 = arith.select %168, %160, %183 : vector<8x128xi1>, vector<8x128xf32>
    %185 = arith.select %166, %156, %184 : vector<8x128xi1>, vector<8x128xf32>
    %186 = arith.select %164, %147, %185 : vector<8x128xi1>, vector<8x128xf32>
    %187 = arith.select %162, %135, %186 : vector<8x128xi1>, vector<8x128xf32>
    %188 = arith.select %170, %160, %183 : vector<8x128xi1>, vector<8x128xf32>
    %189 = arith.select %168, %156, %188 : vector<8x128xi1>, vector<8x128xf32>
    %190 = arith.select %166, %147, %189 : vector<8x128xi1>, vector<8x128xf32>
    %191 = arith.select %164, %135, %190 : vector<8x128xi1>, vector<8x128xf32>
    %192 = arith.select %172, %160, %183 : vector<8x128xi1>, vector<8x128xf32>
    %193 = arith.select %170, %156, %192 : vector<8x128xi1>, vector<8x128xf32>
    %194 = arith.select %168, %147, %193 : vector<8x128xi1>, vector<8x128xf32>
    %195 = arith.select %166, %135, %194 : vector<8x128xi1>, vector<8x128xf32>
    %196 = arith.select %174, %160, %183 : vector<8x128xi1>, vector<8x128xf32>
    %197 = arith.select %172, %156, %196 : vector<8x128xi1>, vector<8x128xf32>
    %198 = arith.select %170, %147, %197 : vector<8x128xi1>, vector<8x128xf32>
    %199 = arith.select %168, %135, %198 : vector<8x128xi1>, vector<8x128xf32>
    %200 = arith.select %176, %160, %183 : vector<8x128xi1>, vector<8x128xf32>
    %201 = arith.select %174, %156, %200 : vector<8x128xi1>, vector<8x128xf32>
    %202 = arith.select %172, %147, %201 : vector<8x128xi1>, vector<8x128xf32>
    %203 = arith.select %170, %135, %202 : vector<8x128xi1>, vector<8x128xf32>
    %204 = arith.select %178, %160, %183 : vector<8x128xi1>, vector<8x128xf32>
    %205 = arith.select %176, %156, %204 : vector<8x128xi1>, vector<8x128xf32>
    %206 = arith.select %174, %147, %205 : vector<8x128xi1>, vector<8x128xf32>
    %207 = arith.select %172, %135, %206 : vector<8x128xi1>, vector<8x128xf32>
    %208 = arith.select %180, %160, %183 : vector<8x128xi1>, vector<8x128xf32>
    %209 = arith.select %178, %156, %208 : vector<8x128xi1>, vector<8x128xf32>
    %210 = arith.select %176, %147, %209 : vector<8x128xi1>, vector<8x128xf32>
    %211 = arith.select %174, %135, %210 : vector<8x128xi1>, vector<8x128xf32>
    %212 = arith.select %182, %160, %183 : vector<8x128xi1>, vector<8x128xf32>
    %213 = arith.select %180, %156, %212 : vector<8x128xi1>, vector<8x128xf32>
    %214 = arith.select %178, %147, %213 : vector<8x128xi1>, vector<8x128xf32>
    %215 = arith.select %176, %135, %214 : vector<8x128xi1>, vector<8x128xf32>
    %216 = arith.truncf %123 : vector<8x128xf32> to vector<8x128xbf16>
    %217 = arith.truncf %187 : vector<8x128xf32> to vector<8x128xbf16>
    %218 = arith.truncf %191 : vector<8x128xf32> to vector<8x128xbf16>
    %219 = arith.truncf %195 : vector<8x128xf32> to vector<8x128xbf16>
    %220 = arith.truncf %199 : vector<8x128xf32> to vector<8x128xbf16>
    %221 = arith.truncf %203 : vector<8x128xf32> to vector<8x128xbf16>
    %222 = arith.truncf %207 : vector<8x128xf32> to vector<8x128xbf16>
    %223 = arith.truncf %211 : vector<8x128xf32> to vector<8x128xbf16>
    %224 = arith.truncf %215 : vector<8x128xf32> to vector<8x128xbf16>
    %225 = tpu.concatenate %216, %217, %218, %219, %220, %221, %222, %223, %224 in 1 : vector<8x128xbf16>, vector<8x128xbf16>, vector<8x128xbf16>, vector<8x128xbf16>, vector<8x128xbf16>, vector<8x128xbf16>, vector<8x128xbf16>, vector<8x128xbf16>, vector<8x128xbf16> -> vector<8x1152xbf16>
    %c0_62 = arith.constant 0 : index
    %c0_63 = arith.constant 0 : index
    %226 = vector.load %arg3[%c0_62, %c0_63] : memref<1152x128xbf16, #tpu.memory_space<vmem>>, vector<1152x128xbf16>
    %cst_64 = arith.constant dense<0.000000e+00> : vector<8x128xf32>
    %227 = tpu.matmul %225, %226, %cst_64 {dimension_numbers = #tpu.dot_dimension_numbers<[1], [0], [0], [1], [0, 0, 1, 1], [], []>} : vector<8x1152xbf16>, vector<1152x128xbf16>, vector<8x128xf32> -> vector<8x128xf32>
    %cst_65 = arith.constant 0.000000e+00 : f32
    %228 = vector.broadcast %cst_65 : f32 to vector<8x128xf32>
    %229 = arith.maximumf %227, %228 : vector<8x128xf32>
    %cst_66 = arith.constant 0.000000e+00 : f32
    %230 = vector.broadcast %cst_66 : f32 to vector<8x128xf32>
    %231 = arith.subf %230, %229 : vector<8x128xf32>
    %232 = math.exp %231 : vector<8x128xf32>
    %cst_67 = arith.constant 1.000000e+00 : f32
    %233 = vector.broadcast %cst_67 : f32 to vector<8x128xf32>
    %234 = arith.addf %233, %232 : vector<8x128xf32>
    %cst_68 = arith.constant 1.000000e+00 : f32
    %235 = vector.broadcast %cst_68 : f32 to vector<8x128xf32>
    %236 = arith.divf %235, %234 : vector<8x128xf32>
    %237 = arith.mulf %229, %236 : vector<8x128xf32>
    %cst_69 = arith.constant -2.200000e+00 : f32
    %238 = vector.broadcast %cst_69 : f32 to vector<8x128xf32>
    %239 = arith.subf %229, %238 : vector<8x128xf32>
    %cst_70 = arith.constant 2.500000e+00 : f32
    %240 = vector.broadcast %cst_70 : f32 to vector<8x128xf32>
    %241 = arith.mulf %239, %240 : vector<8x128xf32>
    %242 = math.floor %241 : vector<8x128xf32>
    %243 = arith.subf %241, %242 : vector<8x128xf32>
    %244 = arith.mulf %243, %243 : vector<8x128xf32>
    %245 = arith.mulf %244, %243 : vector<8x128xf32>
    %cst_71 = arith.constant 1.000000e+00 : f32
    %246 = vector.broadcast %cst_71 : f32 to vector<8x128xf32>
    %247 = arith.subf %246, %243 : vector<8x128xf32>
    %cst_72 = arith.constant 0.166666672 : f32
    %248 = vector.broadcast %cst_72 : f32 to vector<8x128xf32>
    %249 = arith.mulf %245, %248 : vector<8x128xf32>
    %cst_73 = arith.constant -3.000000e+00 : f32
    %250 = vector.broadcast %cst_73 : f32 to vector<8x128xf32>
    %251 = arith.mulf %250, %245 : vector<8x128xf32>
    %cst_74 = arith.constant 3.000000e+00 : f32
    %252 = vector.broadcast %cst_74 : f32 to vector<8x128xf32>
    %253 = arith.mulf %252, %244 : vector<8x128xf32>
    %254 = arith.addf %251, %253 : vector<8x128xf32>
    %cst_75 = arith.constant 3.000000e+00 : f32
    %255 = vector.broadcast %cst_75 : f32 to vector<8x128xf32>
    %256 = arith.mulf %255, %243 : vector<8x128xf32>
    %257 = arith.addf %254, %256 : vector<8x128xf32>
    %cst_76 = arith.constant 1.000000e+00 : f32
    %258 = vector.broadcast %cst_76 : f32 to vector<8x128xf32>
    %259 = arith.addf %257, %258 : vector<8x128xf32>
    %cst_77 = arith.constant 0.166666672 : f32
    %260 = vector.broadcast %cst_77 : f32 to vector<8x128xf32>
    %261 = arith.mulf %259, %260 : vector<8x128xf32>
    %cst_78 = arith.constant 3.000000e+00 : f32
    %262 = vector.broadcast %cst_78 : f32 to vector<8x128xf32>
    %263 = arith.mulf %262, %245 : vector<8x128xf32>
    %cst_79 = arith.constant 6.000000e+00 : f32
    %264 = vector.broadcast %cst_79 : f32 to vector<8x128xf32>
    %265 = arith.mulf %264, %244 : vector<8x128xf32>
    %266 = arith.subf %263, %265 : vector<8x128xf32>
    %cst_80 = arith.constant 4.000000e+00 : f32
    %267 = vector.broadcast %cst_80 : f32 to vector<8x128xf32>
    %268 = arith.addf %266, %267 : vector<8x128xf32>
    %cst_81 = arith.constant 0.166666672 : f32
    %269 = vector.broadcast %cst_81 : f32 to vector<8x128xf32>
    %270 = arith.mulf %268, %269 : vector<8x128xf32>
    %271 = arith.mulf %247, %247 : vector<8x128xf32>
    %272 = arith.mulf %271, %247 : vector<8x128xf32>
    %cst_82 = arith.constant 0.166666672 : f32
    %273 = vector.broadcast %cst_82 : f32 to vector<8x128xf32>
    %274 = arith.mulf %272, %273 : vector<8x128xf32>
    %cst_83 = arith.constant 0.000000e+00 : f32
    %275 = vector.broadcast %cst_83 : f32 to vector<8x128xf32>
    %276 = arith.cmpf oeq, %242, %275 : vector<8x128xf32>
    %cst_84 = arith.constant 1.000000e+00 : f32
    %277 = vector.broadcast %cst_84 : f32 to vector<8x128xf32>
    %278 = arith.cmpf oeq, %242, %277 : vector<8x128xf32>
    %cst_85 = arith.constant 2.000000e+00 : f32
    %279 = vector.broadcast %cst_85 : f32 to vector<8x128xf32>
    %280 = arith.cmpf oeq, %242, %279 : vector<8x128xf32>
    %cst_86 = arith.constant 3.000000e+00 : f32
    %281 = vector.broadcast %cst_86 : f32 to vector<8x128xf32>
    %282 = arith.cmpf oeq, %242, %281 : vector<8x128xf32>
    %cst_87 = arith.constant 4.000000e+00 : f32
    %283 = vector.broadcast %cst_87 : f32 to vector<8x128xf32>
    %284 = arith.cmpf oeq, %242, %283 : vector<8x128xf32>
    %cst_88 = arith.constant 5.000000e+00 : f32
    %285 = vector.broadcast %cst_88 : f32 to vector<8x128xf32>
    %286 = arith.cmpf oeq, %242, %285 : vector<8x128xf32>
    %cst_89 = arith.constant 6.000000e+00 : f32
    %287 = vector.broadcast %cst_89 : f32 to vector<8x128xf32>
    %288 = arith.cmpf oeq, %242, %287 : vector<8x128xf32>
    %cst_90 = arith.constant 7.000000e+00 : f32
    %289 = vector.broadcast %cst_90 : f32 to vector<8x128xf32>
    %290 = arith.cmpf oeq, %242, %289 : vector<8x128xf32>
    %cst_91 = arith.constant 8.000000e+00 : f32
    %291 = vector.broadcast %cst_91 : f32 to vector<8x128xf32>
    %292 = arith.cmpf oeq, %242, %291 : vector<8x128xf32>
    %cst_92 = arith.constant 9.000000e+00 : f32
    %293 = vector.broadcast %cst_92 : f32 to vector<8x128xf32>
    %294 = arith.cmpf oeq, %242, %293 : vector<8x128xf32>
    %cst_93 = arith.constant 1.000000e+01 : f32
    %295 = vector.broadcast %cst_93 : f32 to vector<8x128xf32>
    %296 = arith.cmpf oeq, %242, %295 : vector<8x128xf32>
    %cst_94 = arith.constant 0.000000e+00 : f32
    %297 = vector.broadcast %cst_94 : f32 to vector<8x128xf32>
    %298 = arith.select %282, %274, %297 : vector<8x128xi1>, vector<8x128xf32>
    %299 = arith.select %280, %270, %298 : vector<8x128xi1>, vector<8x128xf32>
    %300 = arith.select %278, %261, %299 : vector<8x128xi1>, vector<8x128xf32>
    %301 = arith.select %276, %249, %300 : vector<8x128xi1>, vector<8x128xf32>
    %302 = arith.select %284, %274, %297 : vector<8x128xi1>, vector<8x128xf32>
    %303 = arith.select %282, %270, %302 : vector<8x128xi1>, vector<8x128xf32>
    %304 = arith.select %280, %261, %303 : vector<8x128xi1>, vector<8x128xf32>
    %305 = arith.select %278, %249, %304 : vector<8x128xi1>, vector<8x128xf32>
    %306 = arith.select %286, %274, %297 : vector<8x128xi1>, vector<8x128xf32>
    %307 = arith.select %284, %270, %306 : vector<8x128xi1>, vector<8x128xf32>
    %308 = arith.select %282, %261, %307 : vector<8x128xi1>, vector<8x128xf32>
    %309 = arith.select %280, %249, %308 : vector<8x128xi1>, vector<8x128xf32>
    %310 = arith.select %288, %274, %297 : vector<8x128xi1>, vector<8x128xf32>
    %311 = arith.select %286, %270, %310 : vector<8x128xi1>, vector<8x128xf32>
    %312 = arith.select %284, %261, %311 : vector<8x128xi1>, vector<8x128xf32>
    %313 = arith.select %282, %249, %312 : vector<8x128xi1>, vector<8x128xf32>
    %314 = arith.select %290, %274, %297 : vector<8x128xi1>, vector<8x128xf32>
    %315 = arith.select %288, %270, %314 : vector<8x128xi1>, vector<8x128xf32>
    %316 = arith.select %286, %261, %315 : vector<8x128xi1>, vector<8x128xf32>
    %317 = arith.select %284, %249, %316 : vector<8x128xi1>, vector<8x128xf32>
    %318 = arith.select %292, %274, %297 : vector<8x128xi1>, vector<8x128xf32>
    %319 = arith.select %290, %270, %318 : vector<8x128xi1>, vector<8x128xf32>
    %320 = arith.select %288, %261, %319 : vector<8x128xi1>, vector<8x128xf32>
    %321 = arith.select %286, %249, %320 : vector<8x128xi1>, vector<8x128xf32>
    %322 = arith.select %294, %274, %297 : vector<8x128xi1>, vector<8x128xf32>
    %323 = arith.select %292, %270, %322 : vector<8x128xi1>, vector<8x128xf32>
    %324 = arith.select %290, %261, %323 : vector<8x128xi1>, vector<8x128xf32>
    %325 = arith.select %288, %249, %324 : vector<8x128xi1>, vector<8x128xf32>
    %326 = arith.select %296, %274, %297 : vector<8x128xi1>, vector<8x128xf32>
    %327 = arith.select %294, %270, %326 : vector<8x128xi1>, vector<8x128xf32>
    %328 = arith.select %292, %261, %327 : vector<8x128xi1>, vector<8x128xf32>
    %329 = arith.select %290, %249, %328 : vector<8x128xi1>, vector<8x128xf32>
    %330 = arith.truncf %237 : vector<8x128xf32> to vector<8x128xbf16>
    %331 = arith.truncf %301 : vector<8x128xf32> to vector<8x128xbf16>
    %332 = arith.truncf %305 : vector<8x128xf32> to vector<8x128xbf16>
    %333 = arith.truncf %309 : vector<8x128xf32> to vector<8x128xbf16>
    %334 = arith.truncf %313 : vector<8x128xf32> to vector<8x128xbf16>
    %335 = arith.truncf %317 : vector<8x128xf32> to vector<8x128xbf16>
    %336 = arith.truncf %321 : vector<8x128xf32> to vector<8x128xbf16>
    %337 = arith.truncf %325 : vector<8x128xf32> to vector<8x128xbf16>
    %338 = arith.truncf %329 : vector<8x128xf32> to vector<8x128xbf16>
    %339 = tpu.concatenate %330, %331, %332, %333, %334, %335, %336, %337, %338 in 1 : vector<8x128xbf16>, vector<8x128xbf16>, vector<8x128xbf16>, vector<8x128xbf16>, vector<8x128xbf16>, vector<8x128xbf16>, vector<8x128xbf16>, vector<8x128xbf16>, vector<8x128xbf16> -> vector<8x1152xbf16>
    %c0_95 = arith.constant 0 : index
    %c0_96 = arith.constant 0 : index
    %340 = vector.load %arg4[%c0_95, %c0_96] : memref<1152x128xbf16, #tpu.memory_space<vmem>>, vector<1152x128xbf16>
    %cst_97 = arith.constant dense<0.000000e+00> : vector<8x128xf32>
    %341 = tpu.matmul %339, %340, %cst_97 {dimension_numbers = #tpu.dot_dimension_numbers<[1], [0], [0], [1], [0, 0, 1, 1], [], []>} : vector<8x1152xbf16>, vector<1152x128xbf16>, vector<8x128xf32> -> vector<8x128xf32>
    %c0_98 = arith.constant 0 : index
    %c0_99 = arith.constant 0 : index
    %342 = vector.load %arg5[%c0_98, %c0_99] : memref<8x128xf32, #tpu.memory_space<vmem>>, vector<8x128xf32>
    tpu.vector_store %arg5[%c0_98, %c0_99], %341 {strides = array<i32>} : memref<8x128xf32, #tpu.memory_space<vmem>>, vector<8x128xf32>,
    return
  }
  func.func @transform_0(%arg0: i32) -> (i32, i32) {
    %c0_i32 = arith.constant 0 : i32
    %c0_i32_0 = arith.constant 0 : i32
    return %arg0, %c0_i32 : i32, i32
  }
  func.func @transform_1(%arg0: i32) -> (i32, i32) {
    %c0_i32 = arith.constant 0 : i32
    %c0_i32_0 = arith.constant 0 : i32
    %c0_i32_1 = arith.constant 0 : i32
    return %c0_i32, %c0_i32_0 : i32, i32
  }
  func.func @transform_2(%arg0: i32) -> (i32, i32) {
    %c0_i32 = arith.constant 0 : i32
    %c0_i32_0 = arith.constant 0 : i32
    %c0_i32_1 = arith.constant 0 : i32
    return %c0_i32, %c0_i32_0 : i32, i32
  }
  func.func @transform_3(%arg0: i32) -> (i32, i32) {
    %c0_i32 = arith.constant 0 : i32
    %c0_i32_0 = arith.constant 0 : i32
    %c0_i32_1 = arith.constant 0 : i32
    return %c0_i32, %c0_i32_0 : i32, i32
  }
  func.func @transform_4(%arg0: i32) -> (i32, i32) {
    %c0_i32 = arith.constant 0 : i32
    %c0_i32_0 = arith.constant 0 : i32
    return %arg0, %c0_i32 : i32, i32
  }
}

</mosaic_0001>

<llo_original>
// kernel: simple_conv_kan_forward.5
$region0: #{simple_conv_kan_forward.5}
  #allocation0 [shape = 'u32[]', space=smem, size = 0x4, offset = 0x4, fixed_abs, tag = 'smem constant byte address 0x4 - core index']
  #allocation1 [shape = 'u32[144,128]{1,0:T(1,128)}', space=vmem, size = 0x12000, scoped, tag = 'internal scratch']
  %s0 = inlined_call_operand.vmem [shape: f32[2,28,28], index: 0, kind: input, shape index: {}]
  %s1 = inlined_call_operand.vmem [shape: bf16[9,2,28,28], index: 1, kind: output, shape index: {}]
  %s2 = sld [smem:[#allocation0]]
  $region74: #{simple_conv_kan_forward.5} parent=0
    _
  %s4 = ssub.s32 1, %s2
  %s5 = scalar_select 0, %s4, %s2
  $region1: #{simple_conv_kan_forward.5} parent=0
    #allocation2 [shape = 'u8[147456]{0}', space=vmem, size = 0x24000, scoped, tag = 'output window, operand 0']
    loop: start=0, step=1, limit=4
    $region2: #{simple_conv_kan_forward.5} parent=1 // loop_pre_header
      _
    $region3: #{simple_conv_kan_forward.5} parent=1 // loop_header
      %s7 = sphi 0, %s11
      %p8 = scmp.ge.s32.totalorder %s7, 4
      %s17 = sphi 0, %s19
      %s20 = sphi 0, %s17
      %s21 = sphi 0, %s20
      %s37 = sphi 0, %s21
      %s43 = sphi 0, %s45
      %s46 = sphi 0, %s43
      %s47 = sphi 0, %s46
      %s63 = sphi 0, %s47
    $region4: #{simple_conv_kan_forward.5} parent=1 // loop_header_branch
      %10 = sbr.rel (%p8) target = $region8
    $region5: #{simple_conv_kan_forward.5} parent=1 // loop_body
      %s12 = ssub.s32 %s7, 1
      %s13 = ssub.s32 %s7, 2
      %s14 = sadd.s32 %s7, 1
      %s15 = ssub.s32 %s7, %s14
      %p16 = scmp.eq.s32.totalorder %s15, 0
      %s18 = sadd.s32 %s17, 1
      %s19 = scalar_select %p16, %s17, %s18
      %p22 = pneg %p16
      %p23 = scmp.eq.s32.totalorder %s7, 1
      %p24 = por %p22, %p23
      %p25 = scmp.ne.s32.totalorder %s17, %s20
      %p26 = scmp.eq.s32.totalorder %s7, 0
      %p27 = por %p25, %p26
      %p28 = scmp.ne.s32.totalorder %s17, %s20
      %p29 = scmp.eq.s32.totalorder %s12, 1
      %p30 = por %p28, %p29
      %p31 = scmp.ne.s32.totalorder %s20, %s21
      %p32 = scmp.eq.s32.totalorder %s12, 0
      %p33 = por %p31, %p32
      %p34 = scmp.ne.s32.totalorder %s20, %s21
      %p35 = scmp.eq.s32.totalorder %s13, 1
      %p36 = por %p34, %p35
      %p38 = scmp.ne.s32.totalorder %s21, %s37
      %p39 = scmp.eq.s32.totalorder %s13, 0
      %p40 = por %p38, %p39
      %s41 = ssub.s32 %s7, %s14
      %p42 = scmp.eq.s32.totalorder %s41, 0
      %s44 = sadd.s32 %s43, 1
      %s45 = scalar_select %p42, %s43, %s44
      %p48 = pneg %p42
      %p49 = scmp.eq.s32.totalorder %s7, 1
      %p50 = por %p48, %p49
      %p51 = scmp.ne.s32.totalorder %s43, %s46
      %p52 = scmp.eq.s32.totalorder %s7, 0
      %p53 = por %p51, %p52
      %p54 = scmp.ne.s32.totalorder %s43, %s46
      %p55 = scmp.eq.s32.totalorder %s12, 1
      %p56 = por %p54, %p55
      %p57 = scmp.ne.s32.totalorder %s46, %s47
      %p58 = scmp.eq.s32.totalorder %s12, 0
      %p59 = por %p57, %p58
      %p60 = scmp.ne.s32.totalorder %s46, %s47
      %p61 = scmp.eq.s32.totalorder %s13, 1
      %p62 = por %p60, %p61
      %p64 = scmp.ne.s32.totalorder %s47, %s63
      %p65 = scmp.eq.s32.totalorder %s13, 0
      %p66 = por %p64, %p65
      %p67 = scmp.le.s32.totalorder 1, %s7
      %p68 = scmp.lt.s32.totalorder %s7, 3
      %p69 = pnand %p67, %p68
      %p70 = pneg %p69
      // Predicated region
      $region9: #{simple_conv_kan_forward.5} parent=5 // pred_check
        _
      $region10: #{simple_conv_kan_forward.5} parent=5 // pred_check_branch
        %72 = sbr.rel (%p69) target = $region12
      $region11: #{simple_conv_kan_forward.5} parent=5 // pred_region
        %s73 = ssub.s32 %s7, 1
      $region12: #{simple_conv_kan_forward.5} parent=5 // pred_fallthru
        _
      %p74 = scmp.lt.s32.totalorder %s7, 2
      // Predicated region
      $region13: #{simple_conv_kan_forward.5} parent=5 // pred_check
        %p75 = pneg %p74
      $region14: #{simple_conv_kan_forward.5} parent=5 // pred_check_branch
        %77 = sbr.rel (%p75) target = $region16
      $region15: #{simple_conv_kan_forward.5} parent=5 // pred_region
        // Predicated region
        $region17: #{simple_conv_kan_forward.5} parent=15 // pred_check
          %p78 = pneg %p27
        $region18: #{simple_conv_kan_forward.5} parent=15 // pred_check_branch
          %80 = sbr.rel (%p78) target = $region20
        $region19: #{simple_conv_kan_forward.5} parent=15 // pred_region
          %p81 = scmp.lt.s32.totalorder %s7, 1
          %s82 = scalar_select %p81, %s7, 1
          %s83 = smul.addr %s82, 4
          %s84 = smul.addr %s83, 8
          %s85 = scalar_lea.vmem %s0, %s84
        $region20: #{simple_conv_kan_forward.5} parent=15 // pred_fallthru
          _
      $region16: #{simple_conv_kan_forward.5} parent=5 // pred_fallthru
        _
      %p86 = scmp.le.s32.totalorder 1, %s7
      %p87 = scmp.lt.s32.totalorder %s7, 3
      %p88 = pnand %p86, %p87
      %p89 = pneg %p88
      // Predicated region
      $region21: #{simple_conv_kan_forward.5} parent=5 // pred_check
        _
      $region22: #{simple_conv_kan_forward.5} parent=5 // pred_check_branch
        %91 = sbr.rel (%p88) target = $region24
      $region23: #{simple_conv_kan_forward.5} parent=5 // pred_region
        %s92 = ssub.s32 %s7, 1
        %p93 = scmp.lt.s32.totalorder %s12, 1
        %s94 = scalar_select %p93, %s12, 1
        %s95 = smul.addr %s94, 4
        %s96 = smul.addr %s95, 8
        %s97 = scalar_lea.vmem %s0, %s96
        %p98 = pneg %p33
        %p99 = pneg %p30
        %p100 = pneg %p59
        %p101 = pneg %p56
        %s102 = sand.u32 %s46, 1
        %s103 = sand.u32 %s46, 1
        %s104 = smul.addr %s103, 144
        %s105 = scalar_lea.vmem [#allocation2], %s104
        %p106 = scmp.lt.s32.totalorder %s12, 1
        %s107 = scalar_select %p106, %s12, 1
        %s108 = smul.addr %s107, 4
        %s109 = smul.addr %s108, 8
        %s110 = scalar_lea.vmem %s0, %s109
        %v111 = vld [vmem:[%s110] sm:$0xff]
        %v112 = vld [vmem:[%s110 + $0x8] sm:$0xff]
        %v113 = vld [vmem:[%s110 + $0x10] sm:$0xff]
        %v114 = vld [vmem:[%s110 + $0x18] sm:$0xf]
        %v115 = vsub.f32 0.0, %v111
        %v116 = vsub.f32 0.0, %v112
        %v117 = vsub.f32 0.0, %v113
        %v118 = vsub.f32 0.0, %v114
        %v119 = vmul.f32 %v115, 1.442695
        %v120 = vpow.pop %v119
        %v121 = vmul.f32 %v116, 1.442695
        %v122 = vpow.pop %v121
        %v123 = vmul.f32 %v117, 1.442695
        %v124 = vpow.pop %v123
        %v125 = vmul.f32 %v118, 1.442695
        %v126 = vpow.pop %v125
        %v127 = vadd.f32 %v120, 1.0
        %v128 = vadd.f32 %v122, 1.0
        %v129 = vadd.f32 %v124, 1.0
        %v130 = vadd.f32 %v126, 1.0
        %v131 = vrcp.pop %v127
        %v132 = vmul.f32 1.0, %v131
        %v133 = vrcp.pop %v128
        %v134 = vmul.f32 1.0, %v133
        %v135 = vrcp.pop %v129
        %v136 = vmul.f32 1.0, %v135
        %v137 = vrcp.pop %v130
        %v138 = vmul.f32 1.0, %v137
        %v139 = vmul.f32 %v111, %v132
        %v140 = vmul.f32 %v112, %v134
        %v141 = vmul.f32 %v113, %v136
        %v142 = vmul.f32 %v114, %v138
        %v143 = vsub.f32 %v111, -2.2
        %v144 = vsub.f32 %v112, -2.2
        %v145 = vsub.f32 %v113, -2.2
        %v146 = vsub.f32 %v114, -2.2
        %v147 = vmul.f32 %v143, 2.5
        %v148 = vmul.f32 %v144, 2.5
        %v149 = vmul.f32 %v145, 2.5
        %v150 = vmul.f32 %v146, 2.5
        %v151 = vfloor.f32 %v147
        %v152 = vfloor.f32 %v148
        %v153 = vfloor.f32 %v149
        %v154 = vfloor.f32 %v150
        %v155 = vsub.f32 %v147, %v151
        %v156 = vsub.f32 %v148, %v152
        %v157 = vsub.f32 %v149, %v153
        %v158 = vsub.f32 %v150, %v154
        %v159 = vmul.f32 %v155, %v155
        %v160 = vmul.f32 %v156, %v156
        %v161 = vmul.f32 %v157, %v157
        %v162 = vmul.f32 %v158, %v158
        %v163 = vmul.f32 %v159, %v155
        %v164 = vmul.f32 %v160, %v156
        %v165 = vmul.f32 %v161, %v157
        %v166 = vmul.f32 %v162, %v158
        %v167 = vsub.f32 1.0, %v155
        %v168 = vsub.f32 1.0, %v156
        %v169 = vsub.f32 1.0, %v157
        %v170 = vsub.f32 1.0, %v158
        %v171 = vmul.f32 %v163, 0.16666667
        %v172 = vmul.f32 %v164, 0.16666667
        %v173 = vmul.f32 %v165, 0.16666667
        %v174 = vmul.f32 %v166, 0.16666667
        %v175 = vmul.f32 %v163, -3.0
        %v176 = vmul.f32 %v164, -3.0
        %v177 = vmul.f32 %v165, -3.0
        %v178 = vmul.f32 %v166, -3.0
        %v179 = vmul.f32 %v159, 3.0
        %v180 = vmul.f32 %v160, 3.0
        %v181 = vmul.f32 %v161, 3.0
        %v182 = vmul.f32 %v162, 3.0
        %v183 = vadd.f32 %v175, %v179
        %v184 = vadd.f32 %v176, %v180
        %v185 = vadd.f32 %v177, %v181
        %v186 = vadd.f32 %v178, %v182
        %v187 = vmul.f32 %v155, 3.0
        %v188 = vmul.f32 %v156, 3.0
        %v189 = vmul.f32 %v157, 3.0
        %v190 = vmul.f32 %v158, 3.0
        %v191 = vadd.f32 %v183, %v187
        %v192 = vadd.f32 %v184, %v188
        %v193 = vadd.f32 %v185, %v189
        %v194 = vadd.f32 %v186, %v190
        %v195 = vadd.f32 %v191, 1.0
        %v196 = vadd.f32 %v192, 1.0
        %v197 = vadd.f32 %v193, 1.0
        %v198 = vadd.f32 %v194, 1.0
        %v199 = vmul.f32 %v195, 0.16666667
        %v200 = vmul.f32 %v196, 0.16666667
        %v201 = vmul.f32 %v197, 0.16666667
        %v202 = vmul.f32 %v198, 0.16666667
        %v203 = vmul.f32 %v163, 3.0
        %v204 = vmul.f32 %v164, 3.0
        %v205 = vmul.f32 %v165, 3.0
        %v206 = vmul.f32 %v166, 3.0
        %v207 = vmul.f32 %v159, 6.0
        %v208 = vmul.f32 %v160, 6.0
        %v209 = vmul.f32 %v161, 6.0
        %v210 = vmul.f32 %v162, 6.0
        %v211 = vsub.f32 %v203, %v207
        %v212 = vsub.f32 %v204, %v208
        %v213 = vsub.f32 %v205, %v209
        %v214 = vsub.f32 %v206, %v210
        %v215 = vadd.f32 %v211, 4.0
        %v216 = vadd.f32 %v212, 4.0
        %v217 = vadd.f32 %v213, 4.0
        %v218 = vadd.f32 %v214, 4.0
        %v219 = vmul.f32 %v215, 0.16666667
        %v220 = vmul.f32 %v216, 0.16666667
        %v221 = vmul.f32 %v217, 0.16666667
        %v222 = vmul.f32 %v218, 0.16666667
        %v223 = vmul.f32 %v167, %v167
        %v224 = vmul.f32 %v168, %v168
        %v225 = vmul.f32 %v169, %v169
        %v226 = vmul.f32 %v170, %v170
        %v227 = vmul.f32 %v223, %v167
        %v228 = vmul.f32 %v224, %v168
        %v229 = vmul.f32 %v225, %v169
        %v230 = vmul.f32 %v226, %v170
        %v231 = vmul.f32 %v227, 0.16666667
        %v232 = vmul.f32 %v228, 0.16666667
        %v233 = vmul.f32 %v229, 0.16666667
        %v234 = vmul.f32 %v230, 0.16666667
        %vm235 = vcmp.eq.f32.partialorder %v151, 0.0
        %vm236 = vcmp.eq.f32.partialorder %v152, 0.0
        %vm237 = vcmp.eq.f32.partialorder %v153, 0.0
        %vm238 = vcmp.eq.f32.partialorder %v154, 0.0
        %vm239 = vcmp.eq.f32.partialorder %v151, 1.0
        %vm240 = vcmp.eq.f32.partialorder %v152, 1.0
        %vm241 = vcmp.eq.f32.partialorder %v153, 1.0
        %vm242 = vcmp.eq.f32.partialorder %v154, 1.0
        %vm243 = vcmp.eq.f32.partialorder %v151, 2.0
        %vm244 = vcmp.eq.f32.partialorder %v152, 2.0
        %vm245 = vcmp.eq.f32.partialorder %v153, 2.0
        %vm246 = vcmp.eq.f32.partialorder %v154, 2.0
        %vm247 = vcmp.eq.f32.partialorder %v151, 3.0
        %vm248 = vcmp.eq.f32.partialorder %v152, 3.0
        %vm249 = vcmp.eq.f32.partialorder %v153, 3.0
        %vm250 = vcmp.eq.f32.partialorder %v154, 3.0
        %vm251 = vcmp.eq.f32.partialorder %v151, 4.0
        %vm252 = vcmp.eq.f32.partialorder %v152, 4.0
        %vm253 = vcmp.eq.f32.partialorder %v153, 4.0
        %vm254 = vcmp.eq.f32.partialorder %v154, 4.0
        %vm255 = vcmp.eq.f32.partialorder %v151, 5.0
        %vm256 = vcmp.eq.f32.partialorder %v152, 5.0
        %vm257 = vcmp.eq.f32.partialorder %v153, 5.0
        %vm258 = vcmp.eq.f32.partialorder %v154, 5.0
        %vm259 = vcmp.eq.f32.partialorder %v151, 6.0
        %vm260 = vcmp.eq.f32.partialorder %v152, 6.0
        %vm261 = vcmp.eq.f32.partialorder %v153, 6.0
        %vm262 = vcmp.eq.f32.partialorder %v154, 6.0
        %vm263 = vcmp.eq.f32.partialorder %v151, 7.0
        %vm264 = vcmp.eq.f32.partialorder %v152, 7.0
        %vm265 = vcmp.eq.f32.partialorder %v153, 7.0
        %vm266 = vcmp.eq.f32.partialorder %v154, 7.0
        %vm267 = vcmp.eq.f32.partialorder %v151, 8.0
        %vm268 = vcmp.eq.f32.partialorder %v152, 8.0
        %vm269 = vcmp.eq.f32.partialorder %v153, 8.0
        %vm270 = vcmp.eq.f32.partialorder %v154, 8.0
        %vm271 = vcmp.eq.f32.partialorder %v151, 9.0
        %vm272 = vcmp.eq.f32.partialorder %v152, 9.0
        %vm273 = vcmp.eq.f32.partialorder %v153, 9.0
        %vm274 = vcmp.eq.f32.partialorder %v154, 9.0
        %vm275 = vcmp.eq.f32.partialorder %v151, 10.0
        %vm276 = vcmp.eq.f32.partialorder %v152, 10.0
        %vm277 = vcmp.eq.f32.partialorder %v153, 10.0
        %vm278 = vcmp.eq.f32.partialorder %v154, 10.0
        %v279 = vsel %vm247, %v231, 0.0
        %v280 = vsel %vm248, %v232, 0.0
        %v281 = vsel %vm249, %v233, 0.0
        %v282 = vsel %vm250, %v234, 0.0
        %v283 = vsel %vm243, %v219, %v279
        %v284 = vsel %vm244, %v220, %v280
        %v285 = vsel %vm245, %v221, %v281
        %v286 = vsel %vm246, %v222, %v282
        %v287 = vsel %vm239, %v199, %v283
        %v288 = vsel %vm240, %v200, %v284
        %v289 = vsel %vm241, %v201, %v285
        %v290 = vsel %vm242, %v202, %v286
        %v291 = vsel %vm235, %v171, %v287
        %v292 = vsel %vm236, %v172, %v288
        %v293 = vsel %vm237, %v173, %v289
        %v294 = vsel %vm238, %v174, %v290
        %v295 = vsel %vm251, %v231, 0.0
        %v296 = vsel %vm252, %v232, 0.0
        %v297 = vsel %vm253, %v233, 0.0
        %v298 = vsel %vm254, %v234, 0.0
        %v299 = vsel %vm247, %v219, %v295
        %v300 = vsel %vm248, %v220, %v296
        %v301 = vsel %vm249, %v221, %v297
        %v302 = vsel %vm250, %v222, %v298
        %v303 = vsel %vm243, %v199, %v299
        %v304 = vsel %vm244, %v200, %v300
        %v305 = vsel %vm245, %v201, %v301
        %v306 = vsel %vm246, %v202, %v302
        %v307 = vsel %vm239, %v171, %v303
        %v308 = vsel %vm240, %v172, %v304
        %v309 = vsel %vm241, %v173, %v305
        %v310 = vsel %vm242, %v174, %v306
        %v311 = vsel %vm255, %v231, 0.0
        %v312 = vsel %vm256, %v232, 0.0
        %v313 = vsel %vm257, %v233, 0.0
        %v314 = vsel %vm258, %v234, 0.0
        %v315 = vsel %vm251, %v219, %v311
        %v316 = vsel %vm252, %v220, %v312
        %v317 = vsel %vm253, %v221, %v313
        %v318 = vsel %vm254, %v222, %v314
        %v319 = vsel %vm247, %v199, %v315
        %v320 = vsel %vm248, %v200, %v316
        %v321 = vsel %vm249, %v201, %v317
        %v322 = vsel %vm250, %v202, %v318
        %v323 = vsel %vm243, %v171, %v319
        %v324 = vsel %vm244, %v172, %v320
        %v325 = vsel %vm245, %v173, %v321
        %v326 = vsel %vm246, %v174, %v322
        %v327 = vsel %vm259, %v231, 0.0
        %v328 = vsel %vm260, %v232, 0.0
        %v329 = vsel %vm261, %v233, 0.0
        %v330 = vsel %vm262, %v234, 0.0
        %v331 = vsel %vm255, %v219, %v327
        %v332 = vsel %vm256, %v220, %v328
        %v333 = vsel %vm257, %v221, %v329
        %v334 = vsel %vm258, %v222, %v330
        %v335 = vsel %vm251, %v199, %v331
        %v336 = vsel %vm252, %v200, %v332
        %v337 = vsel %vm253, %v201, %v333
        %v338 = vsel %vm254, %v202, %v334
        %v339 = vsel %vm247, %v171, %v335
        %v340 = vsel %vm248, %v172, %v336
        %v341 = vsel %vm249, %v173, %v337
        %v342 = vsel %vm250, %v174, %v338
        %v343 = vsel %vm263, %v231, 0.0
        %v344 = vsel %vm264, %v232, 0.0
        %v345 = vsel %vm265, %v233, 0.0
        %v346 = vsel %vm266, %v234, 0.0
        %v347 = vsel %vm259, %v219, %v343
        %v348 = vsel %vm260, %v220, %v344
        %v349 = vsel %vm261, %v221, %v345
        %v350 = vsel %vm262, %v222, %v346
        %v351 = vsel %vm255, %v199, %v347
        %v352 = vsel %vm256, %v200, %v348
        %v353 = vsel %vm257, %v201, %v349
        %v354 = vsel %vm258, %v202, %v350
        %v355 = vsel %vm251, %v171, %v351
        %v356 = vsel %vm252, %v172, %v352
        %v357 = vsel %vm253, %v173, %v353
        %v358 = vsel %vm254, %v174, %v354
        %v359 = vsel %vm267, %v231, 0.0
        %v360 = vsel %vm268, %v232, 0.0
        %v361 = vsel %vm269, %v233, 0.0
        %v362 = vsel %vm270, %v234, 0.0
        %v363 = vsel %vm263, %v219, %v359
        %v364 = vsel %vm264, %v220, %v360
        %v365 = vsel %vm265, %v221, %v361
        %v366 = vsel %vm266, %v222, %v362
        %v367 = vsel %vm259, %v199, %v363
        %v368 = vsel %vm260, %v200, %v364
        %v369 = vsel %vm261, %v201, %v365
        %v370 = vsel %vm262, %v202, %v366
        %v371 = vsel %vm255, %v171, %v367
        %v372 = vsel %vm256, %v172, %v368
        %v373 = vsel %vm257, %v173, %v369
        %v374 = vsel %vm258, %v174, %v370
        %v375 = vsel %vm271, %v231, 0.0
        %v376 = vsel %vm272, %v232, 0.0
        %v377 = vsel %vm273, %v233, 0.0
        %v378 = vsel %vm274, %v234, 0.0
        %v379 = vsel %vm267, %v219, %v375
        %v380 = vsel %vm268, %v220, %v376
        %v381 = vsel %vm269, %v221, %v377
        %v382 = vsel %vm270, %v222, %v378
        %v383 = vsel %vm263, %v199, %v379
        %v384 = vsel %vm264, %v200, %v380
        %v385 = vsel %vm265, %v201, %v381
        %v386 = vsel %vm266, %v202, %v382
        %v387 = vsel %vm259, %v171, %v383
        %v388 = vsel %vm260, %v172, %v384
        %v389 = vsel %vm261, %v173, %v385
        %v390 = vsel %vm262, %v174, %v386
        %v391 = vsel %vm275, %v231, 0.0
        %v392 = vsel %vm276, %v232, 0.0
        %v393 = vsel %vm277, %v233, 0.0
        %v394 = vsel %vm278, %v234, 0.0
        %v395 = vsel %vm271, %v219, %v391
        %v396 = vsel %vm272, %v220, %v392
        %v397 = vsel %vm273, %v221, %v393
        %v398 = vsel %vm274, %v222, %v394
        %v399 = vsel %vm267, %v199, %v395
        %v400 = vsel %vm268, %v200, %v396
        %v401 = vsel %vm269, %v201, %v397
        %v402 = vsel %vm270, %v202, %v398
        %v403 = vsel %vm263, %v171, %v399
        %v404 = vsel %vm264, %v172, %v400
        %v405 = vsel %vm265, %v173, %v401
        %v406 = vsel %vm266, %v174, %v402
        %v407 = vpack.c.bf16 %v140, %v139
        %v408 = vpack.c.bf16 %v142, %v141
        %v411 = vunpack.c.l.b16 %v407
        %v412 = vunpack.c.h.b16 %v407
        %v413 = vunpack.c.l.b16 %v408
        %v414 = vunpack.c.h.b16 %v408
        %v415 = vpack.c.b16 %v411, %v411
        %v416 = vpack.c.b16 %v412, %v412
        %v417 = vpack.c.b16 %v413, %v413
        %v418 = vpack.c.b16 %v414, %v414
        %vm423 = vcmask 224256
        %424 = vst.msk [vmem:[%s105] sm:$0xf] %vm423, %v415
        %425 = vst.msk [vmem:[%s105 + $0x4] sm:$0xf] %vm423, %v416
        %426 = vst.msk [vmem:[%s105 + $0x8] sm:$0xf] %vm423, %v417
        %vm427 = vcmask 222208
        %428 = vst.msk [vmem:[%s105 + $0xc] sm:$0x3] %vm427, %v418
        %v429 = vpack.c.bf16 %v292, %v291
        %v430 = vpack.c.bf16 %v294, %v293
        %v433 = vunpack.c.l.b16 %v429
        %v434 = vunpack.c.h.b16 %v429
        %v435 = vunpack.c.l.b16 %v430
        %v436 = vunpack.c.h.b16 %v430
        %v437 = vpack.c.b16 %v433, %v433
        %v438 = vpack.c.b16 %v434, %v434
        %v439 = vpack.c.b16 %v435, %v435
        %v440 = vpack.c.b16 %v436, %v436
        %s445 = scalar_lea.vmem %s105, 16 [#allocation2]
        %446 = vst.msk [vmem:[%s445] sm:$0xf] %vm423, %v437
        %447 = vst.msk [vmem:[%s445 + $0x4] sm:$0xf] %vm423, %v438
        %448 = vst.msk [vmem:[%s445 + $0x8] sm:$0xf] %vm423, %v439
        %449 = vst.msk [vmem:[%s445 + $0xc] sm:$0x3] %vm427, %v440
        %v450 = vpack.c.bf16 %v308, %v307
        %v451 = vpack.c.bf16 %v310, %v309
        %v454 = vunpack.c.l.b16 %v450
        %v455 = vunpack.c.h.b16 %v450
        %v456 = vunpack.c.l.b16 %v451
        %v457 = vunpack.c.h.b16 %v451
        %v458 = vpack.c.b16 %v454, %v454
        %v459 = vpack.c.b16 %v455, %v455
        %v460 = vpack.c.b16 %v456, %v456
        %v461 = vpack.c.b16 %v457, %v457
        %s466 = scalar_lea.vmem %s105, 32 [#allocation2]
        %467 = vst.msk [vmem:[%s466] sm:$0xf] %vm423, %v458
        %468 = vst.msk [vmem:[%s466 + $0x4] sm:$0xf] %vm423, %v459
        %469 = vst.msk [vmem:[%s466 + $0x8] sm:$0xf] %vm423, %v460
        %470 = vst.msk [vmem:[%s466 + $0xc] sm:$0x3] %vm427, %v461
        %v471 = vpack.c.bf16 %v324, %v323
        %v472 = vpack.c.bf16 %v326, %v325
        %v475 = vunpack.c.l.b16 %v471
        %v476 = vunpack.c.h.b16 %v471
        %v477 = vunpack.c.l.b16 %v472
        %v478 = vunpack.c.h.b16 %v472
        %v479 = vpack.c.b16 %v475, %v475
        %v480 = vpack.c.b16 %v476, %v476
        %v481 = vpack.c.b16 %v477, %v477
        %v482 = vpack.c.b16 %v478, %v478
        %s487 = scalar_lea.vmem %s105, 48 [#allocation2]
        %488 = vst.msk [vmem:[%s487] sm:$0xf] %vm423, %v479
        %489 = vst.msk [vmem:[%s487 + $0x4] sm:$0xf] %vm423, %v480
        %490 = vst.msk [vmem:[%s487 + $0x8] sm:$0xf] %vm423, %v481
        %491 = vst.msk [vmem:[%s487 + $0xc] sm:$0x3] %vm427, %v482
        %v492 = vpack.c.bf16 %v340, %v339
        %v493 = vpack.c.bf16 %v342, %v341
        %v496 = vunpack.c.l.b16 %v492
        %v497 = vunpack.c.h.b16 %v492
        %v498 = vunpack.c.l.b16 %v493
        %v499 = vunpack.c.h.b16 %v493
        %v500 = vpack.c.b16 %v496, %v496
        %v501 = vpack.c.b16 %v497, %v497
        %v502 = vpack.c.b16 %v498, %v498
        %v503 = vpack.c.b16 %v499, %v499
        %s508 = scalar_lea.vmem %s105, 64 [#allocation2]
        %509 = vst.msk [vmem:[%s508] sm:$0xf] %vm423, %v500
        %510 = vst.msk [vmem:[%s508 + $0x4] sm:$0xf] %vm423, %v501
        %511 = vst.msk [vmem:[%s508 + $0x8] sm:$0xf] %vm423, %v502
        %512 = vst.msk [vmem:[%s508 + $0xc] sm:$0x3] %vm427, %v503
        %v513 = vpack.c.bf16 %v356, %v355
        %v514 = vpack.c.bf16 %v358, %v357
        %v517 = vunpack.c.l.b16 %v513
        %v518 = vunpack.c.h.b16 %v513
        %v519 = vunpack.c.l.b16 %v514
        %v520 = vunpack.c.h.b16 %v514
        %v521 = vpack.c.b16 %v517, %v517
        %v522 = vpack.c.b16 %v518, %v518
        %v523 = vpack.c.b16 %v519, %v519
        %v524 = vpack.c.b16 %v520, %v520
        %s529 = scalar_lea.vmem %s105, 80 [#allocation2]
        %530 = vst.msk [vmem:[%s529] sm:$0xf] %vm423, %v521
        %531 = vst.msk [vmem:[%s529 + $0x4] sm:$0xf] %vm423, %v522
        %532 = vst.msk [vmem:[%s529 + $0x8] sm:$0xf] %vm423, %v523
        %533 = vst.msk [vmem:[%s529 + $0xc] sm:$0x3] %vm427, %v524
        %v534 = vpack.c.bf16 %v372, %v371
        %v535 = vpack.c.bf16 %v374, %v373
        %v538 = vunpack.c.l.b16 %v534
        %v539 = vunpack.c.h.b16 %v534
        %v540 = vunpack.c.l.b16 %v535
        %v541 = vunpack.c.h.b16 %v535
        %v542 = vpack.c.b16 %v538, %v538
        %v543 = vpack.c.b16 %v539, %v539
        %v544 = vpack.c.b16 %v540, %v540
        %v545 = vpack.c.b16 %v541, %v541
        %s550 = scalar_lea.vmem %s105, 96 [#allocation2]
        %551 = vst.msk [vmem:[%s550] sm:$0xf] %vm423, %v542
        %552 = vst.msk [vmem:[%s550 + $0x4] sm:$0xf] %vm423, %v543
        %553 = vst.msk [vmem:[%s550 + $0x8] sm:$0xf] %vm423, %v544
        %554 = vst.msk [vmem:[%s550 + $0xc] sm:$0x3] %vm427, %v545
        %v555 = vpack.c.bf16 %v388, %v387
        %v556 = vpack.c.bf16 %v390, %v389
        %v559 = vunpack.c.l.b16 %v555
        %v560 = vunpack.c.h.b16 %v555
        %v561 = vunpack.c.l.b16 %v556
        %v562 = vunpack.c.h.b16 %v556
        %v563 = vpack.c.b16 %v559, %v559
        %v564 = vpack.c.b16 %v560, %v560
        %v565 = vpack.c.b16 %v561, %v561
        %v566 = vpack.c.b16 %v562, %v562
        %s571 = scalar_lea.vmem %s105, 112 [#allocation2]
        %572 = vst.msk [vmem:[%s571] sm:$0xf] %vm423, %v563
        %573 = vst.msk [vmem:[%s571 + $0x4] sm:$0xf] %vm423, %v564
        %574 = vst.msk [vmem:[%s571 + $0x8] sm:$0xf] %vm423, %v565
        %575 = vst.msk [vmem:[%s571 + $0xc] sm:$0x3] %vm427, %v566
        %v576 = vpack.c.bf16 %v404, %v403
        %v577 = vpack.c.bf16 %v406, %v405
        %v580 = vunpack.c.l.b16 %v576
        %v581 = vunpack.c.h.b16 %v576
        %v582 = vunpack.c.l.b16 %v577
        %v583 = vunpack.c.h.b16 %v577
        %v584 = vpack.c.b16 %v580, %v580
        %v585 = vpack.c.b16 %v581, %v581
        %v586 = vpack.c.b16 %v582, %v582
        %v587 = vpack.c.b16 %v583, %v583
        %s592 = scalar_lea.vmem %s105, 128 [#allocation2]
        %593 = vst.msk [vmem:[%s592] sm:$0xf] %vm423, %v584
        %594 = vst.msk [vmem:[%s592 + $0x4] sm:$0xf] %vm423, %v585
        %595 = vst.msk [vmem:[%s592 + $0x8] sm:$0xf] %vm423, %v586
        %596 = vst.msk [vmem:[%s592 + $0xc] sm:$0x3] %vm427, %v587
        %s597 = sand.u32 %s46, 1
        %s598 = sand.u32 %s46, 1
        %s599 = smul.addr %s598, 144
        %s600 = scalar_lea.vmem [#allocation2], %s599
        // Predicated region
        $region25: #{simple_conv_kan_forward.5} parent=23 // pred_check
          %p601 = pneg %p56
        $region26: #{simple_conv_kan_forward.5} parent=23 // pred_check_branch
          %603 = sbr.rel (%p601) target = $region28
        $region27: #{simple_conv_kan_forward.5} parent=23 // pred_region
          %s604 = smul.addr %s12, 4
          %s605 = smul.addr %s604, 4
          %s606 = scalar_lea.vmem %s1, %s605
          // Predicated region
          $region29: #{simple_conv_kan_forward.5} parent=27 // pred_check
            _
          $region30: #{simple_conv_kan_forward.5} parent=27 // pred_check_branch
            %608 = sbr.rel (0) target = $region32
          $region31: #{simple_conv_kan_forward.5} parent=27 // pred_region
            // Predicated region
            $region33: #{simple_conv_kan_forward.5} parent=31 // pred_check
              _
            $region34: #{simple_conv_kan_forward.5} parent=31 // pred_check_branch
              %610 = sbr.rel target = $region36
            $region35: #{simple_conv_kan_forward.5} parent=31 // pred_region
              // Predicated region
              $region48: #{simple_conv_kan_forward.5} parent=35 // pred_check
                _
              $region49: #{simple_conv_kan_forward.5} parent=35 // pred_check_branch
                %696 = sbr.rel (0) target = $region51
              $region50: #{simple_conv_kan_forward.5} parent=35 // pred_region
                loop: start=0, step=1, limit=1
                $region52: #{simple_conv_kan_forward.5} parent=50 // loop_pre_header
                  _
                $region53: #{simple_conv_kan_forward.5} parent=50 // loop_header
                  %s698 = sphi 0, %s702
                  %p699 = scmp.ge.s32.totalorder %s698, 1
                  %s703 = sphi %s600, %s600
                  %s704 = sphi %s606, %s606
                $region54: #{simple_conv_kan_forward.5} parent=50 // loop_header_branch
                  %701 = sbr.rel (%p699) target = $region58
                $region55: #{simple_conv_kan_forward.5} parent=50 // loop_body
                  _
                $region56: #{simple_conv_kan_forward.5} parent=50 // loop_footer
                  %s702 = sadd.s32 1, %s698
                $region57: #{simple_conv_kan_forward.5} parent=50 // loop_footer_branch
                  %697 = sbr.rel target = $region53
                $region58: #{simple_conv_kan_forward.5} parent=50 // loop_exit
                  _
                %s706 = ssub.s32 16, 1
                loop: start=0, step=1, limit=1
                $region59: #{simple_conv_kan_forward.5} parent=50 // loop_pre_header
                  _
                $region60: #{simple_conv_kan_forward.5} parent=50 // loop_header
                  %s708 = sphi 0, %s712
                  %p709 = scmp.ge.s32.totalorder %s708, 1
                  %s713 = sphi %s600, %s600
                  %s714 = sphi %s606, %s606
                $region61: #{simple_conv_kan_forward.5} parent=50 // loop_header_branch
                  %711 = sbr.rel (%p709) target = $region65
                $region62: #{simple_conv_kan_forward.5} parent=50 // loop_body
                  %v715 = vld [vmem:[%s713] sm:%s706]
                  %716 = vst [vmem:[%s714] sm:%s706] %v715
                  %v717 = vld [vmem:[%s713 + $0x4] sm:%s706]
                  %718 = vst [vmem:[%s714 + $0x4] sm:%s706] %v717
                  %v719 = vld [vmem:[%s713 + $0x8] sm:%s706]
                  %720 = vst [vmem:[%s714 + $0x8] sm:%s706] %v719
                  %v721 = vld [vmem:[%s713 + $0xc] sm:%s706]
                  %722 = vst [vmem:[%s714 + $0xc] sm:%s706] %v721
                  %v723 = vld [vmem:[%s713 + $0x10] sm:%s706]
                  %724 = vst [vmem:[%s714 + $0x20] sm:%s706] %v723
                  %v725 = vld [vmem:[%s713 + $0x14] sm:%s706]
                  %726 = vst [vmem:[%s714 + $0x24] sm:%s706] %v725
                  %v727 = vld [vmem:[%s713 + $0x18] sm:%s706]
                  %728 = vst [vmem:[%s714 + $0x28] sm:%s706] %v727
                  %v729 = vld [vmem:[%s713 + $0x1c] sm:%s706]
                  %730 = vst [vmem:[%s714 + $0x2c] sm:%s706] %v729
                  %v731 = vld [vmem:[%s713 + $0x20] sm:%s706]
                  %732 = vst [vmem:[%s714 + $0x40] sm:%s706] %v731
                  %v733 = vld [vmem:[%s713 + $0x24] sm:%s706]
                  %734 = vst [vmem:[%s714 + $0x44] sm:%s706] %v733
                  %v735 = vld [vmem:[%s713 + $0x28] sm:%s706]
                  %736 = vst [vmem:[%s714 + $0x48] sm:%s706] %v735
                  %v737 = vld [vmem:[%s713 + $0x2c] sm:%s706]
                  %738 = vst [vmem:[%s714 + $0x4c] sm:%s706] %v737
                  %v739 = vld [vmem:[%s713 + $0x30] sm:%s706]
                  %740 = vst [vmem:[%s714 + $0x60] sm:%s706] %v739
                  %v741 = vld [vmem:[%s713 + $0x34] sm:%s706]
                  %742 = vst [vmem:[%s714 + $0x64] sm:%s706] %v741
                  %v743 = vld [vmem:[%s713 + $0x38] sm:%s706]
                  %744 = vst [vmem:[%s714 + $0x68] sm:%s706] %v743
                  %v745 = vld [vmem:[%s713 + $0x3c] sm:%s706]
                  %746 = vst [vmem:[%s714 + $0x6c] sm:%s706] %v745
                  %v747 = vld [vmem:[%s713 + $0x40] sm:%s706]
                  %748 = vst [vmem:[%s714 + $0x80] sm:%s706] %v747
                  %v749 = vld [vmem:[%s713 + $0x44] sm:%s706]
                  %750 = vst [vmem:[%s714 + $0x84] sm:%s706] %v749
                  %v751 = vld [vmem:[%s713 + $0x48] sm:%s706]
                  %752 = vst [vmem:[%s714 + $0x88] sm:%s706] %v751
                  %v753 = vld [vmem:[%s713 + $0x4c] sm:%s706]
                  %754 = vst [vmem:[%s714 + $0x8c] sm:%s706] %v753
                  %v755 = vld [vmem:[%s713 + $0x50] sm:%s706]
                  %756 = vst [vmem:[%s714 + $0xa0] sm:%s706] %v755
                  %v757 = vld [vmem:[%s713 + $0x54] sm:%s706]
                  %758 = vst [vmem:[%s714 + $0xa4] sm:%s706] %v757
                  %v759 = vld [vmem:[%s713 + $0x58] sm:%s706]
                  %760 = vst [vmem:[%s714 + $0xa8] sm:%s706] %v759
                  %v761 = vld [vmem:[%s713 + $0x5c] sm:%s706]
                  %762 = vst [vmem:[%s714 + $0xac] sm:%s706] %v761
                  %v763 = vld [vmem:[%s713 + $0x60] sm:%s706]
                  %764 = vst [vmem:[%s714 + $0xc0] sm:%s706] %v763
                  %v765 = vld [vmem:[%s713 + $0x64] sm:%s706]
                  %766 = vst [vmem:[%s714 + $0xc4] sm:%s706] %v765
                  %v767 = vld [vmem:[%s713 + $0x68] sm:%s706]
                  %768 = vst [vmem:[%s714 + $0xc8] sm:%s706] %v767
                  %v769 = vld [vmem:[%s713 + $0x6c] sm:%s706]
                  %770 = vst [vmem:[%s714 + $0xcc] sm:%s706] %v769
                  %v771 = vld [vmem:[%s713 + $0x70] sm:%s706]
                  %772 = vst [vmem:[%s714 + $0xe0] sm:%s706] %v771
                  %v773 = vld [vmem:[%s713 + $0x74] sm:%s706]
                  %774 = vst [vmem:[%s714 + $0xe4] sm:%s706] %v773
                  %v775 = vld [vmem:[%s713 + $0x78] sm:%s706]
                  %776 = vst [vmem:[%s714 + $0xe8] sm:%s706] %v775
                  %v777 = vld [vmem:[%s713 + $0x7c] sm:%s706]
                  %778 = vst [vmem:[%s714 + $0xec] sm:%s706] %v777
                  %v779 = vld [vmem:[%s713 + $0x80] sm:%s706]
                  %780 = vst [vmem:[%s714 + $0x100] sm:%s706] %v779
                  %v781 = vld [vmem:[%s713 + $0x84] sm:%s706]
                  %782 = vst [vmem:[%s714 + $0x104] sm:%s706] %v781
                  %v783 = vld [vmem:[%s713 + $0x88] sm:%s706]
                  %784 = vst [vmem:[%s714 + $0x108] sm:%s706] %v783
                  %v785 = vld [vmem:[%s713 + $0x8c] sm:%s706]
                  %786 = vst [vmem:[%s714 + $0x10c] sm:%s706] %v785
                $region63: #{simple_conv_kan_forward.5} parent=50 // loop_footer
                  %s712 = sadd.s32 1, %s708
                $region64: #{simple_conv_kan_forward.5} parent=50 // loop_footer_branch
                  %707 = sbr.rel target = $region60
                $region65: #{simple_conv_kan_forward.5} parent=50 // loop_exit
                  _
              $region51: #{simple_conv_kan_forward.5} parent=35 // pred_fallthru
                _
            $region36: #{simple_conv_kan_forward.5} parent=31 // pred_fallthru
              _
            // Predicated region
            $region37: #{simple_conv_kan_forward.5} parent=31 // pred_check
              _
            $region38: #{simple_conv_kan_forward.5} parent=31 // pred_check_branch
              %612 = sbr.rel (0) target = $region40
            $region39: #{simple_conv_kan_forward.5} parent=31 // pred_region
              %s614 = ssub.s32 16, 1
              loop: start=0, step=1, limit=1
              $region41: #{simple_conv_kan_forward.5} parent=39 // loop_pre_header
                _
              $region42: #{simple_conv_kan_forward.5} parent=39 // loop_header
                %s616 = sphi 0, %s620
                %p617 = scmp.ge.s32.totalorder %s616, 1
                %s621 = sphi %s600, %s600
                %s622 = sphi %s606, %s606
              $region43: #{simple_conv_kan_forward.5} parent=39 // loop_header_branch
                %619 = sbr.rel (%p617) target = $region47
              $region44: #{simple_conv_kan_forward.5} parent=39 // loop_body
                %v623 = vld [vmem:[%s621] sm:%s614]
                %624 = vst [vmem:[%s622] sm:%s614] %v623
                %v625 = vld [vmem:[%s621 + $0x4] sm:%s614]
                %626 = vst [vmem:[%s622 + $0x4] sm:%s614] %v625
                %v627 = vld [vmem:[%s621 + $0x8] sm:%s614]
                %628 = vst [vmem:[%s622 + $0x8] sm:%s614] %v627
                %v629 = vld [vmem:[%s621 + $0xc] sm:%s614]
                %630 = vst [vmem:[%s622 + $0xc] sm:%s614] %v629
                %v631 = vld [vmem:[%s621 + $0x10] sm:%s614]
                %632 = vst [vmem:[%s622 + $0x20] sm:%s614] %v631
                %v633 = vld [vmem:[%s621 + $0x14] sm:%s614]
                %634 = vst [vmem:[%s622 + $0x24] sm:%s614] %v633
                %v635 = vld [vmem:[%s621 + $0x18] sm:%s614]
                %636 = vst [vmem:[%s622 + $0x28] sm:%s614] %v635
                %v637 = vld [vmem:[%s621 + $0x1c] sm:%s614]
                %638 = vst [vmem:[%s622 + $0x2c] sm:%s614] %v637
                %v639 = vld [vmem:[%s621 + $0x20] sm:%s614]
                %640 = vst [vmem:[%s622 + $0x40] sm:%s614] %v639
                %v641 = vld [vmem:[%s621 + $0x24] sm:%s614]
                %642 = vst [vmem:[%s622 + $0x44] sm:%s614] %v641
                %v643 = vld [vmem:[%s621 + $0x28] sm:%s614]
                %644 = vst [vmem:[%s622 + $0x48] sm:%s614] %v643
                %v645 = vld [vmem:[%s621 + $0x2c] sm:%s614]
                %646 = vst [vmem:[%s622 + $0x4c] sm:%s614] %v645
                %v647 = vld [vmem:[%s621 + $0x30] sm:%s614]
                %648 = vst [vmem:[%s622 + $0x60] sm:%s614] %v647
                %v649 = vld [vmem:[%s621 + $0x34] sm:%s614]
                %650 = vst [vmem:[%s622 + $0x64] sm:%s614] %v649
                %v651 = vld [vmem:[%s621 + $0x38] sm:%s614]
                %652 = vst [vmem:[%s622 + $0x68] sm:%s614] %v651
                %v653 = vld [vmem:[%s621 + $0x3c] sm:%s614]
                %654 = vst [vmem:[%s622 + $0x6c] sm:%s614] %v653
                %v655 = vld [vmem:[%s621 + $0x40] sm:%s614]
                %656 = vst [vmem:[%s622 + $0x80] sm:%s614] %v655
                %v657 = vld [vmem:[%s621 + $0x44] sm:%s614]
                %658 = vst [vmem:[%s622 + $0x84] sm:%s614] %v657
                %v659 = vld [vmem:[%s621 + $0x48] sm:%s614]
                %660 = vst [vmem:[%s622 + $0x88] sm:%s614] %v659
                %v661 = vld [vmem:[%s621 + $0x4c] sm:%s614]
                %662 = vst [vmem:[%s622 + $0x8c] sm:%s614] %v661
                %v663 = vld [vmem:[%s621 + $0x50] sm:%s614]
                %664 = vst [vmem:[%s622 + $0xa0] sm:%s614] %v663
                %v665 = vld [vmem:[%s621 + $0x54] sm:%s614]
                %666 = vst [vmem:[%s622 + $0xa4] sm:%s614] %v665
                %v667 = vld [vmem:[%s621 + $0x58] sm:%s614]
                %668 = vst [vmem:[%s622 + $0xa8] sm:%s614] %v667
                %v669 = vld [vmem:[%s621 + $0x5c] sm:%s614]
                %670 = vst [vmem:[%s622 + $0xac] sm:%s614] %v669
                %v671 = vld [vmem:[%s621 + $0x60] sm:%s614]
                %672 = vst [vmem:[%s622 + $0xc0] sm:%s614] %v671
                %v673 = vld [vmem:[%s621 + $0x64] sm:%s614]
                %674 = vst [vmem:[%s622 + $0xc4] sm:%s614] %v673
                %v675 = vld [vmem:[%s621 + $0x68] sm:%s614]
                %676 = vst [vmem:[%s622 + $0xc8] sm:%s614] %v675
                %v677 = vld [vmem:[%s621 + $0x6c] sm:%s614]
                %678 = vst [vmem:[%s622 + $0xcc] sm:%s614] %v677
                %v679 = vld [vmem:[%s621 + $0x70] sm:%s614]
                %680 = vst [vmem:[%s622 + $0xe0] sm:%s614] %v679
                %v681 = vld [vmem:[%s621 + $0x74] sm:%s614]
                %682 = vst [vmem:[%s622 + $0xe4] sm:%s614] %v681
                %v683 = vld [vmem:[%s621 + $0x78] sm:%s614]
                %684 = vst [vmem:[%s622 + $0xe8] sm:%s614] %v683
                %v685 = vld [vmem:[%s621 + $0x7c] sm:%s614]
                %686 = vst [vmem:[%s622 + $0xec] sm:%s614] %v685
                %v687 = vld [vmem:[%s621 + $0x80] sm:%s614]
                %688 = vst [vmem:[%s622 + $0x100] sm:%s614] %v687
                %v689 = vld [vmem:[%s621 + $0x84] sm:%s614]
                %690 = vst [vmem:[%s622 + $0x104] sm:%s614] %v689
                %v691 = vld [vmem:[%s621 + $0x88] sm:%s614]
                %692 = vst [vmem:[%s622 + $0x108] sm:%s614] %v691
                %v693 = vld [vmem:[%s621 + $0x8c] sm:%s614]
                %694 = vst [vmem:[%s622 + $0x10c] sm:%s614] %v693
              $region45: #{simple_conv_kan_forward.5} parent=39 // loop_footer
                %s620 = sadd.s32 1, %s616
              $region46: #{simple_conv_kan_forward.5} parent=39 // loop_footer_branch
                %615 = sbr.rel target = $region42
              $region47: #{simple_conv_kan_forward.5} parent=39 // loop_exit
                _
            $region40: #{simple_conv_kan_forward.5} parent=31 // pred_fallthru
              _
          $region32: #{simple_conv_kan_forward.5} parent=27 // pred_fallthru
            _
          %787 = vnop
        $region28: #{simple_conv_kan_forward.5} parent=23 // pred_fallthru
          _
      $region24: #{simple_conv_kan_forward.5} parent=5 // pred_fallthru
        _
      %p788 = scmp.le.s32.totalorder 2, %s7
      // Predicated region
      $region66: #{simple_conv_kan_forward.5} parent=5 // pred_check
        %p789 = pneg %p788
      $region67: #{simple_conv_kan_forward.5} parent=5 // pred_check_branch
        %791 = sbr.rel (%p789) target = $region69
      $region68: #{simple_conv_kan_forward.5} parent=5 // pred_region
        %s792 = ssub.s32 %s7, 2
        // Predicated region
        $region70: #{simple_conv_kan_forward.5} parent=68 // pred_check
          %p793 = pneg %p62
        $region71: #{simple_conv_kan_forward.5} parent=68 // pred_check_branch
          %795 = sbr.rel (%p793) target = $region73
        $region72: #{simple_conv_kan_forward.5} parent=68 // pred_region
          %s796 = sand.u32 %s47, 1
          %s797 = sand.u32 %s47, 1
          %s798 = smul.addr %s797, 144
          %s799 = scalar_lea.vmem [#allocation2], %s798
        $region73: #{simple_conv_kan_forward.5} parent=68 // pred_fallthru
          _
      $region69: #{simple_conv_kan_forward.5} parent=5 // pred_fallthru
        _
    $region6: #{simple_conv_kan_forward.5} parent=1 // loop_footer
      %s11 = sadd.s32 1, %s7
    $region7: #{simple_conv_kan_forward.5} parent=1 // loop_footer_branch
      %6 = sbr.rel target = $region3
    $region8: #{simple_conv_kan_forward.5} parent=1 // loop_exit
      _

// kernel: simple_conv_kan_forward.7
$region0: #{simple_conv_kan_forward.7}
  #allocation0 [shape = 'u32[]', space=smem, size = 0x4, offset = 0x4, fixed_abs, tag = 'smem constant byte address 0x4 - core index']
  #allocation1 [shape = 'u32[144,128]{1,0:T(1,128)}', space=vmem, size = 0x12000, scoped, tag = 'internal scratch']
  %s0 = inlined_call_operand.vmem [shape: bf16[2,12,72], index: 0, kind: input, shape index: {}]
  %s1 = inlined_call_operand.vmem [shape: bf16[9,2,12,72], index: 1, kind: output, shape index: {}]
  %s2 = sld [smem:[#allocation0]]
  $region74: #{simple_conv_kan_forward.7} parent=0
    _
  %s4 = ssub.s32 1, %s2
  %s5 = scalar_select 0, %s4, %s2
  $region1: #{simple_conv_kan_forward.7} parent=0
    #allocation2 [shape = 'u8[73728]{0}', space=vmem, size = 0x12000, scoped, tag = 'output window, operand 0']
    loop: start=0, step=1, limit=4
    $region2: #{simple_conv_kan_forward.7} parent=1 // loop_pre_header
      _
    $region3: #{simple_conv_kan_forward.7} parent=1 // loop_header
      %s7 = sphi 0, %s11
      %p8 = scmp.ge.s32.totalorder %s7, 4
      %s17 = sphi 0, %s19
      %s20 = sphi 0, %s17
      %s21 = sphi 0, %s20
      %s37 = sphi 0, %s21
      %s43 = sphi 0, %s45
      %s46 = sphi 0, %s43
      %s47 = sphi 0, %s46
      %s63 = sphi 0, %s47
    $region4: #{simple_conv_kan_forward.7} parent=1 // loop_header_branch
      %10 = sbr.rel (%p8) target = $region8
    $region5: #{simple_conv_kan_forward.7} parent=1 // loop_body
      %s12 = ssub.s32 %s7, 1
      %s13 = ssub.s32 %s7, 2
      %s14 = sadd.s32 %s7, 1
      %s15 = ssub.s32 %s7, %s14
      %p16 = scmp.eq.s32.totalorder %s15, 0
      %s18 = sadd.s32 %s17, 1
      %s19 = scalar_select %p16, %s17, %s18
      %p22 = pneg %p16
      %p23 = scmp.eq.s32.totalorder %s7, 1
      %p24 = por %p22, %p23
      %p25 = scmp.ne.s32.totalorder %s17, %s20
      %p26 = scmp.eq.s32.totalorder %s7, 0
      %p27 = por %p25, %p26
      %p28 = scmp.ne.s32.totalorder %s17, %s20
      %p29 = scmp.eq.s32.totalorder %s12, 1
      %p30 = por %p28, %p29
      %p31 = scmp.ne.s32.totalorder %s20, %s21
      %p32 = scmp.eq.s32.totalorder %s12, 0
      %p33 = por %p31, %p32
      %p34 = scmp.ne.s32.totalorder %s20, %s21
      %p35 = scmp.eq.s32.totalorder %s13, 1
      %p36 = por %p34, %p35
      %p38 = scmp.ne.s32.totalorder %s21, %s37
      %p39 = scmp.eq.s32.totalorder %s13, 0
      %p40 = por %p38, %p39
      %s41 = ssub.s32 %s7, %s14
      %p42 = scmp.eq.s32.totalorder %s41, 0
      %s44 = sadd.s32 %s43, 1
      %s45 = scalar_select %p42, %s43, %s44
      %p48 = pneg %p42
      %p49 = scmp.eq.s32.totalorder %s7, 1
      %p50 = por %p48, %p49
      %p51 = scmp.ne.s32.totalorder %s43, %s46
      %p52 = scmp.eq.s32.totalorder %s7, 0
      %p53 = por %p51, %p52
      %p54 = scmp.ne.s32.totalorder %s43, %s46
      %p55 = scmp.eq.s32.totalorder %s12, 1
      %p56 = por %p54, %p55
      %p57 = scmp.ne.s32.totalorder %s46, %s47
      %p58 = scmp.eq.s32.totalorder %s12, 0
      %p59 = por %p57, %p58
      %p60 = scmp.ne.s32.totalorder %s46, %s47
      %p61 = scmp.eq.s32.totalorder %s13, 1
      %p62 = por %p60, %p61
      %p64 = scmp.ne.s32.totalorder %s47, %s63
      %p65 = scmp.eq.s32.totalorder %s13, 0
      %p66 = por %p64, %p65
      %p67 = scmp.le.s32.totalorder 1, %s7
      %p68 = scmp.lt.s32.totalorder %s7, 3
      %p69 = pnand %p67, %p68
      %p70 = pneg %p69
      // Predicated region
      $region9: #{simple_conv_kan_forward.7} parent=5 // pred_check
        _
      $region10: #{simple_conv_kan_forward.7} parent=5 // pred_check_branch
        %72 = sbr.rel (%p69) target = $region12
      $region11: #{simple_conv_kan_forward.7} parent=5 // pred_region
        %s73 = ssub.s32 %s7, 1
      $region12: #{simple_conv_kan_forward.7} parent=5 // pred_fallthru
        _
      %p74 = scmp.lt.s32.totalorder %s7, 2
      // Predicated region
      $region13: #{simple_conv_kan_forward.7} parent=5 // pred_check
        %p75 = pneg %p74
      $region14: #{simple_conv_kan_forward.7} parent=5 // pred_check_branch
        %77 = sbr.rel (%p75) target = $region16
      $region15: #{simple_conv_kan_forward.7} parent=5 // pred_region
        // Predicated region
        $region17: #{simple_conv_kan_forward.7} parent=15 // pred_check
          %p78 = pneg %p27
        $region18: #{simple_conv_kan_forward.7} parent=15 // pred_check_branch
          %80 = sbr.rel (%p78) target = $region20
        $region19: #{simple_conv_kan_forward.7} parent=15 // pred_region
          %p81 = scmp.lt.s32.totalorder %s7, 1
          %s82 = scalar_select %p81, %s7, 1
          %s83 = smul.addr %s82, 2
          %s84 = smul.addr %s83, 4
          %s85 = scalar_lea.vmem %s0, %s84
        $region20: #{simple_conv_kan_forward.7} parent=15 // pred_fallthru
          _
      $region16: #{simple_conv_kan_forward.7} parent=5 // pred_fallthru
        _
      %p86 = scmp.le.s32.totalorder 1, %s7
      %p87 = scmp.lt.s32.totalorder %s7, 3
      %p88 = pnand %p86, %p87
      %p89 = pneg %p88
      // Predicated region
      $region21: #{simple_conv_kan_forward.7} parent=5 // pred_check
        _
      $region22: #{simple_conv_kan_forward.7} parent=5 // pred_check_branch
        %91 = sbr.rel (%p88) target = $region24
      $region23: #{simple_conv_kan_forward.7} parent=5 // pred_region
        %s92 = ssub.s32 %s7, 1
        %p93 = scmp.lt.s32.totalorder %s12, 1
        %s94 = scalar_select %p93, %s12, 1
        %s95 = smul.addr %s94, 2
        %s96 = smul.addr %s95, 4
        %s97 = scalar_lea.vmem %s0, %s96
        %p98 = pneg %p33
        %p99 = pneg %p30
        %p100 = pneg %p59
        %p101 = pneg %p56
        %s102 = sand.u32 %s46, 1
        %s103 = sand.u32 %s46, 1
        %s104 = smul.addr %s103, 72
        %s105 = scalar_lea.vmem [#allocation2], %s104
        %p106 = scmp.lt.s32.totalorder %s12, 1
        %s107 = scalar_select %p106, %s12, 1
        %s108 = smul.addr %s107, 2
        %s109 = smul.addr %s108, 4
        %s110 = scalar_lea.vmem %s0, %s109
        %v111 = vld [vmem:[%s110] sm:$0xf]
        %v112 = vld [vmem:[%s110 + $0x4] sm:$0x3]
        %v113 = vunpack.c.l.bf16 %v111
        %v114 = vunpack.c.l.bf16 %v112
        %v115 = vsub.f32 0.0, %v113
        %v116 = vsub.f32 0.0, %v114
        %v117 = vmul.f32 %v115, 1.442695
        %v118 = vpow.pop %v117
        %v119 = vmul.f32 %v116, 1.442695
        %v120 = vpow.pop %v119
        %v121 = vadd.f32 %v118, 1.0
        %v122 = vadd.f32 %v120, 1.0
        %v123 = vrcp.pop %v121
        %v124 = vmul.f32 1.0, %v123
        %v125 = vrcp.pop %v122
        %v126 = vmul.f32 1.0, %v125
        %v127 = vmul.f32 %v113, %v124
        %v128 = vmul.f32 %v114, %v126
        %v129 = vsub.f32 %v113, -2.2
        %v130 = vsub.f32 %v114, -2.2
        %v131 = vmul.f32 %v129, 2.5
        %v132 = vmul.f32 %v130, 2.5
        %v133 = vfloor.f32 %v131
        %v134 = vfloor.f32 %v132
        %v135 = vsub.f32 %v131, %v133
        %v136 = vsub.f32 %v132, %v134
        %v137 = vmul.f32 %v135, %v135
        %v138 = vmul.f32 %v136, %v136
        %v139 = vmul.f32 %v137, %v135
        %v140 = vmul.f32 %v138, %v136
        %v141 = vsub.f32 1.0, %v135
        %v142 = vsub.f32 1.0, %v136
        %v143 = vmul.f32 %v139, 0.16666667
        %v144 = vmul.f32 %v140, 0.16666667
        %v145 = vmul.f32 %v139, -3.0
        %v146 = vmul.f32 %v140, -3.0
        %v147 = vmul.f32 %v137, 3.0
        %v148 = vmul.f32 %v138, 3.0
        %v149 = vadd.f32 %v145, %v147
        %v150 = vadd.f32 %v146, %v148
        %v151 = vmul.f32 %v135, 3.0
        %v152 = vmul.f32 %v136, 3.0
        %v153 = vadd.f32 %v149, %v151
        %v154 = vadd.f32 %v150, %v152
        %v155 = vadd.f32 %v153, 1.0
        %v156 = vadd.f32 %v154, 1.0
        %v157 = vmul.f32 %v155, 0.16666667
        %v158 = vmul.f32 %v156, 0.16666667
        %v159 = vmul.f32 %v139, 3.0
        %v160 = vmul.f32 %v140, 3.0
        %v161 = vmul.f32 %v137, 6.0
        %v162 = vmul.f32 %v138, 6.0
        %v163 = vsub.f32 %v159, %v161
        %v164 = vsub.f32 %v160, %v162
        %v165 = vadd.f32 %v163, 4.0
        %v166 = vadd.f32 %v164, 4.0
        %v167 = vmul.f32 %v165, 0.16666667
        %v168 = vmul.f32 %v166, 0.16666667
        %v169 = vmul.f32 %v141, %v141
        %v170 = vmul.f32 %v142, %v142
        %v171 = vmul.f32 %v169, %v141
        %v172 = vmul.f32 %v170, %v142
        %v173 = vmul.f32 %v171, 0.16666667
        %v174 = vmul.f32 %v172, 0.16666667
        %vm175 = vcmp.eq.f32.partialorder %v133, 0.0
        %vm176 = vcmp.eq.f32.partialorder %v134, 0.0
        %vm177 = vcmp.eq.f32.partialorder %v133, 1.0
        %vm178 = vcmp.eq.f32.partialorder %v134, 1.0
        %vm179 = vcmp.eq.f32.partialorder %v133, 2.0
        %vm180 = vcmp.eq.f32.partialorder %v134, 2.0
        %vm181 = vcmp.eq.f32.partialorder %v133, 3.0
        %vm182 = vcmp.eq.f32.partialorder %v134, 3.0
        %vm183 = vcmp.eq.f32.partialorder %v133, 4.0
        %vm184 = vcmp.eq.f32.partialorder %v134, 4.0
        %vm185 = vcmp.eq.f32.partialorder %v133, 5.0
        %vm186 = vcmp.eq.f32.partialorder %v134, 5.0
        %vm187 = vcmp.eq.f32.partialorder %v133, 6.0
        %vm188 = vcmp.eq.f32.partialorder %v134, 6.0
        %vm189 = vcmp.eq.f32.partialorder %v133, 7.0
        %vm190 = vcmp.eq.f32.partialorder %v134, 7.0
        %vm191 = vcmp.eq.f32.partialorder %v133, 8.0
        %vm192 = vcmp.eq.f32.partialorder %v134, 8.0
        %vm193 = vcmp.eq.f32.partialorder %v133, 9.0
        %vm194 = vcmp.eq.f32.partialorder %v134, 9.0
        %vm195 = vcmp.eq.f32.partialorder %v133, 10.0
        %vm196 = vcmp.eq.f32.partialorder %v134, 10.0
        %v197 = vsel %vm181, %v173, 0.0
        %v198 = vsel %vm182, %v174, 0.0
        %v199 = vsel %vm179, %v167, %v197
        %v200 = vsel %vm180, %v168, %v198
        %v201 = vsel %vm177, %v157, %v199
        %v202 = vsel %vm178, %v158, %v200
        %v203 = vsel %vm175, %v143, %v201
        %v204 = vsel %vm176, %v144, %v202
        %v205 = vsel %vm183, %v173, 0.0
        %v206 = vsel %vm184, %v174, 0.0
        %v207 = vsel %vm181, %v167, %v205
        %v208 = vsel %vm182, %v168, %v206
        %v209 = vsel %vm179, %v157, %v207
        %v210 = vsel %vm180, %v158, %v208
        %v211 = vsel %vm177, %v143, %v209
        %v212 = vsel %vm178, %v144, %v210
        %v213 = vsel %vm185, %v173, 0.0
        %v214 = vsel %vm186, %v174, 0.0
        %v215 = vsel %vm183, %v167, %v213
        %v216 = vsel %vm184, %v168, %v214
        %v217 = vsel %vm181, %v157, %v215
        %v218 = vsel %vm182, %v158, %v216
        %v219 = vsel %vm179, %v143, %v217
        %v220 = vsel %vm180, %v144, %v218
        %v221 = vsel %vm187, %v173, 0.0
        %v222 = vsel %vm188, %v174, 0.0
        %v223 = vsel %vm185, %v167, %v221
        %v224 = vsel %vm186, %v168, %v222
        %v225 = vsel %vm183, %v157, %v223
        %v226 = vsel %vm184, %v158, %v224
        %v227 = vsel %vm181, %v143, %v225
        %v228 = vsel %vm182, %v144, %v226
        %v229 = vsel %vm189, %v173, 0.0
        %v230 = vsel %vm190, %v174, 0.0
        %v231 = vsel %vm187, %v167, %v229
        %v232 = vsel %vm188, %v168, %v230
        %v233 = vsel %vm185, %v157, %v231
        %v234 = vsel %vm186, %v158, %v232
        %v235 = vsel %vm183, %v143, %v233
        %v236 = vsel %vm184, %v144, %v234
        %v237 = vsel %vm191, %v173, 0.0
        %v238 = vsel %vm192, %v174, 0.0
        %v239 = vsel %vm189, %v167, %v237
        %v240 = vsel %vm190, %v168, %v238
        %v241 = vsel %vm187, %v157, %v239
        %v242 = vsel %vm188, %v158, %v240
        %v243 = vsel %vm185, %v143, %v241
        %v244 = vsel %vm186, %v144, %v242
        %v245 = vsel %vm193, %v173, 0.0
        %v246 = vsel %vm194, %v174, 0.0
        %v247 = vsel %vm191, %v167, %v245
        %v248 = vsel %vm192, %v168, %v246
        %v249 = vsel %vm189, %v157, %v247
        %v250 = vsel %vm190, %v158, %v248
        %v251 = vsel %vm187, %v143, %v249
        %v252 = vsel %vm188, %v144, %v250
        %v253 = vsel %vm195, %v173, 0.0
        %v254 = vsel %vm196, %v174, 0.0
        %v255 = vsel %vm193, %v167, %v253
        %v256 = vsel %vm194, %v168, %v254
        %v257 = vsel %vm191, %v157, %v255
        %v258 = vsel %vm192, %v158, %v256
        %v259 = vsel %vm189, %v143, %v257
        %v260 = vsel %vm190, %v144, %v258
        %v261 = vpack.c.bf16 %v128, %v127
        %v263 = vunpack.c.l.b16 %v261
        %v264 = vunpack.c.h.b16 %v261
        %v265 = vpack.c.b16 %v263, %v263
        %v266 = vpack.c.b16 %v264, %v264
        %vm269 = vcmask 584704
        %270 = vst.msk [vmem:[%s105] sm:$0xf] %vm269, %v265
        %vm271 = vcmask 582656
        %272 = vst.msk [vmem:[%s105 + $0x4] sm:$0x3] %vm271, %v266
        %v273 = vpack.c.bf16 %v204, %v203
        %v275 = vunpack.c.l.b16 %v273
        %v276 = vunpack.c.h.b16 %v273
        %v277 = vpack.c.b16 %v275, %v275
        %v278 = vpack.c.b16 %v276, %v276
        %s281 = scalar_lea.vmem %s105, 8 [#allocation2]
        %282 = vst.msk [vmem:[%s281] sm:$0xf] %vm269, %v277
        %283 = vst.msk [vmem:[%s281 + $0x4] sm:$0x3] %vm271, %v278
        %v284 = vpack.c.bf16 %v212, %v211
        %v286 = vunpack.c.l.b16 %v284
        %v287 = vunpack.c.h.b16 %v284
        %v288 = vpack.c.b16 %v286, %v286
        %v289 = vpack.c.b16 %v287, %v287
        %s292 = scalar_lea.vmem %s105, 16 [#allocation2]
        %293 = vst.msk [vmem:[%s292] sm:$0xf] %vm269, %v288
        %294 = vst.msk [vmem:[%s292 + $0x4] sm:$0x3] %vm271, %v289
        %v295 = vpack.c.bf16 %v220, %v219
        %v297 = vunpack.c.l.b16 %v295
        %v298 = vunpack.c.h.b16 %v295
        %v299 = vpack.c.b16 %v297, %v297
        %v300 = vpack.c.b16 %v298, %v298
        %s303 = scalar_lea.vmem %s105, 24 [#allocation2]
        %304 = vst.msk [vmem:[%s303] sm:$0xf] %vm269, %v299
        %305 = vst.msk [vmem:[%s303 + $0x4] sm:$0x3] %vm271, %v300
        %v306 = vpack.c.bf16 %v228, %v227
        %v308 = vunpack.c.l.b16 %v306
        %v309 = vunpack.c.h.b16 %v306
        %v310 = vpack.c.b16 %v308, %v308
        %v311 = vpack.c.b16 %v309, %v309
        %s314 = scalar_lea.vmem %s105, 32 [#allocation2]
        %315 = vst.msk [vmem:[%s314] sm:$0xf] %vm269, %v310
        %316 = vst.msk [vmem:[%s314 + $0x4] sm:$0x3] %vm271, %v311
        %v317 = vpack.c.bf16 %v236, %v235
        %v319 = vunpack.c.l.b16 %v317
        %v320 = vunpack.c.h.b16 %v317
        %v321 = vpack.c.b16 %v319, %v319
        %v322 = vpack.c.b16 %v320, %v320
        %s325 = scalar_lea.vmem %s105, 40 [#allocation2]
        %326 = vst.msk [vmem:[%s325] sm:$0xf] %vm269, %v321
        %327 = vst.msk [vmem:[%s325 + $0x4] sm:$0x3] %vm271, %v322
        %v328 = vpack.c.bf16 %v244, %v243
        %v330 = vunpack.c.l.b16 %v328
        %v331 = vunpack.c.h.b16 %v328
        %v332 = vpack.c.b16 %v330, %v330
        %v333 = vpack.c.b16 %v331, %v331
        %s336 = scalar_lea.vmem %s105, 48 [#allocation2]
        %337 = vst.msk [vmem:[%s336] sm:$0xf] %vm269, %v332
        %338 = vst.msk [vmem:[%s336 + $0x4] sm:$0x3] %vm271, %v333
        %v339 = vpack.c.bf16 %v252, %v251
        %v341 = vunpack.c.l.b16 %v339
        %v342 = vunpack.c.h.b16 %v339
        %v343 = vpack.c.b16 %v341, %v341
        %v344 = vpack.c.b16 %v342, %v342
        %s347 = scalar_lea.vmem %s105, 56 [#allocation2]
        %348 = vst.msk [vmem:[%s347] sm:$0xf] %vm269, %v343
        %349 = vst.msk [vmem:[%s347 + $0x4] sm:$0x3] %vm271, %v344
        %v350 = vpack.c.bf16 %v260, %v259
        %v352 = vunpack.c.l.b16 %v350
        %v353 = vunpack.c.h.b16 %v350
        %v354 = vpack.c.b16 %v352, %v352
        %v355 = vpack.c.b16 %v353, %v353
        %s358 = scalar_lea.vmem %s105, 64 [#allocation2]
        %359 = vst.msk [vmem:[%s358] sm:$0xf] %vm269, %v354
        %360 = vst.msk [vmem:[%s358 + $0x4] sm:$0x3] %vm271, %v355
        %s361 = sand.u32 %s46, 1
        %s362 = sand.u32 %s46, 1
        %s363 = smul.addr %s362, 72
        %s364 = scalar_lea.vmem [#allocation2], %s363
        // Predicated region
        $region25: #{simple_conv_kan_forward.7} parent=23 // pred_check
          %p365 = pneg %p56
        $region26: #{simple_conv_kan_forward.7} parent=23 // pred_check_branch
          %367 = sbr.rel (%p365) target = $region28
        $region27: #{simple_conv_kan_forward.7} parent=23 // pred_region
          %s368 = smul.addr %s12, 2
          %s369 = smul.addr %s368, 4
          %s370 = scalar_lea.vmem %s1, %s369
          // Predicated region
          $region29: #{simple_conv_kan_forward.7} parent=27 // pred_check
            _
          $region30: #{simple_conv_kan_forward.7} parent=27 // pred_check_branch
            %372 = sbr.rel (0) target = $region32
          $region31: #{simple_conv_kan_forward.7} parent=27 // pred_region
            // Predicated region
            $region33: #{simple_conv_kan_forward.7} parent=31 // pred_check
              _
            $region34: #{simple_conv_kan_forward.7} parent=31 // pred_check_branch
              %374 = sbr.rel target = $region36
            $region35: #{simple_conv_kan_forward.7} parent=31 // pred_region
              // Predicated region
              $region48: #{simple_conv_kan_forward.7} parent=35 // pred_check
                _
              $region49: #{simple_conv_kan_forward.7} parent=35 // pred_check_branch
                %424 = sbr.rel (0) target = $region51
              $region50: #{simple_conv_kan_forward.7} parent=35 // pred_region
                loop: start=0, step=1, limit=1
                $region52: #{simple_conv_kan_forward.7} parent=50 // loop_pre_header
                  _
                $region53: #{simple_conv_kan_forward.7} parent=50 // loop_header
                  %s426 = sphi 0, %s430
                  %p427 = scmp.ge.s32.totalorder %s426, 1
                  %s431 = sphi %s364, %s364
                  %s432 = sphi %s370, %s370
                $region54: #{simple_conv_kan_forward.7} parent=50 // loop_header_branch
                  %429 = sbr.rel (%p427) target = $region58
                $region55: #{simple_conv_kan_forward.7} parent=50 // loop_body
                  _
                $region56: #{simple_conv_kan_forward.7} parent=50 // loop_footer
                  %s430 = sadd.s32 1, %s426
                $region57: #{simple_conv_kan_forward.7} parent=50 // loop_footer_branch
                  %425 = sbr.rel target = $region53
                $region58: #{simple_conv_kan_forward.7} parent=50 // loop_exit
                  _
                %s434 = ssub.s32 16, 1
                loop: start=0, step=1, limit=1
                $region59: #{simple_conv_kan_forward.7} parent=50 // loop_pre_header
                  _
                $region60: #{simple_conv_kan_forward.7} parent=50 // loop_header
                  %s436 = sphi 0, %s440
                  %p437 = scmp.ge.s32.totalorder %s436, 1
                  %s441 = sphi %s364, %s364
                  %s442 = sphi %s370, %s370
                $region61: #{simple_conv_kan_forward.7} parent=50 // loop_header_branch
                  %439 = sbr.rel (%p437) target = $region65
                $region62: #{simple_conv_kan_forward.7} parent=50 // loop_body
                  %v443 = vld [vmem:[%s441] sm:%s434]
                  %444 = vst [vmem:[%s442] sm:%s434] %v443
                  %v445 = vld [vmem:[%s441 + $0x4] sm:%s434]
                  %446 = vst [vmem:[%s442 + $0x4] sm:%s434] %v445
                  %v447 = vld [vmem:[%s441 + $0x8] sm:%s434]
                  %448 = vst [vmem:[%s442 + $0x10] sm:%s434] %v447
                  %v449 = vld [vmem:[%s441 + $0xc] sm:%s434]
                  %450 = vst [vmem:[%s442 + $0x14] sm:%s434] %v449
                  %v451 = vld [vmem:[%s441 + $0x10] sm:%s434]
                  %452 = vst [vmem:[%s442 + $0x20] sm:%s434] %v451
                  %v453 = vld [vmem:[%s441 + $0x14] sm:%s434]
                  %454 = vst [vmem:[%s442 + $0x24] sm:%s434] %v453
                  %v455 = vld [vmem:[%s441 + $0x18] sm:%s434]
                  %456 = vst [vmem:[%s442 + $0x30] sm:%s434] %v455
                  %v457 = vld [vmem:[%s441 + $0x1c] sm:%s434]
                  %458 = vst [vmem:[%s442 + $0x34] sm:%s434] %v457
                  %v459 = vld [vmem:[%s441 + $0x20] sm:%s434]
                  %460 = vst [vmem:[%s442 + $0x40] sm:%s434] %v459
                  %v461 = vld [vmem:[%s441 + $0x24] sm:%s434]
                  %462 = vst [vmem:[%s442 + $0x44] sm:%s434] %v461
                  %v463 = vld [vmem:[%s441 + $0x28] sm:%s434]
                  %464 = vst [vmem:[%s442 + $0x50] sm:%s434] %v463
                  %v465 = vld [vmem:[%s441 + $0x2c] sm:%s434]
                  %466 = vst [vmem:[%s442 + $0x54] sm:%s434] %v465
                  %v467 = vld [vmem:[%s441 + $0x30] sm:%s434]
                  %468 = vst [vmem:[%s442 + $0x60] sm:%s434] %v467
                  %v469 = vld [vmem:[%s441 + $0x34] sm:%s434]
                  %470 = vst [vmem:[%s442 + $0x64] sm:%s434] %v469
                  %v471 = vld [vmem:[%s441 + $0x38] sm:%s434]
                  %472 = vst [vmem:[%s442 + $0x70] sm:%s434] %v471
                  %v473 = vld [vmem:[%s441 + $0x3c] sm:%s434]
                  %474 = vst [vmem:[%s442 + $0x74] sm:%s434] %v473
                  %v475 = vld [vmem:[%s441 + $0x40] sm:%s434]
                  %476 = vst [vmem:[%s442 + $0x80] sm:%s434] %v475
                  %v477 = vld [vmem:[%s441 + $0x44] sm:%s434]
                  %478 = vst [vmem:[%s442 + $0x84] sm:%s434] %v477
                $region63: #{simple_conv_kan_forward.7} parent=50 // loop_footer
                  %s440 = sadd.s32 1, %s436
                $region64: #{simple_conv_kan_forward.7} parent=50 // loop_footer_branch
                  %435 = sbr.rel target = $region60
                $region65: #{simple_conv_kan_forward.7} parent=50 // loop_exit
                  _
              $region51: #{simple_conv_kan_forward.7} parent=35 // pred_fallthru
                _
            $region36: #{simple_conv_kan_forward.7} parent=31 // pred_fallthru
              _
            // Predicated region
            $region37: #{simple_conv_kan_forward.7} parent=31 // pred_check
              _
            $region38: #{simple_conv_kan_forward.7} parent=31 // pred_check_branch
              %376 = sbr.rel (0) target = $region40
            $region39: #{simple_conv_kan_forward.7} parent=31 // pred_region
              %s378 = ssub.s32 16, 1
              loop: start=0, step=1, limit=1
              $region41: #{simple_conv_kan_forward.7} parent=39 // loop_pre_header
                _
              $region42: #{simple_conv_kan_forward.7} parent=39 // loop_header
                %s380 = sphi 0, %s384
                %p381 = scmp.ge.s32.totalorder %s380, 1
                %s385 = sphi %s364, %s364
                %s386 = sphi %s370, %s370
              $region43: #{simple_conv_kan_forward.7} parent=39 // loop_header_branch
                %383 = sbr.rel (%p381) target = $region47
              $region44: #{simple_conv_kan_forward.7} parent=39 // loop_body
                %v387 = vld [vmem:[%s385] sm:%s378]
                %388 = vst [vmem:[%s386] sm:%s378] %v387
                %v389 = vld [vmem:[%s385 + $0x4] sm:%s378]
                %390 = vst [vmem:[%s386 + $0x4] sm:%s378] %v389
                %v391 = vld [vmem:[%s385 + $0x8] sm:%s378]
                %392 = vst [vmem:[%s386 + $0x10] sm:%s378] %v391
                %v393 = vld [vmem:[%s385 + $0xc] sm:%s378]
                %394 = vst [vmem:[%s386 + $0x14] sm:%s378] %v393
                %v395 = vld [vmem:[%s385 + $0x10] sm:%s378]
                %396 = vst [vmem:[%s386 + $0x20] sm:%s378] %v395
                %v397 = vld [vmem:[%s385 + $0x14] sm:%s378]
                %398 = vst [vmem:[%s386 + $0x24] sm:%s378] %v397
                %v399 = vld [vmem:[%s385 + $0x18] sm:%s378]
                %400 = vst [vmem:[%s386 + $0x30] sm:%s378] %v399
                %v401 = vld [vmem:[%s385 + $0x1c] sm:%s378]
                %402 = vst [vmem:[%s386 + $0x34] sm:%s378] %v401
                %v403 = vld [vmem:[%s385 + $0x20] sm:%s378]
                %404 = vst [vmem:[%s386 + $0x40] sm:%s378] %v403
                %v405 = vld [vmem:[%s385 + $0x24] sm:%s378]
                %406 = vst [vmem:[%s386 + $0x44] sm:%s378] %v405
                %v407 = vld [vmem:[%s385 + $0x28] sm:%s378]
                %408 = vst [vmem:[%s386 + $0x50] sm:%s378] %v407
                %v409 = vld [vmem:[%s385 + $0x2c] sm:%s378]
                %410 = vst [vmem:[%s386 + $0x54] sm:%s378] %v409
                %v411 = vld [vmem:[%s385 + $0x30] sm:%s378]
                %412 = vst [vmem:[%s386 + $0x60] sm:%s378] %v411
                %v413 = vld [vmem:[%s385 + $0x34] sm:%s378]
                %414 = vst [vmem:[%s386 + $0x64] sm:%s378] %v413
                %v415 = vld [vmem:[%s385 + $0x38] sm:%s378]
                %416 = vst [vmem:[%s386 + $0x70] sm:%s378] %v415
                %v417 = vld [vmem:[%s385 + $0x3c] sm:%s378]
                %418 = vst [vmem:[%s386 + $0x74] sm:%s378] %v417
                %v419 = vld [vmem:[%s385 + $0x40] sm:%s378]
                %420 = vst [vmem:[%s386 + $0x80] sm:%s378] %v419
                %v421 = vld [vmem:[%s385 + $0x44] sm:%s378]
                %422 = vst [vmem:[%s386 + $0x84] sm:%s378] %v421
              $region45: #{simple_conv_kan_forward.7} parent=39 // loop_footer
                %s384 = sadd.s32 1, %s380
              $region46: #{simple_conv_kan_forward.7} parent=39 // loop_footer_branch
                %379 = sbr.rel target = $region42
              $region47: #{simple_conv_kan_forward.7} parent=39 // loop_exit
                _
            $region40: #{simple_conv_kan_forward.7} parent=31 // pred_fallthru
              _
          $region32: #{simple_conv_kan_forward.7} parent=27 // pred_fallthru
            _
          %479 = vnop
        $region28: #{simple_conv_kan_forward.7} parent=23 // pred_fallthru
          _
      $region24: #{simple_conv_kan_forward.7} parent=5 // pred_fallthru
        _
      %p480 = scmp.le.s32.totalorder 2, %s7
      // Predicated region
      $region66: #{simple_conv_kan_forward.7} parent=5 // pred_check
        %p481 = pneg %p480
      $region67: #{simple_conv_kan_forward.7} parent=5 // pred_check_branch
        %483 = sbr.rel (%p481) target = $region69
      $region68: #{simple_conv_kan_forward.7} parent=5 // pred_region
        %s484 = ssub.s32 %s7, 2
        // Predicated region
        $region70: #{simple_conv_kan_forward.7} parent=68 // pred_check
          %p485 = pneg %p62
        $region71: #{simple_conv_kan_forward.7} parent=68 // pred_check_branch
          %487 = sbr.rel (%p485) target = $region73
        $region72: #{simple_conv_kan_forward.7} parent=68 // pred_region
          %s488 = sand.u32 %s47, 1
          %s489 = sand.u32 %s47, 1
          %s490 = smul.addr %s489, 72
          %s491 = scalar_lea.vmem [#allocation2], %s490
        $region73: #{simple_conv_kan_forward.7} parent=68 // pred_fallthru
          _
      $region69: #{simple_conv_kan_forward.7} parent=5 // pred_fallthru
        _
    $region6: #{simple_conv_kan_forward.7} parent=1 // loop_footer
      %s11 = sadd.s32 1, %s7
    $region7: #{simple_conv_kan_forward.7} parent=1 // loop_footer_branch
      %6 = sbr.rel target = $region3
    $region8: #{simple_conv_kan_forward.7} parent=1 // loop_exit
      _

// kernel: simple_conv_kan_forward.6
$region0: #{simple_conv_kan_forward.6}
  #allocation0 [shape = 'u32[]', space=smem, size = 0x4, offset = 0x4, fixed_abs, tag = 'smem constant byte address 0x4 - core index']
  #allocation1 [shape = 'u32[144,128]{1,0:T(1,128)}', space=vmem, size = 0x12000, scoped, tag = 'internal scratch']
  %s0 = inlined_call_operand.vmem [shape: bf16[1152,256], index: 0, kind: input, shape index: {}]
  %s1 = inlined_call_operand.vmem [shape: bf16[256,128], index: 1, kind: input, shape index: {}]
  %s2 = inlined_call_operand.vmem [shape: bf16[2,144,6], index: 2, kind: output, shape index: {}]
  %s3 = sld [smem:[#allocation0]]
  $region41: #{simple_conv_kan_forward.6} parent=0
    _
  %s5 = ssub.s32 1, %s3
  %s6 = scalar_select 0, %s5, %s3
  loop: start=0, step=1, limit=4
  $region2: #{simple_conv_kan_forward.6} parent=0 // loop_pre_header
    _
  $region3: #{simple_conv_kan_forward.6} parent=0 // loop_header
    %s8 = sphi 0, %s12
    %p9 = scmp.ge.s32.totalorder %s8, 4
    %s18 = sphi 0, %s20
    %s21 = sphi 0, %s18
    %s22 = sphi 0, %s21
    %s38 = sphi 0, %s22
    %s42 = sphi 0, %s42
    %s44 = sphi 0, %s42
    %s45 = sphi 0, %s44
    %s59 = sphi 0, %s45
    %s65 = sphi 0, %s67
    %s68 = sphi 0, %s65
    %s69 = sphi 0, %s68
    %s85 = sphi 0, %s69
  $region4: #{simple_conv_kan_forward.6} parent=0 // loop_header_branch
    %11 = sbr.rel (%p9) target = $region8
  $region5: #{simple_conv_kan_forward.6} parent=0 // loop_body
    %s13 = ssub.s32 %s8, 1
    %s14 = ssub.s32 %s8, 2
    %s15 = sadd.s32 %s8, 1
    %s16 = ssub.s32 %s8, %s15
    %p17 = scmp.eq.s32.totalorder %s16, 0
    %s19 = sadd.s32 %s18, 1
    %s20 = scalar_select %p17, %s18, %s19
    %p23 = pneg %p17
    %p24 = scmp.eq.s32.totalorder %s8, 1
    %p25 = por %p23, %p24
    %p26 = scmp.ne.s32.totalorder %s18, %s21
    %p27 = scmp.eq.s32.totalorder %s8, 0
    %p28 = por %p26, %p27
    %p29 = scmp.ne.s32.totalorder %s18, %s21
    %p30 = scmp.eq.s32.totalorder %s13, 1
    %p31 = por %p29, %p30
    %p32 = scmp.ne.s32.totalorder %s21, %s22
    %p33 = scmp.eq.s32.totalorder %s13, 0
    %p34 = por %p32, %p33
    %p35 = scmp.ne.s32.totalorder %s21, %s22
    %p36 = scmp.eq.s32.totalorder %s14, 1
    %p37 = por %p35, %p36
    %p39 = scmp.ne.s32.totalorder %s22, %s38
    %p40 = scmp.eq.s32.totalorder %s14, 0
    %p41 = por %p39, %p40
    %s43 = sadd.s32 %s42, 1
    %p46 = scmp.eq.s32.totalorder %s8, 1
    %p47 = scmp.ne.s32.totalorder %s42, %s44
    %p48 = scmp.eq.s32.totalorder %s8, 0
    %p49 = por %p47, %p48
    %p50 = scmp.ne.s32.totalorder %s42, %s44
    %p51 = scmp.eq.s32.totalorder %s13, 1
    %p52 = por %p50, %p51
    %p53 = scmp.ne.s32.totalorder %s44, %s45
    %p54 = scmp.eq.s32.totalorder %s13, 0
    %p55 = por %p53, %p54
    %p56 = scmp.ne.s32.totalorder %s44, %s45
    %p57 = scmp.eq.s32.totalorder %s14, 1
    %p58 = por %p56, %p57
    %p60 = scmp.ne.s32.totalorder %s45, %s59
    %p61 = scmp.eq.s32.totalorder %s14, 0
    %p62 = por %p60, %p61
    %s63 = ssub.s32 %s8, %s15
    %p64 = scmp.eq.s32.totalorder %s63, 0
    %s66 = sadd.s32 %s65, 1
    %s67 = scalar_select %p64, %s65, %s66
    %p70 = pneg %p64
    %p71 = scmp.eq.s32.totalorder %s8, 1
    %p72 = por %p70, %p71
    %p73 = scmp.ne.s32.totalorder %s65, %s68
    %p74 = scmp.eq.s32.totalorder %s8, 0
    %p75 = por %p73, %p74
    %p76 = scmp.ne.s32.totalorder %s65, %s68
    %p77 = scmp.eq.s32.totalorder %s13, 1
    %p78 = por %p76, %p77
    %p79 = scmp.ne.s32.totalorder %s68, %s69
    %p80 = scmp.eq.s32.totalorder %s13, 0
    %p81 = por %p79, %p80
    %p82 = scmp.ne.s32.totalorder %s68, %s69
    %p83 = scmp.eq.s32.totalorder %s14, 1
    %p84 = por %p82, %p83
    %p86 = scmp.ne.s32.totalorder %s69, %s85
    %p87 = scmp.eq.s32.totalorder %s14, 0
    %p88 = por %p86, %p87
    %p89 = scmp.le.s32.totalorder 1, %s8
    %p90 = scmp.lt.s32.totalorder %s8, 3
    %p91 = pnand %p89, %p90
    %p92 = pneg %p91
    // Predicated region
    $region9: #{simple_conv_kan_forward.6} parent=5 // pred_check
      _
    $region10: #{simple_conv_kan_forward.6} parent=5 // pred_check_branch
      %94 = sbr.rel (%p91) target = $region12
    $region11: #{simple_conv_kan_forward.6} parent=5 // pred_region
      %s95 = ssub.s32 %s8, 1
      // Predicated region
      $region13: #{simple_conv_kan_forward.6} parent=11 // pred_check
        %p96 = pneg %p55
      $region14: #{simple_conv_kan_forward.6} parent=11 // pred_check_branch
        %98 = sbr.rel (%p96) target = $region16
      $region15: #{simple_conv_kan_forward.6} parent=11 // pred_region
        _
      $region16: #{simple_conv_kan_forward.6} parent=11 // pred_fallthru
        _
    $region12: #{simple_conv_kan_forward.6} parent=5 // pred_fallthru
      _
    %p99 = scmp.lt.s32.totalorder %s8, 2
    // Predicated region
    $region17: #{simple_conv_kan_forward.6} parent=5 // pred_check
      %p100 = pneg %p99
    $region18: #{simple_conv_kan_forward.6} parent=5 // pred_check_branch
      %102 = sbr.rel (%p100) target = $region20
    $region19: #{simple_conv_kan_forward.6} parent=5 // pred_region
      // Predicated region
      $region21: #{simple_conv_kan_forward.6} parent=19 // pred_check
        %p103 = pneg %p28
      $region22: #{simple_conv_kan_forward.6} parent=19 // pred_check_branch
        %105 = sbr.rel (%p103) target = $region24
      $region23: #{simple_conv_kan_forward.6} parent=19 // pred_region
        %s106 = smul.u32 72, %s8
        %p107 = scmp.lt.s32.totalorder %s106, 143
        %s108 = scalar_select %p107, %s106, 143
        %s109 = smul.addr %s108, 2
        %s110 = smul.addr %s109, 4
        %s111 = scalar_lea.vmem %s0, %s110
        %s112 = smul.u32 72, %s8
      $region24: #{simple_conv_kan_forward.6} parent=19 // pred_fallthru
        _
    $region20: #{simple_conv_kan_forward.6} parent=5 // pred_fallthru
      _
    %p113 = scmp.le.s32.totalorder 1, %s8
    %p114 = scmp.lt.s32.totalorder %s8, 3
    %p115 = pnand %p113, %p114
    %p116 = pneg %p115
    // Predicated region
    $region25: #{simple_conv_kan_forward.6} parent=5 // pred_check
      _
    $region26: #{simple_conv_kan_forward.6} parent=5 // pred_check_branch
      %118 = sbr.rel (%p115) target = $region28
    $region27: #{simple_conv_kan_forward.6} parent=5 // pred_region
      %s119 = ssub.s32 %s8, 1
      %s120 = smul.u32 72, %s13
      %p121 = scmp.lt.s32.totalorder %s120, 143
      %s122 = scalar_select %p121, %s120, 143
      %s123 = smul.addr %s122, 2
      %s124 = smul.addr %s123, 4
      %s125 = scalar_lea.vmem %s0, %s124
      %p126 = pneg %p34
      %p127 = pneg %p31
      %p128 = pneg %p55
      %p129 = pneg %p52
      %p130 = pneg %p81
      %p131 = pneg %p78
      %p132 = scmp.lt.s32.totalorder %s13, 1
      %s133 = scalar_select %p132, %s13, 1
      %s134 = smul.addr %s133, 18
      %s135 = smul.addr %s134, 4
      %s136 = scalar_lea.vmem %s2, %s135
      %s137 = smul.u32 72, %s13
      %p138 = scmp.lt.s32.totalorder %s137, 143
      %s139 = scalar_select %p138, %s137, 143
      %s140 = smul.addr %s139, 2
      %s141 = smul.addr %s140, 4
      %s142 = scalar_lea.vmem %s0, %s141
      %s143 = smul.u32 72, %s13
      %p144 = scmp.lt.s32.totalorder %s13, 1
      %s145 = scalar_select %p144, %s13, 1
      %s146 = smul.addr %s145, 18
      %s147 = smul.addr %s146, 4
      %s148 = scalar_lea.vmem %s2, %s147
      %v150 = vld [vmem:[%s142] sm:$0xff]
      %v151 = vld [vmem:[%s142 + $0x8] sm:$0xff]
      %v152 = vld [vmem:[%s142 + $0x10] sm:$0xff]
      %v153 = vld [vmem:[%s142 + $0x18] sm:$0xff]
      %v154 = vld [vmem:[%s142 + $0x20] sm:$0xff]
      %v155 = vld [vmem:[%s142 + $0x28] sm:$0xff]
      %v156 = vld [vmem:[%s142 + $0x30] sm:$0xff]
      %v157 = vld [vmem:[%s142 + $0x38] sm:$0xff]
      %v158 = vld [vmem:[%s142 + $0x40] sm:$0xff]
      %v159 = vld [vmem:[%s142 + $0x48] sm:$0xff]
      %v160 = vld [vmem:[%s142 + $0x50] sm:$0xff]
      %v161 = vld [vmem:[%s142 + $0x58] sm:$0xff]
      %v162 = vld [vmem:[%s142 + $0x60] sm:$0xff]
      %v163 = vld [vmem:[%s142 + $0x68] sm:$0xff]
      %v164 = vld [vmem:[%s142 + $0x70] sm:$0xff]
      %v165 = vld [vmem:[%s142 + $0x78] sm:$0xff]
      %v166 = vld [vmem:[%s142 + $0x80] sm:$0xff]
      %v167 = vld [vmem:[%s142 + $0x88] sm:$0xff]
      %v168 = vld [vmem:[%s142 + $0x90] sm:$0xff]
      %v169 = vld [vmem:[%s142 + $0x98] sm:$0xff]
      %v170 = vld [vmem:[%s142 + $0xa0] sm:$0xff]
      %v171 = vld [vmem:[%s142 + $0xa8] sm:$0xff]
      %v172 = vld [vmem:[%s142 + $0xb0] sm:$0xff]
      %v173 = vld [vmem:[%s142 + $0xb8] sm:$0xff]
      %v174 = vld [vmem:[%s142 + $0xc0] sm:$0xff]
      %v175 = vld [vmem:[%s142 + $0xc8] sm:$0xff]
      %v176 = vld [vmem:[%s142 + $0xd0] sm:$0xff]
      %v177 = vld [vmem:[%s142 + $0xd8] sm:$0xff]
      %v178 = vld [vmem:[%s142 + $0xe0] sm:$0xff]
      %v179 = vld [vmem:[%s142 + $0xe8] sm:$0xff]
      %v180 = vld [vmem:[%s142 + $0xf0] sm:$0xff]
      %v181 = vld [vmem:[%s142 + $0xf8] sm:$0xff]
      %v182 = vld [vmem:[%s142 + $0x100] sm:$0xff]
      %v183 = vld [vmem:[%s142 + $0x108] sm:$0xff]
      %v184 = vld [vmem:[%s142 + $0x110] sm:$0xff]
      %v185 = vld [vmem:[%s142 + $0x118] sm:$0xff]
      %v186 = vld [vmem:[%s142 + $0x120] sm:$0xff]
      %v187 = vld [vmem:[%s142 + $0x128] sm:$0xff]
      %v188 = vld [vmem:[%s142 + $0x130] sm:$0xff]
      %v189 = vld [vmem:[%s142 + $0x138] sm:$0xff]
      %v190 = vld [vmem:[%s142 + $0x140] sm:$0xff]
      %v191 = vld [vmem:[%s142 + $0x148] sm:$0xff]
      %v192 = vld [vmem:[%s142 + $0x150] sm:$0xff]
      %v193 = vld [vmem:[%s142 + $0x158] sm:$0xff]
      %v194 = vld [vmem:[%s142 + $0x160] sm:$0xff]
      %v195 = vld [vmem:[%s142 + $0x168] sm:$0xff]
      %v196 = vld [vmem:[%s142 + $0x170] sm:$0xff]
      %v197 = vld [vmem:[%s142 + $0x178] sm:$0xff]
      %v198 = vld [vmem:[%s142 + $0x180] sm:$0xff]
      %v199 = vld [vmem:[%s142 + $0x188] sm:$0xff]
      %v200 = vld [vmem:[%s142 + $0x190] sm:$0xff]
      %v201 = vld [vmem:[%s142 + $0x198] sm:$0xff]
      %v202 = vld [vmem:[%s142 + $0x1a0] sm:$0xff]
      %v203 = vld [vmem:[%s142 + $0x1a8] sm:$0xff]
      %v204 = vld [vmem:[%s142 + $0x1b0] sm:$0xff]
      %v205 = vld [vmem:[%s142 + $0x1b8] sm:$0xff]
      %v206 = vld [vmem:[%s142 + $0x1c0] sm:$0xff]
      %v207 = vld [vmem:[%s142 + $0x1c8] sm:$0xff]
      %v208 = vld [vmem:[%s142 + $0x1d0] sm:$0xff]
      %v209 = vld [vmem:[%s142 + $0x1d8] sm:$0xff]
      %v210 = vld [vmem:[%s142 + $0x1e0] sm:$0xff]
      %v211 = vld [vmem:[%s142 + $0x1e8] sm:$0xff]
      %v212 = vld [vmem:[%s142 + $0x1f0] sm:$0xff]
      %v213 = vld [vmem:[%s142 + $0x1f8] sm:$0xff]
      %v214 = vld [vmem:[%s142 + $0x200] sm:$0xff]
      %v215 = vld [vmem:[%s142 + $0x208] sm:$0xff]
      %v216 = vld [vmem:[%s142 + $0x210] sm:$0xff]
      %v217 = vld [vmem:[%s142 + $0x218] sm:$0xff]
      %v218 = vld [vmem:[%s142 + $0x220] sm:$0xff]
      %v219 = vld [vmem:[%s142 + $0x228] sm:$0xff]
      %v220 = vld [vmem:[%s142 + $0x230] sm:$0xff]
      %v221 = vld [vmem:[%s142 + $0x238] sm:$0xff]
      %v222 = vld [vmem:[%s1] sm:$0xf]
      %v223 = vld [vmem:[%s1 + $0x4] sm:$0xf]
      %v224 = vld [vmem:[%s1 + $0x8] sm:$0xf]
      %v225 = vld [vmem:[%s1 + $0xc] sm:$0xf]
      %v226 = vld [vmem:[%s1 + $0x10] sm:$0xf]
      %v227 = vld [vmem:[%s1 + $0x14] sm:$0xf]
      %v228 = vld [vmem:[%s1 + $0x18] sm:$0xf]
      %v229 = vld [vmem:[%s1 + $0x1c] sm:$0xf]
      %v230 = vld [vmem:[%s1 + $0x20] sm:$0xf]
      %v231 = vld [vmem:[%s1 + $0x24] sm:$0xf]
      %v232 = vld [vmem:[%s1 + $0x28] sm:$0xf]
      %v233 = vld [vmem:[%s1 + $0x2c] sm:$0xf]
      %v234 = vld [vmem:[%s1 + $0x30] sm:$0xf]
      %v235 = vld [vmem:[%s1 + $0x34] sm:$0xf]
      %v236 = vld [vmem:[%s1 + $0x38] sm:$0xf]
      %v237 = vld [vmem:[%s1 + $0x3c] sm:$0xf]
      %v238 = vld [vmem:[%s1 + $0x40] sm:$0xf]
      %v239 = vld [vmem:[%s1 + $0x44] sm:$0xf]
      %v240 = vld [vmem:[%s1 + $0x48] sm:$0xf]
      %v241 = vld [vmem:[%s1 + $0x4c] sm:$0xf]
      %v242 = vld [vmem:[%s1 + $0x50] sm:$0xf]
      %v243 = vld [vmem:[%s1 + $0x54] sm:$0xf]
      %v244 = vld [vmem:[%s1 + $0x58] sm:$0xf]
      %v245 = vld [vmem:[%s1 + $0x5c] sm:$0xf]
      %v246 = vld [vmem:[%s1 + $0x60] sm:$0xf]
      %v247 = vld [vmem:[%s1 + $0x64] sm:$0xf]
      %v248 = vld [vmem:[%s1 + $0x68] sm:$0xf]
      %v249 = vld [vmem:[%s1 + $0x6c] sm:$0xf]
      %v250 = vld [vmem:[%s1 + $0x70] sm:$0xf]
      %v251 = vld [vmem:[%s1 + $0x74] sm:$0xf]
      %v252 = vld [vmem:[%s1 + $0x78] sm:$0xf]
      %v253 = vld [vmem:[%s1 + $0x7c] sm:$0xf]
      %v326 = vunpack.c.l.b16 %v150
      %v327 = vunpack.c.h.b16 %v150
      %v328 = vunpack.c.l.b16 %v151
      %v329 = vunpack.c.h.b16 %v151
      %v330 = vunpack.c.l.b16 %v152
      %v331 = vunpack.c.h.b16 %v152
      %v332 = vunpack.c.l.b16 %v153
      %v333 = vunpack.c.h.b16 %v153
      %v334 = vunpack.c.l.b16 %v154
      %v335 = vunpack.c.h.b16 %v154
      %v336 = vunpack.c.l.b16 %v155
      %v337 = vunpack.c.h.b16 %v155
      %v338 = vunpack.c.l.b16 %v156
      %v339 = vunpack.c.h.b16 %v156
      %v340 = vunpack.c.l.b16 %v157
      %v341 = vunpack.c.h.b16 %v157
      %v342 = vunpack.c.l.b16 %v158
      %v343 = vunpack.c.h.b16 %v158
      %v344 = vunpack.c.l.b16 %v159
      %v345 = vunpack.c.h.b16 %v159
      %v346 = vunpack.c.l.b16 %v160
      %v347 = vunpack.c.h.b16 %v160
      %v348 = vunpack.c.l.b16 %v161
      %v349 = vunpack.c.h.b16 %v161
      %v350 = vunpack.c.l.b16 %v162
      %v351 = vunpack.c.h.b16 %v162
      %v352 = vunpack.c.l.b16 %v163
      %v353 = vunpack.c.h.b16 %v163
      %v354 = vunpack.c.l.b16 %v164
      %v355 = vunpack.c.h.b16 %v164
      %v356 = vunpack.c.l.b16 %v165
      %v357 = vunpack.c.h.b16 %v165
      %v358 = vunpack.c.l.b16 %v166
      %v359 = vunpack.c.h.b16 %v166
      %v360 = vunpack.c.l.b16 %v167
      %v361 = vunpack.c.h.b16 %v167
      %v362 = vunpack.c.l.b16 %v168
      %v363 = vunpack.c.h.b16 %v168
      %v364 = vunpack.c.l.b16 %v169
      %v365 = vunpack.c.h.b16 %v169
      %v366 = vunpack.c.l.b16 %v170
      %v367 = vunpack.c.h.b16 %v170
      %v368 = vunpack.c.l.b16 %v171
      %v369 = vunpack.c.h.b16 %v171
      %v370 = vunpack.c.l.b16 %v172
      %v371 = vunpack.c.h.b16 %v172
      %v372 = vunpack.c.l.b16 %v173
      %v373 = vunpack.c.h.b16 %v173
      %v374 = vunpack.c.l.b16 %v174
      %v375 = vunpack.c.h.b16 %v174
      %v376 = vunpack.c.l.b16 %v175
      %v377 = vunpack.c.h.b16 %v175
      %v378 = vunpack.c.l.b16 %v176
      %v379 = vunpack.c.h.b16 %v176
      %v380 = vunpack.c.l.b16 %v177
      %v381 = vunpack.c.h.b16 %v177
      %v382 = vunpack.c.l.b16 %v178
      %v383 = vunpack.c.h.b16 %v178
      %v384 = vunpack.c.l.b16 %v179
      %v385 = vunpack.c.h.b16 %v179
      %v386 = vunpack.c.l.b16 %v180
      %v387 = vunpack.c.h.b16 %v180
      %v388 = vunpack.c.l.b16 %v181
      %v389 = vunpack.c.h.b16 %v181
      %v390 = vunpack.c.l.b16 %v182
      %v391 = vunpack.c.h.b16 %v182
      %v392 = vunpack.c.l.b16 %v183
      %v393 = vunpack.c.h.b16 %v183
      %v394 = vunpack.c.l.b16 %v184
      %v395 = vunpack.c.h.b16 %v184
      %v396 = vunpack.c.l.b16 %v185
      %v397 = vunpack.c.h.b16 %v185
      %v398 = vunpack.c.l.b16 %v186
      %v399 = vunpack.c.h.b16 %v186
      %v400 = vunpack.c.l.b16 %v187
      %v401 = vunpack.c.h.b16 %v187
      %v402 = vunpack.c.l.b16 %v188
      %v403 = vunpack.c.h.b16 %v188
      %v404 = vunpack.c.l.b16 %v189
      %v405 = vunpack.c.h.b16 %v189
      %v406 = vunpack.c.l.b16 %v190
      %v407 = vunpack.c.h.b16 %v190
      %v408 = vunpack.c.l.b16 %v191
      %v409 = vunpack.c.h.b16 %v191
      %v410 = vunpack.c.l.b16 %v192
      %v411 = vunpack.c.h.b16 %v192
      %v412 = vunpack.c.l.b16 %v193
      %v413 = vunpack.c.h.b16 %v193
      %v414 = vunpack.c.l.b16 %v194
      %v415 = vunpack.c.h.b16 %v194
      %v416 = vunpack.c.l.b16 %v195
      %v417 = vunpack.c.h.b16 %v195
      %v418 = vunpack.c.l.b16 %v196
      %v419 = vunpack.c.h.b16 %v196
      %v420 = vunpack.c.l.b16 %v197
      %v421 = vunpack.c.h.b16 %v197
      %v422 = vunpack.c.l.b16 %v198
      %v423 = vunpack.c.h.b16 %v198
      %v424 = vunpack.c.l.b16 %v199
      %v425 = vunpack.c.h.b16 %v199
      %v426 = vunpack.c.l.b16 %v200
      %v427 = vunpack.c.h.b16 %v200
      %v428 = vunpack.c.l.b16 %v201
      %v429 = vunpack.c.h.b16 %v201
      %v430 = vunpack.c.l.b16 %v202
      %v431 = vunpack.c.h.b16 %v202
      %v432 = vunpack.c.l.b16 %v203
      %v433 = vunpack.c.h.b16 %v203
      %v434 = vunpack.c.l.b16 %v204
      %v435 = vunpack.c.h.b16 %v204
      %v436 = vunpack.c.l.b16 %v205
      %v437 = vunpack.c.h.b16 %v205
      %v438 = vunpack.c.l.b16 %v206
      %v439 = vunpack.c.h.b16 %v206
      %v440 = vunpack.c.l.b16 %v207
      %v441 = vunpack.c.h.b16 %v207
      %v442 = vunpack.c.l.b16 %v208
      %v443 = vunpack.c.h.b16 %v208
      %v444 = vunpack.c.l.b16 %v209
      %v445 = vunpack.c.h.b16 %v209
      %v446 = vunpack.c.l.b16 %v210
      %v447 = vunpack.c.h.b16 %v210
      %v448 = vunpack.c.l.b16 %v211
      %v449 = vunpack.c.h.b16 %v211
      %v450 = vunpack.c.l.b16 %v212
      %v451 = vunpack.c.h.b16 %v212
      %v452 = vunpack.c.l.b16 %v213
      %v453 = vunpack.c.h.b16 %v213
      %v454 = vunpack.c.l.b16 %v214
      %v455 = vunpack.c.h.b16 %v214
      %v456 = vunpack.c.l.b16 %v215
      %v457 = vunpack.c.h.b16 %v215
      %v458 = vunpack.c.l.b16 %v216
      %v459 = vunpack.c.h.b16 %v216
      %v460 = vunpack.c.l.b16 %v217
      %v461 = vunpack.c.h.b16 %v217
      %v462 = vunpack.c.l.b16 %v218
      %v463 = vunpack.c.h.b16 %v218
      %v464 = vunpack.c.l.b16 %v219
      %v465 = vunpack.c.h.b16 %v219
      %v466 = vunpack.c.l.b16 %v220
      %v467 = vunpack.c.h.b16 %v220
      %v468 = vunpack.c.l.b16 %v221
      %v469 = vunpack.c.h.b16 %v221
      %v470 = vpack.c.b16 %v328, %v326
      %v471 = vpack.c.b16 %v329, %v327
      %v472 = vpack.c.b16 %v332, %v330
      %v473 = vpack.c.b16 %v333, %v331
      %v474 = vpack.c.b16 %v336, %v334
      %v475 = vpack.c.b16 %v337, %v335
      %v476 = vpack.c.b16 %v340, %v338
      %v477 = vpack.c.b16 %v341, %v339
      %v478 = vpack.c.b16 %v344, %v342
      %v479 = vpack.c.b16 %v345, %v343
      %v480 = vpack.c.b16 %v348, %v346
      %v481 = vpack.c.b16 %v349, %v347
      %v482 = vpack.c.b16 %v352, %v350
      %v483 = vpack.c.b16 %v353, %v351
      %v484 = vpack.c.b16 %v356, %v354
      %v485 = vpack.c.b16 %v357, %v355
      %v486 = vpack.c.b16 %v360, %v358
      %v487 = vpack.c.b16 %v361, %v359
      %v488 = vpack.c.b16 %v364, %v362
      %v489 = vpack.c.b16 %v365, %v363
      %v490 = vpack.c.b16 %v368, %v366
      %v491 = vpack.c.b16 %v369, %v367
      %v492 = vpack.c.b16 %v372, %v370
      %v493 = vpack.c.b16 %v373, %v371
      %v494 = vpack.c.b16 %v376, %v374
      %v495 = vpack.c.b16 %v377, %v375
      %v496 = vpack.c.b16 %v380, %v378
      %v497 = vpack.c.b16 %v381, %v379
      %v498 = vpack.c.b16 %v384, %v382
      %v499 = vpack.c.b16 %v385, %v383
      %v500 = vpack.c.b16 %v388, %v386
      %v501 = vpack.c.b16 %v389, %v387
      %v502 = vpack.c.b16 %v392, %v390
      %v503 = vpack.c.b16 %v393, %v391
      %v504 = vpack.c.b16 %v396, %v394
      %v505 = vpack.c.b16 %v397, %v395
      %v506 = vpack.c.b16 %v400, %v398
      %v507 = vpack.c.b16 %v401, %v399
      %v508 = vpack.c.b16 %v404, %v402
      %v509 = vpack.c.b16 %v405, %v403
      %v510 = vpack.c.b16 %v408, %v406
      %v511 = vpack.c.b16 %v409, %v407
      %v512 = vpack.c.b16 %v412, %v410
      %v513 = vpack.c.b16 %v413, %v411
      %v514 = vpack.c.b16 %v416, %v414
      %v515 = vpack.c.b16 %v417, %v415
      %v516 = vpack.c.b16 %v420, %v418
      %v517 = vpack.c.b16 %v421, %v419
      %v518 = vpack.c.b16 %v424, %v422
      %v519 = vpack.c.b16 %v425, %v423
      %v520 = vpack.c.b16 %v428, %v426
      %v521 = vpack.c.b16 %v429, %v427
      %v522 = vpack.c.b16 %v432, %v430
      %v523 = vpack.c.b16 %v433, %v431
      %v524 = vpack.c.b16 %v436, %v434
      %v525 = vpack.c.b16 %v437, %v435
      %v526 = vpack.c.b16 %v440, %v438
      %v527 = vpack.c.b16 %v441, %v439
      %v528 = vpack.c.b16 %v444, %v442
      %v529 = vpack.c.b16 %v445, %v443
      %v530 = vpack.c.b16 %v448, %v446
      %v531 = vpack.c.b16 %v449, %v447
      %v532 = vpack.c.b16 %v452, %v450
      %v533 = vpack.c.b16 %v453, %v451
      %v534 = vpack.c.b16 %v456, %v454
      %v535 = vpack.c.b16 %v457, %v455
      %v536 = vpack.c.b16 %v460, %v458
      %v537 = vpack.c.b16 %v461, %v459
      %v538 = vpack.c.b16 %v464, %v462
      %v539 = vpack.c.b16 %v465, %v463
      %v540 = vpack.c.b16 %v468, %v466
      %v541 = vpack.c.b16 %v469, %v467
      %v646 = vunpack.c.l.b16 %v222
      %v647 = vunpack.c.l.b16 %v223
      %v648 = vunpack.c.l.b16 %v224
      %v649 = vunpack.c.l.b16 %v225
      %v650 = vunpack.c.l.b16 %v226
      %v651 = vunpack.c.l.b16 %v227
      %v652 = vunpack.c.l.b16 %v228
      %v653 = vunpack.c.l.b16 %v229
      %v654 = vunpack.c.l.b16 %v230
      %v655 = vunpack.c.l.b16 %v231
      %v656 = vunpack.c.l.b16 %v232
      %v657 = vunpack.c.l.b16 %v233
      %v658 = vunpack.c.l.b16 %v234
      %v659 = vunpack.c.l.b16 %v235
      %v660 = vunpack.c.l.b16 %v236
      %v661 = vunpack.c.l.b16 %v237
      %v662 = vunpack.c.l.b16 %v238
      %v663 = vunpack.c.l.b16 %v239
      %v664 = vunpack.c.l.b16 %v240
      %v665 = vunpack.c.l.b16 %v241
      %v666 = vunpack.c.l.b16 %v242
      %v667 = vunpack.c.l.b16 %v243
      %v668 = vunpack.c.l.b16 %v244
      %v669 = vunpack.c.l.b16 %v245
      %v670 = vunpack.c.l.b16 %v246
      %v671 = vunpack.c.l.b16 %v247
      %v672 = vunpack.c.l.b16 %v248
      %v673 = vunpack.c.l.b16 %v249
      %v674 = vunpack.c.l.b16 %v250
      %v675 = vunpack.c.l.b16 %v251
      %v676 = vunpack.c.l.b16 %v252
      %v677 = vunpack.c.l.b16 %v253
      %v678 = vpack.c.b16 %v647, %v646
      %v679 = vpack.c.b16 %v649, %v648
      %v680 = vpack.c.b16 %v651, %v650
      %v681 = vpack.c.b16 %v653, %v652
      %v682 = vpack.c.b16 %v655, %v654
      %v683 = vpack.c.b16 %v657, %v656
      %v684 = vpack.c.b16 %v659, %v658
      %v685 = vpack.c.b16 %v661, %v660
      %v686 = vpack.c.b16 %v663, %v662
      %v687 = vpack.c.b16 %v665, %v664
      %v688 = vpack.c.b16 %v667, %v666
      %v689 = vpack.c.b16 %v669, %v668
      %v690 = vpack.c.b16 %v671, %v670
      %v691 = vpack.c.b16 %v673, %v672
      %v692 = vpack.c.b16 %v675, %v674
      %v693 = vpack.c.b16 %v677, %v676
      %710 = vmatprep.subr.bf16.mxu0 0
      %711 = vmatpush1.bf16.msra.mxu0 %v685
      %712 = vmatprep.subr.bf16.mxu0 0
      %713 = vmatpush1.bf16.msra.mxu0 %v684
      %714 = vmatprep.subr.bf16.mxu0 0
      %715 = vmatpush1.bf16.msra.mxu0 %v683
      %716 = vmatprep.subr.bf16.mxu0 0
      %717 = vmatpush1.bf16.msra.mxu0 %v682
      %718 = vmatprep.subr.bf16.mxu0 0
      %719 = vmatpush1.bf16.msra.mxu0 %v681
      %720 = vmatprep.subr.bf16.mxu0 0
      %721 = vmatpush1.bf16.msra.mxu0 %v680
      %722 = vmatprep.subr.bf16.mxu0 0
      %723 = vmatpush1.bf16.msra.mxu0 %v679
      %724 = vmatprep.subr.bf16.mxu0 0
      %725 = vmatpush1.bf16.msra.mxu0 %v678
      %726 = vmatprep.subr.bf16.mxu0 0
      %727 = vmatpush2.bf16.msra.mxu0 %v693
      %728 = vmatprep.subr.bf16.mxu0 0
      %729 = vmatpush2.bf16.msra.mxu0 %v692
      %730 = vmatprep.subr.bf16.mxu0 0
      %731 = vmatpush2.bf16.msra.mxu0 %v691
      %732 = vmatprep.subr.bf16.mxu0 0
      %733 = vmatpush2.bf16.msra.mxu0 %v690
      %734 = vmatprep.subr.bf16.mxu0 0
      %735 = vmatpush2.bf16.msra.mxu0 %v689
      %736 = vmatprep.subr.bf16.mxu0 0
      %737 = vmatpush2.bf16.msra.mxu0 %v688
      %738 = vmatprep.subr.bf16.mxu0 0
      %739 = vmatpush2.bf16.msra.mxu0 %v687
      %740 = vmatprep.subr.bf16.mxu0 0
      %741 = vmatpush2.bf16.msra.mxu0 %v686
      %742 = vmatprep.mubr.bf16.mxu0 %v471
      %743 = vmatmul.mubr.bf16.gmra.mxu0 %v470
      %v744 = vpop.f32.mrf.mxu0
      %v745 = vadd.f32 0.0, %v744
      %v746 = vpop.f32.mrf.mxu0
      %v747 = vpop.f32.mrf.mxu0
      %v748 = vadd.f32 0.0, %v747
      %v749 = vpop.f32.mrf.mxu0
      %750 = vmatprep.mubr.bf16.mxu0 %v473
      %751 = vmatmul.mubr.bf16.gmra.mxu0 %v472
      %v752 = vpop.f32.mrf.mxu0
      %v753 = vadd.f32 0.0, %v752
      %v754 = vpop.f32.mrf.mxu0
      %v755 = vpop.f32.mrf.mxu0
      %v756 = vadd.f32 0.0, %v755
      %v757 = vpop.f32.mrf.mxu0
      %758 = vmatprep.mubr.bf16.mxu0 %v475
      %759 = vmatmul.mubr.bf16.gmra.mxu0 %v474
      %v760 = vpop.f32.mrf.mxu0
      %v761 = vadd.f32 0.0, %v760
      %v762 = vpop.f32.mrf.mxu0
      %v763 = vpop.f32.mrf.mxu0
      %v764 = vadd.f32 0.0, %v763
      %v765 = vpop.f32.mrf.mxu0
      %766 = vmatprep.mubr.bf16.mxu0 %v477
      %767 = vmatmul.mubr.bf16.gmra.mxu0 %v476
      %v768 = vpop.f32.mrf.mxu0
      %v769 = vadd.f32 0.0, %v768
      %v770 = vpop.f32.mrf.mxu0
      %v771 = vpop.f32.mrf.mxu0
      %v772 = vadd.f32 0.0, %v771
      %v773 = vpop.f32.mrf.mxu0
      %774 = vmatprep.mubr.bf16.mxu0 %v479
      %775 = vmatmul.mubr.bf16.gmra.mxu0 %v478
      %v776 = vpop.f32.mrf.mxu0
      %v777 = vadd.f32 0.0, %v776
      %v778 = vpop.f32.mrf.mxu0
      %v779 = vpop.f32.mrf.mxu0
      %v780 = vadd.f32 0.0, %v779
      %v781 = vpop.f32.mrf.mxu0
      %782 = vmatprep.mubr.bf16.mxu0 %v481
      %783 = vmatmul.mubr.bf16.gmra.mxu0 %v480
      %v784 = vpop.f32.mrf.mxu0
      %v785 = vadd.f32 0.0, %v784
      %v786 = vpop.f32.mrf.mxu0
      %v787 = vpop.f32.mrf.mxu0
      %v788 = vadd.f32 0.0, %v787
      %v789 = vpop.f32.mrf.mxu0
      %790 = vmatprep.mubr.bf16.mxu0 %v483
      %791 = vmatmul.mubr.bf16.gmra.mxu0 %v482
      %v792 = vpop.f32.mrf.mxu0
      %v793 = vadd.f32 0.0, %v792
      %v794 = vpop.f32.mrf.mxu0
      %v795 = vpop.f32.mrf.mxu0
      %v796 = vadd.f32 0.0, %v795
      %v797 = vpop.f32.mrf.mxu0
      %798 = vmatprep.mubr.bf16.mxu0 %v485
      %799 = vmatmul.mubr.bf16.gmra.mxu0 %v484
      %v800 = vpop.f32.mrf.mxu0
      %v801 = vadd.f32 0.0, %v800
      %v802 = vpop.f32.mrf.mxu0
      %v803 = vpop.f32.mrf.mxu0
      %v804 = vadd.f32 0.0, %v803
      %v805 = vpop.f32.mrf.mxu0
      %806 = vmatprep.mubr.bf16.mxu0 %v487
      %807 = vmatmul.mubr.bf16.gmra.mxu0 %v486
      %v808 = vpop.f32.mrf.mxu0
      %v809 = vadd.f32 0.0, %v808
      %v810 = vpop.f32.mrf.mxu0
      %v811 = vpop.f32.mrf.mxu0
      %v812 = vadd.f32 0.0, %v811
      %v813 = vpop.f32.mrf.mxu0
      %814 = vmatprep.mubr.bf16.mxu0 %v489
      %815 = vmatmul.mubr.bf16.gmra.mxu0 %v488
      %v816 = vpop.f32.mrf.mxu0
      %v817 = vadd.f32 0.0, %v816
      %v818 = vpop.f32.mrf.mxu0
      %v819 = vpop.f32.mrf.mxu0
      %v820 = vadd.f32 0.0, %v819
      %v821 = vpop.f32.mrf.mxu0
      %822 = vmatprep.mubr.bf16.mxu0 %v491
      %823 = vmatmul.mubr.bf16.gmra.mxu0 %v490
      %v824 = vpop.f32.mrf.mxu0
      %v825 = vadd.f32 0.0, %v824
      %v826 = vpop.f32.mrf.mxu0
      %v827 = vpop.f32.mrf.mxu0
      %v828 = vadd.f32 0.0, %v827
      %v829 = vpop.f32.mrf.mxu0
      %830 = vmatprep.mubr.bf16.mxu0 %v493
      %831 = vmatmul.mubr.bf16.gmra.mxu0 %v492
      %v832 = vpop.f32.mrf.mxu0
      %v833 = vadd.f32 0.0, %v832
      %v834 = vpop.f32.mrf.mxu0
      %v835 = vpop.f32.mrf.mxu0
      %v836 = vadd.f32 0.0, %v835
      %v837 = vpop.f32.mrf.mxu0
      %838 = vmatprep.mubr.bf16.mxu0 %v495
      %839 = vmatmul.mubr.bf16.gmra.mxu0 %v494
      %v840 = vpop.f32.mrf.mxu0
      %v841 = vadd.f32 0.0, %v840
      %v842 = vpop.f32.mrf.mxu0
      %v843 = vpop.f32.mrf.mxu0
      %v844 = vadd.f32 0.0, %v843
      %v845 = vpop.f32.mrf.mxu0
      %846 = vmatprep.mubr.bf16.mxu0 %v497
      %847 = vmatmul.mubr.bf16.gmra.mxu0 %v496
      %v848 = vpop.f32.mrf.mxu0
      %v849 = vadd.f32 0.0, %v848
      %v850 = vpop.f32.mrf.mxu0
      %v851 = vpop.f32.mrf.mxu0
      %v852 = vadd.f32 0.0, %v851
      %v853 = vpop.f32.mrf.mxu0
      %854 = vmatprep.mubr.bf16.mxu0 %v499
      %855 = vmatmul.mubr.bf16.gmra.mxu0 %v498
      %v856 = vpop.f32.mrf.mxu0
      %v857 = vadd.f32 0.0, %v856
      %v858 = vpop.f32.mrf.mxu0
      %v859 = vpop.f32.mrf.mxu0
      %v860 = vadd.f32 0.0, %v859
      %v861 = vpop.f32.mrf.mxu0
      %862 = vmatprep.mubr.bf16.mxu0 %v501
      %863 = vmatmul.mubr.bf16.gmra.mxu0 %v500
      %v864 = vpop.f32.mrf.mxu0
      %v865 = vadd.f32 0.0, %v864
      %v866 = vpop.f32.mrf.mxu0
      %v867 = vpop.f32.mrf.mxu0
      %v868 = vadd.f32 0.0, %v867
      %v869 = vpop.f32.mrf.mxu0
      %870 = vmatprep.mubr.bf16.mxu0 %v503
      %871 = vmatmul.mubr.bf16.gmra.mxu0 %v502
      %v872 = vpop.f32.mrf.mxu0
      %v873 = vadd.f32 0.0, %v872
      %v874 = vpop.f32.mrf.mxu0
      %v875 = vpop.f32.mrf.mxu0
      %v876 = vadd.f32 0.0, %v875
      %v877 = vpop.f32.mrf.mxu0
      %878 = vmatprep.mubr.bf16.mxu0 %v505
      %879 = vmatmul.mubr.bf16.gmra.mxu0 %v504
      %v880 = vpop.f32.mrf.mxu0
      %v881 = vadd.f32 0.0, %v880
      %v882 = vpop.f32.mrf.mxu0
      %v883 = vpop.f32.mrf.mxu0
      %v884 = vadd.f32 0.0, %v883
      %v885 = vpop.f32.mrf.mxu0
      %886 = vmatprep.mubr.bf16.mxu0 %v507
      %887 = vmatmul.mubr.bf16.gmra.mxu0 %v506
      %v888 = vpop.f32.mrf.mxu0
      %v889 = vadd.f32 0.0, %v888
      %v890 = vpop.f32.mrf.mxu0
      %v891 = vpop.f32.mrf.mxu0
      %v892 = vadd.f32 0.0, %v891
      %v893 = vpop.f32.mrf.mxu0
      %894 = vmatprep.mubr.bf16.mxu0 %v509
      %895 = vmatmul.mubr.bf16.gmra.mxu0 %v508
      %v896 = vpop.f32.mrf.mxu0
      %v897 = vadd.f32 0.0, %v896
      %v898 = vpop.f32.mrf.mxu0
      %v899 = vpop.f32.mrf.mxu0
      %v900 = vadd.f32 0.0, %v899
      %v901 = vpop.f32.mrf.mxu0
      %902 = vmatprep.mubr.bf16.mxu0 %v511
      %903 = vmatmul.mubr.bf16.gmra.mxu0 %v510
      %v904 = vpop.f32.mrf.mxu0
      %v905 = vadd.f32 0.0, %v904
      %v906 = vpop.f32.mrf.mxu0
      %v907 = vpop.f32.mrf.mxu0
      %v908 = vadd.f32 0.0, %v907
      %v909 = vpop.f32.mrf.mxu0
      %910 = vmatprep.mubr.bf16.mxu0 %v513
      %911 = vmatmul.mubr.bf16.gmra.mxu0 %v512
      %v912 = vpop.f32.mrf.mxu0
      %v913 = vadd.f32 0.0, %v912
      %v914 = vpop.f32.mrf.mxu0
      %v915 = vpop.f32.mrf.mxu0
      %v916 = vadd.f32 0.0, %v915
      %v917 = vpop.f32.mrf.mxu0
      %918 = vmatprep.mubr.bf16.mxu0 %v515
      %919 = vmatmul.mubr.bf16.gmra.mxu0 %v514
      %v920 = vpop.f32.mrf.mxu0
      %v921 = vadd.f32 0.0, %v920
      %v922 = vpop.f32.mrf.mxu0
      %v923 = vpop.f32.mrf.mxu0
      %v924 = vadd.f32 0.0, %v923
      %v925 = vpop.f32.mrf.mxu0
      %926 = vmatprep.mubr.bf16.mxu0 %v517
      %927 = vmatmul.mubr.bf16.gmra.mxu0 %v516
      %v928 = vpop.f32.mrf.mxu0
      %v929 = vadd.f32 0.0, %v928
      %v930 = vpop.f32.mrf.mxu0
      %v931 = vpop.f32.mrf.mxu0
      %v932 = vadd.f32 0.0, %v931
      %v933 = vpop.f32.mrf.mxu0
      %934 = vmatprep.mubr.bf16.mxu0 %v519
      %935 = vmatmul.mubr.bf16.gmra.mxu0 %v518
      %v936 = vpop.f32.mrf.mxu0
      %v937 = vadd.f32 0.0, %v936
      %v938 = vpop.f32.mrf.mxu0
      %v939 = vpop.f32.mrf.mxu0
      %v940 = vadd.f32 0.0, %v939
      %v941 = vpop.f32.mrf.mxu0
      %942 = vmatprep.mubr.bf16.mxu0 %v521
      %943 = vmatmul.mubr.bf16.gmra.mxu0 %v520
      %v944 = vpop.f32.mrf.mxu0
      %v945 = vadd.f32 0.0, %v944
      %v946 = vpop.f32.mrf.mxu0
      %v947 = vpop.f32.mrf.mxu0
      %v948 = vadd.f32 0.0, %v947
      %v949 = vpop.f32.mrf.mxu0
      %950 = vmatprep.mubr.bf16.mxu0 %v523
      %951 = vmatmul.mubr.bf16.gmra.mxu0 %v522
      %v952 = vpop.f32.mrf.mxu0
      %v953 = vadd.f32 0.0, %v952
      %v954 = vpop.f32.mrf.mxu0
      %v955 = vpop.f32.mrf.mxu0
      %v956 = vadd.f32 0.0, %v955
      %v957 = vpop.f32.mrf.mxu0
      %958 = vmatprep.mubr.bf16.mxu0 %v525
      %959 = vmatmul.mubr.bf16.gmra.mxu0 %v524
      %v960 = vpop.f32.mrf.mxu0
      %v961 = vadd.f32 0.0, %v960
      %v962 = vpop.f32.mrf.mxu0
      %v963 = vpop.f32.mrf.mxu0
      %v964 = vadd.f32 0.0, %v963
      %v965 = vpop.f32.mrf.mxu0
      %966 = vmatprep.mubr.bf16.mxu0 %v527
      %967 = vmatmul.mubr.bf16.gmra.mxu0 %v526
      %v968 = vpop.f32.mrf.mxu0
      %v969 = vadd.f32 0.0, %v968
      %v970 = vpop.f32.mrf.mxu0
      %v971 = vpop.f32.mrf.mxu0
      %v972 = vadd.f32 0.0, %v971
      %v973 = vpop.f32.mrf.mxu0
      %974 = vmatprep.mubr.bf16.mxu0 %v529
      %975 = vmatmul.mubr.bf16.gmra.mxu0 %v528
      %v976 = vpop.f32.mrf.mxu0
      %v977 = vadd.f32 0.0, %v976
      %v978 = vpop.f32.mrf.mxu0
      %v979 = vpop.f32.mrf.mxu0
      %v980 = vadd.f32 0.0, %v979
      %v981 = vpop.f32.mrf.mxu0
      %982 = vmatprep.mubr.bf16.mxu0 %v531
      %983 = vmatmul.mubr.bf16.gmra.mxu0 %v530
      %v984 = vpop.f32.mrf.mxu0
      %v985 = vadd.f32 0.0, %v984
      %v986 = vpop.f32.mrf.mxu0
      %v987 = vpop.f32.mrf.mxu0
      %v988 = vadd.f32 0.0, %v987
      %v989 = vpop.f32.mrf.mxu0
      %990 = vmatprep.mubr.bf16.mxu0 %v533
      %991 = vmatmul.mubr.bf16.gmra.mxu0 %v532
      %v992 = vpop.f32.mrf.mxu0
      %v993 = vadd.f32 0.0, %v992
      %v994 = vpop.f32.mrf.mxu0
      %v995 = vpop.f32.mrf.mxu0
      %v996 = vadd.f32 0.0, %v995
      %v997 = vpop.f32.mrf.mxu0
      %998 = vmatprep.mubr.bf16.mxu0 %v535
      %999 = vmatmul.mubr.bf16.gmra.mxu0 %v534
      %v1000 = vpop.f32.mrf.mxu0
      %v1001 = vadd.f32 0.0, %v1000
      %v1002 = vpop.f32.mrf.mxu0
      %v1003 = vpop.f32.mrf.mxu0
      %v1004 = vadd.f32 0.0, %v1003
      %v1005 = vpop.f32.mrf.mxu0
      %1006 = vmatprep.mubr.bf16.mxu0 %v537
      %1007 = vmatmul.mubr.bf16.gmra.mxu0 %v536
      %v1008 = vpop.f32.mrf.mxu0
      %v1009 = vadd.f32 0.0, %v1008
      %v1010 = vpop.f32.mrf.mxu0
      %v1011 = vpop.f32.mrf.mxu0
      %v1012 = vadd.f32 0.0, %v1011
      %v1013 = vpop.f32.mrf.mxu0
      %1014 = vmatprep.mubr.bf16.mxu0 %v539
      %1015 = vmatmul.mubr.bf16.gmra.mxu0 %v538
      %v1016 = vpop.f32.mrf.mxu0
      %v1017 = vadd.f32 0.0, %v1016
      %v1018 = vpop.f32.mrf.mxu0
      %v1019 = vpop.f32.mrf.mxu0
      %v1020 = vadd.f32 0.0, %v1019
      %v1021 = vpop.f32.mrf.mxu0
      %1022 = vmatprep.mubr.bf16.mxu0 %v541
      %1023 = vmatmul.mubr.bf16.gmra.mxu0 %v540
      %v1024 = vpop.f32.mrf.mxu0
      %v1025 = vadd.f32 0.0, %v1024
      %v1026 = vpop.f32.mrf.mxu0
      %v1027 = vpop.f32.mrf.mxu0
      %v1028 = vadd.f32 0.0, %v1027
      %v1029 = vpop.f32.mrf.mxu0
      %1030 = vdwg.mxu0
      %v1031 = vmax.f32 %v745, %v817
      %v1032 = vmax.f32 %v748, %v820
      %v1033 = vmax.f32 %v753, %v825
      %v1034 = vmax.f32 %v756, %v828
      %v1035 = vmax.f32 %v761, %v833
      %v1036 = vmax.f32 %v764, %v836
      %v1037 = vmax.f32 %v769, %v841
      %v1038 = vmax.f32 %v772, %v844
      %v1039 = vmax.f32 %v777, %v849
      %v1040 = vmax.f32 %v780, %v852
      %v1041 = vmax.f32 %v785, %v857
      %v1042 = vmax.f32 %v788, %v860
      %v1043 = vmax.f32 %v793, %v865
      %v1044 = vmax.f32 %v796, %v868
      %v1045 = vmax.f32 %v801, %v873
      %v1046 = vmax.f32 %v804, %v876
      %v1047 = vmax.f32 %v809, %v881
      %v1048 = vmax.f32 %v812, %v884
      %v1049 = vmax.f32 %v889, %v961
      %v1050 = vmax.f32 %v892, %v964
      %v1051 = vmax.f32 %v897, %v969
      %v1052 = vmax.f32 %v900, %v972
      %v1053 = vmax.f32 %v905, %v977
      %v1054 = vmax.f32 %v908, %v980
      %v1055 = vmax.f32 %v913, %v985
      %v1056 = vmax.f32 %v916, %v988
      %v1057 = vmax.f32 %v921, %v993
      %v1058 = vmax.f32 %v924, %v996
      %v1059 = vmax.f32 %v929, %v1001
      %v1060 = vmax.f32 %v932, %v1004
      %v1061 = vmax.f32 %v937, %v1009
      %v1062 = vmax.f32 %v940, %v1012
      %v1063 = vmax.f32 %v945, %v1017
      %v1064 = vmax.f32 %v948, %v1020
      %v1065 = vmax.f32 %v953, %v1025
      %v1066 = vmax.f32 %v956, %v1028
      %v1067 = vmax.f32 %v1031, %v1049
      %v1068 = vmax.f32 %v1032, %v1050
      %v1069 = vmax.f32 %v1033, %v1051
      %v1070 = vmax.f32 %v1034, %v1052
      %v1071 = vmax.f32 %v1035, %v1053
      %v1072 = vmax.f32 %v1036, %v1054
      %v1073 = vmax.f32 %v1037, %v1055
      %v1074 = vmax.f32 %v1038, %v1056
      %v1075 = vmax.f32 %v1039, %v1057
      %v1076 = vmax.f32 %v1040, %v1058
      %v1077 = vmax.f32 %v1041, %v1059
      %v1078 = vmax.f32 %v1042, %v1060
      %v1079 = vmax.f32 %v1043, %v1061
      %v1080 = vmax.f32 %v1044, %v1062
      %v1081 = vmax.f32 %v1045, %v1063
      %v1082 = vmax.f32 %v1046, %v1064
      %v1083 = vmax.f32 %v1047, %v1065
      %v1084 = vmax.f32 %v1048, %v1066
      %v1085 = vmax.f32 %v1067, 0.0
      %v1086 = vmax.f32 %v1068, 0.0
      %v1087 = vmax.f32 %v1069, 0.0
      %v1088 = vmax.f32 %v1070, 0.0
      %v1089 = vmax.f32 %v1071, 0.0
      %v1090 = vmax.f32 %v1072, 0.0
      %v1091 = vmax.f32 %v1073, 0.0
      %v1092 = vmax.f32 %v1074, 0.0
      %v1093 = vmax.f32 %v1075, 0.0
      %v1094 = vmax.f32 %v1076, 0.0
      %v1095 = vmax.f32 %v1077, 0.0
      %v1096 = vmax.f32 %v1078, 0.0
      %v1097 = vmax.f32 %v1079, 0.0
      %v1098 = vmax.f32 %v1080, 0.0
      %v1099 = vmax.f32 %v1081, 0.0
      %v1100 = vmax.f32 %v1082, 0.0
      %v1101 = vmax.f32 %v1083, 0.0
      %v1102 = vmax.f32 %v1084, 0.0
      %v1103 = vpack.c.bf16 %v1086, %v1085
      %v1104 = vpack.c.bf16 %v1088, %v1087
      %v1105 = vpack.c.bf16 %v1090, %v1089
      %v1106 = vpack.c.bf16 %v1092, %v1091
      %v1107 = vpack.c.bf16 %v1094, %v1093
      %v1108 = vpack.c.bf16 %v1096, %v1095
      %v1109 = vpack.c.bf16 %v1098, %v1097
      %v1110 = vpack.c.bf16 %v1100, %v1099
      %v1111 = vpack.c.bf16 %v1102, %v1101
      %v1121 = vunpack.c.l.b16 %v1103
      %v1122 = vunpack.c.h.b16 %v1103
      %v1123 = vunpack.c.l.b16 %v1104
      %v1124 = vunpack.c.h.b16 %v1104
      %v1125 = vunpack.c.l.b16 %v1105
      %v1126 = vunpack.c.h.b16 %v1105
      %v1127 = vunpack.c.l.b16 %v1106
      %v1128 = vunpack.c.h.b16 %v1106
      %v1129 = vunpack.c.l.b16 %v1107
      %v1130 = vunpack.c.h.b16 %v1107
      %v1131 = vunpack.c.l.b16 %v1108
      %v1132 = vunpack.c.h.b16 %v1108
      %v1133 = vunpack.c.l.b16 %v1109
      %v1134 = vunpack.c.h.b16 %v1109
      %v1135 = vunpack.c.l.b16 %v1110
      %v1136 = vunpack.c.h.b16 %v1110
      %v1137 = vunpack.c.l.b16 %v1111
      %v1138 = vunpack.c.h.b16 %v1111
      %v1139 = vpack.c.b16 %v1121, %v1121
      %v1140 = vpack.c.b16 %v1122, %v1122
      %v1141 = vpack.c.b16 %v1123, %v1123
      %v1142 = vpack.c.b16 %v1124, %v1124
      %v1143 = vpack.c.b16 %v1125, %v1125
      %v1144 = vpack.c.b16 %v1126, %v1126
      %v1145 = vpack.c.b16 %v1127, %v1127
      %v1146 = vpack.c.b16 %v1128, %v1128
      %v1147 = vpack.c.b16 %v1129, %v1129
      %v1148 = vpack.c.b16 %v1130, %v1130
      %v1149 = vpack.c.b16 %v1131, %v1131
      %v1150 = vpack.c.b16 %v1132, %v1132
      %v1151 = vpack.c.b16 %v1133, %v1133
      %v1152 = vpack.c.b16 %v1134, %v1134
      %v1153 = vpack.c.b16 %v1135, %v1135
      %v1154 = vpack.c.b16 %v1136, %v1136
      %v1155 = vpack.c.b16 %v1137, %v1137
      %v1156 = vpack.c.b16 %v1138, %v1138
      %vm1175 = vcmask 44032
      %1176 = vst.msk [vmem:[%s148] sm:$0xf] %vm1175, %v1139
      %1177 = vst.msk [vmem:[%s148 + $0x4] sm:$0xf] %vm1175, %v1140
      %1178 = vst.msk [vmem:[%s148 + $0x8] sm:$0xf] %vm1175, %v1141
      %1179 = vst.msk [vmem:[%s148 + $0xc] sm:$0xf] %vm1175, %v1142
      %1180 = vst.msk [vmem:[%s148 + $0x10] sm:$0xf] %vm1175, %v1143
      %1181 = vst.msk [vmem:[%s148 + $0x14] sm:$0xf] %vm1175, %v1144
      %1182 = vst.msk [vmem:[%s148 + $0x18] sm:$0xf] %vm1175, %v1145
      %1183 = vst.msk [vmem:[%s148 + $0x1c] sm:$0xf] %vm1175, %v1146
      %1184 = vst.msk [vmem:[%s148 + $0x20] sm:$0xf] %vm1175, %v1147
      %1185 = vst.msk [vmem:[%s148 + $0x24] sm:$0xf] %vm1175, %v1148
      %1186 = vst.msk [vmem:[%s148 + $0x28] sm:$0xf] %vm1175, %v1149
      %1187 = vst.msk [vmem:[%s148 + $0x2c] sm:$0xf] %vm1175, %v1150
      %1188 = vst.msk [vmem:[%s148 + $0x30] sm:$0xf] %vm1175, %v1151
      %1189 = vst.msk [vmem:[%s148 + $0x34] sm:$0xf] %vm1175, %v1152
      %1190 = vst.msk [vmem:[%s148 + $0x38] sm:$0xf] %vm1175, %v1153
      %1191 = vst.msk [vmem:[%s148 + $0x3c] sm:$0xf] %vm1175, %v1154
      %1192 = vst.msk [vmem:[%s148 + $0x40] sm:$0xf] %vm1175, %v1155
      %1193 = vst.msk [vmem:[%s148 + $0x44] sm:$0xf] %vm1175, %v1156
      %p1194 = scmp.lt.s32.totalorder %s13, 1
      %s1195 = scalar_select %p1194, %s13, 1
      %s1196 = smul.addr %s1195, 18
      %s1197 = smul.addr %s1196, 4
      %s1198 = scalar_lea.vmem %s2, %s1197
      // Predicated region
      $region29: #{simple_conv_kan_forward.6} parent=27 // pred_check
        %p1199 = pneg %p78
      $region30: #{simple_conv_kan_forward.6} parent=27 // pred_check_branch
        %1201 = sbr.rel (%p1199) target = $region32
      $region31: #{simple_conv_kan_forward.6} parent=27 // pred_region
        _
      $region32: #{simple_conv_kan_forward.6} parent=27 // pred_fallthru
        _
    $region28: #{simple_conv_kan_forward.6} parent=5 // pred_fallthru
      _
    %p1202 = scmp.le.s32.totalorder 2, %s8
    // Predicated region
    $region33: #{simple_conv_kan_forward.6} parent=5 // pred_check
      %p1203 = pneg %p1202
    $region34: #{simple_conv_kan_forward.6} parent=5 // pred_check_branch
      %1205 = sbr.rel (%p1203) target = $region36
    $region35: #{simple_conv_kan_forward.6} parent=5 // pred_region
      %s1206 = ssub.s32 %s8, 2
      // Predicated region
      $region37: #{simple_conv_kan_forward.6} parent=35 // pred_check
        %p1207 = pneg %p84
      $region38: #{simple_conv_kan_forward.6} parent=35 // pred_check_branch
        %1209 = sbr.rel (%p1207) target = $region40
      $region39: #{simple_conv_kan_forward.6} parent=35 // pred_region
        %p1210 = scmp.lt.s32.totalorder %s14, 1
        %s1211 = scalar_select %p1210, %s14, 1
        %s1212 = smul.addr %s1211, 18
        %s1213 = smul.addr %s1212, 4
        %s1214 = scalar_lea.vmem %s2, %s1213
      $region40: #{simple_conv_kan_forward.6} parent=35 // pred_fallthru
        _
    $region36: #{simple_conv_kan_forward.6} parent=5 // pred_fallthru
      _
  $region6: #{simple_conv_kan_forward.6} parent=0 // loop_footer
    %s12 = sadd.s32 1, %s8
  $region7: #{simple_conv_kan_forward.6} parent=0 // loop_footer_branch
    %7 = sbr.rel target = $region3
  $region8: #{simple_conv_kan_forward.6} parent=0 // loop_exit
    _

// kernel: simple_conv_kan_forward.8
$region0: #{simple_conv_kan_forward.8}
  #allocation0 [shape = 'u32[]', space=smem, size = 0x4, offset = 0x4, fixed_abs, tag = 'smem constant byte address 0x4 - core index']
  #allocation1 [shape = 'u32[144,128]{1,0:T(1,128)}', space=vmem, size = 0x12000, scoped, tag = 'internal scratch']
  %s0 = inlined_call_operand.vmem [shape: bf16[128,1408], index: 0, kind: input, shape index: {}]
  %s1 = inlined_call_operand.vmem [shape: bf16[1408,128], index: 1, kind: input, shape index: {}]
  %s2 = inlined_call_operand.vmem [shape: bf16[2,16,16], index: 2, kind: output, shape index: {}]
  %s3 = sld [smem:[#allocation0]]
  $region41: #{simple_conv_kan_forward.8} parent=0
    _
  %s5 = ssub.s32 1, %s3
  %s6 = scalar_select 0, %s5, %s3
  loop: start=0, step=1, limit=4
  $region2: #{simple_conv_kan_forward.8} parent=0 // loop_pre_header
    _
  $region3: #{simple_conv_kan_forward.8} parent=0 // loop_header
    %s8 = sphi 0, %s12
    %p9 = scmp.ge.s32.totalorder %s8, 4
    %s18 = sphi 0, %s20
    %s21 = sphi 0, %s18
    %s22 = sphi 0, %s21
    %s38 = sphi 0, %s22
    %s42 = sphi 0, %s42
    %s44 = sphi 0, %s42
    %s45 = sphi 0, %s44
    %s59 = sphi 0, %s45
    %s65 = sphi 0, %s67
    %s68 = sphi 0, %s65
    %s69 = sphi 0, %s68
    %s85 = sphi 0, %s69
  $region4: #{simple_conv_kan_forward.8} parent=0 // loop_header_branch
    %11 = sbr.rel (%p9) target = $region8
  $region5: #{simple_conv_kan_forward.8} parent=0 // loop_body
    %s13 = ssub.s32 %s8, 1
    %s14 = ssub.s32 %s8, 2
    %s15 = sadd.s32 %s8, 1
    %s16 = ssub.s32 %s8, %s15
    %p17 = scmp.eq.s32.totalorder %s16, 0
    %s19 = sadd.s32 %s18, 1
    %s20 = scalar_select %p17, %s18, %s19
    %p23 = pneg %p17
    %p24 = scmp.eq.s32.totalorder %s8, 1
    %p25 = por %p23, %p24
    %p26 = scmp.ne.s32.totalorder %s18, %s21
    %p27 = scmp.eq.s32.totalorder %s8, 0
    %p28 = por %p26, %p27
    %p29 = scmp.ne.s32.totalorder %s18, %s21
    %p30 = scmp.eq.s32.totalorder %s13, 1
    %p31 = por %p29, %p30
    %p32 = scmp.ne.s32.totalorder %s21, %s22
    %p33 = scmp.eq.s32.totalorder %s13, 0
    %p34 = por %p32, %p33
    %p35 = scmp.ne.s32.totalorder %s21, %s22
    %p36 = scmp.eq.s32.totalorder %s14, 1
    %p37 = por %p35, %p36
    %p39 = scmp.ne.s32.totalorder %s22, %s38
    %p40 = scmp.eq.s32.totalorder %s14, 0
    %p41 = por %p39, %p40
    %s43 = sadd.s32 %s42, 1
    %p46 = scmp.eq.s32.totalorder %s8, 1
    %p47 = scmp.ne.s32.totalorder %s42, %s44
    %p48 = scmp.eq.s32.totalorder %s8, 0
    %p49 = por %p47, %p48
    %p50 = scmp.ne.s32.totalorder %s42, %s44
    %p51 = scmp.eq.s32.totalorder %s13, 1
    %p52 = por %p50, %p51
    %p53 = scmp.ne.s32.totalorder %s44, %s45
    %p54 = scmp.eq.s32.totalorder %s13, 0
    %p55 = por %p53, %p54
    %p56 = scmp.ne.s32.totalorder %s44, %s45
    %p57 = scmp.eq.s32.totalorder %s14, 1
    %p58 = por %p56, %p57
    %p60 = scmp.ne.s32.totalorder %s45, %s59
    %p61 = scmp.eq.s32.totalorder %s14, 0
    %p62 = por %p60, %p61
    %s63 = ssub.s32 %s8, %s15
    %p64 = scmp.eq.s32.totalorder %s63, 0
    %s66 = sadd.s32 %s65, 1
    %s67 = scalar_select %p64, %s65, %s66
    %p70 = pneg %p64
    %p71 = scmp.eq.s32.totalorder %s8, 1
    %p72 = por %p70, %p71
    %p73 = scmp.ne.s32.totalorder %s65, %s68
    %p74 = scmp.eq.s32.totalorder %s8, 0
    %p75 = por %p73, %p74
    %p76 = scmp.ne.s32.totalorder %s65, %s68
    %p77 = scmp.eq.s32.totalorder %s13, 1
    %p78 = por %p76, %p77
    %p79 = scmp.ne.s32.totalorder %s68, %s69
    %p80 = scmp.eq.s32.totalorder %s13, 0
    %p81 = por %p79, %p80
    %p82 = scmp.ne.s32.totalorder %s68, %s69
    %p83 = scmp.eq.s32.totalorder %s14, 1
    %p84 = por %p82, %p83
    %p86 = scmp.ne.s32.totalorder %s69, %s85
    %p87 = scmp.eq.s32.totalorder %s14, 0
    %p88 = por %p86, %p87
    %p89 = scmp.le.s32.totalorder 1, %s8
    %p90 = scmp.lt.s32.totalorder %s8, 3
    %p91 = pnand %p89, %p90
    %p92 = pneg %p91
    // Predicated region
    $region9: #{simple_conv_kan_forward.8} parent=5 // pred_check
      _
    $region10: #{simple_conv_kan_forward.8} parent=5 // pred_check_branch
      %94 = sbr.rel (%p91) target = $region12
    $region11: #{simple_conv_kan_forward.8} parent=5 // pred_region
      %s95 = ssub.s32 %s8, 1
      // Predicated region
      $region13: #{simple_conv_kan_forward.8} parent=11 // pred_check
        %p96 = pneg %p55
      $region14: #{simple_conv_kan_forward.8} parent=11 // pred_check_branch
        %98 = sbr.rel (%p96) target = $region16
      $region15: #{simple_conv_kan_forward.8} parent=11 // pred_region
        _
      $region16: #{simple_conv_kan_forward.8} parent=11 // pred_fallthru
        _
    $region12: #{simple_conv_kan_forward.8} parent=5 // pred_fallthru
      _
    %p99 = scmp.lt.s32.totalorder %s8, 2
    // Predicated region
    $region17: #{simple_conv_kan_forward.8} parent=5 // pred_check
      %p100 = pneg %p99
    $region18: #{simple_conv_kan_forward.8} parent=5 // pred_check_branch
      %102 = sbr.rel (%p100) target = $region20
    $region19: #{simple_conv_kan_forward.8} parent=5 // pred_region
      // Predicated region
      $region21: #{simple_conv_kan_forward.8} parent=19 // pred_check
        %p103 = pneg %p28
      $region22: #{simple_conv_kan_forward.8} parent=19 // pred_check_branch
        %105 = sbr.rel (%p103) target = $region24
      $region23: #{simple_conv_kan_forward.8} parent=19 // pred_region
        %s106 = smul.u32 8, %s8
        %p107 = scmp.lt.s32.totalorder %s106, 15
        %s108 = scalar_select %p107, %s106, 15
        %s109 = smul.addr %s108, 11
        %s110 = smul.addr %s109, 4
        %s111 = scalar_lea.vmem %s0, %s110
        %s112 = smul.u32 8, %s8
      $region24: #{simple_conv_kan_forward.8} parent=19 // pred_fallthru
        _
    $region20: #{simple_conv_kan_forward.8} parent=5 // pred_fallthru
      _
    %p113 = scmp.le.s32.totalorder 1, %s8
    %p114 = scmp.lt.s32.totalorder %s8, 3
    %p115 = pnand %p113, %p114
    %p116 = pneg %p115
    // Predicated region
    $region25: #{simple_conv_kan_forward.8} parent=5 // pred_check
      _
    $region26: #{simple_conv_kan_forward.8} parent=5 // pred_check_branch
      %118 = sbr.rel (%p115) target = $region28
    $region27: #{simple_conv_kan_forward.8} parent=5 // pred_region
      %s119 = ssub.s32 %s8, 1
      %s120 = smul.u32 8, %s13
      %p121 = scmp.lt.s32.totalorder %s120, 15
      %s122 = scalar_select %p121, %s120, 15
      %s123 = smul.addr %s122, 11
      %s124 = smul.addr %s123, 4
      %s125 = scalar_lea.vmem %s0, %s124
      %p126 = pneg %p34
      %p127 = pneg %p31
      %p128 = pneg %p55
      %p129 = pneg %p52
      %p130 = pneg %p81
      %p131 = pneg %p78
      %p132 = scmp.lt.s32.totalorder %s13, 1
      %s133 = scalar_select %p132, %s13, 1
      %s134 = smul.addr %s133, 2
      %s135 = smul.addr %s134, 4
      %s136 = scalar_lea.vmem %s2, %s135
      %s137 = smul.u32 8, %s13
      %p138 = scmp.lt.s32.totalorder %s137, 15
      %s139 = scalar_select %p138, %s137, 15
      %s140 = smul.addr %s139, 11
      %s141 = smul.addr %s140, 4
      %s142 = scalar_lea.vmem %s0, %s141
      %s143 = smul.u32 8, %s13
      %p144 = scmp.lt.s32.totalorder %s13, 1
      %s145 = scalar_select %p144, %s13, 1
      %s146 = smul.addr %s145, 2
      %s147 = smul.addr %s146, 4
      %s148 = scalar_lea.vmem %s2, %s147
      %v150 = vld [vmem:[%s142] sm:$0xff]
      %v151 = vld [vmem:[%s142 + $0x8] sm:$0xff]
      %v152 = vld [vmem:[%s142 + $0x10] sm:$0xff]
      %v153 = vld [vmem:[%s142 + $0x18] sm:$0xff]
      %v154 = vld [vmem:[%s142 + $0x20] sm:$0xff]
      %v155 = vld [vmem:[%s142 + $0x28] sm:$0xf]
      %v156 = vld [vmem:[%s142 + $0x2c] sm:$0xff]
      %v157 = vld [vmem:[%s142 + $0x34] sm:$0xff]
      %v158 = vld [vmem:[%s142 + $0x3c] sm:$0xff]
      %v159 = vld [vmem:[%s142 + $0x44] sm:$0xff]
      %v160 = vld [vmem:[%s142 + $0x4c] sm:$0xff]
      %v161 = vld [vmem:[%s142 + $0x54] sm:$0xf]
      %v162 = vld [vmem:[%s142 + $0x58] sm:$0xff]
      %v163 = vld [vmem:[%s142 + $0x60] sm:$0xff]
      %v164 = vld [vmem:[%s142 + $0x68] sm:$0xff]
      %v165 = vld [vmem:[%s142 + $0x70] sm:$0xff]
      %v166 = vld [vmem:[%s142 + $0x78] sm:$0xff]
      %v167 = vld [vmem:[%s142 + $0x80] sm:$0xf]
      %v168 = vld [vmem:[%s142 + $0x84] sm:$0xff]
      %v169 = vld [vmem:[%s142 + $0x8c] sm:$0xff]
      %v170 = vld [vmem:[%s142 + $0x94] sm:$0xff]
      %v171 = vld [vmem:[%s142 + $0x9c] sm:$0xff]
      %v172 = vld [vmem:[%s142 + $0xa4] sm:$0xff]
      %v173 = vld [vmem:[%s142 + $0xac] sm:$0xf]
      %v174 = vld [vmem:[%s142 + $0xb0] sm:$0xff]
      %v175 = vld [vmem:[%s142 + $0xb8] sm:$0xff]
      %v176 = vld [vmem:[%s142 + $0xc0] sm:$0xff]
      %v177 = vld [vmem:[%s142 + $0xc8] sm:$0xff]
      %v178 = vld [vmem:[%s142 + $0xd0] sm:$0xff]
      %v179 = vld [vmem:[%s142 + $0xd8] sm:$0xf]
      %v180 = vld [vmem:[%s142 + $0xdc] sm:$0xff]
      %v181 = vld [vmem:[%s142 + $0xe4] sm:$0xff]
      %v182 = vld [vmem:[%s142 + $0xec] sm:$0xff]
      %v183 = vld [vmem:[%s142 + $0xf4] sm:$0xff]
      %v184 = vld [vmem:[%s142 + $0xfc] sm:$0xff]
      %v185 = vld [vmem:[%s142 + $0x104] sm:$0xf]
      %v186 = vld [vmem:[%s142 + $0x108] sm:$0xff]
      %v187 = vld [vmem:[%s142 + $0x110] sm:$0xff]
      %v188 = vld [vmem:[%s142 + $0x118] sm:$0xff]
      %v189 = vld [vmem:[%s142 + $0x120] sm:$0xff]
      %v190 = vld [vmem:[%s142 + $0x128] sm:$0xff]
      %v191 = vld [vmem:[%s142 + $0x130] sm:$0xf]
      %v192 = vld [vmem:[%s142 + $0x134] sm:$0xff]
      %v193 = vld [vmem:[%s142 + $0x13c] sm:$0xff]
      %v194 = vld [vmem:[%s142 + $0x144] sm:$0xff]
      %v195 = vld [vmem:[%s142 + $0x14c] sm:$0xff]
      %v196 = vld [vmem:[%s142 + $0x154] sm:$0xff]
      %v197 = vld [vmem:[%s142 + $0x15c] sm:$0xf]
      %v198 = vld [vmem:[%s1] sm:$0xf]
      %v199 = vld [vmem:[%s1 + $0x4] sm:$0xf]
      %v200 = vld [vmem:[%s1 + $0x8] sm:$0xf]
      %v201 = vld [vmem:[%s1 + $0xc] sm:$0xf]
      %v202 = vld [vmem:[%s1 + $0x10] sm:$0xf]
      %v203 = vld [vmem:[%s1 + $0x14] sm:$0xf]
      %v204 = vld [vmem:[%s1 + $0x18] sm:$0xf]
      %v205 = vld [vmem:[%s1 + $0x1c] sm:$0xf]
      %v206 = vld [vmem:[%s1 + $0x20] sm:$0xf]
      %v207 = vld [vmem:[%s1 + $0x24] sm:$0xf]
      %v208 = vld [vmem:[%s1 + $0x28] sm:$0xf]
      %v209 = vld [vmem:[%s1 + $0x2c] sm:$0xf]
      %v210 = vld [vmem:[%s1 + $0x30] sm:$0xf]
      %v211 = vld [vmem:[%s1 + $0x34] sm:$0xf]
      %v212 = vld [vmem:[%s1 + $0x38] sm:$0xf]
      %v213 = vld [vmem:[%s1 + $0x3c] sm:$0xf]
      %v214 = vld [vmem:[%s1 + $0x40] sm:$0xf]
      %v215 = vld [vmem:[%s1 + $0x44] sm:$0xf]
      %v216 = vld [vmem:[%s1 + $0x48] sm:$0xf]
      %v217 = vld [vmem:[%s1 + $0x4c] sm:$0xf]
      %v218 = vld [vmem:[%s1 + $0x50] sm:$0xf]
      %v219 = vld [vmem:[%s1 + $0x54] sm:$0xf]
      %v220 = vld [vmem:[%s1 + $0x58] sm:$0xf]
      %v221 = vld [vmem:[%s1 + $0x5c] sm:$0xf]
      %v222 = vld [vmem:[%s1 + $0x60] sm:$0xf]
      %v223 = vld [vmem:[%s1 + $0x64] sm:$0xf]
      %v224 = vld [vmem:[%s1 + $0x68] sm:$0xf]
      %v225 = vld [vmem:[%s1 + $0x6c] sm:$0xf]
      %v226 = vld [vmem:[%s1 + $0x70] sm:$0xf]
      %v227 = vld [vmem:[%s1 + $0x74] sm:$0xf]
      %v228 = vld [vmem:[%s1 + $0x78] sm:$0xf]
      %v229 = vld [vmem:[%s1 + $0x7c] sm:$0xf]
      %v230 = vld [vmem:[%s1 + $0x80] sm:$0xf]
      %v231 = vld [vmem:[%s1 + $0x84] sm:$0xf]
      %v232 = vld [vmem:[%s1 + $0x88] sm:$0xf]
      %v233 = vld [vmem:[%s1 + $0x8c] sm:$0xf]
      %v234 = vld [vmem:[%s1 + $0x90] sm:$0xf]
      %v235 = vld [vmem:[%s1 + $0x94] sm:$0xf]
      %v236 = vld [vmem:[%s1 + $0x98] sm:$0xf]
      %v237 = vld [vmem:[%s1 + $0x9c] sm:$0xf]
      %v238 = vld [vmem:[%s1 + $0xa0] sm:$0xf]
      %v239 = vld [vmem:[%s1 + $0xa4] sm:$0xf]
      %v240 = vld [vmem:[%s1 + $0xa8] sm:$0xf]
      %v241 = vld [vmem:[%s1 + $0xac] sm:$0xf]
      %v242 = vld [vmem:[%s1 + $0xb0] sm:$0xf]
      %v243 = vld [vmem:[%s1 + $0xb4] sm:$0xf]
      %v244 = vld [vmem:[%s1 + $0xb8] sm:$0xf]
      %v245 = vld [vmem:[%s1 + $0xbc] sm:$0xf]
      %v246 = vld [vmem:[%s1 + $0xc0] sm:$0xf]
      %v247 = vld [vmem:[%s1 + $0xc4] sm:$0xf]
      %v248 = vld [vmem:[%s1 + $0xc8] sm:$0xf]
      %v249 = vld [vmem:[%s1 + $0xcc] sm:$0xf]
      %v250 = vld [vmem:[%s1 + $0xd0] sm:$0xf]
      %v251 = vld [vmem:[%s1 + $0xd4] sm:$0xf]
      %v252 = vld [vmem:[%s1 + $0xd8] sm:$0xf]
      %v253 = vld [vmem:[%s1 + $0xdc] sm:$0xf]
      %v254 = vld [vmem:[%s1 + $0xe0] sm:$0xf]
      %v255 = vld [vmem:[%s1 + $0xe4] sm:$0xf]
      %v256 = vld [vmem:[%s1 + $0xe8] sm:$0xf]
      %v257 = vld [vmem:[%s1 + $0xec] sm:$0xf]
      %v258 = vld [vmem:[%s1 + $0xf0] sm:$0xf]
      %v259 = vld [vmem:[%s1 + $0xf4] sm:$0xf]
      %v260 = vld [vmem:[%s1 + $0xf8] sm:$0xf]
      %v261 = vld [vmem:[%s1 + $0xfc] sm:$0xf]
      %v262 = vld [vmem:[%s1 + $0x100] sm:$0xf]
      %v263 = vld [vmem:[%s1 + $0x104] sm:$0xf]
      %v264 = vld [vmem:[%s1 + $0x108] sm:$0xf]
      %v265 = vld [vmem:[%s1 + $0x10c] sm:$0xf]
      %v266 = vld [vmem:[%s1 + $0x110] sm:$0xf]
      %v267 = vld [vmem:[%s1 + $0x114] sm:$0xf]
      %v268 = vld [vmem:[%s1 + $0x118] sm:$0xf]
      %v269 = vld [vmem:[%s1 + $0x11c] sm:$0xf]
      %v270 = vld [vmem:[%s1 + $0x120] sm:$0xf]
      %v271 = vld [vmem:[%s1 + $0x124] sm:$0xf]
      %v272 = vld [vmem:[%s1 + $0x128] sm:$0xf]
      %v273 = vld [vmem:[%s1 + $0x12c] sm:$0xf]
      %v274 = vld [vmem:[%s1 + $0x130] sm:$0xf]
      %v275 = vld [vmem:[%s1 + $0x134] sm:$0xf]
      %v276 = vld [vmem:[%s1 + $0x138] sm:$0xf]
      %v277 = vld [vmem:[%s1 + $0x13c] sm:$0xf]
      %v278 = vld [vmem:[%s1 + $0x140] sm:$0xf]
      %v279 = vld [vmem:[%s1 + $0x144] sm:$0xf]
      %v280 = vld [vmem:[%s1 + $0x148] sm:$0xf]
      %v281 = vld [vmem:[%s1 + $0x14c] sm:$0xf]
      %v282 = vld [vmem:[%s1 + $0x150] sm:$0xf]
      %v283 = vld [vmem:[%s1 + $0x154] sm:$0xf]
      %v284 = vld [vmem:[%s1 + $0x158] sm:$0xf]
      %v285 = vld [vmem:[%s1 + $0x15c] sm:$0xf]
      %v286 = vld [vmem:[%s1 + $0x160] sm:$0xf]
      %v287 = vld [vmem:[%s1 + $0x164] sm:$0xf]
      %v288 = vld [vmem:[%s1 + $0x168] sm:$0xf]
      %v289 = vld [vmem:[%s1 + $0x16c] sm:$0xf]
      %v290 = vld [vmem:[%s1 + $0x170] sm:$0xf]
      %v291 = vld [vmem:[%s1 + $0x174] sm:$0xf]
      %v292 = vld [vmem:[%s1 + $0x178] sm:$0xf]
      %v293 = vld [vmem:[%s1 + $0x17c] sm:$0xf]
      %v294 = vld [vmem:[%s1 + $0x180] sm:$0xf]
      %v295 = vld [vmem:[%s1 + $0x184] sm:$0xf]
      %v296 = vld [vmem:[%s1 + $0x188] sm:$0xf]
      %v297 = vld [vmem:[%s1 + $0x18c] sm:$0xf]
      %v298 = vld [vmem:[%s1 + $0x190] sm:$0xf]
      %v299 = vld [vmem:[%s1 + $0x194] sm:$0xf]
      %v300 = vld [vmem:[%s1 + $0x198] sm:$0xf]
      %v301 = vld [vmem:[%s1 + $0x19c] sm:$0xf]
      %v302 = vld [vmem:[%s1 + $0x1a0] sm:$0xf]
      %v303 = vld [vmem:[%s1 + $0x1a4] sm:$0xf]
      %v304 = vld [vmem:[%s1 + $0x1a8] sm:$0xf]
      %v305 = vld [vmem:[%s1 + $0x1ac] sm:$0xf]
      %v306 = vld [vmem:[%s1 + $0x1b0] sm:$0xf]
      %v307 = vld [vmem:[%s1 + $0x1b4] sm:$0xf]
      %v308 = vld [vmem:[%s1 + $0x1b8] sm:$0xf]
      %v309 = vld [vmem:[%s1 + $0x1bc] sm:$0xf]
      %v310 = vld [vmem:[%s1 + $0x1c0] sm:$0xf]
      %v311 = vld [vmem:[%s1 + $0x1c4] sm:$0xf]
      %v312 = vld [vmem:[%s1 + $0x1c8] sm:$0xf]
      %v313 = vld [vmem:[%s1 + $0x1cc] sm:$0xf]
      %v314 = vld [vmem:[%s1 + $0x1d0] sm:$0xf]
      %v315 = vld [vmem:[%s1 + $0x1d4] sm:$0xf]
      %v316 = vld [vmem:[%s1 + $0x1d8] sm:$0xf]
      %v317 = vld [vmem:[%s1 + $0x1dc] sm:$0xf]
      %v318 = vld [vmem:[%s1 + $0x1e0] sm:$0xf]
      %v319 = vld [vmem:[%s1 + $0x1e4] sm:$0xf]
      %v320 = vld [vmem:[%s1 + $0x1e8] sm:$0xf]
      %v321 = vld [vmem:[%s1 + $0x1ec] sm:$0xf]
      %v322 = vld [vmem:[%s1 + $0x1f0] sm:$0xf]
      %v323 = vld [vmem:[%s1 + $0x1f4] sm:$0xf]
      %v324 = vld [vmem:[%s1 + $0x1f8] sm:$0xf]
      %v325 = vld [vmem:[%s1 + $0x1fc] sm:$0xf]
      %v326 = vld [vmem:[%s1 + $0x200] sm:$0xf]
      %v327 = vld [vmem:[%s1 + $0x204] sm:$0xf]
      %v328 = vld [vmem:[%s1 + $0x208] sm:$0xf]
      %v329 = vld [vmem:[%s1 + $0x20c] sm:$0xf]
      %v330 = vld [vmem:[%s1 + $0x210] sm:$0xf]
      %v331 = vld [vmem:[%s1 + $0x214] sm:$0xf]
      %v332 = vld [vmem:[%s1 + $0x218] sm:$0xf]
      %v333 = vld [vmem:[%s1 + $0x21c] sm:$0xf]
      %v334 = vld [vmem:[%s1 + $0x220] sm:$0xf]
      %v335 = vld [vmem:[%s1 + $0x224] sm:$0xf]
      %v336 = vld [vmem:[%s1 + $0x228] sm:$0xf]
      %v337 = vld [vmem:[%s1 + $0x22c] sm:$0xf]
      %v338 = vld [vmem:[%s1 + $0x230] sm:$0xf]
      %v339 = vld [vmem:[%s1 + $0x234] sm:$0xf]
      %v340 = vld [vmem:[%s1 + $0x238] sm:$0xf]
      %v341 = vld [vmem:[%s1 + $0x23c] sm:$0xf]
      %v342 = vld [vmem:[%s1 + $0x240] sm:$0xf]
      %v343 = vld [vmem:[%s1 + $0x244] sm:$0xf]
      %v344 = vld [vmem:[%s1 + $0x248] sm:$0xf]
      %v345 = vld [vmem:[%s1 + $0x24c] sm:$0xf]
      %v346 = vld [vmem:[%s1 + $0x250] sm:$0xf]
      %v347 = vld [vmem:[%s1 + $0x254] sm:$0xf]
      %v348 = vld [vmem:[%s1 + $0x258] sm:$0xf]
      %v349 = vld [vmem:[%s1 + $0x25c] sm:$0xf]
      %v350 = vld [vmem:[%s1 + $0x260] sm:$0xf]
      %v351 = vld [vmem:[%s1 + $0x264] sm:$0xf]
      %v352 = vld [vmem:[%s1 + $0x268] sm:$0xf]
      %v353 = vld [vmem:[%s1 + $0x26c] sm:$0xf]
      %v354 = vld [vmem:[%s1 + $0x270] sm:$0xf]
      %v355 = vld [vmem:[%s1 + $0x274] sm:$0xf]
      %v356 = vld [vmem:[%s1 + $0x278] sm:$0xf]
      %v357 = vld [vmem:[%s1 + $0x27c] sm:$0xf]
      %v358 = vld [vmem:[%s1 + $0x280] sm:$0xf]
      %v359 = vld [vmem:[%s1 + $0x284] sm:$0xf]
      %v360 = vld [vmem:[%s1 + $0x288] sm:$0xf]
      %v361 = vld [vmem:[%s1 + $0x28c] sm:$0xf]
      %v362 = vld [vmem:[%s1 + $0x290] sm:$0xf]
      %v363 = vld [vmem:[%s1 + $0x294] sm:$0xf]
      %v364 = vld [vmem:[%s1 + $0x298] sm:$0xf]
      %v365 = vld [vmem:[%s1 + $0x29c] sm:$0xf]
      %v366 = vld [vmem:[%s1 + $0x2a0] sm:$0xf]
      %v367 = vld [vmem:[%s1 + $0x2a4] sm:$0xf]
      %v368 = vld [vmem:[%s1 + $0x2a8] sm:$0xf]
      %v369 = vld [vmem:[%s1 + $0x2ac] sm:$0xf]
      %v370 = vld [vmem:[%s1 + $0x2b0] sm:$0xf]
      %v371 = vld [vmem:[%s1 + $0x2b4] sm:$0xf]
      %v372 = vld [vmem:[%s1 + $0x2b8] sm:$0xf]
      %v373 = vld [vmem:[%s1 + $0x2bc] sm:$0xf]
      %v422 = vunpack.c.l.b16 %v150
      %v423 = vunpack.c.h.b16 %v150
      %v424 = vunpack.c.l.b16 %v151
      %v425 = vunpack.c.h.b16 %v151
      %v426 = vunpack.c.l.b16 %v152
      %v427 = vunpack.c.h.b16 %v152
      %v428 = vunpack.c.l.b16 %v153
      %v429 = vunpack.c.h.b16 %v153
      %v430 = vunpack.c.l.b16 %v154
      %v431 = vunpack.c.h.b16 %v154
      %v432 = vunpack.c.l.b16 %v155
      %v433 = vunpack.c.l.b16 %v156
      %v434 = vunpack.c.h.b16 %v156
      %v435 = vunpack.c.l.b16 %v157
      %v436 = vunpack.c.h.b16 %v157
      %v437 = vunpack.c.l.b16 %v158
      %v438 = vunpack.c.h.b16 %v158
      %v439 = vunpack.c.l.b16 %v159
      %v440 = vunpack.c.h.b16 %v159
      %v441 = vunpack.c.l.b16 %v160
      %v442 = vunpack.c.h.b16 %v160
      %v443 = vunpack.c.l.b16 %v161
      %v444 = vunpack.c.l.b16 %v162
      %v445 = vunpack.c.h.b16 %v162
      %v446 = vunpack.c.l.b16 %v163
      %v447 = vunpack.c.h.b16 %v163
      %v448 = vunpack.c.l.b16 %v164
      %v449 = vunpack.c.h.b16 %v164
      %v450 = vunpack.c.l.b16 %v165
      %v451 = vunpack.c.h.b16 %v165
      %v452 = vunpack.c.l.b16 %v166
      %v453 = vunpack.c.h.b16 %v166
      %v454 = vunpack.c.l.b16 %v167
      %v455 = vunpack.c.l.b16 %v168
      %v456 = vunpack.c.h.b16 %v168
      %v457 = vunpack.c.l.b16 %v169
      %v458 = vunpack.c.h.b16 %v169
      %v459 = vunpack.c.l.b16 %v170
      %v460 = vunpack.c.h.b16 %v170
      %v461 = vunpack.c.l.b16 %v171
      %v462 = vunpack.c.h.b16 %v171
      %v463 = vunpack.c.l.b16 %v172
      %v464 = vunpack.c.h.b16 %v172
      %v465 = vunpack.c.l.b16 %v173
      %v466 = vunpack.c.l.b16 %v174
      %v467 = vunpack.c.h.b16 %v174
      %v468 = vunpack.c.l.b16 %v175
      %v469 = vunpack.c.h.b16 %v175
      %v470 = vunpack.c.l.b16 %v176
      %v471 = vunpack.c.h.b16 %v176
      %v472 = vunpack.c.l.b16 %v177
      %v473 = vunpack.c.h.b16 %v177
      %v474 = vunpack.c.l.b16 %v178
      %v475 = vunpack.c.h.b16 %v178
      %v476 = vunpack.c.l.b16 %v179
      %v477 = vunpack.c.l.b16 %v180
      %v478 = vunpack.c.h.b16 %v180
      %v479 = vunpack.c.l.b16 %v181
      %v480 = vunpack.c.h.b16 %v181
      %v481 = vunpack.c.l.b16 %v182
      %v482 = vunpack.c.h.b16 %v182
      %v483 = vunpack.c.l.b16 %v183
      %v484 = vunpack.c.h.b16 %v183
      %v485 = vunpack.c.l.b16 %v184
      %v486 = vunpack.c.h.b16 %v184
      %v487 = vunpack.c.l.b16 %v185
      %v488 = vunpack.c.l.b16 %v186
      %v489 = vunpack.c.h.b16 %v186
      %v490 = vunpack.c.l.b16 %v187
      %v491 = vunpack.c.h.b16 %v187
      %v492 = vunpack.c.l.b16 %v188
      %v493 = vunpack.c.h.b16 %v188
      %v494 = vunpack.c.l.b16 %v189
      %v495 = vunpack.c.h.b16 %v189
      %v496 = vunpack.c.l.b16 %v190
      %v497 = vunpack.c.h.b16 %v190
      %v498 = vunpack.c.l.b16 %v191
      %v499 = vunpack.c.l.b16 %v192
      %v500 = vunpack.c.h.b16 %v192
      %v501 = vunpack.c.l.b16 %v193
      %v502 = vunpack.c.h.b16 %v193
      %v503 = vunpack.c.l.b16 %v194
      %v504 = vunpack.c.h.b16 %v194
      %v505 = vunpack.c.l.b16 %v195
      %v506 = vunpack.c.h.b16 %v195
      %v507 = vunpack.c.l.b16 %v196
      %v508 = vunpack.c.h.b16 %v196
      %v509 = vunpack.c.l.b16 %v197
      %v510 = vpack.c.b16 %v433, %v422
      %v511 = vpack.c.b16 %v434, %v423
      %v512 = vpack.c.b16 %v435, %v424
      %v513 = vpack.c.b16 %v436, %v425
      %v514 = vpack.c.b16 %v437, %v426
      %v515 = vpack.c.b16 %v438, %v427
      %v516 = vpack.c.b16 %v439, %v428
      %v517 = vpack.c.b16 %v440, %v429
      %v518 = vpack.c.b16 %v441, %v430
      %v519 = vpack.c.b16 %v442, %v431
      %v520 = vpack.c.b16 %v443, %v432
      %v521 = vpack.c.b16 %v455, %v444
      %v522 = vpack.c.b16 %v456, %v445
      %v523 = vpack.c.b16 %v457, %v446
      %v524 = vpack.c.b16 %v458, %v447
      %v525 = vpack.c.b16 %v459, %v448
      %v526 = vpack.c.b16 %v460, %v449
      %v527 = vpack.c.b16 %v461, %v450
      %v528 = vpack.c.b16 %v462, %v451
      %v529 = vpack.c.b16 %v463, %v452
      %v530 = vpack.c.b16 %v464, %v453
      %v531 = vpack.c.b16 %v465, %v454
      %v532 = vpack.c.b16 %v477, %v466
      %v533 = vpack.c.b16 %v478, %v467
      %v534 = vpack.c.b16 %v479, %v468
      %v535 = vpack.c.b16 %v480, %v469
      %v536 = vpack.c.b16 %v481, %v470
      %v537 = vpack.c.b16 %v482, %v471
      %v538 = vpack.c.b16 %v483, %v472
      %v539 = vpack.c.b16 %v484, %v473
      %v540 = vpack.c.b16 %v485, %v474
      %v541 = vpack.c.b16 %v486, %v475
      %v542 = vpack.c.b16 %v487, %v476
      %v543 = vpack.c.b16 %v499, %v488
      %v544 = vpack.c.b16 %v500, %v489
      %v545 = vpack.c.b16 %v501, %v490
      %v546 = vpack.c.b16 %v502, %v491
      %v547 = vpack.c.b16 %v503, %v492
      %v548 = vpack.c.b16 %v504, %v493
      %v549 = vpack.c.b16 %v505, %v494
      %v550 = vpack.c.b16 %v506, %v495
      %v551 = vpack.c.b16 %v507, %v496
      %v552 = vpack.c.b16 %v508, %v497
      %v553 = vpack.c.b16 %v509, %v498
      %v774 = vunpack.c.l.b16 %v198
      %v775 = vunpack.c.l.b16 %v199
      %v776 = vunpack.c.l.b16 %v200
      %v777 = vunpack.c.l.b16 %v201
      %v778 = vunpack.c.l.b16 %v202
      %v779 = vunpack.c.l.b16 %v203
      %v780 = vunpack.c.l.b16 %v204
      %v781 = vunpack.c.l.b16 %v205
      %v782 = vunpack.c.l.b16 %v206
      %v783 = vunpack.c.l.b16 %v207
      %v784 = vunpack.c.l.b16 %v208
      %v785 = vunpack.c.l.b16 %v209
      %v786 = vunpack.c.l.b16 %v210
      %v787 = vunpack.c.l.b16 %v211
      %v788 = vunpack.c.l.b16 %v212
      %v789 = vunpack.c.l.b16 %v213
      %v790 = vunpack.c.l.b16 %v214
      %v791 = vunpack.c.l.b16 %v215
      %v792 = vunpack.c.l.b16 %v216
      %v793 = vunpack.c.l.b16 %v217
      %v794 = vunpack.c.l.b16 %v218
      %v795 = vunpack.c.l.b16 %v219
      %v796 = vunpack.c.l.b16 %v220
      %v797 = vunpack.c.l.b16 %v221
      %v798 = vunpack.c.l.b16 %v222
      %v799 = vunpack.c.l.b16 %v223
      %v800 = vunpack.c.l.b16 %v224
      %v801 = vunpack.c.l.b16 %v225
      %v802 = vunpack.c.l.b16 %v226
      %v803 = vunpack.c.l.b16 %v227
      %v804 = vunpack.c.l.b16 %v228
      %v805 = vunpack.c.l.b16 %v229
      %v806 = vunpack.c.l.b16 %v230
      %v807 = vunpack.c.l.b16 %v231
      %v808 = vunpack.c.l.b16 %v232
      %v809 = vunpack.c.l.b16 %v233
      %v810 = vunpack.c.l.b16 %v234
      %v811 = vunpack.c.l.b16 %v235
      %v812 = vunpack.c.l.b16 %v236
      %v813 = vunpack.c.l.b16 %v237
      %v814 = vunpack.c.l.b16 %v238
      %v815 = vunpack.c.l.b16 %v239
      %v816 = vunpack.c.l.b16 %v240
      %v817 = vunpack.c.l.b16 %v241
      %v818 = vunpack.c.l.b16 %v242
      %v819 = vunpack.c.l.b16 %v243
      %v820 = vunpack.c.l.b16 %v244
      %v821 = vunpack.c.l.b16 %v245
      %v822 = vunpack.c.l.b16 %v246
      %v823 = vunpack.c.l.b16 %v247
      %v824 = vunpack.c.l.b16 %v248
      %v825 = vunpack.c.l.b16 %v249
      %v826 = vunpack.c.l.b16 %v250
      %v827 = vunpack.c.l.b16 %v251
      %v828 = vunpack.c.l.b16 %v252
      %v829 = vunpack.c.l.b16 %v253
      %v830 = vunpack.c.l.b16 %v254
      %v831 = vunpack.c.l.b16 %v255
      %v832 = vunpack.c.l.b16 %v256
      %v833 = vunpack.c.l.b16 %v257
      %v834 = vunpack.c.l.b16 %v258
      %v835 = vunpack.c.l.b16 %v259
      %v836 = vunpack.c.l.b16 %v260
      %v837 = vunpack.c.l.b16 %v261
      %v838 = vunpack.c.l.b16 %v262
      %v839 = vunpack.c.l.b16 %v263
      %v840 = vunpack.c.l.b16 %v264
      %v841 = vunpack.c.l.b16 %v265
      %v842 = vunpack.c.l.b16 %v266
      %v843 = vunpack.c.l.b16 %v267
      %v844 = vunpack.c.l.b16 %v268
      %v845 = vunpack.c.l.b16 %v269
      %v846 = vunpack.c.l.b16 %v270
      %v847 = vunpack.c.l.b16 %v271
      %v848 = vunpack.c.l.b16 %v272
      %v849 = vunpack.c.l.b16 %v273
      %v850 = vunpack.c.l.b16 %v274
      %v851 = vunpack.c.l.b16 %v275
      %v852 = vunpack.c.l.b16 %v276
      %v853 = vunpack.c.l.b16 %v277
      %v854 = vunpack.c.l.b16 %v278
      %v855 = vunpack.c.l.b16 %v279
      %v856 = vunpack.c.l.b16 %v280
      %v857 = vunpack.c.l.b16 %v281
      %v858 = vunpack.c.l.b16 %v282
      %v859 = vunpack.c.l.b16 %v283
      %v860 = vunpack.c.l.b16 %v284
      %v861 = vunpack.c.l.b16 %v285
      %v862 = vunpack.c.l.b16 %v286
      %v863 = vunpack.c.l.b16 %v287
      %v864 = vunpack.c.l.b16 %v288
      %v865 = vunpack.c.l.b16 %v289
      %v866 = vunpack.c.l.b16 %v290
      %v867 = vunpack.c.l.b16 %v291
      %v868 = vunpack.c.l.b16 %v292
      %v869 = vunpack.c.l.b16 %v293
      %v870 = vunpack.c.l.b16 %v294
      %v871 = vunpack.c.l.b16 %v295
      %v872 = vunpack.c.l.b16 %v296
      %v873 = vunpack.c.l.b16 %v297
      %v874 = vunpack.c.l.b16 %v298
      %v875 = vunpack.c.l.b16 %v299
      %v876 = vunpack.c.l.b16 %v300
      %v877 = vunpack.c.l.b16 %v301
      %v878 = vunpack.c.l.b16 %v302
      %v879 = vunpack.c.l.b16 %v303
      %v880 = vunpack.c.l.b16 %v304
      %v881 = vunpack.c.l.b16 %v305
      %v882 = vunpack.c.l.b16 %v306
      %v883 = vunpack.c.l.b16 %v307
      %v884 = vunpack.c.l.b16 %v308
      %v885 = vunpack.c.l.b16 %v309
      %v886 = vunpack.c.l.b16 %v310
      %v887 = vunpack.c.l.b16 %v311
      %v888 = vunpack.c.l.b16 %v312
      %v889 = vunpack.c.l.b16 %v313
      %v890 = vunpack.c.l.b16 %v314
      %v891 = vunpack.c.l.b16 %v315
      %v892 = vunpack.c.l.b16 %v316
      %v893 = vunpack.c.l.b16 %v317
      %v894 = vunpack.c.l.b16 %v318
      %v895 = vunpack.c.l.b16 %v319
      %v896 = vunpack.c.l.b16 %v320
      %v897 = vunpack.c.l.b16 %v321
      %v898 = vunpack.c.l.b16 %v322
      %v899 = vunpack.c.l.b16 %v323
      %v900 = vunpack.c.l.b16 %v324
      %v901 = vunpack.c.l.b16 %v325
      %v902 = vunpack.c.l.b16 %v326
      %v903 = vunpack.c.l.b16 %v327
      %v904 = vunpack.c.l.b16 %v328
      %v905 = vunpack.c.l.b16 %v329
      %v906 = vunpack.c.l.b16 %v330
      %v907 = vunpack.c.l.b16 %v331
      %v908 = vunpack.c.l.b16 %v332
      %v909 = vunpack.c.l.b16 %v333
      %v910 = vunpack.c.l.b16 %v334
      %v911 = vunpack.c.l.b16 %v335
      %v912 = vunpack.c.l.b16 %v336
      %v913 = vunpack.c.l.b16 %v337
      %v914 = vunpack.c.l.b16 %v338
      %v915 = vunpack.c.l.b16 %v339
      %v916 = vunpack.c.l.b16 %v340
      %v917 = vunpack.c.l.b16 %v341
      %v918 = vunpack.c.l.b16 %v342
      %v919 = vunpack.c.l.b16 %v343
      %v920 = vunpack.c.l.b16 %v344
      %v921 = vunpack.c.l.b16 %v345
      %v922 = vunpack.c.l.b16 %v346
      %v923 = vunpack.c.l.b16 %v347
      %v924 = vunpack.c.l.b16 %v348
      %v925 = vunpack.c.l.b16 %v349
      %v926 = vunpack.c.l.b16 %v350
      %v927 = vunpack.c.l.b16 %v351
      %v928 = vunpack.c.l.b16 %v352
      %v929 = vunpack.c.l.b16 %v353
      %v930 = vunpack.c.l.b16 %v354
      %v931 = vunpack.c.l.b16 %v355
      %v932 = vunpack.c.l.b16 %v356
      %v933 = vunpack.c.l.b16 %v357
      %v934 = vunpack.c.l.b16 %v358
      %v935 = vunpack.c.l.b16 %v359
      %v936 = vunpack.c.l.b16 %v360
      %v937 = vunpack.c.l.b16 %v361
      %v938 = vunpack.c.l.b16 %v362
      %v939 = vunpack.c.l.b16 %v363
      %v940 = vunpack.c.l.b16 %v364
      %v941 = vunpack.c.l.b16 %v365
      %v942 = vunpack.c.l.b16 %v366
      %v943 = vunpack.c.l.b16 %v367
      %v944 = vunpack.c.l.b16 %v368
      %v945 = vunpack.c.l.b16 %v369
      %v946 = vunpack.c.l.b16 %v370
      %v947 = vunpack.c.l.b16 %v371
      %v948 = vunpack.c.l.b16 %v372
      %v949 = vunpack.c.l.b16 %v373
      %v950 = vpack.c.b16 %v775, %v774
      %v951 = vpack.c.b16 %v777, %v776
      %v952 = vpack.c.b16 %v779, %v778
      %v953 = vpack.c.b16 %v781, %v780
      %v954 = vpack.c.b16 %v783, %v782
      %v955 = vpack.c.b16 %v785, %v784
      %v956 = vpack.c.b16 %v787, %v786
      %v957 = vpack.c.b16 %v789, %v788
      %v958 = vpack.c.b16 %v791, %v790
      %v959 = vpack.c.b16 %v793, %v792
      %v960 = vpack.c.b16 %v795, %v794
      %v961 = vpack.c.b16 %v797, %v796
      %v962 = vpack.c.b16 %v799, %v798
      %v963 = vpack.c.b16 %v801, %v800
      %v964 = vpack.c.b16 %v803, %v802
      %v965 = vpack.c.b16 %v805, %v804
      %v966 = vpack.c.b16 %v807, %v806
      %v967 = vpack.c.b16 %v809, %v808
      %v968 = vpack.c.b16 %v811, %v810
      %v969 = vpack.c.b16 %v813, %v812
      %v970 = vpack.c.b16 %v815, %v814
      %v971 = vpack.c.b16 %v817, %v816
      %v972 = vpack.c.b16 %v819, %v818
      %v973 = vpack.c.b16 %v821, %v820
      %v974 = vpack.c.b16 %v823, %v822
      %v975 = vpack.c.b16 %v825, %v824
      %v976 = vpack.c.b16 %v827, %v826
      %v977 = vpack.c.b16 %v829, %v828
      %v978 = vpack.c.b16 %v831, %v830
      %v979 = vpack.c.b16 %v833, %v832
      %v980 = vpack.c.b16 %v835, %v834
      %v981 = vpack.c.b16 %v837, %v836
      %v982 = vpack.c.b16 %v839, %v838
      %v983 = vpack.c.b16 %v841, %v840
      %v984 = vpack.c.b16 %v843, %v842
      %v985 = vpack.c.b16 %v845, %v844
      %v986 = vpack.c.b16 %v847, %v846
      %v987 = vpack.c.b16 %v849, %v848
      %v988 = vpack.c.b16 %v851, %v850
      %v989 = vpack.c.b16 %v853, %v852
      %v990 = vpack.c.b16 %v855, %v854
      %v991 = vpack.c.b16 %v857, %v856
      %v992 = vpack.c.b16 %v859, %v858
      %v993 = vpack.c.b16 %v861, %v860
      %v994 = vpack.c.b16 %v863, %v862
      %v995 = vpack.c.b16 %v865, %v864
      %v996 = vpack.c.b16 %v867, %v866
      %v997 = vpack.c.b16 %v869, %v868
      %v998 = vpack.c.b16 %v871, %v870
      %v999 = vpack.c.b16 %v873, %v872
      %v1000 = vpack.c.b16 %v875, %v874
      %v1001 = vpack.c.b16 %v877, %v876
      %v1002 = vpack.c.b16 %v879, %v878
      %v1003 = vpack.c.b16 %v881, %v880
      %v1004 = vpack.c.b16 %v883, %v882
      %v1005 = vpack.c.b16 %v885, %v884
      %v1006 = vpack.c.b16 %v887, %v886
      %v1007 = vpack.c.b16 %v889, %v888
      %v1008 = vpack.c.b16 %v891, %v890
      %v1009 = vpack.c.b16 %v893, %v892
      %v1010 = vpack.c.b16 %v895, %v894
      %v1011 = vpack.c.b16 %v897, %v896
      %v1012 = vpack.c.b16 %v899, %v898
      %v1013 = vpack.c.b16 %v901, %v900
      %v1014 = vpack.c.b16 %v903, %v902
      %v1015 = vpack.c.b16 %v905, %v904
      %v1016 = vpack.c.b16 %v907, %v906
      %v1017 = vpack.c.b16 %v909, %v908
      %v1018 = vpack.c.b16 %v911, %v910
      %v1019 = vpack.c.b16 %v913, %v912
      %v1020 = vpack.c.b16 %v915, %v914
      %v1021 = vpack.c.b16 %v917, %v916
      %v1022 = vpack.c.b16 %v919, %v918
      %v1023 = vpack.c.b16 %v921, %v920
      %v1024 = vpack.c.b16 %v923, %v922
      %v1025 = vpack.c.b16 %v925, %v924
      %v1026 = vpack.c.b16 %v927, %v926
      %v1027 = vpack.c.b16 %v929, %v928
      %v1028 = vpack.c.b16 %v931, %v930
      %v1029 = vpack.c.b16 %v933, %v932
      %v1030 = vpack.c.b16 %v935, %v934
      %v1031 = vpack.c.b16 %v937, %v936
      %v1032 = vpack.c.b16 %v939, %v938
      %v1033 = vpack.c.b16 %v941, %v940
      %v1034 = vpack.c.b16 %v943, %v942
      %v1035 = vpack.c.b16 %v945, %v944
      %v1036 = vpack.c.b16 %v947, %v946
      %v1037 = vpack.c.b16 %v949, %v948
      %1126 = vmatprep.subr.bf16.mxu0 0
      %1127 = vmatpush1.bf16.msra.mxu0 %v957
      %1128 = vmatprep.subr.bf16.mxu0 0
      %1129 = vmatpush1.bf16.msra.mxu0 %v956
      %1130 = vmatprep.subr.bf16.mxu0 0
      %1131 = vmatpush1.bf16.msra.mxu0 %v955
      %1132 = vmatprep.subr.bf16.mxu0 0
      %1133 = vmatpush1.bf16.msra.mxu0 %v954
      %1134 = vmatprep.subr.bf16.mxu0 0
      %1135 = vmatpush1.bf16.msra.mxu0 %v953
      %1136 = vmatprep.subr.bf16.mxu0 0
      %1137 = vmatpush1.bf16.msra.mxu0 %v952
      %1138 = vmatprep.subr.bf16.mxu0 0
      %1139 = vmatpush1.bf16.msra.mxu0 %v951
      %1140 = vmatprep.subr.bf16.mxu0 0
      %1141 = vmatpush1.bf16.msra.mxu0 %v950
      %1142 = vmatprep.subr.bf16.mxu0 0
      %1143 = vmatpush2.bf16.msra.mxu0 %v965
      %1144 = vmatprep.subr.bf16.mxu0 0
      %1145 = vmatpush2.bf16.msra.mxu0 %v964
      %1146 = vmatprep.subr.bf16.mxu0 0
      %1147 = vmatpush2.bf16.msra.mxu0 %v963
      %1148 = vmatprep.subr.bf16.mxu0 0
      %1149 = vmatpush2.bf16.msra.mxu0 %v962
      %1150 = vmatprep.subr.bf16.mxu0 0
      %1151 = vmatpush2.bf16.msra.mxu0 %v961
      %1152 = vmatprep.subr.bf16.mxu0 0
      %1153 = vmatpush2.bf16.msra.mxu0 %v960
      %1154 = vmatprep.subr.bf16.mxu0 0
      %1155 = vmatpush2.bf16.msra.mxu0 %v959
      %1156 = vmatprep.subr.bf16.mxu0 0
      %1157 = vmatpush2.bf16.msra.mxu0 %v958
      %1158 = vmatprep.mubr.bf16.mxu0 %v511
      %1159 = vmatmul.mubr.bf16.gmra.mxu0 %v510
      %v1160 = vpop.f32.mrf.mxu0
      %v1161 = vadd.f32 0.0, %v1160
      %v1162 = vpop.f32.mrf.mxu0
      %v1163 = vpop.f32.mrf.mxu0
      %v1164 = vadd.f32 0.0, %v1163
      %v1165 = vpop.f32.mrf.mxu0
      %1166 = vmatprep.mubr.bf16.mxu0 %v522
      %1167 = vmatmul.mubr.bf16.gmra.mxu0 %v521
      %v1168 = vpop.f32.mrf.mxu0
      %v1169 = vadd.f32 0.0, %v1168
      %v1170 = vpop.f32.mrf.mxu0
      %v1171 = vpop.f32.mrf.mxu0
      %v1172 = vadd.f32 0.0, %v1171
      %v1173 = vpop.f32.mrf.mxu0
      %1174 = vmatprep.mubr.bf16.mxu0 %v533
      %1175 = vmatmul.mubr.bf16.gmra.mxu0 %v532
      %v1176 = vpop.f32.mrf.mxu0
      %v1177 = vadd.f32 0.0, %v1176
      %v1178 = vpop.f32.mrf.mxu0
      %v1179 = vpop.f32.mrf.mxu0
      %v1180 = vadd.f32 0.0, %v1179
      %v1181 = vpop.f32.mrf.mxu0
      %1182 = vmatprep.mubr.bf16.mxu0 %v544
      %1183 = vmatmul.mubr.bf16.gmra.mxu0 %v543
      %v1184 = vpop.f32.mrf.mxu0
      %v1185 = vadd.f32 0.0, %v1184
      %v1186 = vpop.f32.mrf.mxu0
      %v1187 = vpop.f32.mrf.mxu0
      %v1188 = vadd.f32 0.0, %v1187
      %v1189 = vpop.f32.mrf.mxu0
      %1190 = vdwg.mxu0
      %1191 = vmatprep.subr.bf16.mxu0 0
      %1192 = vmatpush1.bf16.msra.mxu0 %v973
      %1193 = vmatprep.subr.bf16.mxu0 0
      %1194 = vmatpush1.bf16.msra.mxu0 %v972
      %1195 = vmatprep.subr.bf16.mxu0 0
      %1196 = vmatpush1.bf16.msra.mxu0 %v971
      %1197 = vmatprep.subr.bf16.mxu0 0
      %1198 = vmatpush1.bf16.msra.mxu0 %v970
      %1199 = vmatprep.subr.bf16.mxu0 0
      %1200 = vmatpush1.bf16.msra.mxu0 %v969
      %1201 = vmatprep.subr.bf16.mxu0 0
      %1202 = vmatpush1.bf16.msra.mxu0 %v968
      %1203 = vmatprep.subr.bf16.mxu0 0
      %1204 = vmatpush1.bf16.msra.mxu0 %v967
      %1205 = vmatprep.subr.bf16.mxu0 0
      %1206 = vmatpush1.bf16.msra.mxu0 %v966
      %1207 = vmatprep.subr.bf16.mxu0 0
      %1208 = vmatpush2.bf16.msra.mxu0 %v981
      %1209 = vmatprep.subr.bf16.mxu0 0
      %1210 = vmatpush2.bf16.msra.mxu0 %v980
      %1211 = vmatprep.subr.bf16.mxu0 0
      %1212 = vmatpush2.bf16.msra.mxu0 %v979
      %1213 = vmatprep.subr.bf16.mxu0 0
      %1214 = vmatpush2.bf16.msra.mxu0 %v978
      %1215 = vmatprep.subr.bf16.mxu0 0
      %1216 = vmatpush2.bf16.msra.mxu0 %v977
      %1217 = vmatprep.subr.bf16.mxu0 0
      %1218 = vmatpush2.bf16.msra.mxu0 %v976
      %1219 = vmatprep.subr.bf16.mxu0 0
      %1220 = vmatpush2.bf16.msra.mxu0 %v975
      %1221 = vmatprep.subr.bf16.mxu0 0
      %1222 = vmatpush2.bf16.msra.mxu0 %v974
      %1223 = vmatprep.mubr.bf16.mxu0 %v513
      %1224 = vmatmul.mubr.bf16.gmra.mxu0 %v512
      %v1225 = vpop.f32.mrf.mxu0
      %v1226 = vadd.f32 %v1161, %v1225
      %v1227 = vpop.f32.mrf.mxu0
      %v1228 = vpop.f32.mrf.mxu0
      %v1229 = vadd.f32 %v1164, %v1228
      %v1230 = vpop.f32.mrf.mxu0
      %1231 = vmatprep.mubr.bf16.mxu0 %v524
      %1232 = vmatmul.mubr.bf16.gmra.mxu0 %v523
      %v1233 = vpop.f32.mrf.mxu0
      %v1234 = vadd.f32 %v1169, %v1233
      %v1235 = vpop.f32.mrf.mxu0
      %v1236 = vpop.f32.mrf.mxu0
      %v1237 = vadd.f32 %v1172, %v1236
      %v1238 = vpop.f32.mrf.mxu0
      %1239 = vmatprep.mubr.bf16.mxu0 %v535
      %1240 = vmatmul.mubr.bf16.gmra.mxu0 %v534
      %v1241 = vpop.f32.mrf.mxu0
      %v1242 = vadd.f32 %v1177, %v1241
      %v1243 = vpop.f32.mrf.mxu0
      %v1244 = vpop.f32.mrf.mxu0
      %v1245 = vadd.f32 %v1180, %v1244
      %v1246 = vpop.f32.mrf.mxu0
      %1247 = vmatprep.mubr.bf16.mxu0 %v546
      %1248 = vmatmul.mubr.bf16.gmra.mxu0 %v545
      %v1249 = vpop.f32.mrf.mxu0
      %v1250 = vadd.f32 %v1185, %v1249
      %v1251 = vpop.f32.mrf.mxu0
      %v1252 = vpop.f32.mrf.mxu0
      %v1253 = vadd.f32 %v1188, %v1252
      %v1254 = vpop.f32.mrf.mxu0
      %1255 = vdwg.mxu0
      %1256 = vmatprep.subr.bf16.mxu0 0
      %1257 = vmatpush1.bf16.msra.mxu0 %v989
      %1258 = vmatprep.subr.bf16.mxu0 0
      %1259 = vmatpush1.bf16.msra.mxu0 %v988
      %1260 = vmatprep.subr.bf16.mxu0 0
      %1261 = vmatpush1.bf16.msra.mxu0 %v987
      %1262 = vmatprep.subr.bf16.mxu0 0
      %1263 = vmatpush1.bf16.msra.mxu0 %v986
      %1264 = vmatprep.subr.bf16.mxu0 0
      %1265 = vmatpush1.bf16.msra.mxu0 %v985
      %1266 = vmatprep.subr.bf16.mxu0 0
      %1267 = vmatpush1.bf16.msra.mxu0 %v984
      %1268 = vmatprep.subr.bf16.mxu0 0
      %1269 = vmatpush1.bf16.msra.mxu0 %v983
      %1270 = vmatprep.subr.bf16.mxu0 0
      %1271 = vmatpush1.bf16.msra.mxu0 %v982
      %1272 = vmatprep.subr.bf16.mxu0 0
      %1273 = vmatpush2.bf16.msra.mxu0 %v997
      %1274 = vmatprep.subr.bf16.mxu0 0
      %1275 = vmatpush2.bf16.msra.mxu0 %v996
      %1276 = vmatprep.subr.bf16.mxu0 0
      %1277 = vmatpush2.bf16.msra.mxu0 %v995
      %1278 = vmatprep.subr.bf16.mxu0 0
      %1279 = vmatpush2.bf16.msra.mxu0 %v994
      %1280 = vmatprep.subr.bf16.mxu0 0
      %1281 = vmatpush2.bf16.msra.mxu0 %v993
      %1282 = vmatprep.subr.bf16.mxu0 0
      %1283 = vmatpush2.bf16.msra.mxu0 %v992
      %1284 = vmatprep.subr.bf16.mxu0 0
      %1285 = vmatpush2.bf16.msra.mxu0 %v991
      %1286 = vmatprep.subr.bf16.mxu0 0
      %1287 = vmatpush2.bf16.msra.mxu0 %v990
      %1288 = vmatprep.mubr.bf16.mxu0 %v515
      %1289 = vmatmul.mubr.bf16.gmra.mxu0 %v514
      %v1290 = vpop.f32.mrf.mxu0
      %v1291 = vadd.f32 %v1226, %v1290
      %v1292 = vpop.f32.mrf.mxu0
      %v1293 = vpop.f32.mrf.mxu0
      %v1294 = vadd.f32 %v1229, %v1293
      %v1295 = vpop.f32.mrf.mxu0
      %1296 = vmatprep.mubr.bf16.mxu0 %v526
      %1297 = vmatmul.mubr.bf16.gmra.mxu0 %v525
      %v1298 = vpop.f32.mrf.mxu0
      %v1299 = vadd.f32 %v1234, %v1298
      %v1300 = vpop.f32.mrf.mxu0
      %v1301 = vpop.f32.mrf.mxu0
      %v1302 = vadd.f32 %v1237, %v1301
      %v1303 = vpop.f32.mrf.mxu0
      %1304 = vmatprep.mubr.bf16.mxu0 %v537
      %1305 = vmatmul.mubr.bf16.gmra.mxu0 %v536
      %v1306 = vpop.f32.mrf.mxu0
      %v1307 = vadd.f32 %v1242, %v1306
      %v1308 = vpop.f32.mrf.mxu0
      %v1309 = vpop.f32.mrf.mxu0
      %v1310 = vadd.f32 %v1245, %v1309
      %v1311 = vpop.f32.mrf.mxu0
      %1312 = vmatprep.mubr.bf16.mxu0 %v548
      %1313 = vmatmul.mubr.bf16.gmra.mxu0 %v547
      %v1314 = vpop.f32.mrf.mxu0
      %v1315 = vadd.f32 %v1250, %v1314
      %v1316 = vpop.f32.mrf.mxu0
      %v1317 = vpop.f32.mrf.mxu0
      %v1318 = vadd.f32 %v1253, %v1317
      %v1319 = vpop.f32.mrf.mxu0
      %1320 = vdwg.mxu0
      %1321 = vmatprep.subr.bf16.mxu0 0
      %1322 = vmatpush1.bf16.msra.mxu0 %v1005
      %1323 = vmatprep.subr.bf16.mxu0 0
      %1324 = vmatpush1.bf16.msra.mxu0 %v1004
      %1325 = vmatprep.subr.bf16.mxu0 0
      %1326 = vmatpush1.bf16.msra.mxu0 %v1003
      %1327 = vmatprep.subr.bf16.mxu0 0
      %1328 = vmatpush1.bf16.msra.mxu0 %v1002
      %1329 = vmatprep.subr.bf16.mxu0 0
      %1330 = vmatpush1.bf16.msra.mxu0 %v1001
      %1331 = vmatprep.subr.bf16.mxu0 0
      %1332 = vmatpush1.bf16.msra.mxu0 %v1000
      %1333 = vmatprep.subr.bf16.mxu0 0
      %1334 = vmatpush1.bf16.msra.mxu0 %v999
      %1335 = vmatprep.subr.bf16.mxu0 0
      %1336 = vmatpush1.bf16.msra.mxu0 %v998
      %1337 = vmatprep.subr.bf16.mxu0 0
      %1338 = vmatpush2.bf16.msra.mxu0 %v1013
      %1339 = vmatprep.subr.bf16.mxu0 0
      %1340 = vmatpush2.bf16.msra.mxu0 %v1012
      %1341 = vmatprep.subr.bf16.mxu0 0
      %1342 = vmatpush2.bf16.msra.mxu0 %v1011
      %1343 = vmatprep.subr.bf16.mxu0 0
      %1344 = vmatpush2.bf16.msra.mxu0 %v1010
      %1345 = vmatprep.subr.bf16.mxu0 0
      %1346 = vmatpush2.bf16.msra.mxu0 %v1009
      %1347 = vmatprep.subr.bf16.mxu0 0
      %1348 = vmatpush2.bf16.msra.mxu0 %v1008
      %1349 = vmatprep.subr.bf16.mxu0 0
      %1350 = vmatpush2.bf16.msra.mxu0 %v1007
      %1351 = vmatprep.subr.bf16.mxu0 0
      %1352 = vmatpush2.bf16.msra.mxu0 %v1006
      %1353 = vmatprep.mubr.bf16.mxu0 %v517
      %1354 = vmatmul.mubr.bf16.gmra.mxu0 %v516
      %v1355 = vpop.f32.mrf.mxu0
      %v1356 = vadd.f32 %v1291, %v1355
      %v1357 = vpop.f32.mrf.mxu0
      %v1358 = vpop.f32.mrf.mxu0
      %v1359 = vadd.f32 %v1294, %v1358
      %v1360 = vpop.f32.mrf.mxu0
      %1361 = vmatprep.mubr.bf16.mxu0 %v528
      %1362 = vmatmul.mubr.bf16.gmra.mxu0 %v527
      %v1363 = vpop.f32.mrf.mxu0
      %v1364 = vadd.f32 %v1299, %v1363
      %v1365 = vpop.f32.mrf.mxu0
      %v1366 = vpop.f32.mrf.mxu0
      %v1367 = vadd.f32 %v1302, %v1366
      %v1368 = vpop.f32.mrf.mxu0
      %1369 = vmatprep.mubr.bf16.mxu0 %v539
      %1370 = vmatmul.mubr.bf16.gmra.mxu0 %v538
      %v1371 = vpop.f32.mrf.mxu0
      %v1372 = vadd.f32 %v1307, %v1371
      %v1373 = vpop.f32.mrf.mxu0
      %v1374 = vpop.f32.mrf.mxu0
      %v1375 = vadd.f32 %v1310, %v1374
      %v1376 = vpop.f32.mrf.mxu0
      %1377 = vmatprep.mubr.bf16.mxu0 %v550
      %1378 = vmatmul.mubr.bf16.gmra.mxu0 %v549
      %v1379 = vpop.f32.mrf.mxu0
      %v1380 = vadd.f32 %v1315, %v1379
      %v1381 = vpop.f32.mrf.mxu0
      %v1382 = vpop.f32.mrf.mxu0
      %v1383 = vadd.f32 %v1318, %v1382
      %v1384 = vpop.f32.mrf.mxu0
      %1385 = vdwg.mxu0
      %1386 = vmatprep.subr.bf16.mxu0 0
      %1387 = vmatpush1.bf16.msra.mxu0 %v1021
      %1388 = vmatprep.subr.bf16.mxu0 0
      %1389 = vmatpush1.bf16.msra.mxu0 %v1020
      %1390 = vmatprep.subr.bf16.mxu0 0
      %1391 = vmatpush1.bf16.msra.mxu0 %v1019
      %1392 = vmatprep.subr.bf16.mxu0 0
      %1393 = vmatpush1.bf16.msra.mxu0 %v1018
      %1394 = vmatprep.subr.bf16.mxu0 0
      %1395 = vmatpush1.bf16.msra.mxu0 %v1017
      %1396 = vmatprep.subr.bf16.mxu0 0
      %1397 = vmatpush1.bf16.msra.mxu0 %v1016
      %1398 = vmatprep.subr.bf16.mxu0 0
      %1399 = vmatpush1.bf16.msra.mxu0 %v1015
      %1400 = vmatprep.subr.bf16.mxu0 0
      %1401 = vmatpush1.bf16.msra.mxu0 %v1014
      %1402 = vmatprep.subr.bf16.mxu0 0
      %1403 = vmatpush2.bf16.msra.mxu0 %v1029
      %1404 = vmatprep.subr.bf16.mxu0 0
      %1405 = vmatpush2.bf16.msra.mxu0 %v1028
      %1406 = vmatprep.subr.bf16.mxu0 0
      %1407 = vmatpush2.bf16.msra.mxu0 %v1027
      %1408 = vmatprep.subr.bf16.mxu0 0
      %1409 = vmatpush2.bf16.msra.mxu0 %v1026
      %1410 = vmatprep.subr.bf16.mxu0 0
      %1411 = vmatpush2.bf16.msra.mxu0 %v1025
      %1412 = vmatprep.subr.bf16.mxu0 0
      %1413 = vmatpush2.bf16.msra.mxu0 %v1024
      %1414 = vmatprep.subr.bf16.mxu0 0
      %1415 = vmatpush2.bf16.msra.mxu0 %v1023
      %1416 = vmatprep.subr.bf16.mxu0 0
      %1417 = vmatpush2.bf16.msra.mxu0 %v1022
      %1418 = vmatprep.mubr.bf16.mxu0 %v519
      %1419 = vmatmul.mubr.bf16.gmra.mxu0 %v518
      %v1420 = vpop.f32.mrf.mxu0
      %v1421 = vadd.f32 %v1356, %v1420
      %v1422 = vpop.f32.mrf.mxu0
      %v1423 = vpop.f32.mrf.mxu0
      %v1424 = vadd.f32 %v1359, %v1423
      %v1425 = vpop.f32.mrf.mxu0
      %1426 = vmatprep.mubr.bf16.mxu0 %v530
      %1427 = vmatmul.mubr.bf16.gmra.mxu0 %v529
      %v1428 = vpop.f32.mrf.mxu0
      %v1429 = vadd.f32 %v1364, %v1428
      %v1430 = vpop.f32.mrf.mxu0
      %v1431 = vpop.f32.mrf.mxu0
      %v1432 = vadd.f32 %v1367, %v1431
      %v1433 = vpop.f32.mrf.mxu0
      %1434 = vmatprep.mubr.bf16.mxu0 %v541
      %1435 = vmatmul.mubr.bf16.gmra.mxu0 %v540
      %v1436 = vpop.f32.mrf.mxu0
      %v1437 = vadd.f32 %v1372, %v1436
      %v1438 = vpop.f32.mrf.mxu0
      %v1439 = vpop.f32.mrf.mxu0
      %v1440 = vadd.f32 %v1375, %v1439
      %v1441 = vpop.f32.mrf.mxu0
      %1442 = vmatprep.mubr.bf16.mxu0 %v552
      %1443 = vmatmul.mubr.bf16.gmra.mxu0 %v551
      %v1444 = vpop.f32.mrf.mxu0
      %v1445 = vadd.f32 %v1380, %v1444
      %v1446 = vpop.f32.mrf.mxu0
      %v1447 = vpop.f32.mrf.mxu0
      %v1448 = vadd.f32 %v1383, %v1447
      %v1449 = vpop.f32.mrf.mxu0
      %1450 = vdwg.mxu0
      %1451 = vmatprep.subr.bf16.mxu0 0
      %1452 = vmatpush1.bf16.msra.mxu0 %v1037
      %1453 = vmatprep.subr.bf16.mxu0 0
      %1454 = vmatpush1.bf16.msra.mxu0 %v1036
      %1455 = vmatprep.subr.bf16.mxu0 0
      %1456 = vmatpush1.bf16.msra.mxu0 %v1035
      %1457 = vmatprep.subr.bf16.mxu0 0
      %1458 = vmatpush1.bf16.msra.mxu0 %v1034
      %1459 = vmatprep.subr.bf16.mxu0 0
      %1460 = vmatpush1.bf16.msra.mxu0 %v1033
      %1461 = vmatprep.subr.bf16.mxu0 0
      %1462 = vmatpush1.bf16.msra.mxu0 %v1032
      %1463 = vmatprep.subr.bf16.mxu0 0
      %1464 = vmatpush1.bf16.msra.mxu0 %v1031
      %1465 = vmatprep.subr.bf16.mxu0 0
      %1466 = vmatpush1.bf16.msra.mxu0 %v1030
      %1467 = vmatprep.subr.bf16.mxu0 0
      %1468 = vmatpush2.bf16.msra.mxu0 0
      %1469 = vmatprep.subr.bf16.mxu0 0
      %1470 = vmatpush2.bf16.msra.mxu0 0
      %1471 = vmatprep.subr.bf16.mxu0 0
      %1472 = vmatpush2.bf16.msra.mxu0 0
      %1473 = vmatprep.subr.bf16.mxu0 0
      %1474 = vmatpush2.bf16.msra.mxu0 0
      %1475 = vmatprep.subr.bf16.mxu0 0
      %1476 = vmatpush2.bf16.msra.mxu0 0
      %1477 = vmatprep.subr.bf16.mxu0 0
      %1478 = vmatpush2.bf16.msra.mxu0 0
      %1479 = vmatprep.subr.bf16.mxu0 0
      %1480 = vmatpush2.bf16.msra.mxu0 0
      %1481 = vmatprep.subr.bf16.mxu0 0
      %1482 = vmatpush2.bf16.msra.mxu0 0
      %1483 = vmatprep.mubr.bf16.mxu0 0
      %1484 = vmatmul.mubr.bf16.gmra.mxu0 %v520
      %v1485 = vpop.f32.mrf.mxu0
      %v1486 = vadd.f32 %v1421, %v1485
      %v1487 = vpop.f32.mrf.mxu0
      %v1488 = vpop.f32.mrf.mxu0
      %v1489 = vadd.f32 %v1424, %v1488
      %v1490 = vpop.f32.mrf.mxu0
      %1491 = vmatprep.mubr.bf16.mxu0 0
      %1492 = vmatmul.mubr.bf16.gmra.mxu0 %v531
      %v1493 = vpop.f32.mrf.mxu0
      %v1494 = vadd.f32 %v1429, %v1493
      %v1495 = vpop.f32.mrf.mxu0
      %v1496 = vpop.f32.mrf.mxu0
      %v1497 = vadd.f32 %v1432, %v1496
      %v1498 = vpop.f32.mrf.mxu0
      %1499 = vmatprep.mubr.bf16.mxu0 0
      %1500 = vmatmul.mubr.bf16.gmra.mxu0 %v542
      %v1501 = vpop.f32.mrf.mxu0
      %v1502 = vadd.f32 %v1437, %v1501
      %v1503 = vpop.f32.mrf.mxu0
      %v1504 = vpop.f32.mrf.mxu0
      %v1505 = vadd.f32 %v1440, %v1504
      %v1506 = vpop.f32.mrf.mxu0
      %1507 = vmatprep.mubr.bf16.mxu0 0
      %1508 = vmatmul.mubr.bf16.gmra.mxu0 %v553
      %v1509 = vpop.f32.mrf.mxu0
      %v1510 = vadd.f32 %v1445, %v1509
      %v1511 = vpop.f32.mrf.mxu0
      %v1512 = vpop.f32.mrf.mxu0
      %v1513 = vadd.f32 %v1448, %v1512
      %v1514 = vpop.f32.mrf.mxu0
      %1515 = vdwg.mxu0
      %v1516 = vmax.f32 %v1486, %v1494
      %v1517 = vmax.f32 %v1489, %v1497
      %v1518 = vmax.f32 %v1502, %v1510
      %v1519 = vmax.f32 %v1505, %v1513
      %v1520 = vmax.f32 %v1516, %v1518
      %v1521 = vmax.f32 %v1517, %v1519
      %v1522 = vmax.f32 %v1520, 0.0
      %v1523 = vmax.f32 %v1521, 0.0
      %v1524 = vpack.c.bf16 %v1523, %v1522
      %v1526 = vunpack.c.l.b16 %v1524
      %v1527 = vunpack.c.h.b16 %v1524
      %v1528 = vpack.c.b16 %v1526, %v1526
      %v1529 = vpack.c.b16 %v1527, %v1527
      %vm1532 = vcmask 125952
      %1533 = vst.msk [vmem:[%s148] sm:$0xf] %vm1532, %v1528
      %1534 = vst.msk [vmem:[%s148 + $0x4] sm:$0xf] %vm1532, %v1529
      %p1535 = scmp.lt.s32.totalorder %s13, 1
      %s1536 = scalar_select %p1535, %s13, 1
      %s1537 = smul.addr %s1536, 2
      %s1538 = smul.addr %s1537, 4
      %s1539 = scalar_lea.vmem %s2, %s1538
      // Predicated region
      $region29: #{simple_conv_kan_forward.8} parent=27 // pred_check
        %p1540 = pneg %p78
      $region30: #{simple_conv_kan_forward.8} parent=27 // pred_check_branch
        %1542 = sbr.rel (%p1540) target = $region32
      $region31: #{simple_conv_kan_forward.8} parent=27 // pred_region
        _
      $region32: #{simple_conv_kan_forward.8} parent=27 // pred_fallthru
        _
    $region28: #{simple_conv_kan_forward.8} parent=5 // pred_fallthru
      _
    %p1543 = scmp.le.s32.totalorder 2, %s8
    // Predicated region
    $region33: #{simple_conv_kan_forward.8} parent=5 // pred_check
      %p1544 = pneg %p1543
    $region34: #{simple_conv_kan_forward.8} parent=5 // pred_check_branch
      %1546 = sbr.rel (%p1544) target = $region36
    $region35: #{simple_conv_kan_forward.8} parent=5 // pred_region
      %s1547 = ssub.s32 %s8, 2
      // Predicated region
      $region37: #{simple_conv_kan_forward.8} parent=35 // pred_check
        %p1548 = pneg %p84
      $region38: #{simple_conv_kan_forward.8} parent=35 // pred_check_branch
        %1550 = sbr.rel (%p1548) target = $region40
      $region39: #{simple_conv_kan_forward.8} parent=35 // pred_region
        %p1551 = scmp.lt.s32.totalorder %s14, 1
        %s1552 = scalar_select %p1551, %s14, 1
        %s1553 = smul.addr %s1552, 2
        %s1554 = smul.addr %s1553, 4
        %s1555 = scalar_lea.vmem %s2, %s1554
      $region40: #{simple_conv_kan_forward.8} parent=35 // pred_fallthru
        _
    $region36: #{simple_conv_kan_forward.8} parent=5 // pred_fallthru
      _
  $region6: #{simple_conv_kan_forward.8} parent=0 // loop_footer
    %s12 = sadd.s32 1, %s8
  $region7: #{simple_conv_kan_forward.8} parent=0 // loop_footer_branch
    %7 = sbr.rel target = $region3
  $region8: #{simple_conv_kan_forward.8} parent=0 // loop_exit
    _

// kernel: simple_conv_kan_forward.9
$region0: #{simple_conv_kan_forward.9}
  #allocation0 [shape = 'u32[]', space=smem, size = 0x4, offset = 0x4, fixed_abs, tag = 'smem constant byte address 0x4 - core index']
  #allocation1 [shape = 'u32[144,128]{1,0:T(1,128)}', space=vmem, size = 0x12000, scoped, tag = 'internal scratch']
  %s0 = inlined_call_operand.vmem [shape: bf16[16,256], index: 0, kind: input, shape index: {}]
  %s1 = inlined_call_operand.vmem [shape: bf16[2304,128], index: 1, kind: input, shape index: {}]
  %s2 = inlined_call_operand.vmem [shape: bf16[1152,128], index: 2, kind: input, shape index: {}]
  %s3 = inlined_call_operand.vmem [shape: bf16[1152,128], index: 3, kind: input, shape index: {}]
  %s4 = inlined_call_operand.vmem [shape: f32[16,128], index: 4, kind: output, shape index: {}]
  %s5 = sld [smem:[#allocation0]]
  $region49: #{simple_conv_kan_forward.9} parent=0
    _
  %s7 = ssub.s32 1, %s5
  %s8 = scalar_select 0, %s7, %s5
  loop: start=0, step=1, limit=4
  $region2: #{simple_conv_kan_forward.9} parent=0 // loop_pre_header
    _
  $region3: #{simple_conv_kan_forward.9} parent=0 // loop_header
    %s10 = sphi 0, %s14
    %p11 = scmp.ge.s32.totalorder %s10, 4
    %s20 = sphi 0, %s22
    %s23 = sphi 0, %s20
    %s24 = sphi 0, %s23
    %s40 = sphi 0, %s24
    %s44 = sphi 0, %s44
    %s46 = sphi 0, %s44
    %s47 = sphi 0, %s46
    %s61 = sphi 0, %s47
    %s65 = sphi 0, %s65
    %s67 = sphi 0, %s65
    %s68 = sphi 0, %s67
    %s82 = sphi 0, %s68
    %s86 = sphi 0, %s86
    %s88 = sphi 0, %s86
    %s89 = sphi 0, %s88
    %s103 = sphi 0, %s89
    %s109 = sphi 0, %s111
    %s112 = sphi 0, %s109
    %s113 = sphi 0, %s112
    %s129 = sphi 0, %s113
  $region4: #{simple_conv_kan_forward.9} parent=0 // loop_header_branch
    %13 = sbr.rel (%p11) target = $region8
  $region5: #{simple_conv_kan_forward.9} parent=0 // loop_body
    %s15 = ssub.s32 %s10, 1
    %s16 = ssub.s32 %s10, 2
    %s17 = sadd.s32 %s10, 1
    %s18 = ssub.s32 %s10, %s17
    %p19 = scmp.eq.s32.totalorder %s18, 0
    %s21 = sadd.s32 %s20, 1
    %s22 = scalar_select %p19, %s20, %s21
    %p25 = pneg %p19
    %p26 = scmp.eq.s32.totalorder %s10, 1
    %p27 = por %p25, %p26
    %p28 = scmp.ne.s32.totalorder %s20, %s23
    %p29 = scmp.eq.s32.totalorder %s10, 0
    %p30 = por %p28, %p29
    %p31 = scmp.ne.s32.totalorder %s20, %s23
    %p32 = scmp.eq.s32.totalorder %s15, 1
    %p33 = por %p31, %p32
    %p34 = scmp.ne.s32.totalorder %s23, %s24
    %p35 = scmp.eq.s32.totalorder %s15, 0
    %p36 = por %p34, %p35
    %p37 = scmp.ne.s32.totalorder %s23, %s24
    %p38 = scmp.eq.s32.totalorder %s16, 1
    %p39 = por %p37, %p38
    %p41 = scmp.ne.s32.totalorder %s24, %s40
    %p42 = scmp.eq.s32.totalorder %s16, 0
    %p43 = por %p41, %p42
    %s45 = sadd.s32 %s44, 1
    %p48 = scmp.eq.s32.totalorder %s10, 1
    %p49 = scmp.ne.s32.totalorder %s44, %s46
    %p50 = scmp.eq.s32.totalorder %s10, 0
    %p51 = por %p49, %p50
    %p52 = scmp.ne.s32.totalorder %s44, %s46
    %p53 = scmp.eq.s32.totalorder %s15, 1
    %p54 = por %p52, %p53
    %p55 = scmp.ne.s32.totalorder %s46, %s47
    %p56 = scmp.eq.s32.totalorder %s15, 0
    %p57 = por %p55, %p56
    %p58 = scmp.ne.s32.totalorder %s46, %s47
    %p59 = scmp.eq.s32.totalorder %s16, 1
    %p60 = por %p58, %p59
    %p62 = scmp.ne.s32.totalorder %s47, %s61
    %p63 = scmp.eq.s32.totalorder %s16, 0
    %p64 = por %p62, %p63
    %s66 = sadd.s32 %s65, 1
    %p69 = scmp.eq.s32.totalorder %s10, 1
    %p70 = scmp.ne.s32.totalorder %s65, %s67
    %p71 = scmp.eq.s32.totalorder %s10, 0
    %p72 = por %p70, %p71
    %p73 = scmp.ne.s32.totalorder %s65, %s67
    %p74 = scmp.eq.s32.totalorder %s15, 1
    %p75 = por %p73, %p74
    %p76 = scmp.ne.s32.totalorder %s67, %s68
    %p77 = scmp.eq.s32.totalorder %s15, 0
    %p78 = por %p76, %p77
    %p79 = scmp.ne.s32.totalorder %s67, %s68
    %p80 = scmp.eq.s32.totalorder %s16, 1
    %p81 = por %p79, %p80
    %p83 = scmp.ne.s32.totalorder %s68, %s82
    %p84 = scmp.eq.s32.totalorder %s16, 0
    %p85 = por %p83, %p84
    %s87 = sadd.s32 %s86, 1
    %p90 = scmp.eq.s32.totalorder %s10, 1
    %p91 = scmp.ne.s32.totalorder %s86, %s88
    %p92 = scmp.eq.s32.totalorder %s10, 0
    %p93 = por %p91, %p92
    %p94 = scmp.ne.s32.totalorder %s86, %s88
    %p95 = scmp.eq.s32.totalorder %s15, 1
    %p96 = por %p94, %p95
    %p97 = scmp.ne.s32.totalorder %s88, %s89
    %p98 = scmp.eq.s32.totalorder %s15, 0
    %p99 = por %p97, %p98
    %p100 = scmp.ne.s32.totalorder %s88, %s89
    %p101 = scmp.eq.s32.totalorder %s16, 1
    %p102 = por %p100, %p101
    %p104 = scmp.ne.s32.totalorder %s89, %s103
    %p105 = scmp.eq.s32.totalorder %s16, 0
    %p106 = por %p104, %p105
    %s107 = ssub.s32 %s10, %s17
    %p108 = scmp.eq.s32.totalorder %s107, 0
    %s110 = sadd.s32 %s109, 1
    %s111 = scalar_select %p108, %s109, %s110
    %p114 = pneg %p108
    %p115 = scmp.eq.s32.totalorder %s10, 1
    %p116 = por %p114, %p115
    %p117 = scmp.ne.s32.totalorder %s109, %s112
    %p118 = scmp.eq.s32.totalorder %s10, 0
    %p119 = por %p117, %p118
    %p120 = scmp.ne.s32.totalorder %s109, %s112
    %p121 = scmp.eq.s32.totalorder %s15, 1
    %p122 = por %p120, %p121
    %p123 = scmp.ne.s32.totalorder %s112, %s113
    %p124 = scmp.eq.s32.totalorder %s15, 0
    %p125 = por %p123, %p124
    %p126 = scmp.ne.s32.totalorder %s112, %s113
    %p127 = scmp.eq.s32.totalorder %s16, 1
    %p128 = por %p126, %p127
    %p130 = scmp.ne.s32.totalorder %s113, %s129
    %p131 = scmp.eq.s32.totalorder %s16, 0
    %p132 = por %p130, %p131
    %p133 = scmp.le.s32.totalorder 1, %s10
    %p134 = scmp.lt.s32.totalorder %s10, 3
    %p135 = pnand %p133, %p134
    %p136 = pneg %p135
    // Predicated region
    $region9: #{simple_conv_kan_forward.9} parent=5 // pred_check
      _
    $region10: #{simple_conv_kan_forward.9} parent=5 // pred_check_branch
      %138 = sbr.rel (%p135) target = $region12
    $region11: #{simple_conv_kan_forward.9} parent=5 // pred_region
      %s139 = ssub.s32 %s10, 1
      // Predicated region
      $region13: #{simple_conv_kan_forward.9} parent=11 // pred_check
        %p140 = pneg %p57
      $region14: #{simple_conv_kan_forward.9} parent=11 // pred_check_branch
        %142 = sbr.rel (%p140) target = $region16
      $region15: #{simple_conv_kan_forward.9} parent=11 // pred_region
        _
      $region16: #{simple_conv_kan_forward.9} parent=11 // pred_fallthru
        _
      // Predicated region
      $region17: #{simple_conv_kan_forward.9} parent=11 // pred_check
        %p143 = pneg %p78
      $region18: #{simple_conv_kan_forward.9} parent=11 // pred_check_branch
        %145 = sbr.rel (%p143) target = $region20
      $region19: #{simple_conv_kan_forward.9} parent=11 // pred_region
        _
      $region20: #{simple_conv_kan_forward.9} parent=11 // pred_fallthru
        _
      // Predicated region
      $region21: #{simple_conv_kan_forward.9} parent=11 // pred_check
        %p146 = pneg %p99
      $region22: #{simple_conv_kan_forward.9} parent=11 // pred_check_branch
        %148 = sbr.rel (%p146) target = $region24
      $region23: #{simple_conv_kan_forward.9} parent=11 // pred_region
        _
      $region24: #{simple_conv_kan_forward.9} parent=11 // pred_fallthru
        _
    $region12: #{simple_conv_kan_forward.9} parent=5 // pred_fallthru
      _
    %p149 = scmp.lt.s32.totalorder %s10, 2
    // Predicated region
    $region25: #{simple_conv_kan_forward.9} parent=5 // pred_check
      %p150 = pneg %p149
    $region26: #{simple_conv_kan_forward.9} parent=5 // pred_check_branch
      %152 = sbr.rel (%p150) target = $region28
    $region27: #{simple_conv_kan_forward.9} parent=5 // pred_region
      // Predicated region
      $region29: #{simple_conv_kan_forward.9} parent=27 // pred_check
        %p153 = pneg %p30
      $region30: #{simple_conv_kan_forward.9} parent=27 // pred_check_branch
        %155 = sbr.rel (%p153) target = $region32
      $region31: #{simple_conv_kan_forward.9} parent=27 // pred_region
        %p156 = scmp.lt.s32.totalorder %s10, 1
        %s157 = scalar_select %p156, %s10, 1
        %s158 = smul.addr %s157, 2
        %s159 = smul.addr %s158, 4
        %s160 = scalar_lea.vmem %s0, %s159
      $region32: #{simple_conv_kan_forward.9} parent=27 // pred_fallthru
        _
    $region28: #{simple_conv_kan_forward.9} parent=5 // pred_fallthru
      _
    %p161 = scmp.le.s32.totalorder 1, %s10
    %p162 = scmp.lt.s32.totalorder %s10, 3
    %p163 = pnand %p161, %p162
    %p164 = pneg %p163
    // Predicated region
    $region33: #{simple_conv_kan_forward.9} parent=5 // pred_check
      _
    $region34: #{simple_conv_kan_forward.9} parent=5 // pred_check_branch
      %166 = sbr.rel (%p163) target = $region36
    $region35: #{simple_conv_kan_forward.9} parent=5 // pred_region
      %s167 = ssub.s32 %s10, 1
      %p168 = scmp.lt.s32.totalorder %s15, 1
      %s169 = scalar_select %p168, %s15, 1
      %s170 = smul.addr %s169, 2
      %s171 = smul.addr %s170, 4
      %s172 = scalar_lea.vmem %s0, %s171
      %p173 = pneg %p36
      %p174 = pneg %p33
      %p175 = pneg %p57
      %p176 = pneg %p54
      %p177 = pneg %p78
      %p178 = pneg %p75
      %p179 = pneg %p99
      %p180 = pneg %p96
      %p181 = pneg %p125
      %p182 = pneg %p122
      %p183 = scmp.lt.s32.totalorder %s15, 1
      %s184 = scalar_select %p183, %s15, 1
      %s185 = smul.addr %s184, 8
      %s186 = scalar_lea.vmem %s4, %s185
      %p187 = scmp.lt.s32.totalorder %s15, 1
      %s188 = scalar_select %p187, %s15, 1
      %s189 = smul.addr %s188, 2
      %s190 = smul.addr %s189, 4
      %s191 = scalar_lea.vmem %s0, %s190
      %p192 = scmp.lt.s32.totalorder %s15, 1
      %s193 = scalar_select %p192, %s15, 1
      %s194 = smul.addr %s193, 8
      %s195 = scalar_lea.vmem %s4, %s194
      %v197 = vld [vmem:[%s191] sm:$0xff]
      %v198 = vunpack.c.l.bf16 %v197
      %v199 = vunpack.c.h.bf16 %v197
      %v200 = vsub.f32 0.0, %v198
      %v201 = vsub.f32 0.0, %v199
      %v202 = vmul.f32 %v200, 1.442695
      %v203 = vpow.pop %v202
      %v204 = vmul.f32 %v201, 1.442695
      %v205 = vpow.pop %v204
      %v206 = vadd.f32 %v203, 1.0
      %v207 = vadd.f32 %v205, 1.0
      %v208 = vrcp.pop %v206
      %v209 = vmul.f32 1.0, %v208
      %v210 = vrcp.pop %v207
      %v211 = vmul.f32 1.0, %v210
      %v212 = vmul.f32 %v198, %v209
      %v213 = vmul.f32 %v199, %v211
      %v214 = vsub.f32 %v198, -2.2
      %v215 = vsub.f32 %v199, -2.2
      %v216 = vmul.f32 %v214, 2.5
      %v217 = vmul.f32 %v215, 2.5
      %v218 = vfloor.f32 %v216
      %v219 = vfloor.f32 %v217
      %v220 = vsub.f32 %v216, %v218
      %v221 = vsub.f32 %v217, %v219
      %v222 = vmul.f32 %v220, %v220
      %v223 = vmul.f32 %v221, %v221
      %v224 = vmul.f32 %v222, %v220
      %v225 = vmul.f32 %v223, %v221
      %v226 = vsub.f32 1.0, %v220
      %v227 = vsub.f32 1.0, %v221
      %v228 = vmul.f32 %v224, 0.16666667
      %v229 = vmul.f32 %v225, 0.16666667
      %v230 = vmul.f32 %v224, -3.0
      %v231 = vmul.f32 %v225, -3.0
      %v232 = vmul.f32 %v222, 3.0
      %v233 = vmul.f32 %v223, 3.0
      %v234 = vadd.f32 %v230, %v232
      %v235 = vadd.f32 %v231, %v233
      %v236 = vmul.f32 %v220, 3.0
      %v237 = vmul.f32 %v221, 3.0
      %v238 = vadd.f32 %v234, %v236
      %v239 = vadd.f32 %v235, %v237
      %v240 = vadd.f32 %v238, 1.0
      %v241 = vadd.f32 %v239, 1.0
      %v242 = vmul.f32 %v240, 0.16666667
      %v243 = vmul.f32 %v241, 0.16666667
      %v244 = vmul.f32 %v224, 3.0
      %v245 = vmul.f32 %v225, 3.0
      %v246 = vmul.f32 %v222, 6.0
      %v247 = vmul.f32 %v223, 6.0
      %v248 = vsub.f32 %v244, %v246
      %v249 = vsub.f32 %v245, %v247
      %v250 = vadd.f32 %v248, 4.0
      %v251 = vadd.f32 %v249, 4.0
      %v252 = vmul.f32 %v250, 0.16666667
      %v253 = vmul.f32 %v251, 0.16666667
      %v254 = vmul.f32 %v226, %v226
      %v255 = vmul.f32 %v227, %v227
      %v256 = vmul.f32 %v254, %v226
      %v257 = vmul.f32 %v255, %v227
      %v258 = vmul.f32 %v256, 0.16666667
      %v259 = vmul.f32 %v257, 0.16666667
      %vm260 = vcmp.eq.f32.partialorder %v218, 0.0
      %vm261 = vcmp.eq.f32.partialorder %v219, 0.0
      %vm262 = vcmp.eq.f32.partialorder %v218, 1.0
      %vm263 = vcmp.eq.f32.partialorder %v219, 1.0
      %vm264 = vcmp.eq.f32.partialorder %v218, 2.0
      %vm265 = vcmp.eq.f32.partialorder %v219, 2.0
      %vm266 = vcmp.eq.f32.partialorder %v218, 3.0
      %vm267 = vcmp.eq.f32.partialorder %v219, 3.0
      %vm268 = vcmp.eq.f32.partialorder %v218, 4.0
      %vm269 = vcmp.eq.f32.partialorder %v219, 4.0
      %vm270 = vcmp.eq.f32.partialorder %v218, 5.0
      %vm271 = vcmp.eq.f32.partialorder %v219, 5.0
      %vm272 = vcmp.eq.f32.partialorder %v218, 6.0
      %vm273 = vcmp.eq.f32.partialorder %v219, 6.0
      %vm274 = vcmp.eq.f32.partialorder %v218, 7.0
      %vm275 = vcmp.eq.f32.partialorder %v219, 7.0
      %vm276 = vcmp.eq.f32.partialorder %v218, 8.0
      %vm277 = vcmp.eq.f32.partialorder %v219, 8.0
      %vm278 = vcmp.eq.f32.partialorder %v218, 9.0
      %vm279 = vcmp.eq.f32.partialorder %v219, 9.0
      %vm280 = vcmp.eq.f32.partialorder %v218, 10.0
      %vm281 = vcmp.eq.f32.partialorder %v219, 10.0
      %v282 = vsel %vm266, %v258, 0.0
      %v283 = vsel %vm267, %v259, 0.0
      %v284 = vsel %vm264, %v252, %v282
      %v285 = vsel %vm265, %v253, %v283
      %v286 = vsel %vm262, %v242, %v284
      %v287 = vsel %vm263, %v243, %v285
      %v288 = vsel %vm260, %v228, %v286
      %v289 = vsel %vm261, %v229, %v287
      %v290 = vsel %vm268, %v258, 0.0
      %v291 = vsel %vm269, %v259, 0.0
      %v292 = vsel %vm266, %v252, %v290
      %v293 = vsel %vm267, %v253, %v291
      %v294 = vsel %vm264, %v242, %v292
      %v295 = vsel %vm265, %v243, %v293
      %v296 = vsel %vm262, %v228, %v294
      %v297 = vsel %vm263, %v229, %v295
      %v298 = vsel %vm270, %v258, 0.0
      %v299 = vsel %vm271, %v259, 0.0
      %v300 = vsel %vm268, %v252, %v298
      %v301 = vsel %vm269, %v253, %v299
      %v302 = vsel %vm266, %v242, %v300
      %v303 = vsel %vm267, %v243, %v301
      %v304 = vsel %vm264, %v228, %v302
      %v305 = vsel %vm265, %v229, %v303
      %v306 = vsel %vm272, %v258, 0.0
      %v307 = vsel %vm273, %v259, 0.0
      %v308 = vsel %vm270, %v252, %v306
      %v309 = vsel %vm271, %v253, %v307
      %v310 = vsel %vm268, %v242, %v308
      %v311 = vsel %vm269, %v243, %v309
      %v312 = vsel %vm266, %v228, %v310
      %v313 = vsel %vm267, %v229, %v311
      %v314 = vsel %vm274, %v258, 0.0
      %v315 = vsel %vm275, %v259, 0.0
      %v316 = vsel %vm272, %v252, %v314
      %v317 = vsel %vm273, %v253, %v315
      %v318 = vsel %vm270, %v242, %v316
      %v319 = vsel %vm271, %v243, %v317
      %v320 = vsel %vm268, %v228, %v318
      %v321 = vsel %vm269, %v229, %v319
      %v322 = vsel %vm276, %v258, 0.0
      %v323 = vsel %vm277, %v259, 0.0
      %v324 = vsel %vm274, %v252, %v322
      %v325 = vsel %vm275, %v253, %v323
      %v326 = vsel %vm272, %v242, %v324
      %v327 = vsel %vm273, %v243, %v325
      %v328 = vsel %vm270, %v228, %v326
      %v329 = vsel %vm271, %v229, %v327
      %v330 = vsel %vm278, %v258, 0.0
      %v331 = vsel %vm279, %v259, 0.0
      %v332 = vsel %vm276, %v252, %v330
      %v333 = vsel %vm277, %v253, %v331
      %v334 = vsel %vm274, %v242, %v332
      %v335 = vsel %vm275, %v243, %v333
      %v336 = vsel %vm272, %v228, %v334
      %v337 = vsel %vm273, %v229, %v335
      %v338 = vsel %vm280, %v258, 0.0
      %v339 = vsel %vm281, %v259, 0.0
      %v340 = vsel %vm278, %v252, %v338
      %v341 = vsel %vm279, %v253, %v339
      %v342 = vsel %vm276, %v242, %v340
      %v343 = vsel %vm277, %v243, %v341
      %v344 = vsel %vm274, %v228, %v342
      %v345 = vsel %vm275, %v229, %v343
      %v346 = vpack.c.bf16 %v212, %v212
      %v347 = vpack.c.bf16 %v213, %v213
      %v348 = vpack.c.bf16 %v288, %v288
      %v349 = vpack.c.bf16 %v289, %v289
      %v350 = vpack.c.bf16 %v296, %v296
      %v351 = vpack.c.bf16 %v297, %v297
      %v352 = vpack.c.bf16 %v304, %v304
      %v353 = vpack.c.bf16 %v305, %v305
      %v354 = vpack.c.bf16 %v312, %v312
      %v355 = vpack.c.bf16 %v313, %v313
      %v356 = vpack.c.bf16 %v320, %v320
      %v357 = vpack.c.bf16 %v321, %v321
      %v358 = vpack.c.bf16 %v328, %v328
      %v359 = vpack.c.bf16 %v329, %v329
      %v360 = vpack.c.bf16 %v336, %v336
      %v361 = vpack.c.bf16 %v337, %v337
      %v362 = vpack.c.bf16 %v344, %v344
      %v363 = vpack.c.bf16 %v345, %v345
      %v364 = vld [vmem:[%s1] sm:$0xf]
      %v365 = vld [vmem:[%s1 + $0x4] sm:$0xf]
      %v366 = vld [vmem:[%s1 + $0x8] sm:$0xf]
      %v367 = vld [vmem:[%s1 + $0xc] sm:$0xf]
      %v368 = vld [vmem:[%s1 + $0x10] sm:$0xf]
      %v369 = vld [vmem:[%s1 + $0x14] sm:$0xf]
      %v370 = vld [vmem:[%s1 + $0x18] sm:$0xf]
      %v371 = vld [vmem:[%s1 + $0x1c] sm:$0xf]
      %v372 = vld [vmem:[%s1 + $0x20] sm:$0xf]
      %v373 = vld [vmem:[%s1 + $0x24] sm:$0xf]
      %v374 = vld [vmem:[%s1 + $0x28] sm:$0xf]
      %v375 = vld [vmem:[%s1 + $0x2c] sm:$0xf]
      %v376 = vld [vmem:[%s1 + $0x30] sm:$0xf]
      %v377 = vld [vmem:[%s1 + $0x34] sm:$0xf]
      %v378 = vld [vmem:[%s1 + $0x38] sm:$0xf]
      %v379 = vld [vmem:[%s1 + $0x3c] sm:$0xf]
      %v380 = vld [vmem:[%s1 + $0x40] sm:$0xf]
      %v381 = vld [vmem:[%s1 + $0x44] sm:$0xf]
      %v382 = vld [vmem:[%s1 + $0x48] sm:$0xf]
      %v383 = vld [vmem:[%s1 + $0x4c] sm:$0xf]
      %v384 = vld [vmem:[%s1 + $0x50] sm:$0xf]
      %v385 = vld [vmem:[%s1 + $0x54] sm:$0xf]
      %v386 = vld [vmem:[%s1 + $0x58] sm:$0xf]
      %v387 = vld [vmem:[%s1 + $0x5c] sm:$0xf]
      %v388 = vld [vmem:[%s1 + $0x60] sm:$0xf]
      %v389 = vld [vmem:[%s1 + $0x64] sm:$0xf]
      %v390 = vld [vmem:[%s1 + $0x68] sm:$0xf]
      %v391 = vld [vmem:[%s1 + $0x6c] sm:$0xf]
      %v392 = vld [vmem:[%s1 + $0x70] sm:$0xf]
      %v393 = vld [vmem:[%s1 + $0x74] sm:$0xf]
      %v394 = vld [vmem:[%s1 + $0x78] sm:$0xf]
      %v395 = vld [vmem:[%s1 + $0x7c] sm:$0xf]
      %v396 = vld [vmem:[%s1 + $0x80] sm:$0xf]
      %v397 = vld [vmem:[%s1 + $0x84] sm:$0xf]
      %v398 = vld [vmem:[%s1 + $0x88] sm:$0xf]
      %v399 = vld [vmem:[%s1 + $0x8c] sm:$0xf]
      %v400 = vld [vmem:[%s1 + $0x90] sm:$0xf]
      %v401 = vld [vmem:[%s1 + $0x94] sm:$0xf]
      %v402 = vld [vmem:[%s1 + $0x98] sm:$0xf]
      %v403 = vld [vmem:[%s1 + $0x9c] sm:$0xf]
      %v404 = vld [vmem:[%s1 + $0xa0] sm:$0xf]
      %v405 = vld [vmem:[%s1 + $0xa4] sm:$0xf]
      %v406 = vld [vmem:[%s1 + $0xa8] sm:$0xf]
      %v407 = vld [vmem:[%s1 + $0xac] sm:$0xf]
      %v408 = vld [vmem:[%s1 + $0xb0] sm:$0xf]
      %v409 = vld [vmem:[%s1 + $0xb4] sm:$0xf]
      %v410 = vld [vmem:[%s1 + $0xb8] sm:$0xf]
      %v411 = vld [vmem:[%s1 + $0xbc] sm:$0xf]
      %v412 = vld [vmem:[%s1 + $0xc0] sm:$0xf]
      %v413 = vld [vmem:[%s1 + $0xc4] sm:$0xf]
      %v414 = vld [vmem:[%s1 + $0xc8] sm:$0xf]
      %v415 = vld [vmem:[%s1 + $0xcc] sm:$0xf]
      %v416 = vld [vmem:[%s1 + $0xd0] sm:$0xf]
      %v417 = vld [vmem:[%s1 + $0xd4] sm:$0xf]
      %v418 = vld [vmem:[%s1 + $0xd8] sm:$0xf]
      %v419 = vld [vmem:[%s1 + $0xdc] sm:$0xf]
      %v420 = vld [vmem:[%s1 + $0xe0] sm:$0xf]
      %v421 = vld [vmem:[%s1 + $0xe4] sm:$0xf]
      %v422 = vld [vmem:[%s1 + $0xe8] sm:$0xf]
      %v423 = vld [vmem:[%s1 + $0xec] sm:$0xf]
      %v424 = vld [vmem:[%s1 + $0xf0] sm:$0xf]
      %v425 = vld [vmem:[%s1 + $0xf4] sm:$0xf]
      %v426 = vld [vmem:[%s1 + $0xf8] sm:$0xf]
      %v427 = vld [vmem:[%s1 + $0xfc] sm:$0xf]
      %v428 = vld [vmem:[%s1 + $0x100] sm:$0xf]
      %v429 = vld [vmem:[%s1 + $0x104] sm:$0xf]
      %v430 = vld [vmem:[%s1 + $0x108] sm:$0xf]
      %v431 = vld [vmem:[%s1 + $0x10c] sm:$0xf]
      %v432 = vld [vmem:[%s1 + $0x110] sm:$0xf]
      %v433 = vld [vmem:[%s1 + $0x114] sm:$0xf]
      %v434 = vld [vmem:[%s1 + $0x118] sm:$0xf]
      %v435 = vld [vmem:[%s1 + $0x11c] sm:$0xf]
      %v436 = vld [vmem:[%s1 + $0x120] sm:$0xf]
      %v437 = vld [vmem:[%s1 + $0x124] sm:$0xf]
      %v438 = vld [vmem:[%s1 + $0x128] sm:$0xf]
      %v439 = vld [vmem:[%s1 + $0x12c] sm:$0xf]
      %v440 = vld [vmem:[%s1 + $0x130] sm:$0xf]
      %v441 = vld [vmem:[%s1 + $0x134] sm:$0xf]
      %v442 = vld [vmem:[%s1 + $0x138] sm:$0xf]
      %v443 = vld [vmem:[%s1 + $0x13c] sm:$0xf]
      %v444 = vld [vmem:[%s1 + $0x140] sm:$0xf]
      %v445 = vld [vmem:[%s1 + $0x144] sm:$0xf]
      %v446 = vld [vmem:[%s1 + $0x148] sm:$0xf]
      %v447 = vld [vmem:[%s1 + $0x14c] sm:$0xf]
      %v448 = vld [vmem:[%s1 + $0x150] sm:$0xf]
      %v449 = vld [vmem:[%s1 + $0x154] sm:$0xf]
      %v450 = vld [vmem:[%s1 + $0x158] sm:$0xf]
      %v451 = vld [vmem:[%s1 + $0x15c] sm:$0xf]
      %v452 = vld [vmem:[%s1 + $0x160] sm:$0xf]
      %v453 = vld [vmem:[%s1 + $0x164] sm:$0xf]
      %v454 = vld [vmem:[%s1 + $0x168] sm:$0xf]
      %v455 = vld [vmem:[%s1 + $0x16c] sm:$0xf]
      %v456 = vld [vmem:[%s1 + $0x170] sm:$0xf]
      %v457 = vld [vmem:[%s1 + $0x174] sm:$0xf]
      %v458 = vld [vmem:[%s1 + $0x178] sm:$0xf]
      %v459 = vld [vmem:[%s1 + $0x17c] sm:$0xf]
      %v460 = vld [vmem:[%s1 + $0x180] sm:$0xf]
      %v461 = vld [vmem:[%s1 + $0x184] sm:$0xf]
      %v462 = vld [vmem:[%s1 + $0x188] sm:$0xf]
      %v463 = vld [vmem:[%s1 + $0x18c] sm:$0xf]
      %v464 = vld [vmem:[%s1 + $0x190] sm:$0xf]
      %v465 = vld [vmem:[%s1 + $0x194] sm:$0xf]
      %v466 = vld [vmem:[%s1 + $0x198] sm:$0xf]
      %v467 = vld [vmem:[%s1 + $0x19c] sm:$0xf]
      %v468 = vld [vmem:[%s1 + $0x1a0] sm:$0xf]
      %v469 = vld [vmem:[%s1 + $0x1a4] sm:$0xf]
      %v470 = vld [vmem:[%s1 + $0x1a8] sm:$0xf]
      %v471 = vld [vmem:[%s1 + $0x1ac] sm:$0xf]
      %v472 = vld [vmem:[%s1 + $0x1b0] sm:$0xf]
      %v473 = vld [vmem:[%s1 + $0x1b4] sm:$0xf]
      %v474 = vld [vmem:[%s1 + $0x1b8] sm:$0xf]
      %v475 = vld [vmem:[%s1 + $0x1bc] sm:$0xf]
      %v476 = vld [vmem:[%s1 + $0x1c0] sm:$0xf]
      %v477 = vld [vmem:[%s1 + $0x1c4] sm:$0xf]
      %v478 = vld [vmem:[%s1 + $0x1c8] sm:$0xf]
      %v479 = vld [vmem:[%s1 + $0x1cc] sm:$0xf]
      %v480 = vld [vmem:[%s1 + $0x1d0] sm:$0xf]
      %v481 = vld [vmem:[%s1 + $0x1d4] sm:$0xf]
      %v482 = vld [vmem:[%s1 + $0x1d8] sm:$0xf]
      %v483 = vld [vmem:[%s1 + $0x1dc] sm:$0xf]
      %v484 = vld [vmem:[%s1 + $0x1e0] sm:$0xf]
      %v485 = vld [vmem:[%s1 + $0x1e4] sm:$0xf]
      %v486 = vld [vmem:[%s1 + $0x1e8] sm:$0xf]
      %v487 = vld [vmem:[%s1 + $0x1ec] sm:$0xf]
      %v488 = vld [vmem:[%s1 + $0x1f0] sm:$0xf]
      %v489 = vld [vmem:[%s1 + $0x1f4] sm:$0xf]
      %v490 = vld [vmem:[%s1 + $0x1f8] sm:$0xf]
      %v491 = vld [vmem:[%s1 + $0x1fc] sm:$0xf]
      %v492 = vld [vmem:[%s1 + $0x200] sm:$0xf]
      %v493 = vld [vmem:[%s1 + $0x204] sm:$0xf]
      %v494 = vld [vmem:[%s1 + $0x208] sm:$0xf]
      %v495 = vld [vmem:[%s1 + $0x20c] sm:$0xf]
      %v496 = vld [vmem:[%s1 + $0x210] sm:$0xf]
      %v497 = vld [vmem:[%s1 + $0x214] sm:$0xf]
      %v498 = vld [vmem:[%s1 + $0x218] sm:$0xf]
      %v499 = vld [vmem:[%s1 + $0x21c] sm:$0xf]
      %v500 = vld [vmem:[%s1 + $0x220] sm:$0xf]
      %v501 = vld [vmem:[%s1 + $0x224] sm:$0xf]
      %v502 = vld [vmem:[%s1 + $0x228] sm:$0xf]
      %v503 = vld [vmem:[%s1 + $0x22c] sm:$0xf]
      %v504 = vld [vmem:[%s1 + $0x230] sm:$0xf]
      %v505 = vld [vmem:[%s1 + $0x234] sm:$0xf]
      %v506 = vld [vmem:[%s1 + $0x238] sm:$0xf]
      %v507 = vld [vmem:[%s1 + $0x23c] sm:$0xf]
      %v508 = vld [vmem:[%s1 + $0x240] sm:$0xf]
      %v509 = vld [vmem:[%s1 + $0x244] sm:$0xf]
      %v510 = vld [vmem:[%s1 + $0x248] sm:$0xf]
      %v511 = vld [vmem:[%s1 + $0x24c] sm:$0xf]
      %v512 = vld [vmem:[%s1 + $0x250] sm:$0xf]
      %v513 = vld [vmem:[%s1 + $0x254] sm:$0xf]
      %v514 = vld [vmem:[%s1 + $0x258] sm:$0xf]
      %v515 = vld [vmem:[%s1 + $0x25c] sm:$0xf]
      %v516 = vld [vmem:[%s1 + $0x260] sm:$0xf]
      %v517 = vld [vmem:[%s1 + $0x264] sm:$0xf]
      %v518 = vld [vmem:[%s1 + $0x268] sm:$0xf]
      %v519 = vld [vmem:[%s1 + $0x26c] sm:$0xf]
      %v520 = vld [vmem:[%s1 + $0x270] sm:$0xf]
      %v521 = vld [vmem:[%s1 + $0x274] sm:$0xf]
      %v522 = vld [vmem:[%s1 + $0x278] sm:$0xf]
      %v523 = vld [vmem:[%s1 + $0x27c] sm:$0xf]
      %v524 = vld [vmem:[%s1 + $0x280] sm:$0xf]
      %v525 = vld [vmem:[%s1 + $0x284] sm:$0xf]
      %v526 = vld [vmem:[%s1 + $0x288] sm:$0xf]
      %v527 = vld [vmem:[%s1 + $0x28c] sm:$0xf]
      %v528 = vld [vmem:[%s1 + $0x290] sm:$0xf]
      %v529 = vld [vmem:[%s1 + $0x294] sm:$0xf]
      %v530 = vld [vmem:[%s1 + $0x298] sm:$0xf]
      %v531 = vld [vmem:[%s1 + $0x29c] sm:$0xf]
      %v532 = vld [vmem:[%s1 + $0x2a0] sm:$0xf]
      %v533 = vld [vmem:[%s1 + $0x2a4] sm:$0xf]
      %v534 = vld [vmem:[%s1 + $0x2a8] sm:$0xf]
      %v535 = vld [vmem:[%s1 + $0x2ac] sm:$0xf]
      %v536 = vld [vmem:[%s1 + $0x2b0] sm:$0xf]
      %v537 = vld [vmem:[%s1 + $0x2b4] sm:$0xf]
      %v538 = vld [vmem:[%s1 + $0x2b8] sm:$0xf]
      %v539 = vld [vmem:[%s1 + $0x2bc] sm:$0xf]
      %v540 = vld [vmem:[%s1 + $0x2c0] sm:$0xf]
      %v541 = vld [vmem:[%s1 + $0x2c4] sm:$0xf]
      %v542 = vld [vmem:[%s1 + $0x2c8] sm:$0xf]
      %v543 = vld [vmem:[%s1 + $0x2cc] sm:$0xf]
      %v544 = vld [vmem:[%s1 + $0x2d0] sm:$0xf]
      %v545 = vld [vmem:[%s1 + $0x2d4] sm:$0xf]
      %v546 = vld [vmem:[%s1 + $0x2d8] sm:$0xf]
      %v547 = vld [vmem:[%s1 + $0x2dc] sm:$0xf]
      %v548 = vld [vmem:[%s1 + $0x2e0] sm:$0xf]
      %v549 = vld [vmem:[%s1 + $0x2e4] sm:$0xf]
      %v550 = vld [vmem:[%s1 + $0x2e8] sm:$0xf]
      %v551 = vld [vmem:[%s1 + $0x2ec] sm:$0xf]
      %v552 = vld [vmem:[%s1 + $0x2f0] sm:$0xf]
      %v553 = vld [vmem:[%s1 + $0x2f4] sm:$0xf]
      %v554 = vld [vmem:[%s1 + $0x2f8] sm:$0xf]
      %v555 = vld [vmem:[%s1 + $0x2fc] sm:$0xf]
      %v556 = vld [vmem:[%s1 + $0x300] sm:$0xf]
      %v557 = vld [vmem:[%s1 + $0x304] sm:$0xf]
      %v558 = vld [vmem:[%s1 + $0x308] sm:$0xf]
      %v559 = vld [vmem:[%s1 + $0x30c] sm:$0xf]
      %v560 = vld [vmem:[%s1 + $0x310] sm:$0xf]
      %v561 = vld [vmem:[%s1 + $0x314] sm:$0xf]
      %v562 = vld [vmem:[%s1 + $0x318] sm:$0xf]
      %v563 = vld [vmem:[%s1 + $0x31c] sm:$0xf]
      %v564 = vld [vmem:[%s1 + $0x320] sm:$0xf]
      %v565 = vld [vmem:[%s1 + $0x324] sm:$0xf]
      %v566 = vld [vmem:[%s1 + $0x328] sm:$0xf]
      %v567 = vld [vmem:[%s1 + $0x32c] sm:$0xf]
      %v568 = vld [vmem:[%s1 + $0x330] sm:$0xf]
      %v569 = vld [vmem:[%s1 + $0x334] sm:$0xf]
      %v570 = vld [vmem:[%s1 + $0x338] sm:$0xf]
      %v571 = vld [vmem:[%s1 + $0x33c] sm:$0xf]
      %v572 = vld [vmem:[%s1 + $0x340] sm:$0xf]
      %v573 = vld [vmem:[%s1 + $0x344] sm:$0xf]
      %v574 = vld [vmem:[%s1 + $0x348] sm:$0xf]
      %v575 = vld [vmem:[%s1 + $0x34c] sm:$0xf]
      %v576 = vld [vmem:[%s1 + $0x350] sm:$0xf]
      %v577 = vld [vmem:[%s1 + $0x354] sm:$0xf]
      %v578 = vld [vmem:[%s1 + $0x358] sm:$0xf]
      %v579 = vld [vmem:[%s1 + $0x35c] sm:$0xf]
      %v580 = vld [vmem:[%s1 + $0x360] sm:$0xf]
      %v581 = vld [vmem:[%s1 + $0x364] sm:$0xf]
      %v582 = vld [vmem:[%s1 + $0x368] sm:$0xf]
      %v583 = vld [vmem:[%s1 + $0x36c] sm:$0xf]
      %v584 = vld [vmem:[%s1 + $0x370] sm:$0xf]
      %v585 = vld [vmem:[%s1 + $0x374] sm:$0xf]
      %v586 = vld [vmem:[%s1 + $0x378] sm:$0xf]
      %v587 = vld [vmem:[%s1 + $0x37c] sm:$0xf]
      %v588 = vld [vmem:[%s1 + $0x380] sm:$0xf]
      %v589 = vld [vmem:[%s1 + $0x384] sm:$0xf]
      %v590 = vld [vmem:[%s1 + $0x388] sm:$0xf]
      %v591 = vld [vmem:[%s1 + $0x38c] sm:$0xf]
      %v592 = vld [vmem:[%s1 + $0x390] sm:$0xf]
      %v593 = vld [vmem:[%s1 + $0x394] sm:$0xf]
      %v594 = vld [vmem:[%s1 + $0x398] sm:$0xf]
      %v595 = vld [vmem:[%s1 + $0x39c] sm:$0xf]
      %v596 = vld [vmem:[%s1 + $0x3a0] sm:$0xf]
      %v597 = vld [vmem:[%s1 + $0x3a4] sm:$0xf]
      %v598 = vld [vmem:[%s1 + $0x3a8] sm:$0xf]
      %v599 = vld [vmem:[%s1 + $0x3ac] sm:$0xf]
      %v600 = vld [vmem:[%s1 + $0x3b0] sm:$0xf]
      %v601 = vld [vmem:[%s1 + $0x3b4] sm:$0xf]
      %v602 = vld [vmem:[%s1 + $0x3b8] sm:$0xf]
      %v603 = vld [vmem:[%s1 + $0x3bc] sm:$0xf]
      %v604 = vld [vmem:[%s1 + $0x3c0] sm:$0xf]
      %v605 = vld [vmem:[%s1 + $0x3c4] sm:$0xf]
      %v606 = vld [vmem:[%s1 + $0x3c8] sm:$0xf]
      %v607 = vld [vmem:[%s1 + $0x3cc] sm:$0xf]
      %v608 = vld [vmem:[%s1 + $0x3d0] sm:$0xf]
      %v609 = vld [vmem:[%s1 + $0x3d4] sm:$0xf]
      %v610 = vld [vmem:[%s1 + $0x3d8] sm:$0xf]
      %v611 = vld [vmem:[%s1 + $0x3dc] sm:$0xf]
      %v612 = vld [vmem:[%s1 + $0x3e0] sm:$0xf]
      %v613 = vld [vmem:[%s1 + $0x3e4] sm:$0xf]
      %v614 = vld [vmem:[%s1 + $0x3e8] sm:$0xf]
      %v615 = vld [vmem:[%s1 + $0x3ec] sm:$0xf]
      %v616 = vld [vmem:[%s1 + $0x3f0] sm:$0xf]
      %v617 = vld [vmem:[%s1 + $0x3f4] sm:$0xf]
      %v618 = vld [vmem:[%s1 + $0x3f8] sm:$0xf]
      %v619 = vld [vmem:[%s1 + $0x3fc] sm:$0xf]
      %v620 = vld [vmem:[%s1 + $0x400] sm:$0xf]
      %v621 = vld [vmem:[%s1 + $0x404] sm:$0xf]
      %v622 = vld [vmem:[%s1 + $0x408] sm:$0xf]
      %v623 = vld [vmem:[%s1 + $0x40c] sm:$0xf]
      %v624 = vld [vmem:[%s1 + $0x410] sm:$0xf]
      %v625 = vld [vmem:[%s1 + $0x414] sm:$0xf]
      %v626 = vld [vmem:[%s1 + $0x418] sm:$0xf]
      %v627 = vld [vmem:[%s1 + $0x41c] sm:$0xf]
      %v628 = vld [vmem:[%s1 + $0x420] sm:$0xf]
      %v629 = vld [vmem:[%s1 + $0x424] sm:$0xf]
      %v630 = vld [vmem:[%s1 + $0x428] sm:$0xf]
      %v631 = vld [vmem:[%s1 + $0x42c] sm:$0xf]
      %v632 = vld [vmem:[%s1 + $0x430] sm:$0xf]
      %v633 = vld [vmem:[%s1 + $0x434] sm:$0xf]
      %v634 = vld [vmem:[%s1 + $0x438] sm:$0xf]
      %v635 = vld [vmem:[%s1 + $0x43c] sm:$0xf]
      %v636 = vld [vmem:[%s1 + $0x440] sm:$0xf]
      %v637 = vld [vmem:[%s1 + $0x444] sm:$0xf]
      %v638 = vld [vmem:[%s1 + $0x448] sm:$0xf]
      %v639 = vld [vmem:[%s1 + $0x44c] sm:$0xf]
      %v640 = vld [vmem:[%s1 + $0x450] sm:$0xf]
      %v641 = vld [vmem:[%s1 + $0x454] sm:$0xf]
      %v642 = vld [vmem:[%s1 + $0x458] sm:$0xf]
      %v643 = vld [vmem:[%s1 + $0x45c] sm:$0xf]
      %v644 = vld [vmem:[%s1 + $0x460] sm:$0xf]
      %v645 = vld [vmem:[%s1 + $0x464] sm:$0xf]
      %v646 = vld [vmem:[%s1 + $0x468] sm:$0xf]
      %v647 = vld [vmem:[%s1 + $0x46c] sm:$0xf]
      %v648 = vld [vmem:[%s1 + $0x470] sm:$0xf]
      %v649 = vld [vmem:[%s1 + $0x474] sm:$0xf]
      %v650 = vld [vmem:[%s1 + $0x478] sm:$0xf]
      %v651 = vld [vmem:[%s1 + $0x47c] sm:$0xf]
      %v940 = vunpack.c.l.b16 %v364
      %v941 = vunpack.c.l.b16 %v365
      %v942 = vunpack.c.l.b16 %v366
      %v943 = vunpack.c.l.b16 %v367
      %v944 = vunpack.c.l.b16 %v368
      %v945 = vunpack.c.l.b16 %v369
      %v946 = vunpack.c.l.b16 %v370
      %v947 = vunpack.c.l.b16 %v371
      %v948 = vunpack.c.l.b16 %v372
      %v949 = vunpack.c.l.b16 %v373
      %v950 = vunpack.c.l.b16 %v374
      %v951 = vunpack.c.l.b16 %v375
      %v952 = vunpack.c.l.b16 %v376
      %v953 = vunpack.c.l.b16 %v377
      %v954 = vunpack.c.l.b16 %v378
      %v955 = vunpack.c.l.b16 %v379
      %v956 = vunpack.c.l.b16 %v380
      %v957 = vunpack.c.l.b16 %v381
      %v958 = vunpack.c.l.b16 %v382
      %v959 = vunpack.c.l.b16 %v383
      %v960 = vunpack.c.l.b16 %v384
      %v961 = vunpack.c.l.b16 %v385
      %v962 = vunpack.c.l.b16 %v386
      %v963 = vunpack.c.l.b16 %v387
      %v964 = vunpack.c.l.b16 %v388
      %v965 = vunpack.c.l.b16 %v389
      %v966 = vunpack.c.l.b16 %v390
      %v967 = vunpack.c.l.b16 %v391
      %v968 = vunpack.c.l.b16 %v392
      %v969 = vunpack.c.l.b16 %v393
      %v970 = vunpack.c.l.b16 %v394
      %v971 = vunpack.c.l.b16 %v395
      %v972 = vunpack.c.l.b16 %v396
      %v973 = vunpack.c.l.b16 %v397
      %v974 = vunpack.c.l.b16 %v398
      %v975 = vunpack.c.l.b16 %v399
      %v976 = vunpack.c.l.b16 %v400
      %v977 = vunpack.c.l.b16 %v401
      %v978 = vunpack.c.l.b16 %v402
      %v979 = vunpack.c.l.b16 %v403
      %v980 = vunpack.c.l.b16 %v404
      %v981 = vunpack.c.l.b16 %v405
      %v982 = vunpack.c.l.b16 %v406
      %v983 = vunpack.c.l.b16 %v407
      %v984 = vunpack.c.l.b16 %v408
      %v985 = vunpack.c.l.b16 %v409
      %v986 = vunpack.c.l.b16 %v410
      %v987 = vunpack.c.l.b16 %v411
      %v988 = vunpack.c.l.b16 %v412
      %v989 = vunpack.c.l.b16 %v413
      %v990 = vunpack.c.l.b16 %v414
      %v991 = vunpack.c.l.b16 %v415
      %v992 = vunpack.c.l.b16 %v416
      %v993 = vunpack.c.l.b16 %v417
      %v994 = vunpack.c.l.b16 %v418
      %v995 = vunpack.c.l.b16 %v419
      %v996 = vunpack.c.l.b16 %v420
      %v997 = vunpack.c.l.b16 %v421
      %v998 = vunpack.c.l.b16 %v422
      %v999 = vunpack.c.l.b16 %v423
      %v1000 = vunpack.c.l.b16 %v424
      %v1001 = vunpack.c.l.b16 %v425
      %v1002 = vunpack.c.l.b16 %v426
      %v1003 = vunpack.c.l.b16 %v427
      %v1004 = vunpack.c.l.b16 %v428
      %v1005 = vunpack.c.l.b16 %v429
      %v1006 = vunpack.c.l.b16 %v430
      %v1007 = vunpack.c.l.b16 %v431
      %v1008 = vunpack.c.l.b16 %v432
      %v1009 = vunpack.c.l.b16 %v433
      %v1010 = vunpack.c.l.b16 %v434
      %v1011 = vunpack.c.l.b16 %v435
      %v1012 = vunpack.c.l.b16 %v436
      %v1013 = vunpack.c.l.b16 %v437
      %v1014 = vunpack.c.l.b16 %v438
      %v1015 = vunpack.c.l.b16 %v439
      %v1016 = vunpack.c.l.b16 %v440
      %v1017 = vunpack.c.l.b16 %v441
      %v1018 = vunpack.c.l.b16 %v442
      %v1019 = vunpack.c.l.b16 %v443
      %v1020 = vunpack.c.l.b16 %v444
      %v1021 = vunpack.c.l.b16 %v445
      %v1022 = vunpack.c.l.b16 %v446
      %v1023 = vunpack.c.l.b16 %v447
      %v1024 = vunpack.c.l.b16 %v448
      %v1025 = vunpack.c.l.b16 %v449
      %v1026 = vunpack.c.l.b16 %v450
      %v1027 = vunpack.c.l.b16 %v451
      %v1028 = vunpack.c.l.b16 %v452
      %v1029 = vunpack.c.l.b16 %v453
      %v1030 = vunpack.c.l.b16 %v454
      %v1031 = vunpack.c.l.b16 %v455
      %v1032 = vunpack.c.l.b16 %v456
      %v1033 = vunpack.c.l.b16 %v457
      %v1034 = vunpack.c.l.b16 %v458
      %v1035 = vunpack.c.l.b16 %v459
      %v1036 = vunpack.c.l.b16 %v460
      %v1037 = vunpack.c.l.b16 %v461
      %v1038 = vunpack.c.l.b16 %v462
      %v1039 = vunpack.c.l.b16 %v463
      %v1040 = vunpack.c.l.b16 %v464
      %v1041 = vunpack.c.l.b16 %v465
      %v1042 = vunpack.c.l.b16 %v466
      %v1043 = vunpack.c.l.b16 %v467
      %v1044 = vunpack.c.l.b16 %v468
      %v1045 = vunpack.c.l.b16 %v469
      %v1046 = vunpack.c.l.b16 %v470
      %v1047 = vunpack.c.l.b16 %v471
      %v1048 = vunpack.c.l.b16 %v472
      %v1049 = vunpack.c.l.b16 %v473
      %v1050 = vunpack.c.l.b16 %v474
      %v1051 = vunpack.c.l.b16 %v475
      %v1052 = vunpack.c.l.b16 %v476
      %v1053 = vunpack.c.l.b16 %v477
      %v1054 = vunpack.c.l.b16 %v478
      %v1055 = vunpack.c.l.b16 %v479
      %v1056 = vunpack.c.l.b16 %v480
      %v1057 = vunpack.c.l.b16 %v481
      %v1058 = vunpack.c.l.b16 %v482
      %v1059 = vunpack.c.l.b16 %v483
      %v1060 = vunpack.c.l.b16 %v484
      %v1061 = vunpack.c.l.b16 %v485
      %v1062 = vunpack.c.l.b16 %v486
      %v1063 = vunpack.c.l.b16 %v487
      %v1064 = vunpack.c.l.b16 %v488
      %v1065 = vunpack.c.l.b16 %v489
      %v1066 = vunpack.c.l.b16 %v490
      %v1067 = vunpack.c.l.b16 %v491
      %v1068 = vunpack.c.l.b16 %v492
      %v1069 = vunpack.c.l.b16 %v493
      %v1070 = vunpack.c.l.b16 %v494
      %v1071 = vunpack.c.l.b16 %v495
      %v1072 = vunpack.c.l.b16 %v496
      %v1073 = vunpack.c.l.b16 %v497
      %v1074 = vunpack.c.l.b16 %v498
      %v1075 = vunpack.c.l.b16 %v499
      %v1076 = vunpack.c.l.b16 %v500
      %v1077 = vunpack.c.l.b16 %v501
      %v1078 = vunpack.c.l.b16 %v502
      %v1079 = vunpack.c.l.b16 %v503
      %v1080 = vunpack.c.l.b16 %v504
      %v1081 = vunpack.c.l.b16 %v505
      %v1082 = vunpack.c.l.b16 %v506
      %v1083 = vunpack.c.l.b16 %v507
      %v1084 = vunpack.c.l.b16 %v508
      %v1085 = vunpack.c.l.b16 %v509
      %v1086 = vunpack.c.l.b16 %v510
      %v1087 = vunpack.c.l.b16 %v511
      %v1088 = vunpack.c.l.b16 %v512
      %v1089 = vunpack.c.l.b16 %v513
      %v1090 = vunpack.c.l.b16 %v514
      %v1091 = vunpack.c.l.b16 %v515
      %v1092 = vunpack.c.l.b16 %v516
      %v1093 = vunpack.c.l.b16 %v517
      %v1094 = vunpack.c.l.b16 %v518
      %v1095 = vunpack.c.l.b16 %v519
      %v1096 = vunpack.c.l.b16 %v520
      %v1097 = vunpack.c.l.b16 %v521
      %v1098 = vunpack.c.l.b16 %v522
      %v1099 = vunpack.c.l.b16 %v523
      %v1100 = vunpack.c.l.b16 %v524
      %v1101 = vunpack.c.l.b16 %v525
      %v1102 = vunpack.c.l.b16 %v526
      %v1103 = vunpack.c.l.b16 %v527
      %v1104 = vunpack.c.l.b16 %v528
      %v1105 = vunpack.c.l.b16 %v529
      %v1106 = vunpack.c.l.b16 %v530
      %v1107 = vunpack.c.l.b16 %v531
      %v1108 = vunpack.c.l.b16 %v532
      %v1109 = vunpack.c.l.b16 %v533
      %v1110 = vunpack.c.l.b16 %v534
      %v1111 = vunpack.c.l.b16 %v535
      %v1112 = vunpack.c.l.b16 %v536
      %v1113 = vunpack.c.l.b16 %v537
      %v1114 = vunpack.c.l.b16 %v538
      %v1115 = vunpack.c.l.b16 %v539
      %v1116 = vunpack.c.l.b16 %v540
      %v1117 = vunpack.c.l.b16 %v541
      %v1118 = vunpack.c.l.b16 %v542
      %v1119 = vunpack.c.l.b16 %v543
      %v1120 = vunpack.c.l.b16 %v544
      %v1121 = vunpack.c.l.b16 %v545
      %v1122 = vunpack.c.l.b16 %v546
      %v1123 = vunpack.c.l.b16 %v547
      %v1124 = vunpack.c.l.b16 %v548
      %v1125 = vunpack.c.l.b16 %v549
      %v1126 = vunpack.c.l.b16 %v550
      %v1127 = vunpack.c.l.b16 %v551
      %v1128 = vunpack.c.l.b16 %v552
      %v1129 = vunpack.c.l.b16 %v553
      %v1130 = vunpack.c.l.b16 %v554
      %v1131 = vunpack.c.l.b16 %v555
      %v1132 = vunpack.c.l.b16 %v556
      %v1133 = vunpack.c.l.b16 %v557
      %v1134 = vunpack.c.l.b16 %v558
      %v1135 = vunpack.c.l.b16 %v559
      %v1136 = vunpack.c.l.b16 %v560
      %v1137 = vunpack.c.l.b16 %v561
      %v1138 = vunpack.c.l.b16 %v562
      %v1139 = vunpack.c.l.b16 %v563
      %v1140 = vunpack.c.l.b16 %v564
      %v1141 = vunpack.c.l.b16 %v565
      %v1142 = vunpack.c.l.b16 %v566
      %v1143 = vunpack.c.l.b16 %v567
      %v1144 = vunpack.c.l.b16 %v568
      %v1145 = vunpack.c.l.b16 %v569
      %v1146 = vunpack.c.l.b16 %v570
      %v1147 = vunpack.c.l.b16 %v571
      %v1148 = vunpack.c.l.b16 %v572
      %v1149 = vunpack.c.l.b16 %v573
      %v1150 = vunpack.c.l.b16 %v574
      %v1151 = vunpack.c.l.b16 %v575
      %v1152 = vunpack.c.l.b16 %v576
      %v1153 = vunpack.c.l.b16 %v577
      %v1154 = vunpack.c.l.b16 %v578
      %v1155 = vunpack.c.l.b16 %v579
      %v1156 = vunpack.c.l.b16 %v580
      %v1157 = vunpack.c.l.b16 %v581
      %v1158 = vunpack.c.l.b16 %v582
      %v1159 = vunpack.c.l.b16 %v583
      %v1160 = vunpack.c.l.b16 %v584
      %v1161 = vunpack.c.l.b16 %v585
      %v1162 = vunpack.c.l.b16 %v586
      %v1163 = vunpack.c.l.b16 %v587
      %v1164 = vunpack.c.l.b16 %v588
      %v1165 = vunpack.c.l.b16 %v589
      %v1166 = vunpack.c.l.b16 %v590
      %v1167 = vunpack.c.l.b16 %v591
      %v1168 = vunpack.c.l.b16 %v592
      %v1169 = vunpack.c.l.b16 %v593
      %v1170 = vunpack.c.l.b16 %v594
      %v1171 = vunpack.c.l.b16 %v595
      %v1172 = vunpack.c.l.b16 %v596
      %v1173 = vunpack.c.l.b16 %v597
      %v1174 = vunpack.c.l.b16 %v598
      %v1175 = vunpack.c.l.b16 %v599
      %v1176 = vunpack.c.l.b16 %v600
      %v1177 = vunpack.c.l.b16 %v601
      %v1178 = vunpack.c.l.b16 %v602
      %v1179 = vunpack.c.l.b16 %v603
      %v1180 = vunpack.c.l.b16 %v604
      %v1181 = vunpack.c.l.b16 %v605
      %v1182 = vunpack.c.l.b16 %v606
      %v1183 = vunpack.c.l.b16 %v607
      %v1184 = vunpack.c.l.b16 %v608
      %v1185 = vunpack.c.l.b16 %v609
      %v1186 = vunpack.c.l.b16 %v610
      %v1187 = vunpack.c.l.b16 %v611
      %v1188 = vunpack.c.l.b16 %v612
      %v1189 = vunpack.c.l.b16 %v613
      %v1190 = vunpack.c.l.b16 %v614
      %v1191 = vunpack.c.l.b16 %v615
      %v1192 = vunpack.c.l.b16 %v616
      %v1193 = vunpack.c.l.b16 %v617
      %v1194 = vunpack.c.l.b16 %v618
      %v1195 = vunpack.c.l.b16 %v619
      %v1196 = vunpack.c.l.b16 %v620
      %v1197 = vunpack.c.l.b16 %v621
      %v1198 = vunpack.c.l.b16 %v622
      %v1199 = vunpack.c.l.b16 %v623
      %v1200 = vunpack.c.l.b16 %v624
      %v1201 = vunpack.c.l.b16 %v625
      %v1202 = vunpack.c.l.b16 %v626
      %v1203 = vunpack.c.l.b16 %v627
      %v1204 = vunpack.c.l.b16 %v628
      %v1205 = vunpack.c.l.b16 %v629
      %v1206 = vunpack.c.l.b16 %v630
      %v1207 = vunpack.c.l.b16 %v631
      %v1208 = vunpack.c.l.b16 %v632
      %v1209 = vunpack.c.l.b16 %v633
      %v1210 = vunpack.c.l.b16 %v634
      %v1211 = vunpack.c.l.b16 %v635
      %v1212 = vunpack.c.l.b16 %v636
      %v1213 = vunpack.c.l.b16 %v637
      %v1214 = vunpack.c.l.b16 %v638
      %v1215 = vunpack.c.l.b16 %v639
      %v1216 = vunpack.c.l.b16 %v640
      %v1217 = vunpack.c.l.b16 %v641
      %v1218 = vunpack.c.l.b16 %v642
      %v1219 = vunpack.c.l.b16 %v643
      %v1220 = vunpack.c.l.b16 %v644
      %v1221 = vunpack.c.l.b16 %v645
      %v1222 = vunpack.c.l.b16 %v646
      %v1223 = vunpack.c.l.b16 %v647
      %v1224 = vunpack.c.l.b16 %v648
      %v1225 = vunpack.c.l.b16 %v649
      %v1226 = vunpack.c.l.b16 %v650
      %v1227 = vunpack.c.l.b16 %v651
      %v1228 = vpack.c.b16 %v941, %v940
      %v1229 = vpack.c.b16 %v943, %v942
      %v1230 = vpack.c.b16 %v945, %v944
      %v1231 = vpack.c.b16 %v947, %v946
      %v1232 = vpack.c.b16 %v949, %v948
      %v1233 = vpack.c.b16 %v951, %v950
      %v1234 = vpack.c.b16 %v953, %v952
      %v1235 = vpack.c.b16 %v955, %v954
      %v1236 = vpack.c.b16 %v957, %v956
      %v1237 = vpack.c.b16 %v959, %v958
      %v1238 = vpack.c.b16 %v961, %v960
      %v1239 = vpack.c.b16 %v963, %v962
      %v1240 = vpack.c.b16 %v965, %v964
      %v1241 = vpack.c.b16 %v967, %v966
      %v1242 = vpack.c.b16 %v969, %v968
      %v1243 = vpack.c.b16 %v971, %v970
      %v1244 = vpack.c.b16 %v973, %v972
      %v1245 = vpack.c.b16 %v975, %v974
      %v1246 = vpack.c.b16 %v977, %v976
      %v1247 = vpack.c.b16 %v979, %v978
      %v1248 = vpack.c.b16 %v981, %v980
      %v1249 = vpack.c.b16 %v983, %v982
      %v1250 = vpack.c.b16 %v985, %v984
      %v1251 = vpack.c.b16 %v987, %v986
      %v1252 = vpack.c.b16 %v989, %v988
      %v1253 = vpack.c.b16 %v991, %v990
      %v1254 = vpack.c.b16 %v993, %v992
      %v1255 = vpack.c.b16 %v995, %v994
      %v1256 = vpack.c.b16 %v997, %v996
      %v1257 = vpack.c.b16 %v999, %v998
      %v1258 = vpack.c.b16 %v1001, %v1000
      %v1259 = vpack.c.b16 %v1003, %v1002
      %v1260 = vpack.c.b16 %v1005, %v1004
      %v1261 = vpack.c.b16 %v1007, %v1006
      %v1262 = vpack.c.b16 %v1009, %v1008
      %v1263 = vpack.c.b16 %v1011, %v1010
      %v1264 = vpack.c.b16 %v1013, %v1012
      %v1265 = vpack.c.b16 %v1015, %v1014
      %v1266 = vpack.c.b16 %v1017, %v1016
      %v1267 = vpack.c.b16 %v1019, %v1018
      %v1268 = vpack.c.b16 %v1021, %v1020
      %v1269 = vpack.c.b16 %v1023, %v1022
      %v1270 = vpack.c.b16 %v1025, %v1024
      %v1271 = vpack.c.b16 %v1027, %v1026
      %v1272 = vpack.c.b16 %v1029, %v1028
      %v1273 = vpack.c.b16 %v1031, %v1030
      %v1274 = vpack.c.b16 %v1033, %v1032
      %v1275 = vpack.c.b16 %v1035, %v1034
      %v1276 = vpack.c.b16 %v1037, %v1036
      %v1277 = vpack.c.b16 %v1039, %v1038
      %v1278 = vpack.c.b16 %v1041, %v1040
      %v1279 = vpack.c.b16 %v1043, %v1042
      %v1280 = vpack.c.b16 %v1045, %v1044
      %v1281 = vpack.c.b16 %v1047, %v1046
      %v1282 = vpack.c.b16 %v1049, %v1048
      %v1283 = vpack.c.b16 %v1051, %v1050
      %v1284 = vpack.c.b16 %v1053, %v1052
      %v1285 = vpack.c.b16 %v1055, %v1054
      %v1286 = vpack.c.b16 %v1057, %v1056
      %v1287 = vpack.c.b16 %v1059, %v1058
      %v1288 = vpack.c.b16 %v1061, %v1060
      %v1289 = vpack.c.b16 %v1063, %v1062
      %v1290 = vpack.c.b16 %v1065, %v1064
      %v1291 = vpack.c.b16 %v1067, %v1066
      %v1292 = vpack.c.b16 %v1069, %v1068
      %v1293 = vpack.c.b16 %v1071, %v1070
      %v1294 = vpack.c.b16 %v1073, %v1072
      %v1295 = vpack.c.b16 %v1075, %v1074
      %v1296 = vpack.c.b16 %v1077, %v1076
      %v1297 = vpack.c.b16 %v1079, %v1078
      %v1298 = vpack.c.b16 %v1081, %v1080
      %v1299 = vpack.c.b16 %v1083, %v1082
      %v1300 = vpack.c.b16 %v1085, %v1084
      %v1301 = vpack.c.b16 %v1087, %v1086
      %v1302 = vpack.c.b16 %v1089, %v1088
      %v1303 = vpack.c.b16 %v1091, %v1090
      %v1304 = vpack.c.b16 %v1093, %v1092
      %v1305 = vpack.c.b16 %v1095, %v1094
      %v1306 = vpack.c.b16 %v1097, %v1096
      %v1307 = vpack.c.b16 %v1099, %v1098
      %v1308 = vpack.c.b16 %v1101, %v1100
      %v1309 = vpack.c.b16 %v1103, %v1102
      %v1310 = vpack.c.b16 %v1105, %v1104
      %v1311 = vpack.c.b16 %v1107, %v1106
      %v1312 = vpack.c.b16 %v1109, %v1108
      %v1313 = vpack.c.b16 %v1111, %v1110
      %v1314 = vpack.c.b16 %v1113, %v1112
      %v1315 = vpack.c.b16 %v1115, %v1114
      %v1316 = vpack.c.b16 %v1117, %v1116
      %v1317 = vpack.c.b16 %v1119, %v1118
      %v1318 = vpack.c.b16 %v1121, %v1120
      %v1319 = vpack.c.b16 %v1123, %v1122
      %v1320 = vpack.c.b16 %v1125, %v1124
      %v1321 = vpack.c.b16 %v1127, %v1126
      %v1322 = vpack.c.b16 %v1129, %v1128
      %v1323 = vpack.c.b16 %v1131, %v1130
      %v1324 = vpack.c.b16 %v1133, %v1132
      %v1325 = vpack.c.b16 %v1135, %v1134
      %v1326 = vpack.c.b16 %v1137, %v1136
      %v1327 = vpack.c.b16 %v1139, %v1138
      %v1328 = vpack.c.b16 %v1141, %v1140
      %v1329 = vpack.c.b16 %v1143, %v1142
      %v1330 = vpack.c.b16 %v1145, %v1144
      %v1331 = vpack.c.b16 %v1147, %v1146
      %v1332 = vpack.c.b16 %v1149, %v1148
      %v1333 = vpack.c.b16 %v1151, %v1150
      %v1334 = vpack.c.b16 %v1153, %v1152
      %v1335 = vpack.c.b16 %v1155, %v1154
      %v1336 = vpack.c.b16 %v1157, %v1156
      %v1337 = vpack.c.b16 %v1159, %v1158
      %v1338 = vpack.c.b16 %v1161, %v1160
      %v1339 = vpack.c.b16 %v1163, %v1162
      %v1340 = vpack.c.b16 %v1165, %v1164
      %v1341 = vpack.c.b16 %v1167, %v1166
      %v1342 = vpack.c.b16 %v1169, %v1168
      %v1343 = vpack.c.b16 %v1171, %v1170
      %v1344 = vpack.c.b16 %v1173, %v1172
      %v1345 = vpack.c.b16 %v1175, %v1174
      %v1346 = vpack.c.b16 %v1177, %v1176
      %v1347 = vpack.c.b16 %v1179, %v1178
      %v1348 = vpack.c.b16 %v1181, %v1180
      %v1349 = vpack.c.b16 %v1183, %v1182
      %v1350 = vpack.c.b16 %v1185, %v1184
      %v1351 = vpack.c.b16 %v1187, %v1186
      %v1352 = vpack.c.b16 %v1189, %v1188
      %v1353 = vpack.c.b16 %v1191, %v1190
      %v1354 = vpack.c.b16 %v1193, %v1192
      %v1355 = vpack.c.b16 %v1195, %v1194
      %v1356 = vpack.c.b16 %v1197, %v1196
      %v1357 = vpack.c.b16 %v1199, %v1198
      %v1358 = vpack.c.b16 %v1201, %v1200
      %v1359 = vpack.c.b16 %v1203, %v1202
      %v1360 = vpack.c.b16 %v1205, %v1204
      %v1361 = vpack.c.b16 %v1207, %v1206
      %v1362 = vpack.c.b16 %v1209, %v1208
      %v1363 = vpack.c.b16 %v1211, %v1210
      %v1364 = vpack.c.b16 %v1213, %v1212
      %v1365 = vpack.c.b16 %v1215, %v1214
      %v1366 = vpack.c.b16 %v1217, %v1216
      %v1367 = vpack.c.b16 %v1219, %v1218
      %v1368 = vpack.c.b16 %v1221, %v1220
      %v1369 = vpack.c.b16 %v1223, %v1222
      %v1370 = vpack.c.b16 %v1225, %v1224
      %v1371 = vpack.c.b16 %v1227, %v1226
      %1516 = vmatprep.subr.bf16.mxu0 0
      %1517 = vmatpush1.bf16.msra.mxu0 %v1235
      %1518 = vmatprep.subr.bf16.mxu0 0
      %1519 = vmatpush1.bf16.msra.mxu0 %v1234
      %1520 = vmatprep.subr.bf16.mxu0 0
      %1521 = vmatpush1.bf16.msra.mxu0 %v1233
      %1522 = vmatprep.subr.bf16.mxu0 0
      %1523 = vmatpush1.bf16.msra.mxu0 %v1232
      %1524 = vmatprep.subr.bf16.mxu0 0
      %1525 = vmatpush1.bf16.msra.mxu0 %v1231
      %1526 = vmatprep.subr.bf16.mxu0 0
      %1527 = vmatpush1.bf16.msra.mxu0 %v1230
      %1528 = vmatprep.subr.bf16.mxu0 0
      %1529 = vmatpush1.bf16.msra.mxu0 %v1229
      %1530 = vmatprep.subr.bf16.mxu0 0
      %1531 = vmatpush1.bf16.msra.mxu0 %v1228
      %1532 = vmatprep.subr.bf16.mxu0 0
      %1533 = vmatpush2.bf16.msra.mxu0 %v1243
      %1534 = vmatprep.subr.bf16.mxu0 0
      %1535 = vmatpush2.bf16.msra.mxu0 %v1242
      %1536 = vmatprep.subr.bf16.mxu0 0
      %1537 = vmatpush2.bf16.msra.mxu0 %v1241
      %1538 = vmatprep.subr.bf16.mxu0 0
      %1539 = vmatpush2.bf16.msra.mxu0 %v1240
      %1540 = vmatprep.subr.bf16.mxu0 0
      %1541 = vmatpush2.bf16.msra.mxu0 %v1239
      %1542 = vmatprep.subr.bf16.mxu0 0
      %1543 = vmatpush2.bf16.msra.mxu0 %v1238
      %1544 = vmatprep.subr.bf16.mxu0 0
      %1545 = vmatpush2.bf16.msra.mxu0 %v1237
      %1546 = vmatprep.subr.bf16.mxu0 0
      %1547 = vmatpush2.bf16.msra.mxu0 %v1236
      %1548 = vmatprep.mubr.bf16.mxu0 %v347
      %1549 = vmatmul.mubr.bf16.gmra.mxu0 %v346
      %v1550 = vpop.f32.mrf.mxu0
      %v1551 = vadd.f32 0.0, %v1550
      %v1552 = vpop.f32.mrf.mxu0
      %v1553 = vpop.f32.mrf.mxu0
      %v1554 = vpop.f32.mrf.mxu0
      %1555 = vdwg.mxu0
      %1556 = vmatprep.subr.bf16.mxu0 0
      %1557 = vmatpush1.bf16.msra.mxu0 %v1251
      %1558 = vmatprep.subr.bf16.mxu0 0
      %1559 = vmatpush1.bf16.msra.mxu0 %v1250
      %1560 = vmatprep.subr.bf16.mxu0 0
      %1561 = vmatpush1.bf16.msra.mxu0 %v1249
      %1562 = vmatprep.subr.bf16.mxu0 0
      %1563 = vmatpush1.bf16.msra.mxu0 %v1248
      %1564 = vmatprep.subr.bf16.mxu0 0
      %1565 = vmatpush1.bf16.msra.mxu0 %v1247
      %1566 = vmatprep.subr.bf16.mxu0 0
      %1567 = vmatpush1.bf16.msra.mxu0 %v1246
      %1568 = vmatprep.subr.bf16.mxu0 0
      %1569 = vmatpush1.bf16.msra.mxu0 %v1245
      %1570 = vmatprep.subr.bf16.mxu0 0
      %1571 = vmatpush1.bf16.msra.mxu0 %v1244
      %1572 = vmatprep.subr.bf16.mxu0 0
      %1573 = vmatpush2.bf16.msra.mxu0 %v1259
      %1574 = vmatprep.subr.bf16.mxu0 0
      %1575 = vmatpush2.bf16.msra.mxu0 %v1258
      %1576 = vmatprep.subr.bf16.mxu0 0
      %1577 = vmatpush2.bf16.msra.mxu0 %v1257
      %1578 = vmatprep.subr.bf16.mxu0 0
      %1579 = vmatpush2.bf16.msra.mxu0 %v1256
      %1580 = vmatprep.subr.bf16.mxu0 0
      %1581 = vmatpush2.bf16.msra.mxu0 %v1255
      %1582 = vmatprep.subr.bf16.mxu0 0
      %1583 = vmatpush2.bf16.msra.mxu0 %v1254
      %1584 = vmatprep.subr.bf16.mxu0 0
      %1585 = vmatpush2.bf16.msra.mxu0 %v1253
      %1586 = vmatprep.subr.bf16.mxu0 0
      %1587 = vmatpush2.bf16.msra.mxu0 %v1252
      %1588 = vmatprep.mubr.bf16.mxu0 %v349
      %1589 = vmatmul.mubr.bf16.gmra.mxu0 %v348
      %v1590 = vpop.f32.mrf.mxu0
      %v1591 = vadd.f32 %v1551, %v1590
      %v1592 = vpop.f32.mrf.mxu0
      %v1593 = vpop.f32.mrf.mxu0
      %v1594 = vpop.f32.mrf.mxu0
      %1595 = vdwg.mxu0
      %1596 = vmatprep.subr.bf16.mxu0 0
      %1597 = vmatpush1.bf16.msra.mxu0 %v1267
      %1598 = vmatprep.subr.bf16.mxu0 0
      %1599 = vmatpush1.bf16.msra.mxu0 %v1266
      %1600 = vmatprep.subr.bf16.mxu0 0
      %1601 = vmatpush1.bf16.msra.mxu0 %v1265
      %1602 = vmatprep.subr.bf16.mxu0 0
      %1603 = vmatpush1.bf16.msra.mxu0 %v1264
      %1604 = vmatprep.subr.bf16.mxu0 0
      %1605 = vmatpush1.bf16.msra.mxu0 %v1263
      %1606 = vmatprep.subr.bf16.mxu0 0
      %1607 = vmatpush1.bf16.msra.mxu0 %v1262
      %1608 = vmatprep.subr.bf16.mxu0 0
      %1609 = vmatpush1.bf16.msra.mxu0 %v1261
      %1610 = vmatprep.subr.bf16.mxu0 0
      %1611 = vmatpush1.bf16.msra.mxu0 %v1260
      %1612 = vmatprep.subr.bf16.mxu0 0
      %1613 = vmatpush2.bf16.msra.mxu0 %v1275
      %1614 = vmatprep.subr.bf16.mxu0 0
      %1615 = vmatpush2.bf16.msra.mxu0 %v1274
      %1616 = vmatprep.subr.bf16.mxu0 0
      %1617 = vmatpush2.bf16.msra.mxu0 %v1273
      %1618 = vmatprep.subr.bf16.mxu0 0
      %1619 = vmatpush2.bf16.msra.mxu0 %v1272
      %1620 = vmatprep.subr.bf16.mxu0 0
      %1621 = vmatpush2.bf16.msra.mxu0 %v1271
      %1622 = vmatprep.subr.bf16.mxu0 0
      %1623 = vmatpush2.bf16.msra.mxu0 %v1270
      %1624 = vmatprep.subr.bf16.mxu0 0
      %1625 = vmatpush2.bf16.msra.mxu0 %v1269
      %1626 = vmatprep.subr.bf16.mxu0 0
      %1627 = vmatpush2.bf16.msra.mxu0 %v1268
      %1628 = vmatprep.mubr.bf16.mxu0 %v351
      %1629 = vmatmul.mubr.bf16.gmra.mxu0 %v350
      %v1630 = vpop.f32.mrf.mxu0
      %v1631 = vadd.f32 %v1591, %v1630
      %v1632 = vpop.f32.mrf.mxu0
      %v1633 = vpop.f32.mrf.mxu0
      %v1634 = vpop.f32.mrf.mxu0
      %1635 = vdwg.mxu0
      %1636 = vmatprep.subr.bf16.mxu0 0
      %1637 = vmatpush1.bf16.msra.mxu0 %v1283
      %1638 = vmatprep.subr.bf16.mxu0 0
      %1639 = vmatpush1.bf16.msra.mxu0 %v1282
      %1640 = vmatprep.subr.bf16.mxu0 0
      %1641 = vmatpush1.bf16.msra.mxu0 %v1281
      %1642 = vmatprep.subr.bf16.mxu0 0
      %1643 = vmatpush1.bf16.msra.mxu0 %v1280
      %1644 = vmatprep.subr.bf16.mxu0 0
      %1645 = vmatpush1.bf16.msra.mxu0 %v1279
      %1646 = vmatprep.subr.bf16.mxu0 0
      %1647 = vmatpush1.bf16.msra.mxu0 %v1278
      %1648 = vmatprep.subr.bf16.mxu0 0
      %1649 = vmatpush1.bf16.msra.mxu0 %v1277
      %1650 = vmatprep.subr.bf16.mxu0 0
      %1651 = vmatpush1.bf16.msra.mxu0 %v1276
      %1652 = vmatprep.subr.bf16.mxu0 0
      %1653 = vmatpush2.bf16.msra.mxu0 %v1291
      %1654 = vmatprep.subr.bf16.mxu0 0
      %1655 = vmatpush2.bf16.msra.mxu0 %v1290
      %1656 = vmatprep.subr.bf16.mxu0 0
      %1657 = vmatpush2.bf16.msra.mxu0 %v1289
      %1658 = vmatprep.subr.bf16.mxu0 0
      %1659 = vmatpush2.bf16.msra.mxu0 %v1288
      %1660 = vmatprep.subr.bf16.mxu0 0
      %1661 = vmatpush2.bf16.msra.mxu0 %v1287
      %1662 = vmatprep.subr.bf16.mxu0 0
      %1663 = vmatpush2.bf16.msra.mxu0 %v1286
      %1664 = vmatprep.subr.bf16.mxu0 0
      %1665 = vmatpush2.bf16.msra.mxu0 %v1285
      %1666 = vmatprep.subr.bf16.mxu0 0
      %1667 = vmatpush2.bf16.msra.mxu0 %v1284
      %1668 = vmatprep.mubr.bf16.mxu0 %v353
      %1669 = vmatmul.mubr.bf16.gmra.mxu0 %v352
      %v1670 = vpop.f32.mrf.mxu0
      %v1671 = vadd.f32 %v1631, %v1670
      %v1672 = vpop.f32.mrf.mxu0
      %v1673 = vpop.f32.mrf.mxu0
      %v1674 = vpop.f32.mrf.mxu0
      %1675 = vdwg.mxu0
      %1676 = vmatprep.subr.bf16.mxu0 0
      %1677 = vmatpush1.bf16.msra.mxu0 %v1299
      %1678 = vmatprep.subr.bf16.mxu0 0
      %1679 = vmatpush1.bf16.msra.mxu0 %v1298
      %1680 = vmatprep.subr.bf16.mxu0 0
      %1681 = vmatpush1.bf16.msra.mxu0 %v1297
      %1682 = vmatprep.subr.bf16.mxu0 0
      %1683 = vmatpush1.bf16.msra.mxu0 %v1296
      %1684 = vmatprep.subr.bf16.mxu0 0
      %1685 = vmatpush1.bf16.msra.mxu0 %v1295
      %1686 = vmatprep.subr.bf16.mxu0 0
      %1687 = vmatpush1.bf16.msra.mxu0 %v1294
      %1688 = vmatprep.subr.bf16.mxu0 0
      %1689 = vmatpush1.bf16.msra.mxu0 %v1293
      %1690 = vmatprep.subr.bf16.mxu0 0
      %1691 = vmatpush1.bf16.msra.mxu0 %v1292
      %1692 = vmatprep.subr.bf16.mxu0 0
      %1693 = vmatpush2.bf16.msra.mxu0 %v1307
      %1694 = vmatprep.subr.bf16.mxu0 0
      %1695 = vmatpush2.bf16.msra.mxu0 %v1306
      %1696 = vmatprep.subr.bf16.mxu0 0
      %1697 = vmatpush2.bf16.msra.mxu0 %v1305
      %1698 = vmatprep.subr.bf16.mxu0 0
      %1699 = vmatpush2.bf16.msra.mxu0 %v1304
      %1700 = vmatprep.subr.bf16.mxu0 0
      %1701 = vmatpush2.bf16.msra.mxu0 %v1303
      %1702 = vmatprep.subr.bf16.mxu0 0
      %1703 = vmatpush2.bf16.msra.mxu0 %v1302
      %1704 = vmatprep.subr.bf16.mxu0 0
      %1705 = vmatpush2.bf16.msra.mxu0 %v1301
      %1706 = vmatprep.subr.bf16.mxu0 0
      %1707 = vmatpush2.bf16.msra.mxu0 %v1300
      %1708 = vmatprep.mubr.bf16.mxu0 %v355
      %1709 = vmatmul.mubr.bf16.gmra.mxu0 %v354
      %v1710 = vpop.f32.mrf.mxu0
      %v1711 = vadd.f32 %v1671, %v1710
      %v1712 = vpop.f32.mrf.mxu0
      %v1713 = vpop.f32.mrf.mxu0
      %v1714 = vpop.f32.mrf.mxu0
      %1715 = vdwg.mxu0
      %1716 = vmatprep.subr.bf16.mxu0 0
      %1717 = vmatpush1.bf16.msra.mxu0 %v1315
      %1718 = vmatprep.subr.bf16.mxu0 0
      %1719 = vmatpush1.bf16.msra.mxu0 %v1314
      %1720 = vmatprep.subr.bf16.mxu0 0
      %1721 = vmatpush1.bf16.msra.mxu0 %v1313
      %1722 = vmatprep.subr.bf16.mxu0 0
      %1723 = vmatpush1.bf16.msra.mxu0 %v1312
      %1724 = vmatprep.subr.bf16.mxu0 0
      %1725 = vmatpush1.bf16.msra.mxu0 %v1311
      %1726 = vmatprep.subr.bf16.mxu0 0
      %1727 = vmatpush1.bf16.msra.mxu0 %v1310
      %1728 = vmatprep.subr.bf16.mxu0 0
      %1729 = vmatpush1.bf16.msra.mxu0 %v1309
      %1730 = vmatprep.subr.bf16.mxu0 0
      %1731 = vmatpush1.bf16.msra.mxu0 %v1308
      %1732 = vmatprep.subr.bf16.mxu0 0
      %1733 = vmatpush2.bf16.msra.mxu0 %v1323
      %1734 = vmatprep.subr.bf16.mxu0 0
      %1735 = vmatpush2.bf16.msra.mxu0 %v1322
      %1736 = vmatprep.subr.bf16.mxu0 0
      %1737 = vmatpush2.bf16.msra.mxu0 %v1321
      %1738 = vmatprep.subr.bf16.mxu0 0
      %1739 = vmatpush2.bf16.msra.mxu0 %v1320
      %1740 = vmatprep.subr.bf16.mxu0 0
      %1741 = vmatpush2.bf16.msra.mxu0 %v1319
      %1742 = vmatprep.subr.bf16.mxu0 0
      %1743 = vmatpush2.bf16.msra.mxu0 %v1318
      %1744 = vmatprep.subr.bf16.mxu0 0
      %1745 = vmatpush2.bf16.msra.mxu0 %v1317
      %1746 = vmatprep.subr.bf16.mxu0 0
      %1747 = vmatpush2.bf16.msra.mxu0 %v1316
      %1748 = vmatprep.mubr.bf16.mxu0 %v357
      %1749 = vmatmul.mubr.bf16.gmra.mxu0 %v356
      %v1750 = vpop.f32.mrf.mxu0
      %v1751 = vadd.f32 %v1711, %v1750
      %v1752 = vpop.f32.mrf.mxu0
      %v1753 = vpop.f32.mrf.mxu0
      %v1754 = vpop.f32.mrf.mxu0
      %1755 = vdwg.mxu0
      %1756 = vmatprep.subr.bf16.mxu0 0
      %1757 = vmatpush1.bf16.msra.mxu0 %v1331
      %1758 = vmatprep.subr.bf16.mxu0 0
      %1759 = vmatpush1.bf16.msra.mxu0 %v1330
      %1760 = vmatprep.subr.bf16.mxu0 0
      %1761 = vmatpush1.bf16.msra.mxu0 %v1329
      %1762 = vmatprep.subr.bf16.mxu0 0
      %1763 = vmatpush1.bf16.msra.mxu0 %v1328
      %1764 = vmatprep.subr.bf16.mxu0 0
      %1765 = vmatpush1.bf16.msra.mxu0 %v1327
      %1766 = vmatprep.subr.bf16.mxu0 0
      %1767 = vmatpush1.bf16.msra.mxu0 %v1326
      %1768 = vmatprep.subr.bf16.mxu0 0
      %1769 = vmatpush1.bf16.msra.mxu0 %v1325
      %1770 = vmatprep.subr.bf16.mxu0 0
      %1771 = vmatpush1.bf16.msra.mxu0 %v1324
      %1772 = vmatprep.subr.bf16.mxu0 0
      %1773 = vmatpush2.bf16.msra.mxu0 %v1339
      %1774 = vmatprep.subr.bf16.mxu0 0
      %1775 = vmatpush2.bf16.msra.mxu0 %v1338
      %1776 = vmatprep.subr.bf16.mxu0 0
      %1777 = vmatpush2.bf16.msra.mxu0 %v1337
      %1778 = vmatprep.subr.bf16.mxu0 0
      %1779 = vmatpush2.bf16.msra.mxu0 %v1336
      %1780 = vmatprep.subr.bf16.mxu0 0
      %1781 = vmatpush2.bf16.msra.mxu0 %v1335
      %1782 = vmatprep.subr.bf16.mxu0 0
      %1783 = vmatpush2.bf16.msra.mxu0 %v1334
      %1784 = vmatprep.subr.bf16.mxu0 0
      %1785 = vmatpush2.bf16.msra.mxu0 %v1333
      %1786 = vmatprep.subr.bf16.mxu0 0
      %1787 = vmatpush2.bf16.msra.mxu0 %v1332
      %1788 = vmatprep.mubr.bf16.mxu0 %v359
      %1789 = vmatmul.mubr.bf16.gmra.mxu0 %v358
      %v1790 = vpop.f32.mrf.mxu0
      %v1791 = vadd.f32 %v1751, %v1790
      %v1792 = vpop.f32.mrf.mxu0
      %v1793 = vpop.f32.mrf.mxu0
      %v1794 = vpop.f32.mrf.mxu0
      %1795 = vdwg.mxu0
      %1796 = vmatprep.subr.bf16.mxu0 0
      %1797 = vmatpush1.bf16.msra.mxu0 %v1347
      %1798 = vmatprep.subr.bf16.mxu0 0
      %1799 = vmatpush1.bf16.msra.mxu0 %v1346
      %1800 = vmatprep.subr.bf16.mxu0 0
      %1801 = vmatpush1.bf16.msra.mxu0 %v1345
      %1802 = vmatprep.subr.bf16.mxu0 0
      %1803 = vmatpush1.bf16.msra.mxu0 %v1344
      %1804 = vmatprep.subr.bf16.mxu0 0
      %1805 = vmatpush1.bf16.msra.mxu0 %v1343
      %1806 = vmatprep.subr.bf16.mxu0 0
      %1807 = vmatpush1.bf16.msra.mxu0 %v1342
      %1808 = vmatprep.subr.bf16.mxu0 0
      %1809 = vmatpush1.bf16.msra.mxu0 %v1341
      %1810 = vmatprep.subr.bf16.mxu0 0
      %1811 = vmatpush1.bf16.msra.mxu0 %v1340
      %1812 = vmatprep.subr.bf16.mxu0 0
      %1813 = vmatpush2.bf16.msra.mxu0 %v1355
      %1814 = vmatprep.subr.bf16.mxu0 0
      %1815 = vmatpush2.bf16.msra.mxu0 %v1354
      %1816 = vmatprep.subr.bf16.mxu0 0
      %1817 = vmatpush2.bf16.msra.mxu0 %v1353
      %1818 = vmatprep.subr.bf16.mxu0 0
      %1819 = vmatpush2.bf16.msra.mxu0 %v1352
      %1820 = vmatprep.subr.bf16.mxu0 0
      %1821 = vmatpush2.bf16.msra.mxu0 %v1351
      %1822 = vmatprep.subr.bf16.mxu0 0
      %1823 = vmatpush2.bf16.msra.mxu0 %v1350
      %1824 = vmatprep.subr.bf16.mxu0 0
      %1825 = vmatpush2.bf16.msra.mxu0 %v1349
      %1826 = vmatprep.subr.bf16.mxu0 0
      %1827 = vmatpush2.bf16.msra.mxu0 %v1348
      %1828 = vmatprep.mubr.bf16.mxu0 %v361
      %1829 = vmatmul.mubr.bf16.gmra.mxu0 %v360
      %v1830 = vpop.f32.mrf.mxu0
      %v1831 = vadd.f32 %v1791, %v1830
      %v1832 = vpop.f32.mrf.mxu0
      %v1833 = vpop.f32.mrf.mxu0
      %v1834 = vpop.f32.mrf.mxu0
      %1835 = vdwg.mxu0
      %1836 = vmatprep.subr.bf16.mxu0 0
      %1837 = vmatpush1.bf16.msra.mxu0 %v1363
      %1838 = vmatprep.subr.bf16.mxu0 0
      %1839 = vmatpush1.bf16.msra.mxu0 %v1362
      %1840 = vmatprep.subr.bf16.mxu0 0
      %1841 = vmatpush1.bf16.msra.mxu0 %v1361
      %1842 = vmatprep.subr.bf16.mxu0 0
      %1843 = vmatpush1.bf16.msra.mxu0 %v1360
      %1844 = vmatprep.subr.bf16.mxu0 0
      %1845 = vmatpush1.bf16.msra.mxu0 %v1359
      %1846 = vmatprep.subr.bf16.mxu0 0
      %1847 = vmatpush1.bf16.msra.mxu0 %v1358
      %1848 = vmatprep.subr.bf16.mxu0 0
      %1849 = vmatpush1.bf16.msra.mxu0 %v1357
      %1850 = vmatprep.subr.bf16.mxu0 0
      %1851 = vmatpush1.bf16.msra.mxu0 %v1356
      %1852 = vmatprep.subr.bf16.mxu0 0
      %1853 = vmatpush2.bf16.msra.mxu0 %v1371
      %1854 = vmatprep.subr.bf16.mxu0 0
      %1855 = vmatpush2.bf16.msra.mxu0 %v1370
      %1856 = vmatprep.subr.bf16.mxu0 0
      %1857 = vmatpush2.bf16.msra.mxu0 %v1369
      %1858 = vmatprep.subr.bf16.mxu0 0
      %1859 = vmatpush2.bf16.msra.mxu0 %v1368
      %1860 = vmatprep.subr.bf16.mxu0 0
      %1861 = vmatpush2.bf16.msra.mxu0 %v1367
      %1862 = vmatprep.subr.bf16.mxu0 0
      %1863 = vmatpush2.bf16.msra.mxu0 %v1366
      %1864 = vmatprep.subr.bf16.mxu0 0
      %1865 = vmatpush2.bf16.msra.mxu0 %v1365
      %1866 = vmatprep.subr.bf16.mxu0 0
      %1867 = vmatpush2.bf16.msra.mxu0 %v1364
      %1868 = vmatprep.mubr.bf16.mxu0 %v363
      %1869 = vmatmul.mubr.bf16.gmra.mxu0 %v362
      %v1870 = vpop.f32.mrf.mxu0
      %v1871 = vadd.f32 %v1831, %v1870
      %v1872 = vpop.f32.mrf.mxu0
      %v1873 = vpop.f32.mrf.mxu0
      %v1874 = vpop.f32.mrf.mxu0
      %1875 = vdwg.mxu0
      %v1876 = vmax.f32 %v1871, 0.0
      %v1877 = vsub.f32 0.0, %v1876
      %v1878 = vmul.f32 %v1877, 1.442695
      %v1879 = vpow.pop %v1878
      %v1880 = vadd.f32 %v1879, 1.0
      %v1881 = vrcp.pop %v1880
      %v1882 = vmul.f32 1.0, %v1881
      %v1883 = vmul.f32 %v1876, %v1882
      %v1884 = vsub.f32 %v1876, -2.2
      %v1885 = vmul.f32 %v1884, 2.5
      %v1886 = vfloor.f32 %v1885
      %v1887 = vsub.f32 %v1885, %v1886
      %v1888 = vmul.f32 %v1887, %v1887
      %v1889 = vmul.f32 %v1888, %v1887
      %v1890 = vsub.f32 1.0, %v1887
      %v1891 = vmul.f32 %v1889, 0.16666667
      %v1892 = vmul.f32 %v1889, -3.0
      %v1893 = vmul.f32 %v1888, 3.0
      %v1894 = vadd.f32 %v1892, %v1893
      %v1895 = vmul.f32 %v1887, 3.0
      %v1896 = vadd.f32 %v1894, %v1895
      %v1897 = vadd.f32 %v1896, 1.0
      %v1898 = vmul.f32 %v1897, 0.16666667
      %v1899 = vmul.f32 %v1889, 3.0
      %v1900 = vmul.f32 %v1888, 6.0
      %v1901 = vsub.f32 %v1899, %v1900
      %v1902 = vadd.f32 %v1901, 4.0
      %v1903 = vmul.f32 %v1902, 0.16666667
      %v1904 = vmul.f32 %v1890, %v1890
      %v1905 = vmul.f32 %v1904, %v1890
      %v1906 = vmul.f32 %v1905, 0.16666667
      %vm1907 = vcmp.eq.f32.partialorder %v1886, 0.0
      %vm1908 = vcmp.eq.f32.partialorder %v1886, 1.0
      %vm1909 = vcmp.eq.f32.partialorder %v1886, 2.0
      %vm1910 = vcmp.eq.f32.partialorder %v1886, 3.0
      %vm1911 = vcmp.eq.f32.partialorder %v1886, 4.0
      %vm1912 = vcmp.eq.f32.partialorder %v1886, 5.0
      %vm1913 = vcmp.eq.f32.partialorder %v1886, 6.0
      %vm1914 = vcmp.eq.f32.partialorder %v1886, 7.0
      %vm1915 = vcmp.eq.f32.partialorder %v1886, 8.0
      %vm1916 = vcmp.eq.f32.partialorder %v1886, 9.0
      %vm1917 = vcmp.eq.f32.partialorder %v1886, 10.0
      %v1918 = vsel %vm1910, %v1906, 0.0
      %v1919 = vsel %vm1909, %v1903, %v1918
      %v1920 = vsel %vm1908, %v1898, %v1919
      %v1921 = vsel %vm1907, %v1891, %v1920
      %v1922 = vsel %vm1911, %v1906, 0.0
      %v1923 = vsel %vm1910, %v1903, %v1922
      %v1924 = vsel %vm1909, %v1898, %v1923
      %v1925 = vsel %vm1908, %v1891, %v1924
      %v1926 = vsel %vm1912, %v1906, 0.0
      %v1927 = vsel %vm1911, %v1903, %v1926
      %v1928 = vsel %vm1910, %v1898, %v1927
      %v1929 = vsel %vm1909, %v1891, %v1928
      %v1930 = vsel %vm1913, %v1906, 0.0
      %v1931 = vsel %vm1912, %v1903, %v1930
      %v1932 = vsel %vm1911, %v1898, %v1931
      %v1933 = vsel %vm1910, %v1891, %v1932
      %v1934 = vsel %vm1914, %v1906, 0.0
      %v1935 = vsel %vm1913, %v1903, %v1934
      %v1936 = vsel %vm1912, %v1898, %v1935
      %v1937 = vsel %vm1911, %v1891, %v1936
      %v1938 = vsel %vm1915, %v1906, 0.0
      %v1939 = vsel %vm1914, %v1903, %v1938
      %v1940 = vsel %vm1913, %v1898, %v1939
      %v1941 = vsel %vm1912, %v1891, %v1940
      %v1942 = vsel %vm1916, %v1906, 0.0
      %v1943 = vsel %vm1915, %v1903, %v1942
      %v1944 = vsel %vm1914, %v1898, %v1943
      %v1945 = vsel %vm1913, %v1891, %v1944
      %v1946 = vsel %vm1917, %v1906, 0.0
      %v1947 = vsel %vm1916, %v1903, %v1946
      %v1948 = vsel %vm1915, %v1898, %v1947
      %v1949 = vsel %vm1914, %v1891, %v1948
      %v1950 = vpack.c.bf16 %v1883, %v1883
      %v1951 = vpack.c.bf16 %v1921, %v1921
      %v1952 = vpack.c.bf16 %v1925, %v1925
      %v1953 = vpack.c.bf16 %v1929, %v1929
      %v1954 = vpack.c.bf16 %v1933, %v1933
      %v1955 = vpack.c.bf16 %v1937, %v1937
      %v1956 = vpack.c.bf16 %v1941, %v1941
      %v1957 = vpack.c.bf16 %v1945, %v1945
      %v1958 = vpack.c.bf16 %v1949, %v1949
      %v1959 = vld [vmem:[%s2] sm:$0xf]
      %v1960 = vld [vmem:[%s2 + $0x4] sm:$0xf]
      %v1961 = vld [vmem:[%s2 + $0x8] sm:$0xf]
      %v1962 = vld [vmem:[%s2 + $0xc] sm:$0xf]
      %v1963 = vld [vmem:[%s2 + $0x10] sm:$0xf]
      %v1964 = vld [vmem:[%s2 + $0x14] sm:$0xf]
      %v1965 = vld [vmem:[%s2 + $0x18] sm:$0xf]
      %v1966 = vld [vmem:[%s2 + $0x1c] sm:$0xf]
      %v1967 = vld [vmem:[%s2 + $0x20] sm:$0xf]
      %v1968 = vld [vmem:[%s2 + $0x24] sm:$0xf]
      %v1969 = vld [vmem:[%s2 + $0x28] sm:$0xf]
      %v1970 = vld [vmem:[%s2 + $0x2c] sm:$0xf]
      %v1971 = vld [vmem:[%s2 + $0x30] sm:$0xf]
      %v1972 = vld [vmem:[%s2 + $0x34] sm:$0xf]
      %v1973 = vld [vmem:[%s2 + $0x38] sm:$0xf]
      %v1974 = vld [vmem:[%s2 + $0x3c] sm:$0xf]
      %v1975 = vld [vmem:[%s2 + $0x40] sm:$0xf]
      %v1976 = vld [vmem:[%s2 + $0x44] sm:$0xf]
      %v1977 = vld [vmem:[%s2 + $0x48] sm:$0xf]
      %v1978 = vld [vmem:[%s2 + $0x4c] sm:$0xf]
      %v1979 = vld [vmem:[%s2 + $0x50] sm:$0xf]
      %v1980 = vld [vmem:[%s2 + $0x54] sm:$0xf]
      %v1981 = vld [vmem:[%s2 + $0x58] sm:$0xf]
      %v1982 = vld [vmem:[%s2 + $0x5c] sm:$0xf]
      %v1983 = vld [vmem:[%s2 + $0x60] sm:$0xf]
      %v1984 = vld [vmem:[%s2 + $0x64] sm:$0xf]
      %v1985 = vld [vmem:[%s2 + $0x68] sm:$0xf]
      %v1986 = vld [vmem:[%s2 + $0x6c] sm:$0xf]
      %v1987 = vld [vmem:[%s2 + $0x70] sm:$0xf]
      %v1988 = vld [vmem:[%s2 + $0x74] sm:$0xf]
      %v1989 = vld [vmem:[%s2 + $0x78] sm:$0xf]
      %v1990 = vld [vmem:[%s2 + $0x7c] sm:$0xf]
      %v1991 = vld [vmem:[%s2 + $0x80] sm:$0xf]
      %v1992 = vld [vmem:[%s2 + $0x84] sm:$0xf]
      %v1993 = vld [vmem:[%s2 + $0x88] sm:$0xf]
      %v1994 = vld [vmem:[%s2 + $0x8c] sm:$0xf]
      %v1995 = vld [vmem:[%s2 + $0x90] sm:$0xf]
      %v1996 = vld [vmem:[%s2 + $0x94] sm:$0xf]
      %v1997 = vld [vmem:[%s2 + $0x98] sm:$0xf]
      %v1998 = vld [vmem:[%s2 + $0x9c] sm:$0xf]
      %v1999 = vld [vmem:[%s2 + $0xa0] sm:$0xf]
      %v2000 = vld [vmem:[%s2 + $0xa4] sm:$0xf]
      %v2001 = vld [vmem:[%s2 + $0xa8] sm:$0xf]
      %v2002 = vld [vmem:[%s2 + $0xac] sm:$0xf]
      %v2003 = vld [vmem:[%s2 + $0xb0] sm:$0xf]
      %v2004 = vld [vmem:[%s2 + $0xb4] sm:$0xf]
      %v2005 = vld [vmem:[%s2 + $0xb8] sm:$0xf]
      %v2006 = vld [vmem:[%s2 + $0xbc] sm:$0xf]
      %v2007 = vld [vmem:[%s2 + $0xc0] sm:$0xf]
      %v2008 = vld [vmem:[%s2 + $0xc4] sm:$0xf]
      %v2009 = vld [vmem:[%s2 + $0xc8] sm:$0xf]
      %v2010 = vld [vmem:[%s2 + $0xcc] sm:$0xf]
      %v2011 = vld [vmem:[%s2 + $0xd0] sm:$0xf]
      %v2012 = vld [vmem:[%s2 + $0xd4] sm:$0xf]
      %v2013 = vld [vmem:[%s2 + $0xd8] sm:$0xf]
      %v2014 = vld [vmem:[%s2 + $0xdc] sm:$0xf]
      %v2015 = vld [vmem:[%s2 + $0xe0] sm:$0xf]
      %v2016 = vld [vmem:[%s2 + $0xe4] sm:$0xf]
      %v2017 = vld [vmem:[%s2 + $0xe8] sm:$0xf]
      %v2018 = vld [vmem:[%s2 + $0xec] sm:$0xf]
      %v2019 = vld [vmem:[%s2 + $0xf0] sm:$0xf]
      %v2020 = vld [vmem:[%s2 + $0xf4] sm:$0xf]
      %v2021 = vld [vmem:[%s2 + $0xf8] sm:$0xf]
      %v2022 = vld [vmem:[%s2 + $0xfc] sm:$0xf]
      %v2023 = vld [vmem:[%s2 + $0x100] sm:$0xf]
      %v2024 = vld [vmem:[%s2 + $0x104] sm:$0xf]
      %v2025 = vld [vmem:[%s2 + $0x108] sm:$0xf]
      %v2026 = vld [vmem:[%s2 + $0x10c] sm:$0xf]
      %v2027 = vld [vmem:[%s2 + $0x110] sm:$0xf]
      %v2028 = vld [vmem:[%s2 + $0x114] sm:$0xf]
      %v2029 = vld [vmem:[%s2 + $0x118] sm:$0xf]
      %v2030 = vld [vmem:[%s2 + $0x11c] sm:$0xf]
      %v2031 = vld [vmem:[%s2 + $0x120] sm:$0xf]
      %v2032 = vld [vmem:[%s2 + $0x124] sm:$0xf]
      %v2033 = vld [vmem:[%s2 + $0x128] sm:$0xf]
      %v2034 = vld [vmem:[%s2 + $0x12c] sm:$0xf]
      %v2035 = vld [vmem:[%s2 + $0x130] sm:$0xf]
      %v2036 = vld [vmem:[%s2 + $0x134] sm:$0xf]
      %v2037 = vld [vmem:[%s2 + $0x138] sm:$0xf]
      %v2038 = vld [vmem:[%s2 + $0x13c] sm:$0xf]
      %v2039 = vld [vmem:[%s2 + $0x140] sm:$0xf]
      %v2040 = vld [vmem:[%s2 + $0x144] sm:$0xf]
      %v2041 = vld [vmem:[%s2 + $0x148] sm:$0xf]
      %v2042 = vld [vmem:[%s2 + $0x14c] sm:$0xf]
      %v2043 = vld [vmem:[%s2 + $0x150] sm:$0xf]
      %v2044 = vld [vmem:[%s2 + $0x154] sm:$0xf]
      %v2045 = vld [vmem:[%s2 + $0x158] sm:$0xf]
      %v2046 = vld [vmem:[%s2 + $0x15c] sm:$0xf]
      %v2047 = vld [vmem:[%s2 + $0x160] sm:$0xf]
      %v2048 = vld [vmem:[%s2 + $0x164] sm:$0xf]
      %v2049 = vld [vmem:[%s2 + $0x168] sm:$0xf]
      %v2050 = vld [vmem:[%s2 + $0x16c] sm:$0xf]
      %v2051 = vld [vmem:[%s2 + $0x170] sm:$0xf]
      %v2052 = vld [vmem:[%s2 + $0x174] sm:$0xf]
      %v2053 = vld [vmem:[%s2 + $0x178] sm:$0xf]
      %v2054 = vld [vmem:[%s2 + $0x17c] sm:$0xf]
      %v2055 = vld [vmem:[%s2 + $0x180] sm:$0xf]
      %v2056 = vld [vmem:[%s2 + $0x184] sm:$0xf]
      %v2057 = vld [vmem:[%s2 + $0x188] sm:$0xf]
      %v2058 = vld [vmem:[%s2 + $0x18c] sm:$0xf]
      %v2059 = vld [vmem:[%s2 + $0x190] sm:$0xf]
      %v2060 = vld [vmem:[%s2 + $0x194] sm:$0xf]
      %v2061 = vld [vmem:[%s2 + $0x198] sm:$0xf]
      %v2062 = vld [vmem:[%s2 + $0x19c] sm:$0xf]
      %v2063 = vld [vmem:[%s2 + $0x1a0] sm:$0xf]
      %v2064 = vld [vmem:[%s2 + $0x1a4] sm:$0xf]
      %v2065 = vld [vmem:[%s2 + $0x1a8] sm:$0xf]
      %v2066 = vld [vmem:[%s2 + $0x1ac] sm:$0xf]
      %v2067 = vld [vmem:[%s2 + $0x1b0] sm:$0xf]
      %v2068 = vld [vmem:[%s2 + $0x1b4] sm:$0xf]
      %v2069 = vld [vmem:[%s2 + $0x1b8] sm:$0xf]
      %v2070 = vld [vmem:[%s2 + $0x1bc] sm:$0xf]
      %v2071 = vld [vmem:[%s2 + $0x1c0] sm:$0xf]
      %v2072 = vld [vmem:[%s2 + $0x1c4] sm:$0xf]
      %v2073 = vld [vmem:[%s2 + $0x1c8] sm:$0xf]
      %v2074 = vld [vmem:[%s2 + $0x1cc] sm:$0xf]
      %v2075 = vld [vmem:[%s2 + $0x1d0] sm:$0xf]
      %v2076 = vld [vmem:[%s2 + $0x1d4] sm:$0xf]
      %v2077 = vld [vmem:[%s2 + $0x1d8] sm:$0xf]
      %v2078 = vld [vmem:[%s2 + $0x1dc] sm:$0xf]
      %v2079 = vld [vmem:[%s2 + $0x1e0] sm:$0xf]
      %v2080 = vld [vmem:[%s2 + $0x1e4] sm:$0xf]
      %v2081 = vld [vmem:[%s2 + $0x1e8] sm:$0xf]
      %v2082 = vld [vmem:[%s2 + $0x1ec] sm:$0xf]
      %v2083 = vld [vmem:[%s2 + $0x1f0] sm:$0xf]
      %v2084 = vld [vmem:[%s2 + $0x1f4] sm:$0xf]
      %v2085 = vld [vmem:[%s2 + $0x1f8] sm:$0xf]
      %v2086 = vld [vmem:[%s2 + $0x1fc] sm:$0xf]
      %v2087 = vld [vmem:[%s2 + $0x200] sm:$0xf]
      %v2088 = vld [vmem:[%s2 + $0x204] sm:$0xf]
      %v2089 = vld [vmem:[%s2 + $0x208] sm:$0xf]
      %v2090 = vld [vmem:[%s2 + $0x20c] sm:$0xf]
      %v2091 = vld [vmem:[%s2 + $0x210] sm:$0xf]
      %v2092 = vld [vmem:[%s2 + $0x214] sm:$0xf]
      %v2093 = vld [vmem:[%s2 + $0x218] sm:$0xf]
      %v2094 = vld [vmem:[%s2 + $0x21c] sm:$0xf]
      %v2095 = vld [vmem:[%s2 + $0x220] sm:$0xf]
      %v2096 = vld [vmem:[%s2 + $0x224] sm:$0xf]
      %v2097 = vld [vmem:[%s2 + $0x228] sm:$0xf]
      %v2098 = vld [vmem:[%s2 + $0x22c] sm:$0xf]
      %v2099 = vld [vmem:[%s2 + $0x230] sm:$0xf]
      %v2100 = vld [vmem:[%s2 + $0x234] sm:$0xf]
      %v2101 = vld [vmem:[%s2 + $0x238] sm:$0xf]
      %v2102 = vld [vmem:[%s2 + $0x23c] sm:$0xf]
      %v2247 = vunpack.c.l.b16 %v1959
      %v2248 = vunpack.c.l.b16 %v1960
      %v2249 = vunpack.c.l.b16 %v1961
      %v2250 = vunpack.c.l.b16 %v1962
      %v2251 = vunpack.c.l.b16 %v1963
      %v2252 = vunpack.c.l.b16 %v1964
      %v2253 = vunpack.c.l.b16 %v1965
      %v2254 = vunpack.c.l.b16 %v1966
      %v2255 = vunpack.c.l.b16 %v1967
      %v2256 = vunpack.c.l.b16 %v1968
      %v2257 = vunpack.c.l.b16 %v1969
      %v2258 = vunpack.c.l.b16 %v1970
      %v2259 = vunpack.c.l.b16 %v1971
      %v2260 = vunpack.c.l.b16 %v1972
      %v2261 = vunpack.c.l.b16 %v1973
      %v2262 = vunpack.c.l.b16 %v1974
      %v2263 = vunpack.c.l.b16 %v1975
      %v2264 = vunpack.c.l.b16 %v1976
      %v2265 = vunpack.c.l.b16 %v1977
      %v2266 = vunpack.c.l.b16 %v1978
      %v2267 = vunpack.c.l.b16 %v1979
      %v2268 = vunpack.c.l.b16 %v1980
      %v2269 = vunpack.c.l.b16 %v1981
      %v2270 = vunpack.c.l.b16 %v1982
      %v2271 = vunpack.c.l.b16 %v1983
      %v2272 = vunpack.c.l.b16 %v1984
      %v2273 = vunpack.c.l.b16 %v1985
      %v2274 = vunpack.c.l.b16 %v1986
      %v2275 = vunpack.c.l.b16 %v1987
      %v2276 = vunpack.c.l.b16 %v1988
      %v2277 = vunpack.c.l.b16 %v1989
      %v2278 = vunpack.c.l.b16 %v1990
      %v2279 = vunpack.c.l.b16 %v1991
      %v2280 = vunpack.c.l.b16 %v1992
      %v2281 = vunpack.c.l.b16 %v1993
      %v2282 = vunpack.c.l.b16 %v1994
      %v2283 = vunpack.c.l.b16 %v1995
      %v2284 = vunpack.c.l.b16 %v1996
      %v2285 = vunpack.c.l.b16 %v1997
      %v2286 = vunpack.c.l.b16 %v1998
      %v2287 = vunpack.c.l.b16 %v1999
      %v2288 = vunpack.c.l.b16 %v2000
      %v2289 = vunpack.c.l.b16 %v2001
      %v2290 = vunpack.c.l.b16 %v2002
      %v2291 = vunpack.c.l.b16 %v2003
      %v2292 = vunpack.c.l.b16 %v2004
      %v2293 = vunpack.c.l.b16 %v2005
      %v2294 = vunpack.c.l.b16 %v2006
      %v2295 = vunpack.c.l.b16 %v2007
      %v2296 = vunpack.c.l.b16 %v2008
      %v2297 = vunpack.c.l.b16 %v2009
      %v2298 = vunpack.c.l.b16 %v2010
      %v2299 = vunpack.c.l.b16 %v2011
      %v2300 = vunpack.c.l.b16 %v2012
      %v2301 = vunpack.c.l.b16 %v2013
      %v2302 = vunpack.c.l.b16 %v2014
      %v2303 = vunpack.c.l.b16 %v2015
      %v2304 = vunpack.c.l.b16 %v2016
      %v2305 = vunpack.c.l.b16 %v2017
      %v2306 = vunpack.c.l.b16 %v2018
      %v2307 = vunpack.c.l.b16 %v2019
      %v2308 = vunpack.c.l.b16 %v2020
      %v2309 = vunpack.c.l.b16 %v2021
      %v2310 = vunpack.c.l.b16 %v2022
      %v2311 = vunpack.c.l.b16 %v2023
      %v2312 = vunpack.c.l.b16 %v2024
      %v2313 = vunpack.c.l.b16 %v2025
      %v2314 = vunpack.c.l.b16 %v2026
      %v2315 = vunpack.c.l.b16 %v2027
      %v2316 = vunpack.c.l.b16 %v2028
      %v2317 = vunpack.c.l.b16 %v2029
      %v2318 = vunpack.c.l.b16 %v2030
      %v2319 = vunpack.c.l.b16 %v2031
      %v2320 = vunpack.c.l.b16 %v2032
      %v2321 = vunpack.c.l.b16 %v2033
      %v2322 = vunpack.c.l.b16 %v2034
      %v2323 = vunpack.c.l.b16 %v2035
      %v2324 = vunpack.c.l.b16 %v2036
      %v2325 = vunpack.c.l.b16 %v2037
      %v2326 = vunpack.c.l.b16 %v2038
      %v2327 = vunpack.c.l.b16 %v2039
      %v2328 = vunpack.c.l.b16 %v2040
      %v2329 = vunpack.c.l.b16 %v2041
      %v2330 = vunpack.c.l.b16 %v2042
      %v2331 = vunpack.c.l.b16 %v2043
      %v2332 = vunpack.c.l.b16 %v2044
      %v2333 = vunpack.c.l.b16 %v2045
      %v2334 = vunpack.c.l.b16 %v2046
      %v2335 = vunpack.c.l.b16 %v2047
      %v2336 = vunpack.c.l.b16 %v2048
      %v2337 = vunpack.c.l.b16 %v2049
      %v2338 = vunpack.c.l.b16 %v2050
      %v2339 = vunpack.c.l.b16 %v2051
      %v2340 = vunpack.c.l.b16 %v2052
      %v2341 = vunpack.c.l.b16 %v2053
      %v2342 = vunpack.c.l.b16 %v2054
      %v2343 = vunpack.c.l.b16 %v2055
      %v2344 = vunpack.c.l.b16 %v2056
      %v2345 = vunpack.c.l.b16 %v2057
      %v2346 = vunpack.c.l.b16 %v2058
      %v2347 = vunpack.c.l.b16 %v2059
      %v2348 = vunpack.c.l.b16 %v2060
      %v2349 = vunpack.c.l.b16 %v2061
      %v2350 = vunpack.c.l.b16 %v2062
      %v2351 = vunpack.c.l.b16 %v2063
      %v2352 = vunpack.c.l.b16 %v2064
      %v2353 = vunpack.c.l.b16 %v2065
      %v2354 = vunpack.c.l.b16 %v2066
      %v2355 = vunpack.c.l.b16 %v2067
      %v2356 = vunpack.c.l.b16 %v2068
      %v2357 = vunpack.c.l.b16 %v2069
      %v2358 = vunpack.c.l.b16 %v2070
      %v2359 = vunpack.c.l.b16 %v2071
      %v2360 = vunpack.c.l.b16 %v2072
      %v2361 = vunpack.c.l.b16 %v2073
      %v2362 = vunpack.c.l.b16 %v2074
      %v2363 = vunpack.c.l.b16 %v2075
      %v2364 = vunpack.c.l.b16 %v2076
      %v2365 = vunpack.c.l.b16 %v2077
      %v2366 = vunpack.c.l.b16 %v2078
      %v2367 = vunpack.c.l.b16 %v2079
      %v2368 = vunpack.c.l.b16 %v2080
      %v2369 = vunpack.c.l.b16 %v2081
      %v2370 = vunpack.c.l.b16 %v2082
      %v2371 = vunpack.c.l.b16 %v2083
      %v2372 = vunpack.c.l.b16 %v2084
      %v2373 = vunpack.c.l.b16 %v2085
      %v2374 = vunpack.c.l.b16 %v2086
      %v2375 = vunpack.c.l.b16 %v2087
      %v2376 = vunpack.c.l.b16 %v2088
      %v2377 = vunpack.c.l.b16 %v2089
      %v2378 = vunpack.c.l.b16 %v2090
      %v2379 = vunpack.c.l.b16 %v2091
      %v2380 = vunpack.c.l.b16 %v2092
      %v2381 = vunpack.c.l.b16 %v2093
      %v2382 = vunpack.c.l.b16 %v2094
      %v2383 = vunpack.c.l.b16 %v2095
      %v2384 = vunpack.c.l.b16 %v2096
      %v2385 = vunpack.c.l.b16 %v2097
      %v2386 = vunpack.c.l.b16 %v2098
      %v2387 = vunpack.c.l.b16 %v2099
      %v2388 = vunpack.c.l.b16 %v2100
      %v2389 = vunpack.c.l.b16 %v2101
      %v2390 = vunpack.c.l.b16 %v2102
      %v2391 = vpack.c.b16 %v2248, %v2247
      %v2392 = vpack.c.b16 %v2250, %v2249
      %v2393 = vpack.c.b16 %v2252, %v2251
      %v2394 = vpack.c.b16 %v2254, %v2253
      %v2395 = vpack.c.b16 %v2256, %v2255
      %v2396 = vpack.c.b16 %v2258, %v2257
      %v2397 = vpack.c.b16 %v2260, %v2259
      %v2398 = vpack.c.b16 %v2262, %v2261
      %v2399 = vpack.c.b16 %v2264, %v2263
      %v2400 = vpack.c.b16 %v2266, %v2265
      %v2401 = vpack.c.b16 %v2268, %v2267
      %v2402 = vpack.c.b16 %v2270, %v2269
      %v2403 = vpack.c.b16 %v2272, %v2271
      %v2404 = vpack.c.b16 %v2274, %v2273
      %v2405 = vpack.c.b16 %v2276, %v2275
      %v2406 = vpack.c.b16 %v2278, %v2277
      %v2407 = vpack.c.b16 %v2280, %v2279
      %v2408 = vpack.c.b16 %v2282, %v2281
      %v2409 = vpack.c.b16 %v2284, %v2283
      %v2410 = vpack.c.b16 %v2286, %v2285
      %v2411 = vpack.c.b16 %v2288, %v2287
      %v2412 = vpack.c.b16 %v2290, %v2289
      %v2413 = vpack.c.b16 %v2292, %v2291
      %v2414 = vpack.c.b16 %v2294, %v2293
      %v2415 = vpack.c.b16 %v2296, %v2295
      %v2416 = vpack.c.b16 %v2298, %v2297
      %v2417 = vpack.c.b16 %v2300, %v2299
      %v2418 = vpack.c.b16 %v2302, %v2301
      %v2419 = vpack.c.b16 %v2304, %v2303
      %v2420 = vpack.c.b16 %v2306, %v2305
      %v2421 = vpack.c.b16 %v2308, %v2307
      %v2422 = vpack.c.b16 %v2310, %v2309
      %v2423 = vpack.c.b16 %v2312, %v2311
      %v2424 = vpack.c.b16 %v2314, %v2313
      %v2425 = vpack.c.b16 %v2316, %v2315
      %v2426 = vpack.c.b16 %v2318, %v2317
      %v2427 = vpack.c.b16 %v2320, %v2319
      %v2428 = vpack.c.b16 %v2322, %v2321
      %v2429 = vpack.c.b16 %v2324, %v2323
      %v2430 = vpack.c.b16 %v2326, %v2325
      %v2431 = vpack.c.b16 %v2328, %v2327
      %v2432 = vpack.c.b16 %v2330, %v2329
      %v2433 = vpack.c.b16 %v2332, %v2331
      %v2434 = vpack.c.b16 %v2334, %v2333
      %v2435 = vpack.c.b16 %v2336, %v2335
      %v2436 = vpack.c.b16 %v2338, %v2337
      %v2437 = vpack.c.b16 %v2340, %v2339
      %v2438 = vpack.c.b16 %v2342, %v2341
      %v2439 = vpack.c.b16 %v2344, %v2343
      %v2440 = vpack.c.b16 %v2346, %v2345
      %v2441 = vpack.c.b16 %v2348, %v2347
      %v2442 = vpack.c.b16 %v2350, %v2349
      %v2443 = vpack.c.b16 %v2352, %v2351
      %v2444 = vpack.c.b16 %v2354, %v2353
      %v2445 = vpack.c.b16 %v2356, %v2355
      %v2446 = vpack.c.b16 %v2358, %v2357
      %v2447 = vpack.c.b16 %v2360, %v2359
      %v2448 = vpack.c.b16 %v2362, %v2361
      %v2449 = vpack.c.b16 %v2364, %v2363
      %v2450 = vpack.c.b16 %v2366, %v2365
      %v2451 = vpack.c.b16 %v2368, %v2367
      %v2452 = vpack.c.b16 %v2370, %v2369
      %v2453 = vpack.c.b16 %v2372, %v2371
      %v2454 = vpack.c.b16 %v2374, %v2373
      %v2455 = vpack.c.b16 %v2376, %v2375
      %v2456 = vpack.c.b16 %v2378, %v2377
      %v2457 = vpack.c.b16 %v2380, %v2379
      %v2458 = vpack.c.b16 %v2382, %v2381
      %v2459 = vpack.c.b16 %v2384, %v2383
      %v2460 = vpack.c.b16 %v2386, %v2385
      %v2461 = vpack.c.b16 %v2388, %v2387
      %v2462 = vpack.c.b16 %v2390, %v2389
      %2535 = vmatprep.subr.bf16.mxu0 0
      %2536 = vmatpush1.bf16.msra.mxu0 %v2398
      %2537 = vmatprep.subr.bf16.mxu0 0
      %2538 = vmatpush1.bf16.msra.mxu0 %v2397
      %2539 = vmatprep.subr.bf16.mxu0 0
      %2540 = vmatpush1.bf16.msra.mxu0 %v2396
      %2541 = vmatprep.subr.bf16.mxu0 0
      %2542 = vmatpush1.bf16.msra.mxu0 %v2395
      %2543 = vmatprep.subr.bf16.mxu0 0
      %2544 = vmatpush1.bf16.msra.mxu0 %v2394
      %2545 = vmatprep.subr.bf16.mxu0 0
      %2546 = vmatpush1.bf16.msra.mxu0 %v2393
      %2547 = vmatprep.subr.bf16.mxu0 0
      %2548 = vmatpush1.bf16.msra.mxu0 %v2392
      %2549 = vmatprep.subr.bf16.mxu0 0
      %2550 = vmatpush1.bf16.msra.mxu0 %v2391
      %2551 = vmatprep.subr.bf16.mxu0 0
      %2552 = vmatpush2.bf16.msra.mxu0 %v2406
      %2553 = vmatprep.subr.bf16.mxu0 0
      %2554 = vmatpush2.bf16.msra.mxu0 %v2405
      %2555 = vmatprep.subr.bf16.mxu0 0
      %2556 = vmatpush2.bf16.msra.mxu0 %v2404
      %2557 = vmatprep.subr.bf16.mxu0 0
      %2558 = vmatpush2.bf16.msra.mxu0 %v2403
      %2559 = vmatprep.subr.bf16.mxu0 0
      %2560 = vmatpush2.bf16.msra.mxu0 %v2402
      %2561 = vmatprep.subr.bf16.mxu0 0
      %2562 = vmatpush2.bf16.msra.mxu0 %v2401
      %2563 = vmatprep.subr.bf16.mxu0 0
      %2564 = vmatpush2.bf16.msra.mxu0 %v2400
      %2565 = vmatprep.subr.bf16.mxu0 0
      %2566 = vmatpush2.bf16.msra.mxu0 %v2399
      %2567 = vmatprep.mubr.bf16.mxu0 %v1951
      %2568 = vmatmul.mubr.bf16.gmra.mxu0 %v1950
      %v2569 = vpop.f32.mrf.mxu0
      %v2570 = vadd.f32 0.0, %v2569
      %v2571 = vpop.f32.mrf.mxu0
      %v2572 = vpop.f32.mrf.mxu0
      %v2573 = vpop.f32.mrf.mxu0
      %2574 = vdwg.mxu0
      %2575 = vmatprep.subr.bf16.mxu0 0
      %2576 = vmatpush1.bf16.msra.mxu0 %v2414
      %2577 = vmatprep.subr.bf16.mxu0 0
      %2578 = vmatpush1.bf16.msra.mxu0 %v2413
      %2579 = vmatprep.subr.bf16.mxu0 0
      %2580 = vmatpush1.bf16.msra.mxu0 %v2412
      %2581 = vmatprep.subr.bf16.mxu0 0
      %2582 = vmatpush1.bf16.msra.mxu0 %v2411
      %2583 = vmatprep.subr.bf16.mxu0 0
      %2584 = vmatpush1.bf16.msra.mxu0 %v2410
      %2585 = vmatprep.subr.bf16.mxu0 0
      %2586 = vmatpush1.bf16.msra.mxu0 %v2409
      %2587 = vmatprep.subr.bf16.mxu0 0
      %2588 = vmatpush1.bf16.msra.mxu0 %v2408
      %2589 = vmatprep.subr.bf16.mxu0 0
      %2590 = vmatpush1.bf16.msra.mxu0 %v2407
      %2591 = vmatprep.subr.bf16.mxu0 0
      %2592 = vmatpush2.bf16.msra.mxu0 %v2422
      %2593 = vmatprep.subr.bf16.mxu0 0
      %2594 = vmatpush2.bf16.msra.mxu0 %v2421
      %2595 = vmatprep.subr.bf16.mxu0 0
      %2596 = vmatpush2.bf16.msra.mxu0 %v2420
      %2597 = vmatprep.subr.bf16.mxu0 0
      %2598 = vmatpush2.bf16.msra.mxu0 %v2419
      %2599 = vmatprep.subr.bf16.mxu0 0
      %2600 = vmatpush2.bf16.msra.mxu0 %v2418
      %2601 = vmatprep.subr.bf16.mxu0 0
      %2602 = vmatpush2.bf16.msra.mxu0 %v2417
      %2603 = vmatprep.subr.bf16.mxu0 0
      %2604 = vmatpush2.bf16.msra.mxu0 %v2416
      %2605 = vmatprep.subr.bf16.mxu0 0
      %2606 = vmatpush2.bf16.msra.mxu0 %v2415
      %2607 = vmatprep.mubr.bf16.mxu0 %v1953
      %2608 = vmatmul.mubr.bf16.gmra.mxu0 %v1952
      %v2609 = vpop.f32.mrf.mxu0
      %v2610 = vadd.f32 %v2570, %v2609
      %v2611 = vpop.f32.mrf.mxu0
      %v2612 = vpop.f32.mrf.mxu0
      %v2613 = vpop.f32.mrf.mxu0
      %2614 = vdwg.mxu0
      %2615 = vmatprep.subr.bf16.mxu0 0
      %2616 = vmatpush1.bf16.msra.mxu0 %v2430
      %2617 = vmatprep.subr.bf16.mxu0 0
      %2618 = vmatpush1.bf16.msra.mxu0 %v2429
      %2619 = vmatprep.subr.bf16.mxu0 0
      %2620 = vmatpush1.bf16.msra.mxu0 %v2428
      %2621 = vmatprep.subr.bf16.mxu0 0
      %2622 = vmatpush1.bf16.msra.mxu0 %v2427
      %2623 = vmatprep.subr.bf16.mxu0 0
      %2624 = vmatpush1.bf16.msra.mxu0 %v2426
      %2625 = vmatprep.subr.bf16.mxu0 0
      %2626 = vmatpush1.bf16.msra.mxu0 %v2425
      %2627 = vmatprep.subr.bf16.mxu0 0
      %2628 = vmatpush1.bf16.msra.mxu0 %v2424
      %2629 = vmatprep.subr.bf16.mxu0 0
      %2630 = vmatpush1.bf16.msra.mxu0 %v2423
      %2631 = vmatprep.subr.bf16.mxu0 0
      %2632 = vmatpush2.bf16.msra.mxu0 %v2438
      %2633 = vmatprep.subr.bf16.mxu0 0
      %2634 = vmatpush2.bf16.msra.mxu0 %v2437
      %2635 = vmatprep.subr.bf16.mxu0 0
      %2636 = vmatpush2.bf16.msra.mxu0 %v2436
      %2637 = vmatprep.subr.bf16.mxu0 0
      %2638 = vmatpush2.bf16.msra.mxu0 %v2435
      %2639 = vmatprep.subr.bf16.mxu0 0
      %2640 = vmatpush2.bf16.msra.mxu0 %v2434
      %2641 = vmatprep.subr.bf16.mxu0 0
      %2642 = vmatpush2.bf16.msra.mxu0 %v2433
      %2643 = vmatprep.subr.bf16.mxu0 0
      %2644 = vmatpush2.bf16.msra.mxu0 %v2432
      %2645 = vmatprep.subr.bf16.mxu0 0
      %2646 = vmatpush2.bf16.msra.mxu0 %v2431
      %2647 = vmatprep.mubr.bf16.mxu0 %v1955
      %2648 = vmatmul.mubr.bf16.gmra.mxu0 %v1954
      %v2649 = vpop.f32.mrf.mxu0
      %v2650 = vadd.f32 %v2610, %v2649
      %v2651 = vpop.f32.mrf.mxu0
      %v2652 = vpop.f32.mrf.mxu0
      %v2653 = vpop.f32.mrf.mxu0
      %2654 = vdwg.mxu0
      %2655 = vmatprep.subr.bf16.mxu0 0
      %2656 = vmatpush1.bf16.msra.mxu0 %v2446
      %2657 = vmatprep.subr.bf16.mxu0 0
      %2658 = vmatpush1.bf16.msra.mxu0 %v2445
      %2659 = vmatprep.subr.bf16.mxu0 0
      %2660 = vmatpush1.bf16.msra.mxu0 %v2444
      %2661 = vmatprep.subr.bf16.mxu0 0
      %2662 = vmatpush1.bf16.msra.mxu0 %v2443
      %2663 = vmatprep.subr.bf16.mxu0 0
      %2664 = vmatpush1.bf16.msra.mxu0 %v2442
      %2665 = vmatprep.subr.bf16.mxu0 0
      %2666 = vmatpush1.bf16.msra.mxu0 %v2441
      %2667 = vmatprep.subr.bf16.mxu0 0
      %2668 = vmatpush1.bf16.msra.mxu0 %v2440
      %2669 = vmatprep.subr.bf16.mxu0 0
      %2670 = vmatpush1.bf16.msra.mxu0 %v2439
      %2671 = vmatprep.subr.bf16.mxu0 0
      %2672 = vmatpush2.bf16.msra.mxu0 %v2454
      %2673 = vmatprep.subr.bf16.mxu0 0
      %2674 = vmatpush2.bf16.msra.mxu0 %v2453
      %2675 = vmatprep.subr.bf16.mxu0 0
      %2676 = vmatpush2.bf16.msra.mxu0 %v2452
      %2677 = vmatprep.subr.bf16.mxu0 0
      %2678 = vmatpush2.bf16.msra.mxu0 %v2451
      %2679 = vmatprep.subr.bf16.mxu0 0
      %2680 = vmatpush2.bf16.msra.mxu0 %v2450
      %2681 = vmatprep.subr.bf16.mxu0 0
      %2682 = vmatpush2.bf16.msra.mxu0 %v2449
      %2683 = vmatprep.subr.bf16.mxu0 0
      %2684 = vmatpush2.bf16.msra.mxu0 %v2448
      %2685 = vmatprep.subr.bf16.mxu0 0
      %2686 = vmatpush2.bf16.msra.mxu0 %v2447
      %2687 = vmatprep.mubr.bf16.mxu0 %v1957
      %2688 = vmatmul.mubr.bf16.gmra.mxu0 %v1956
      %v2689 = vpop.f32.mrf.mxu0
      %v2690 = vadd.f32 %v2650, %v2689
      %v2691 = vpop.f32.mrf.mxu0
      %v2692 = vpop.f32.mrf.mxu0
      %v2693 = vpop.f32.mrf.mxu0
      %2694 = vdwg.mxu0
      %2695 = vmatprep.subr.bf16.mxu0 0
      %2696 = vmatpush1.bf16.msra.mxu0 %v2462
      %2697 = vmatprep.subr.bf16.mxu0 0
      %2698 = vmatpush1.bf16.msra.mxu0 %v2461
      %2699 = vmatprep.subr.bf16.mxu0 0
      %2700 = vmatpush1.bf16.msra.mxu0 %v2460
      %2701 = vmatprep.subr.bf16.mxu0 0
      %2702 = vmatpush1.bf16.msra.mxu0 %v2459
      %2703 = vmatprep.subr.bf16.mxu0 0
      %2704 = vmatpush1.bf16.msra.mxu0 %v2458
      %2705 = vmatprep.subr.bf16.mxu0 0
      %2706 = vmatpush1.bf16.msra.mxu0 %v2457
      %2707 = vmatprep.subr.bf16.mxu0 0
      %2708 = vmatpush1.bf16.msra.mxu0 %v2456
      %2709 = vmatprep.subr.bf16.mxu0 0
      %2710 = vmatpush1.bf16.msra.mxu0 %v2455
      %2711 = vmatprep.subr.bf16.mxu0 0
      %2712 = vmatpush2.bf16.msra.mxu0 0
      %2713 = vmatprep.subr.bf16.mxu0 0
      %2714 = vmatpush2.bf16.msra.mxu0 0
      %2715 = vmatprep.subr.bf16.mxu0 0
      %2716 = vmatpush2.bf16.msra.mxu0 0
      %2717 = vmatprep.subr.bf16.mxu0 0
      %2718 = vmatpush2.bf16.msra.mxu0 0
      %2719 = vmatprep.subr.bf16.mxu0 0
      %2720 = vmatpush2.bf16.msra.mxu0 0
      %2721 = vmatprep.subr.bf16.mxu0 0
      %2722 = vmatpush2.bf16.msra.mxu0 0
      %2723 = vmatprep.subr.bf16.mxu0 0
      %2724 = vmatpush2.bf16.msra.mxu0 0
      %2725 = vmatprep.subr.bf16.mxu0 0
      %2726 = vmatpush2.bf16.msra.mxu0 0
      %2727 = vmatprep.mubr.bf16.mxu0 0
      %2728 = vmatmul.mubr.bf16.gmra.mxu0 %v1958
      %v2729 = vpop.f32.mrf.mxu0
      %v2730 = vadd.f32 %v2690, %v2729
      %v2731 = vpop.f32.mrf.mxu0
      %v2732 = vpop.f32.mrf.mxu0
      %v2733 = vpop.f32.mrf.mxu0
      %2734 = vdwg.mxu0
      %v2735 = vmax.f32 %v2730, 0.0
      %v2736 = vsub.f32 0.0, %v2735
      %v2737 = vmul.f32 %v2736, 1.442695
      %v2738 = vpow.pop %v2737
      %v2739 = vadd.f32 %v2738, 1.0
      %v2740 = vrcp.pop %v2739
      %v2741 = vmul.f32 1.0, %v2740
      %v2742 = vmul.f32 %v2735, %v2741
      %v2743 = vsub.f32 %v2735, -2.2
      %v2744 = vmul.f32 %v2743, 2.5
      %v2745 = vfloor.f32 %v2744
      %v2746 = vsub.f32 %v2744, %v2745
      %v2747 = vmul.f32 %v2746, %v2746
      %v2748 = vmul.f32 %v2747, %v2746
      %v2749 = vsub.f32 1.0, %v2746
      %v2750 = vmul.f32 %v2748, 0.16666667
      %v2751 = vmul.f32 %v2748, -3.0
      %v2752 = vmul.f32 %v2747, 3.0
      %v2753 = vadd.f32 %v2751, %v2752
      %v2754 = vmul.f32 %v2746, 3.0
      %v2755 = vadd.f32 %v2753, %v2754
      %v2756 = vadd.f32 %v2755, 1.0
      %v2757 = vmul.f32 %v2756, 0.16666667
      %v2758 = vmul.f32 %v2748, 3.0
      %v2759 = vmul.f32 %v2747, 6.0
      %v2760 = vsub.f32 %v2758, %v2759
      %v2761 = vadd.f32 %v2760, 4.0
      %v2762 = vmul.f32 %v2761, 0.16666667
      %v2763 = vmul.f32 %v2749, %v2749
      %v2764 = vmul.f32 %v2763, %v2749
      %v2765 = vmul.f32 %v2764, 0.16666667
      %vm2766 = vcmp.eq.f32.partialorder %v2745, 0.0
      %vm2767 = vcmp.eq.f32.partialorder %v2745, 1.0
      %vm2768 = vcmp.eq.f32.partialorder %v2745, 2.0
      %vm2769 = vcmp.eq.f32.partialorder %v2745, 3.0
      %vm2770 = vcmp.eq.f32.partialorder %v2745, 4.0
      %vm2771 = vcmp.eq.f32.partialorder %v2745, 5.0
      %vm2772 = vcmp.eq.f32.partialorder %v2745, 6.0
      %vm2773 = vcmp.eq.f32.partialorder %v2745, 7.0
      %vm2774 = vcmp.eq.f32.partialorder %v2745, 8.0
      %vm2775 = vcmp.eq.f32.partialorder %v2745, 9.0
      %vm2776 = vcmp.eq.f32.partialorder %v2745, 10.0
      %v2777 = vsel %vm2769, %v2765, 0.0
      %v2778 = vsel %vm2768, %v2762, %v2777
      %v2779 = vsel %vm2767, %v2757, %v2778
      %v2780 = vsel %vm2766, %v2750, %v2779
      %v2781 = vsel %vm2770, %v2765, 0.0
      %v2782 = vsel %vm2769, %v2762, %v2781
      %v2783 = vsel %vm2768, %v2757, %v2782
      %v2784 = vsel %vm2767, %v2750, %v2783
      %v2785 = vsel %vm2771, %v2765, 0.0
      %v2786 = vsel %vm2770, %v2762, %v2785
      %v2787 = vsel %vm2769, %v2757, %v2786
      %v2788 = vsel %vm2768, %v2750, %v2787
      %v2789 = vsel %vm2772, %v2765, 0.0
      %v2790 = vsel %vm2771, %v2762, %v2789
      %v2791 = vsel %vm2770, %v2757, %v2790
      %v2792 = vsel %vm2769, %v2750, %v2791
      %v2793 = vsel %vm2773, %v2765, 0.0
      %v2794 = vsel %vm2772, %v2762, %v2793
      %v2795 = vsel %vm2771, %v2757, %v2794
      %v2796 = vsel %vm2770, %v2750, %v2795
      %v2797 = vsel %vm2774, %v2765, 0.0
      %v2798 = vsel %vm2773, %v2762, %v2797
      %v2799 = vsel %vm2772, %v2757, %v2798
      %v2800 = vsel %vm2771, %v2750, %v2799
      %v2801 = vsel %vm2775, %v2765, 0.0
      %v2802 = vsel %vm2774, %v2762, %v2801
      %v2803 = vsel %vm2773, %v2757, %v2802
      %v2804 = vsel %vm2772, %v2750, %v2803
      %v2805 = vsel %vm2776, %v2765, 0.0
      %v2806 = vsel %vm2775, %v2762, %v2805
      %v2807 = vsel %vm2774, %v2757, %v2806
      %v2808 = vsel %vm2773, %v2750, %v2807
      %v2809 = vpack.c.bf16 %v2742, %v2742
      %v2810 = vpack.c.bf16 %v2780, %v2780
      %v2811 = vpack.c.bf16 %v2784, %v2784
      %v2812 = vpack.c.bf16 %v2788, %v2788
      %v2813 = vpack.c.bf16 %v2792, %v2792
      %v2814 = vpack.c.bf16 %v2796, %v2796
      %v2815 = vpack.c.bf16 %v2800, %v2800
      %v2816 = vpack.c.bf16 %v2804, %v2804
      %v2817 = vpack.c.bf16 %v2808, %v2808
      %v2818 = vld [vmem:[%s3] sm:$0xf]
      %v2819 = vld [vmem:[%s3 + $0x4] sm:$0xf]
      %v2820 = vld [vmem:[%s3 + $0x8] sm:$0xf]
      %v2821 = vld [vmem:[%s3 + $0xc] sm:$0xf]
      %v2822 = vld [vmem:[%s3 + $0x10] sm:$0xf]
      %v2823 = vld [vmem:[%s3 + $0x14] sm:$0xf]
      %v2824 = vld [vmem:[%s3 + $0x18] sm:$0xf]
      %v2825 = vld [vmem:[%s3 + $0x1c] sm:$0xf]
      %v2826 = vld [vmem:[%s3 + $0x20] sm:$0xf]
      %v2827 = vld [vmem:[%s3 + $0x24] sm:$0xf]
      %v2828 = vld [vmem:[%s3 + $0x28] sm:$0xf]
      %v2829 = vld [vmem:[%s3 + $0x2c] sm:$0xf]
      %v2830 = vld [vmem:[%s3 + $0x30] sm:$0xf]
      %v2831 = vld [vmem:[%s3 + $0x34] sm:$0xf]
      %v2832 = vld [vmem:[%s3 + $0x38] sm:$0xf]
      %v2833 = vld [vmem:[%s3 + $0x3c] sm:$0xf]
      %v2834 = vld [vmem:[%s3 + $0x40] sm:$0xf]
      %v2835 = vld [vmem:[%s3 + $0x44] sm:$0xf]
      %v2836 = vld [vmem:[%s3 + $0x48] sm:$0xf]
      %v2837 = vld [vmem:[%s3 + $0x4c] sm:$0xf]
      %v2838 = vld [vmem:[%s3 + $0x50] sm:$0xf]
      %v2839 = vld [vmem:[%s3 + $0x54] sm:$0xf]
      %v2840 = vld [vmem:[%s3 + $0x58] sm:$0xf]
      %v2841 = vld [vmem:[%s3 + $0x5c] sm:$0xf]
      %v2842 = vld [vmem:[%s3 + $0x60] sm:$0xf]
      %v2843 = vld [vmem:[%s3 + $0x64] sm:$0xf]
      %v2844 = vld [vmem:[%s3 + $0x68] sm:$0xf]
      %v2845 = vld [vmem:[%s3 + $0x6c] sm:$0xf]
      %v2846 = vld [vmem:[%s3 + $0x70] sm:$0xf]
      %v2847 = vld [vmem:[%s3 + $0x74] sm:$0xf]
      %v2848 = vld [vmem:[%s3 + $0x78] sm:$0xf]
      %v2849 = vld [vmem:[%s3 + $0x7c] sm:$0xf]
      %v2850 = vld [vmem:[%s3 + $0x80] sm:$0xf]
      %v2851 = vld [vmem:[%s3 + $0x84] sm:$0xf]
      %v2852 = vld [vmem:[%s3 + $0x88] sm:$0xf]
      %v2853 = vld [vmem:[%s3 + $0x8c] sm:$0xf]
      %v2854 = vld [vmem:[%s3 + $0x90] sm:$0xf]
      %v2855 = vld [vmem:[%s3 + $0x94] sm:$0xf]
      %v2856 = vld [vmem:[%s3 + $0x98] sm:$0xf]
      %v2857 = vld [vmem:[%s3 + $0x9c] sm:$0xf]
      %v2858 = vld [vmem:[%s3 + $0xa0] sm:$0xf]
      %v2859 = vld [vmem:[%s3 + $0xa4] sm:$0xf]
      %v2860 = vld [vmem:[%s3 + $0xa8] sm:$0xf]
      %v2861 = vld [vmem:[%s3 + $0xac] sm:$0xf]
      %v2862 = vld [vmem:[%s3 + $0xb0] sm:$0xf]
      %v2863 = vld [vmem:[%s3 + $0xb4] sm:$0xf]
      %v2864 = vld [vmem:[%s3 + $0xb8] sm:$0xf]
      %v2865 = vld [vmem:[%s3 + $0xbc] sm:$0xf]
      %v2866 = vld [vmem:[%s3 + $0xc0] sm:$0xf]
      %v2867 = vld [vmem:[%s3 + $0xc4] sm:$0xf]
      %v2868 = vld [vmem:[%s3 + $0xc8] sm:$0xf]
      %v2869 = vld [vmem:[%s3 + $0xcc] sm:$0xf]
      %v2870 = vld [vmem:[%s3 + $0xd0] sm:$0xf]
      %v2871 = vld [vmem:[%s3 + $0xd4] sm:$0xf]
      %v2872 = vld [vmem:[%s3 + $0xd8] sm:$0xf]
      %v2873 = vld [vmem:[%s3 + $0xdc] sm:$0xf]
      %v2874 = vld [vmem:[%s3 + $0xe0] sm:$0xf]
      %v2875 = vld [vmem:[%s3 + $0xe4] sm:$0xf]
      %v2876 = vld [vmem:[%s3 + $0xe8] sm:$0xf]
      %v2877 = vld [vmem:[%s3 + $0xec] sm:$0xf]
      %v2878 = vld [vmem:[%s3 + $0xf0] sm:$0xf]
      %v2879 = vld [vmem:[%s3 + $0xf4] sm:$0xf]
      %v2880 = vld [vmem:[%s3 + $0xf8] sm:$0xf]
      %v2881 = vld [vmem:[%s3 + $0xfc] sm:$0xf]
      %v2882 = vld [vmem:[%s3 + $0x100] sm:$0xf]
      %v2883 = vld [vmem:[%s3 + $0x104] sm:$0xf]
      %v2884 = vld [vmem:[%s3 + $0x108] sm:$0xf]
      %v2885 = vld [vmem:[%s3 + $0x10c] sm:$0xf]
      %v2886 = vld [vmem:[%s3 + $0x110] sm:$0xf]
      %v2887 = vld [vmem:[%s3 + $0x114] sm:$0xf]
      %v2888 = vld [vmem:[%s3 + $0x118] sm:$0xf]
      %v2889 = vld [vmem:[%s3 + $0x11c] sm:$0xf]
      %v2890 = vld [vmem:[%s3 + $0x120] sm:$0xf]
      %v2891 = vld [vmem:[%s3 + $0x124] sm:$0xf]
      %v2892 = vld [vmem:[%s3 + $0x128] sm:$0xf]
      %v2893 = vld [vmem:[%s3 + $0x12c] sm:$0xf]
      %v2894 = vld [vmem:[%s3 + $0x130] sm:$0xf]
      %v2895 = vld [vmem:[%s3 + $0x134] sm:$0xf]
      %v2896 = vld [vmem:[%s3 + $0x138] sm:$0xf]
      %v2897 = vld [vmem:[%s3 + $0x13c] sm:$0xf]
      %v2898 = vld [vmem:[%s3 + $0x140] sm:$0xf]
      %v2899 = vld [vmem:[%s3 + $0x144] sm:$0xf]
      %v2900 = vld [vmem:[%s3 + $0x148] sm:$0xf]
      %v2901 = vld [vmem:[%s3 + $0x14c] sm:$0xf]
      %v2902 = vld [vmem:[%s3 + $0x150] sm:$0xf]
      %v2903 = vld [vmem:[%s3 + $0x154] sm:$0xf]
      %v2904 = vld [vmem:[%s3 + $0x158] sm:$0xf]
      %v2905 = vld [vmem:[%s3 + $0x15c] sm:$0xf]
      %v2906 = vld [vmem:[%s3 + $0x160] sm:$0xf]
      %v2907 = vld [vmem:[%s3 + $0x164] sm:$0xf]
      %v2908 = vld [vmem:[%s3 + $0x168] sm:$0xf]
      %v2909 = vld [vmem:[%s3 + $0x16c] sm:$0xf]
      %v2910 = vld [vmem:[%s3 + $0x170] sm:$0xf]
      %v2911 = vld [vmem:[%s3 + $0x174] sm:$0xf]
      %v2912 = vld [vmem:[%s3 + $0x178] sm:$0xf]
      %v2913 = vld [vmem:[%s3 + $0x17c] sm:$0xf]
      %v2914 = vld [vmem:[%s3 + $0x180] sm:$0xf]
      %v2915 = vld [vmem:[%s3 + $0x184] sm:$0xf]
      %v2916 = vld [vmem:[%s3 + $0x188] sm:$0xf]
      %v2917 = vld [vmem:[%s3 + $0x18c] sm:$0xf]
      %v2918 = vld [vmem:[%s3 + $0x190] sm:$0xf]
      %v2919 = vld [vmem:[%s3 + $0x194] sm:$0xf]
      %v2920 = vld [vmem:[%s3 + $0x198] sm:$0xf]
      %v2921 = vld [vmem:[%s3 + $0x19c] sm:$0xf]
      %v2922 = vld [vmem:[%s3 + $0x1a0] sm:$0xf]
      %v2923 = vld [vmem:[%s3 + $0x1a4] sm:$0xf]
      %v2924 = vld [vmem:[%s3 + $0x1a8] sm:$0xf]
      %v2925 = vld [vmem:[%s3 + $0x1ac] sm:$0xf]
      %v2926 = vld [vmem:[%s3 + $0x1b0] sm:$0xf]
      %v2927 = vld [vmem:[%s3 + $0x1b4] sm:$0xf]
      %v2928 = vld [vmem:[%s3 + $0x1b8] sm:$0xf]
      %v2929 = vld [vmem:[%s3 + $0x1bc] sm:$0xf]
      %v2930 = vld [vmem:[%s3 + $0x1c0] sm:$0xf]
      %v2931 = vld [vmem:[%s3 + $0x1c4] sm:$0xf]
      %v2932 = vld [vmem:[%s3 + $0x1c8] sm:$0xf]
      %v2933 = vld [vmem:[%s3 + $0x1cc] sm:$0xf]
      %v2934 = vld [vmem:[%s3 + $0x1d0] sm:$0xf]
      %v2935 = vld [vmem:[%s3 + $0x1d4] sm:$0xf]
      %v2936 = vld [vmem:[%s3 + $0x1d8] sm:$0xf]
      %v2937 = vld [vmem:[%s3 + $0x1dc] sm:$0xf]
      %v2938 = vld [vmem:[%s3 + $0x1e0] sm:$0xf]
      %v2939 = vld [vmem:[%s3 + $0x1e4] sm:$0xf]
      %v2940 = vld [vmem:[%s3 + $0x1e8] sm:$0xf]
      %v2941 = vld [vmem:[%s3 + $0x1ec] sm:$0xf]
      %v2942 = vld [vmem:[%s3 + $0x1f0] sm:$0xf]
      %v2943 = vld [vmem:[%s3 + $0x1f4] sm:$0xf]
      %v2944 = vld [vmem:[%s3 + $0x1f8] sm:$0xf]
      %v2945 = vld [vmem:[%s3 + $0x1fc] sm:$0xf]
      %v2946 = vld [vmem:[%s3 + $0x200] sm:$0xf]
      %v2947 = vld [vmem:[%s3 + $0x204] sm:$0xf]
      %v2948 = vld [vmem:[%s3 + $0x208] sm:$0xf]
      %v2949 = vld [vmem:[%s3 + $0x20c] sm:$0xf]
      %v2950 = vld [vmem:[%s3 + $0x210] sm:$0xf]
      %v2951 = vld [vmem:[%s3 + $0x214] sm:$0xf]
      %v2952 = vld [vmem:[%s3 + $0x218] sm:$0xf]
      %v2953 = vld [vmem:[%s3 + $0x21c] sm:$0xf]
      %v2954 = vld [vmem:[%s3 + $0x220] sm:$0xf]
      %v2955 = vld [vmem:[%s3 + $0x224] sm:$0xf]
      %v2956 = vld [vmem:[%s3 + $0x228] sm:$0xf]
      %v2957 = vld [vmem:[%s3 + $0x22c] sm:$0xf]
      %v2958 = vld [vmem:[%s3 + $0x230] sm:$0xf]
      %v2959 = vld [vmem:[%s3 + $0x234] sm:$0xf]
      %v2960 = vld [vmem:[%s3 + $0x238] sm:$0xf]
      %v2961 = vld [vmem:[%s3 + $0x23c] sm:$0xf]
      %v3106 = vunpack.c.l.b16 %v2818
      %v3107 = vunpack.c.l.b16 %v2819
      %v3108 = vunpack.c.l.b16 %v2820
      %v3109 = vunpack.c.l.b16 %v2821
      %v3110 = vunpack.c.l.b16 %v2822
      %v3111 = vunpack.c.l.b16 %v2823
      %v3112 = vunpack.c.l.b16 %v2824
      %v3113 = vunpack.c.l.b16 %v2825
      %v3114 = vunpack.c.l.b16 %v2826
      %v3115 = vunpack.c.l.b16 %v2827
      %v3116 = vunpack.c.l.b16 %v2828
      %v3117 = vunpack.c.l.b16 %v2829
      %v3118 = vunpack.c.l.b16 %v2830
      %v3119 = vunpack.c.l.b16 %v2831
      %v3120 = vunpack.c.l.b16 %v2832
      %v3121 = vunpack.c.l.b16 %v2833
      %v3122 = vunpack.c.l.b16 %v2834
      %v3123 = vunpack.c.l.b16 %v2835
      %v3124 = vunpack.c.l.b16 %v2836
      %v3125 = vunpack.c.l.b16 %v2837
      %v3126 = vunpack.c.l.b16 %v2838
      %v3127 = vunpack.c.l.b16 %v2839
      %v3128 = vunpack.c.l.b16 %v2840
      %v3129 = vunpack.c.l.b16 %v2841
      %v3130 = vunpack.c.l.b16 %v2842
      %v3131 = vunpack.c.l.b16 %v2843
      %v3132 = vunpack.c.l.b16 %v2844
      %v3133 = vunpack.c.l.b16 %v2845
      %v3134 = vunpack.c.l.b16 %v2846
      %v3135 = vunpack.c.l.b16 %v2847
      %v3136 = vunpack.c.l.b16 %v2848
      %v3137 = vunpack.c.l.b16 %v2849
      %v3138 = vunpack.c.l.b16 %v2850
      %v3139 = vunpack.c.l.b16 %v2851
      %v3140 = vunpack.c.l.b16 %v2852
      %v3141 = vunpack.c.l.b16 %v2853
      %v3142 = vunpack.c.l.b16 %v2854
      %v3143 = vunpack.c.l.b16 %v2855
      %v3144 = vunpack.c.l.b16 %v2856
      %v3145 = vunpack.c.l.b16 %v2857
      %v3146 = vunpack.c.l.b16 %v2858
      %v3147 = vunpack.c.l.b16 %v2859
      %v3148 = vunpack.c.l.b16 %v2860
      %v3149 = vunpack.c.l.b16 %v2861
      %v3150 = vunpack.c.l.b16 %v2862
      %v3151 = vunpack.c.l.b16 %v2863
      %v3152 = vunpack.c.l.b16 %v2864
      %v3153 = vunpack.c.l.b16 %v2865
      %v3154 = vunpack.c.l.b16 %v2866
      %v3155 = vunpack.c.l.b16 %v2867
      %v3156 = vunpack.c.l.b16 %v2868
      %v3157 = vunpack.c.l.b16 %v2869
      %v3158 = vunpack.c.l.b16 %v2870
      %v3159 = vunpack.c.l.b16 %v2871
      %v3160 = vunpack.c.l.b16 %v2872
      %v3161 = vunpack.c.l.b16 %v2873
      %v3162 = vunpack.c.l.b16 %v2874
      %v3163 = vunpack.c.l.b16 %v2875
      %v3164 = vunpack.c.l.b16 %v2876
      %v3165 = vunpack.c.l.b16 %v2877
      %v3166 = vunpack.c.l.b16 %v2878
      %v3167 = vunpack.c.l.b16 %v2879
      %v3168 = vunpack.c.l.b16 %v2880
      %v3169 = vunpack.c.l.b16 %v2881
      %v3170 = vunpack.c.l.b16 %v2882
      %v3171 = vunpack.c.l.b16 %v2883
      %v3172 = vunpack.c.l.b16 %v2884
      %v3173 = vunpack.c.l.b16 %v2885
      %v3174 = vunpack.c.l.b16 %v2886
      %v3175 = vunpack.c.l.b16 %v2887
      %v3176 = vunpack.c.l.b16 %v2888
      %v3177 = vunpack.c.l.b16 %v2889
      %v3178 = vunpack.c.l.b16 %v2890
      %v3179 = vunpack.c.l.b16 %v2891
      %v3180 = vunpack.c.l.b16 %v2892
      %v3181 = vunpack.c.l.b16 %v2893
      %v3182 = vunpack.c.l.b16 %v2894
      %v3183 = vunpack.c.l.b16 %v2895
      %v3184 = vunpack.c.l.b16 %v2896
      %v3185 = vunpack.c.l.b16 %v2897
      %v3186 = vunpack.c.l.b16 %v2898
      %v3187 = vunpack.c.l.b16 %v2899
      %v3188 = vunpack.c.l.b16 %v2900
      %v3189 = vunpack.c.l.b16 %v2901
      %v3190 = vunpack.c.l.b16 %v2902
      %v3191 = vunpack.c.l.b16 %v2903
      %v3192 = vunpack.c.l.b16 %v2904
      %v3193 = vunpack.c.l.b16 %v2905
      %v3194 = vunpack.c.l.b16 %v2906
      %v3195 = vunpack.c.l.b16 %v2907
      %v3196 = vunpack.c.l.b16 %v2908
      %v3197 = vunpack.c.l.b16 %v2909
      %v3198 = vunpack.c.l.b16 %v2910
      %v3199 = vunpack.c.l.b16 %v2911
      %v3200 = vunpack.c.l.b16 %v2912
      %v3201 = vunpack.c.l.b16 %v2913
      %v3202 = vunpack.c.l.b16 %v2914
      %v3203 = vunpack.c.l.b16 %v2915
      %v3204 = vunpack.c.l.b16 %v2916
      %v3205 = vunpack.c.l.b16 %v2917
      %v3206 = vunpack.c.l.b16 %v2918
      %v3207 = vunpack.c.l.b16 %v2919
      %v3208 = vunpack.c.l.b16 %v2920
      %v3209 = vunpack.c.l.b16 %v2921
      %v3210 = vunpack.c.l.b16 %v2922
      %v3211 = vunpack.c.l.b16 %v2923
      %v3212 = vunpack.c.l.b16 %v2924
      %v3213 = vunpack.c.l.b16 %v2925
      %v3214 = vunpack.c.l.b16 %v2926
      %v3215 = vunpack.c.l.b16 %v2927
      %v3216 = vunpack.c.l.b16 %v2928
      %v3217 = vunpack.c.l.b16 %v2929
      %v3218 = vunpack.c.l.b16 %v2930
      %v3219 = vunpack.c.l.b16 %v2931
      %v3220 = vunpack.c.l.b16 %v2932
      %v3221 = vunpack.c.l.b16 %v2933
      %v3222 = vunpack.c.l.b16 %v2934
      %v3223 = vunpack.c.l.b16 %v2935
      %v3224 = vunpack.c.l.b16 %v2936
      %v3225 = vunpack.c.l.b16 %v2937
      %v3226 = vunpack.c.l.b16 %v2938
      %v3227 = vunpack.c.l.b16 %v2939
      %v3228 = vunpack.c.l.b16 %v2940
      %v3229 = vunpack.c.l.b16 %v2941
      %v3230 = vunpack.c.l.b16 %v2942
      %v3231 = vunpack.c.l.b16 %v2943
      %v3232 = vunpack.c.l.b16 %v2944
      %v3233 = vunpack.c.l.b16 %v2945
      %v3234 = vunpack.c.l.b16 %v2946
      %v3235 = vunpack.c.l.b16 %v2947
      %v3236 = vunpack.c.l.b16 %v2948
      %v3237 = vunpack.c.l.b16 %v2949
      %v3238 = vunpack.c.l.b16 %v2950
      %v3239 = vunpack.c.l.b16 %v2951
      %v3240 = vunpack.c.l.b16 %v2952
      %v3241 = vunpack.c.l.b16 %v2953
      %v3242 = vunpack.c.l.b16 %v2954
      %v3243 = vunpack.c.l.b16 %v2955
      %v3244 = vunpack.c.l.b16 %v2956
      %v3245 = vunpack.c.l.b16 %v2957
      %v3246 = vunpack.c.l.b16 %v2958
      %v3247 = vunpack.c.l.b16 %v2959
      %v3248 = vunpack.c.l.b16 %v2960
      %v3249 = vunpack.c.l.b16 %v2961
      %v3250 = vpack.c.b16 %v3107, %v3106
      %v3251 = vpack.c.b16 %v3109, %v3108
      %v3252 = vpack.c.b16 %v3111, %v3110
      %v3253 = vpack.c.b16 %v3113, %v3112
      %v3254 = vpack.c.b16 %v3115, %v3114
      %v3255 = vpack.c.b16 %v3117, %v3116
      %v3256 = vpack.c.b16 %v3119, %v3118
      %v3257 = vpack.c.b16 %v3121, %v3120
      %v3258 = vpack.c.b16 %v3123, %v3122
      %v3259 = vpack.c.b16 %v3125, %v3124
      %v3260 = vpack.c.b16 %v3127, %v3126
      %v3261 = vpack.c.b16 %v3129, %v3128
      %v3262 = vpack.c.b16 %v3131, %v3130
      %v3263 = vpack.c.b16 %v3133, %v3132
      %v3264 = vpack.c.b16 %v3135, %v3134
      %v3265 = vpack.c.b16 %v3137, %v3136
      %v3266 = vpack.c.b16 %v3139, %v3138
      %v3267 = vpack.c.b16 %v3141, %v3140
      %v3268 = vpack.c.b16 %v3143, %v3142
      %v3269 = vpack.c.b16 %v3145, %v3144
      %v3270 = vpack.c.b16 %v3147, %v3146
      %v3271 = vpack.c.b16 %v3149, %v3148
      %v3272 = vpack.c.b16 %v3151, %v3150
      %v3273 = vpack.c.b16 %v3153, %v3152
      %v3274 = vpack.c.b16 %v3155, %v3154
      %v3275 = vpack.c.b16 %v3157, %v3156
      %v3276 = vpack.c.b16 %v3159, %v3158
      %v3277 = vpack.c.b16 %v3161, %v3160
      %v3278 = vpack.c.b16 %v3163, %v3162
      %v3279 = vpack.c.b16 %v3165, %v3164
      %v3280 = vpack.c.b16 %v3167, %v3166
      %v3281 = vpack.c.b16 %v3169, %v3168
      %v3282 = vpack.c.b16 %v3171, %v3170
      %v3283 = vpack.c.b16 %v3173, %v3172
      %v3284 = vpack.c.b16 %v3175, %v3174
      %v3285 = vpack.c.b16 %v3177, %v3176
      %v3286 = vpack.c.b16 %v3179, %v3178
      %v3287 = vpack.c.b16 %v3181, %v3180
      %v3288 = vpack.c.b16 %v3183, %v3182
      %v3289 = vpack.c.b16 %v3185, %v3184
      %v3290 = vpack.c.b16 %v3187, %v3186
      %v3291 = vpack.c.b16 %v3189, %v3188
      %v3292 = vpack.c.b16 %v3191, %v3190
      %v3293 = vpack.c.b16 %v3193, %v3192
      %v3294 = vpack.c.b16 %v3195, %v3194
      %v3295 = vpack.c.b16 %v3197, %v3196
      %v3296 = vpack.c.b16 %v3199, %v3198
      %v3297 = vpack.c.b16 %v3201, %v3200
      %v3298 = vpack.c.b16 %v3203, %v3202
      %v3299 = vpack.c.b16 %v3205, %v3204
      %v3300 = vpack.c.b16 %v3207, %v3206
      %v3301 = vpack.c.b16 %v3209, %v3208
      %v3302 = vpack.c.b16 %v3211, %v3210
      %v3303 = vpack.c.b16 %v3213, %v3212
      %v3304 = vpack.c.b16 %v3215, %v3214
      %v3305 = vpack.c.b16 %v3217, %v3216
      %v3306 = vpack.c.b16 %v3219, %v3218
      %v3307 = vpack.c.b16 %v3221, %v3220
      %v3308 = vpack.c.b16 %v3223, %v3222
      %v3309 = vpack.c.b16 %v3225, %v3224
      %v3310 = vpack.c.b16 %v3227, %v3226
      %v3311 = vpack.c.b16 %v3229, %v3228
      %v3312 = vpack.c.b16 %v3231, %v3230
      %v3313 = vpack.c.b16 %v3233, %v3232
      %v3314 = vpack.c.b16 %v3235, %v3234
      %v3315 = vpack.c.b16 %v3237, %v3236
      %v3316 = vpack.c.b16 %v3239, %v3238
      %v3317 = vpack.c.b16 %v3241, %v3240
      %v3318 = vpack.c.b16 %v3243, %v3242
      %v3319 = vpack.c.b16 %v3245, %v3244
      %v3320 = vpack.c.b16 %v3247, %v3246
      %v3321 = vpack.c.b16 %v3249, %v3248
      %3394 = vmatprep.subr.bf16.mxu0 0
      %3395 = vmatpush1.bf16.msra.mxu0 %v3257
      %3396 = vmatprep.subr.bf16.mxu0 0
      %3397 = vmatpush1.bf16.msra.mxu0 %v3256
      %3398 = vmatprep.subr.bf16.mxu0 0
      %3399 = vmatpush1.bf16.msra.mxu0 %v3255
      %3400 = vmatprep.subr.bf16.mxu0 0
      %3401 = vmatpush1.bf16.msra.mxu0 %v3254
      %3402 = vmatprep.subr.bf16.mxu0 0
      %3403 = vmatpush1.bf16.msra.mxu0 %v3253
      %3404 = vmatprep.subr.bf16.mxu0 0
      %3405 = vmatpush1.bf16.msra.mxu0 %v3252
      %3406 = vmatprep.subr.bf16.mxu0 0
      %3407 = vmatpush1.bf16.msra.mxu0 %v3251
      %3408 = vmatprep.subr.bf16.mxu0 0
      %3409 = vmatpush1.bf16.msra.mxu0 %v3250
      %3410 = vmatprep.subr.bf16.mxu0 0
      %3411 = vmatpush2.bf16.msra.mxu0 %v3265
      %3412 = vmatprep.subr.bf16.mxu0 0
      %3413 = vmatpush2.bf16.msra.mxu0 %v3264
      %3414 = vmatprep.subr.bf16.mxu0 0
      %3415 = vmatpush2.bf16.msra.mxu0 %v3263
      %3416 = vmatprep.subr.bf16.mxu0 0
      %3417 = vmatpush2.bf16.msra.mxu0 %v3262
      %3418 = vmatprep.subr.bf16.mxu0 0
      %3419 = vmatpush2.bf16.msra.mxu0 %v3261
      %3420 = vmatprep.subr.bf16.mxu0 0
      %3421 = vmatpush2.bf16.msra.mxu0 %v3260
      %3422 = vmatprep.subr.bf16.mxu0 0
      %3423 = vmatpush2.bf16.msra.mxu0 %v3259
      %3424 = vmatprep.subr.bf16.mxu0 0
      %3425 = vmatpush2.bf16.msra.mxu0 %v3258
      %3426 = vmatprep.mubr.bf16.mxu0 %v2810
      %3427 = vmatmul.mubr.bf16.gmra.mxu0 %v2809
      %v3428 = vpop.f32.mrf.mxu0
      %v3429 = vadd.f32 0.0, %v3428
      %v3430 = vpop.f32.mrf.mxu0
      %v3431 = vpop.f32.mrf.mxu0
      %v3432 = vpop.f32.mrf.mxu0
      %3433 = vdwg.mxu0
      %3434 = vmatprep.subr.bf16.mxu0 0
      %3435 = vmatpush1.bf16.msra.mxu0 %v3273
      %3436 = vmatprep.subr.bf16.mxu0 0
      %3437 = vmatpush1.bf16.msra.mxu0 %v3272
      %3438 = vmatprep.subr.bf16.mxu0 0
      %3439 = vmatpush1.bf16.msra.mxu0 %v3271
      %3440 = vmatprep.subr.bf16.mxu0 0
      %3441 = vmatpush1.bf16.msra.mxu0 %v3270
      %3442 = vmatprep.subr.bf16.mxu0 0
      %3443 = vmatpush1.bf16.msra.mxu0 %v3269
      %3444 = vmatprep.subr.bf16.mxu0 0
      %3445 = vmatpush1.bf16.msra.mxu0 %v3268
      %3446 = vmatprep.subr.bf16.mxu0 0
      %3447 = vmatpush1.bf16.msra.mxu0 %v3267
      %3448 = vmatprep.subr.bf16.mxu0 0
      %3449 = vmatpush1.bf16.msra.mxu0 %v3266
      %3450 = vmatprep.subr.bf16.mxu0 0
      %3451 = vmatpush2.bf16.msra.mxu0 %v3281
      %3452 = vmatprep.subr.bf16.mxu0 0
      %3453 = vmatpush2.bf16.msra.mxu0 %v3280
      %3454 = vmatprep.subr.bf16.mxu0 0
      %3455 = vmatpush2.bf16.msra.mxu0 %v3279
      %3456 = vmatprep.subr.bf16.mxu0 0
      %3457 = vmatpush2.bf16.msra.mxu0 %v3278
      %3458 = vmatprep.subr.bf16.mxu0 0
      %3459 = vmatpush2.bf16.msra.mxu0 %v3277
      %3460 = vmatprep.subr.bf16.mxu0 0
      %3461 = vmatpush2.bf16.msra.mxu0 %v3276
      %3462 = vmatprep.subr.bf16.mxu0 0
      %3463 = vmatpush2.bf16.msra.mxu0 %v3275
      %3464 = vmatprep.subr.bf16.mxu0 0
      %3465 = vmatpush2.bf16.msra.mxu0 %v3274
      %3466 = vmatprep.mubr.bf16.mxu0 %v2812
      %3467 = vmatmul.mubr.bf16.gmra.mxu0 %v2811
      %v3468 = vpop.f32.mrf.mxu0
      %v3469 = vadd.f32 %v3429, %v3468
      %v3470 = vpop.f32.mrf.mxu0
      %v3471 = vpop.f32.mrf.mxu0
      %v3472 = vpop.f32.mrf.mxu0
      %3473 = vdwg.mxu0
      %3474 = vmatprep.subr.bf16.mxu0 0
      %3475 = vmatpush1.bf16.msra.mxu0 %v3289
      %3476 = vmatprep.subr.bf16.mxu0 0
      %3477 = vmatpush1.bf16.msra.mxu0 %v3288
      %3478 = vmatprep.subr.bf16.mxu0 0
      %3479 = vmatpush1.bf16.msra.mxu0 %v3287
      %3480 = vmatprep.subr.bf16.mxu0 0
      %3481 = vmatpush1.bf16.msra.mxu0 %v3286
      %3482 = vmatprep.subr.bf16.mxu0 0
      %3483 = vmatpush1.bf16.msra.mxu0 %v3285
      %3484 = vmatprep.subr.bf16.mxu0 0
      %3485 = vmatpush1.bf16.msra.mxu0 %v3284
      %3486 = vmatprep.subr.bf16.mxu0 0
      %3487 = vmatpush1.bf16.msra.mxu0 %v3283
      %3488 = vmatprep.subr.bf16.mxu0 0
      %3489 = vmatpush1.bf16.msra.mxu0 %v3282
      %3490 = vmatprep.subr.bf16.mxu0 0
      %3491 = vmatpush2.bf16.msra.mxu0 %v3297
      %3492 = vmatprep.subr.bf16.mxu0 0
      %3493 = vmatpush2.bf16.msra.mxu0 %v3296
      %3494 = vmatprep.subr.bf16.mxu0 0
      %3495 = vmatpush2.bf16.msra.mxu0 %v3295
      %3496 = vmatprep.subr.bf16.mxu0 0
      %3497 = vmatpush2.bf16.msra.mxu0 %v3294
      %3498 = vmatprep.subr.bf16.mxu0 0
      %3499 = vmatpush2.bf16.msra.mxu0 %v3293
      %3500 = vmatprep.subr.bf16.mxu0 0
      %3501 = vmatpush2.bf16.msra.mxu0 %v3292
      %3502 = vmatprep.subr.bf16.mxu0 0
      %3503 = vmatpush2.bf16.msra.mxu0 %v3291
      %3504 = vmatprep.subr.bf16.mxu0 0
      %3505 = vmatpush2.bf16.msra.mxu0 %v3290
      %3506 = vmatprep.mubr.bf16.mxu0 %v2814
      %3507 = vmatmul.mubr.bf16.gmra.mxu0 %v2813
      %v3508 = vpop.f32.mrf.mxu0
      %v3509 = vadd.f32 %v3469, %v3508
      %v3510 = vpop.f32.mrf.mxu0
      %v3511 = vpop.f32.mrf.mxu0
      %v3512 = vpop.f32.mrf.mxu0
      %3513 = vdwg.mxu0
      %3514 = vmatprep.subr.bf16.mxu0 0
      %3515 = vmatpush1.bf16.msra.mxu0 %v3305
      %3516 = vmatprep.subr.bf16.mxu0 0
      %3517 = vmatpush1.bf16.msra.mxu0 %v3304
      %3518 = vmatprep.subr.bf16.mxu0 0
      %3519 = vmatpush1.bf16.msra.mxu0 %v3303
      %3520 = vmatprep.subr.bf16.mxu0 0
      %3521 = vmatpush1.bf16.msra.mxu0 %v3302
      %3522 = vmatprep.subr.bf16.mxu0 0
      %3523 = vmatpush1.bf16.msra.mxu0 %v3301
      %3524 = vmatprep.subr.bf16.mxu0 0
      %3525 = vmatpush1.bf16.msra.mxu0 %v3300
      %3526 = vmatprep.subr.bf16.mxu0 0
      %3527 = vmatpush1.bf16.msra.mxu0 %v3299
      %3528 = vmatprep.subr.bf16.mxu0 0
      %3529 = vmatpush1.bf16.msra.mxu0 %v3298
      %3530 = vmatprep.subr.bf16.mxu0 0
      %3531 = vmatpush2.bf16.msra.mxu0 %v3313
      %3532 = vmatprep.subr.bf16.mxu0 0
      %3533 = vmatpush2.bf16.msra.mxu0 %v3312
      %3534 = vmatprep.subr.bf16.mxu0 0
      %3535 = vmatpush2.bf16.msra.mxu0 %v3311
      %3536 = vmatprep.subr.bf16.mxu0 0
      %3537 = vmatpush2.bf16.msra.mxu0 %v3310
      %3538 = vmatprep.subr.bf16.mxu0 0
      %3539 = vmatpush2.bf16.msra.mxu0 %v3309
      %3540 = vmatprep.subr.bf16.mxu0 0
      %3541 = vmatpush2.bf16.msra.mxu0 %v3308
      %3542 = vmatprep.subr.bf16.mxu0 0
      %3543 = vmatpush2.bf16.msra.mxu0 %v3307
      %3544 = vmatprep.subr.bf16.mxu0 0
      %3545 = vmatpush2.bf16.msra.mxu0 %v3306
      %3546 = vmatprep.mubr.bf16.mxu0 %v2816
      %3547 = vmatmul.mubr.bf16.gmra.mxu0 %v2815
      %v3548 = vpop.f32.mrf.mxu0
      %v3549 = vadd.f32 %v3509, %v3548
      %v3550 = vpop.f32.mrf.mxu0
      %v3551 = vpop.f32.mrf.mxu0
      %v3552 = vpop.f32.mrf.mxu0
      %3553 = vdwg.mxu0
      %3554 = vmatprep.subr.bf16.mxu0 0
      %3555 = vmatpush1.bf16.msra.mxu0 %v3321
      %3556 = vmatprep.subr.bf16.mxu0 0
      %3557 = vmatpush1.bf16.msra.mxu0 %v3320
      %3558 = vmatprep.subr.bf16.mxu0 0
      %3559 = vmatpush1.bf16.msra.mxu0 %v3319
      %3560 = vmatprep.subr.bf16.mxu0 0
      %3561 = vmatpush1.bf16.msra.mxu0 %v3318
      %3562 = vmatprep.subr.bf16.mxu0 0
      %3563 = vmatpush1.bf16.msra.mxu0 %v3317
      %3564 = vmatprep.subr.bf16.mxu0 0
      %3565 = vmatpush1.bf16.msra.mxu0 %v3316
      %3566 = vmatprep.subr.bf16.mxu0 0
      %3567 = vmatpush1.bf16.msra.mxu0 %v3315
      %3568 = vmatprep.subr.bf16.mxu0 0
      %3569 = vmatpush1.bf16.msra.mxu0 %v3314
      %3570 = vmatprep.subr.bf16.mxu0 0
      %3571 = vmatpush2.bf16.msra.mxu0 0
      %3572 = vmatprep.subr.bf16.mxu0 0
      %3573 = vmatpush2.bf16.msra.mxu0 0
      %3574 = vmatprep.subr.bf16.mxu0 0
      %3575 = vmatpush2.bf16.msra.mxu0 0
      %3576 = vmatprep.subr.bf16.mxu0 0
      %3577 = vmatpush2.bf16.msra.mxu0 0
      %3578 = vmatprep.subr.bf16.mxu0 0
      %3579 = vmatpush2.bf16.msra.mxu0 0
      %3580 = vmatprep.subr.bf16.mxu0 0
      %3581 = vmatpush2.bf16.msra.mxu0 0
      %3582 = vmatprep.subr.bf16.mxu0 0
      %3583 = vmatpush2.bf16.msra.mxu0 0
      %3584 = vmatprep.subr.bf16.mxu0 0
      %3585 = vmatpush2.bf16.msra.mxu0 0
      %3586 = vmatprep.mubr.bf16.mxu0 0
      %3587 = vmatmul.mubr.bf16.gmra.mxu0 %v2817
      %v3588 = vpop.f32.mrf.mxu0
      %v3589 = vadd.f32 %v3549, %v3588
      %v3590 = vpop.f32.mrf.mxu0
      %v3591 = vpop.f32.mrf.mxu0
      %v3592 = vpop.f32.mrf.mxu0
      %3593 = vdwg.mxu0
      %3594 = vst [vmem:[%s195] sm:$0xff] %v3589
      %p3595 = scmp.lt.s32.totalorder %s15, 1
      %s3596 = scalar_select %p3595, %s15, 1
      %s3597 = smul.addr %s3596, 8
      %s3598 = scalar_lea.vmem %s4, %s3597
      // Predicated region
      $region37: #{simple_conv_kan_forward.9} parent=35 // pred_check
        %p3599 = pneg %p122
      $region38: #{simple_conv_kan_forward.9} parent=35 // pred_check_branch
        %3601 = sbr.rel (%p3599) target = $region40
      $region39: #{simple_conv_kan_forward.9} parent=35 // pred_region
        _
      $region40: #{simple_conv_kan_forward.9} parent=35 // pred_fallthru
        _
    $region36: #{simple_conv_kan_forward.9} parent=5 // pred_fallthru
      _
    %p3602 = scmp.le.s32.totalorder 2, %s10
    // Predicated region
    $region41: #{simple_conv_kan_forward.9} parent=5 // pred_check
      %p3603 = pneg %p3602
    $region42: #{simple_conv_kan_forward.9} parent=5 // pred_check_branch
      %3605 = sbr.rel (%p3603) target = $region44
    $region43: #{simple_conv_kan_forward.9} parent=5 // pred_region
      %s3606 = ssub.s32 %s10, 2
      // Predicated region
      $region45: #{simple_conv_kan_forward.9} parent=43 // pred_check
        %p3607 = pneg %p128
      $region46: #{simple_conv_kan_forward.9} parent=43 // pred_check_branch
        %3609 = sbr.rel (%p3607) target = $region48
      $region47: #{simple_conv_kan_forward.9} parent=43 // pred_region
        %p3610 = scmp.lt.s32.totalorder %s16, 1
        %s3611 = scalar_select %p3610, %s16, 1
        %s3612 = smul.addr %s3611, 8
        %s3613 = scalar_lea.vmem %s4, %s3612
      $region48: #{simple_conv_kan_forward.9} parent=43 // pred_fallthru
        _
    $region44: #{simple_conv_kan_forward.9} parent=5 // pred_fallthru
      _
  $region6: #{simple_conv_kan_forward.9} parent=0 // loop_footer
    %s14 = sadd.s32 1, %s10
  $region7: #{simple_conv_kan_forward.9} parent=0 // loop_footer_branch
    %9 = sbr.rel target = $region3
  $region8: #{simple_conv_kan_forward.9} parent=0 // loop_exit
    _

</llo_original>
